<compile_context>
chip_gen: v6e
topology: v6e:2x2x1
jax: 0.10.0
libtpu: 0.0.40
codegen_flags: <defaults>
</compile_context>

<pallas_src>
import functools
from math import floor

import jax
import jax.numpy as jnp
from jax.experimental import pallas as pl
from jax.experimental.pallas import tpu as pltpu

_LANE = 128
_VMEM_LIMIT = 48 * 1024 * 1024     # scoped VMEM limit: safe on v5e/v6e and v7x (64 MiB)
_VMEM_BUDGET = 36 * 1024 * 1024    # planning budget for double-buffered tiles
_BN_EPS = 1e-5


def _round_up(v, m):
    return (v + m - 1) // m * m


# ----------------------------- tile planning ---------------------------------

def _pick_tm(m, cap=1024):
    """Largest power-of-two M tile (<=cap) with <= ~12.5% padding waste."""
    m8 = _round_up(m, 8)
    tm = 8
    for cand in (16, 32, 64, 128, 256, 512, 1024):
        if cand > cap:
            break
        if _round_up(m, cand) - m8 <= m8 // 8:
            tm = cand
    return tm


def _plan_matmul(m, kdim, out_bytes, with_stats):
    """Returns (tm, tk, kp, gk).  Prefers a single full-K pass (gk == 1)."""
    kp = _round_up(kdim, _LANE)
    tm = _pick_tm(m)

    def est(tm_, tk_, multi):
        a = 2 * tm_ * tk_ * 2                  # bf16 LHS tile, double buffered
        w = 2 * tk_ * _LANE * 2                # bf16 RHS tile, double buffered
        o = 2 * tm_ * _LANE * out_bytes        # output tile
        acc = tm_ * _LANE * 4 if multi else 0  # f32 accumulator scratch
        st = 2 * 8 * _LANE * 4 if with_stats else 0
        bias = 2 * _LANE * 4
        return a + w + o + acc + st + bias

    t = tm
    while True:
        if est(t, kp, False) <= _VMEM_BUDGET:
            return t, kp, kp, 1
        if t <= 8:
            break
        t = max(8, t // 2)

    # Fallback: split K (f32 accumulator, "arbitrary" k axis).
    gk = 2
    while True:
        tk = _round_up(-(-kp // gk), _LANE)
        if est(tm, tk, True) <= _VMEM_BUDGET or tk == _LANE:
            return tm, tk, tk * gk, gk
        gk += 1


# ------------------------- tiled matmul (+BN stats) --------------------------

def _write_stats(stat_ref, y):
    tn = y.shape[1]
    s = jnp.sum(y, axis=0, keepdims=True)
    sq = jnp.sum(y * y, axis=0, keepdims=True)
    ri = jax.lax.broadcasted_iota(jnp.int32, (8, tn), 0)
    stat_ref[...] = jnp.where(
        ri == 0, jnp.broadcast_to(s, (8, tn)),
        jnp.where(ri == 1, jnp.broadcast_to(sq, (8, tn)), 0.0))


def _mm_kernel_single(x_ref, w_ref, b_ref, *out_refs, relu, m_valid, tm,
                      with_stats, mask_rows):
    """Single full-K pass: dot + bias + ReLU (+ row mask, + BN stats)."""
    if with_stats:
        o_ref, stat_ref = out_refs
    else:
        (o_ref,) = out_refs
    i = pl.program_id(0)                       # top level (never inside pl.when)
    y = jnp.dot(x_ref[...], w_ref[...], preferred_element_type=jnp.float32)
    y = y + b_ref[...]
    if relu:
        y = jnp.maximum(y, 0.0)
    if mask_rows:
        rows = jax.lax.broadcasted_iota(jnp.int32, y.shape, 0) + i * tm
        y = jnp.where(rows < m_valid, y, 0.0)
    o_ref[...] = y.astype(o_ref.dtype)
    if with_stats:
        _write_stats(stat_ref, y)


def _mm_kernel_multi(x_ref, w_ref, b_ref, *refs, relu, m_valid, tm,
                     with_stats, mask_rows):
    """K-split pass with f32 VMEM accumulator (only used when full-K won't fit)."""
    if with_stats:
        o_ref, stat_ref, acc_ref = refs
    else:
        o_ref, acc_ref = refs
    # All grid reads hoisted to the top of the body (interpret-mode safe).
    i = pl.program_id(0)
    k = pl.program_id(2)
    nk = pl.num_programs(2)

    @pl.when(k == 0)
    def _():
        acc_ref[...] = jnp.zeros_like(acc_ref)

    acc_ref[...] += jnp.dot(x_ref[...], w_ref[...],
                            preferred_element_type=jnp.float32)

    @pl.when(k == nk - 1)
    def _():
        y = acc_ref[...] + b_ref[...]
        if relu:
            y = jnp.maximum(y, 0.0)
        if mask_rows:
            rows = jax.lax.broadcasted_iota(jnp.int32, y.shape, 0) + i * tm
            y = jnp.where(rows < m_valid, y, 0.0)
        o_ref[...] = y.astype(o_ref.dtype)
        if with_stats:
            _write_stats(stat_ref, y)


def matmul_bias_act(a, w, b, *, relu, with_stats, out_dtype=jnp.bfloat16):
    """(relu)(a @ w + b) with optional fused per-column sum / sum-of-squares.

    a:(M,K), w:(K,Nout), b:(Nout,).  Returns y (Mp, Np) in `out_dtype` (padded
    rows/cols are zero) and, when with_stats, f32 (col_sum, col_sumsq) of length Np.
    """
    m, kdim = a.shape
    nout = w.shape[1]
    np_ = _round_up(nout, _LANE)
    out_bytes = jnp.dtype(out_dtype).itemsize
    tm, tk, kp, gk = _plan_matmul(m, kdim, out_bytes, with_stats)
    mp = _round_up(m, tm)
    gm, gn = mp // tm, np_ // _LANE
    mask_rows = mp != m

    a_p = jnp.pad(a.astype(jnp.bfloat16), ((0, mp - m), (0, kp - kdim)))
    w_p = jnp.pad(w.astype(jnp.bfloat16), ((0, kp - kdim), (0, np_ - nout)))
    b_p = jnp.pad(b.astype(jnp.float32), (0, np_ - nout)).reshape(1, np_)

    out_shape = [jax.ShapeDtypeStruct((mp, np_), out_dtype)]

    if gk == 1:
        grid = (gm, gn)
        in_specs = [pl.BlockSpec((tm, tk), lambda i, j: (i, 0)),
                    pl.BlockSpec((tk, _LANE), lambda i, j: (0, j)),
                    pl.BlockSpec((1, _LANE), lambda i, j: (0, j))]
        out_specs = [pl.BlockSpec((tm, _LANE), lambda i, j: (i, j))]
        if with_stats:
            out_shape.append(jax.ShapeDtypeStruct((8 * gm, np_), jnp.float32))
            out_specs.append(pl.BlockSpec((8, _LANE), lambda i, j: (i, j)))
        kern = functools.partial(_mm_kernel_single, relu=relu, m_valid=m, tm=tm,
                                 with_stats=with_stats, mask_rows=mask_rows)
        scratch = []
        sem = ("parallel", "parallel")
    else:
        grid = (gm, gn, gk)
        in_specs = [pl.BlockSpec((tm, tk), lambda i, j, k: (i, k)),
                    pl.BlockSpec((tk, _LANE), lambda i, j, k: (k, j)),
                    pl.BlockSpec((1, _LANE), lambda i, j, k: (0, j))]
        out_specs = [pl.BlockSpec((tm, _LANE), lambda i, j, k: (i, j))]
        if with_stats:
            out_shape.append(jax.ShapeDtypeStruct((8 * gm, np_), jnp.float32))
            out_specs.append(pl.BlockSpec((8, _LANE), lambda i, j, k: (i, j)))
        kern = functools.partial(_mm_kernel_multi, relu=relu, m_valid=m, tm=tm,
                                 with_stats=with_stats, mask_rows=mask_rows)
        scratch = [pltpu.VMEM((tm, _LANE), jnp.float32)]
        sem = ("parallel", "parallel", "arbitrary")

    res = pl.pallas_call(
        kern,
        out_shape=tuple(out_shape),
        grid_spec=pltpu.PrefetchScalarGridSpec(
            num_scalar_prefetch=0,
            grid=grid,
            in_specs=in_specs,
            out_specs=tuple(out_specs),
            scratch_shapes=scratch),
        compiler_params=pltpu.CompilerParams(
            dimension_semantics=sem,
            vmem_limit_bytes=_VMEM_LIMIT),
    )(a_p, w_p, b_p)

    if with_stats:
        y, stats = res
        stats = stats.reshape(gm, 8, np_)
        return y, stats[:, 0, :].sum(axis=0), stats[:, 1, :].sum(axis=0)
    return res[0]


# -------------------- BatchNorm (training-mode batch stats) ------------------

def _bn_scale_shift(col_sum, col_sumsq, count, gamma, beta):
    # Tiny per-channel math (length <= a few hundred) -> plain JAX glue.
    np_ = col_sum.shape[0]
    g = jnp.pad(gamma.astype(jnp.float32), (0, np_ - gamma.shape[0]))
    bt = jnp.pad(beta.astype(jnp.float32), (0, np_ - beta.shape[0]))
    mean = col_sum / count
    var = jnp.maximum(col_sumsq / count - mean * mean, 0.0)   # biased (training)
    scale = g * jax.lax.rsqrt(var + _BN_EPS)
    shift = bt - mean * scale
    return scale.reshape(1, np_), shift.reshape(1, np_)


def _elem_tile(mp):
    for cand in (1024, 512, 256, 128, 64, 32, 16, 8):
        if mp % cand == 0:
            return cand
    return mp


def _scale_shift_kernel(x_ref, sc_ref, sh_ref, o_ref):
    o_ref[...] = (x_ref[...].astype(jnp.float32) * sc_ref[...]
                  + sh_ref[...]).astype(o_ref.dtype)


def bn_apply(y, scale, shift, out_dtype=jnp.float32):
    """Tiled lane-dense normalise pass (used only for BatchNorm1d)."""
    mp, np_ = y.shape
    tm = _elem_tile(mp)
    return pl.pallas_call(
        _scale_shift_kernel,
        out_shape=jax.ShapeDtypeStruct((mp, np_), out_dtype),
        grid_spec=pltpu.PrefetchScalarGridSpec(
            num_scalar_prefetch=0,
            grid=(mp // tm,),
            in_specs=[pl.BlockSpec((tm, np_), lambda i: (i, 0)),
                      pl.BlockSpec((1, np_), lambda i: (0, 0)),
                      pl.BlockSpec((1, np_), lambda i: (0, 0))],
            out_specs=pl.BlockSpec((tm, np_), lambda i: (i, 0))),
        compiler_params=pltpu.CompilerParams(
            dimension_semantics=("parallel",),
            vmem_limit_bytes=_VMEM_LIMIT),
    )(y, scale, shift)


# ------------- fused: BN(conv1) + BN(res conv) + residual add ----------------

def _res_bn_add_kernel(yr_ref, y1_ref, scr_ref, shr_ref, sc1_ref, sh1_ref, o_ref):
    r = yr_ref[...].astype(jnp.float32) * scr_ref[...] + shr_ref[...]
    h = y1_ref[...].astype(jnp.float32) * sc1_ref[...] + sh1_ref[...]
    o_ref[...] = (h + r).astype(o_ref.dtype)


def res_bn_add(yr, y1, scr, shr, sc1, sh1, out_dtype=jnp.bfloat16):
    """s = BN_r(yr) + BN_1(y1) in one pass (residual add + both BatchNorms)."""
    assert yr.shape == y1.shape, (yr.shape, y1.shape)
    mp, np_ = yr.shape
    tm = _elem_tile(mp)
    xspec = pl.BlockSpec((tm, np_), lambda i: (i, 0))
    vspec = pl.BlockSpec((1, np_), lambda i: (0, 0))
    return pl.pallas_call(
        _res_bn_add_kernel,
        out_shape=jax.ShapeDtypeStruct((mp, np_), out_dtype),
        grid_spec=pltpu.PrefetchScalarGridSpec(
            num_scalar_prefetch=0,
            grid=(mp // tm,),
            in_specs=[xspec, xspec, vspec, vspec, vspec, vspec],
            out_specs=xspec),
        compiler_params=pltpu.CompilerParams(
            dimension_semantics=("parallel",),
            vmem_limit_bytes=_VMEM_LIMIT),
    )(yr, y1, scr, shr, sc1, sh1)


# ---------------------- BatchNorm + MaxPool3d(2) fused -----------------------

def _bn_maxpool_kernel(x_ref, sc_ref, sh_ref, o_ref, *, cp):
    sc = sc_ref[...]                             # (1, 2*cp) f32
    sh = sh_ref[...]
    m = None
    for dd in range(2):                          # depth pair
        for dh in range(2):                      # height pair
            v = x_ref[0, dd, :, dh].astype(jnp.float32) * sc + sh   # (Ho, Wo, 2cp)
            m = v if m is None else jnp.maximum(m, v)
    # width pair lives in the lane axis (two 128-wide halves)
    o_ref[0, 0] = jnp.maximum(m[..., :cp], m[..., cp:]).astype(o_ref.dtype)


def bn_maxpool(x6, scale2, shift2, cp, out_dtype=jnp.bfloat16):
    """x6: (N, 2*Do, Ho, 2, Wo, 2*cp); returns (N, Do, Ho, Wo, cp)."""
    n, d2e, ho, _, wo, c2 = x6.shape
    do = d2e // 2
    return pl.pallas_call(
        functools.partial(_bn_maxpool_kernel, cp=cp),
        out_shape=jax.ShapeDtypeStruct((n, do, ho, wo, cp), out_dtype),
        grid_spec=pltpu.PrefetchScalarGridSpec(
            num_scalar_prefetch=0,
            grid=(n, do),
            in_specs=[
                pl.BlockSpec((1, 2, ho, 2, wo, c2),
                             lambda b, d: (b, d, 0, 0, 0, 0)),
                pl.BlockSpec((1, c2), lambda b, d: (0, 0)),
                pl.BlockSpec((1, c2), lambda b, d: (0, 0)),
            ],
            out_specs=pl.BlockSpec((1, 1, ho, wo, cp),
                                   lambda b, d: (b, d, 0, 0, 0))),
        compiler_params=pltpu.CompilerParams(
            dimension_semantics=("parallel", "parallel"),
            vmem_limit_bytes=_VMEM_LIMIT),
    )(x6, scale2, shift2)


# --------------------------------- im2col ------------------------------------

def _im2col_3d(x, cin, k, stride, pad):
    """x: (N, D, H, W, C>=cin) channels-last, bf16.

    Returns patches (N*Do*Ho*Wo, k^3*cin) in tap-major / Cin-minor order.
    """
    n, d, h, w, _ = x.shape
    x = x[..., :cin]
    xp = jnp.pad(x, ((0, 0), (pad, pad), (pad, pad), (pad, pad), (0, 0)))
    do = (d + 2 * pad - k) // stride + 1
    ho = (h + 2 * pad - k) // stride + 1
    wo = (w + 2 * pad - k) // stride + 1
    cols = []
    for kd in range(k):
        for kh in range(k):
            for kw in range(k):
                cols.append(xp[:, kd:kd + stride * (do - 1) + 1:stride,
                                  kh:kh + stride * (ho - 1) + 1:stride,
                                  kw:kw + stride * (wo - 1) + 1:stride, :])
    patches = jnp.stack(cols, axis=4)            # (N, Do, Ho, Wo, k^3, cin)
    return patches.reshape(n * do * ho * wo, k * k * k * cin), (do, ho, wo)


# ------------------------------ CNN3D forward --------------------------------

def cnn3d_forward(x_ncdhw, params):
    """Forward pass of CNN3D; returns (f2, f1) like the PyTorch module."""
    nf0 = params["b1"].shape[0]
    num_classes = params["lb2"].shape[0]
    n = x_ncdhw.shape[0]

    # NCDHW -> NDHWC, bf16 (halves every downstream patch/activation HBM read).
    x = jnp.transpose(x_ncdhw, (0, 2, 3, 4, 1)).astype(jnp.bfloat16)

    # conv_block_one: Conv3d(7, s=3, p=3) -> ReLU -> BatchNorm3d
    p1, (d1, h1, w1) = _im2col_3d(x, x.shape[-1], 7, 3, 3)
    m1 = n * d1 * h1 * w1
    y1, s1, q1 = matmul_bias_act(p1, params["w1"], params["b1"],
                                 relu=True, with_stats=True)
    sc1, sh1 = _bn_scale_shift(s1, q1, m1, params["bn1_g"], params["bn1_b"])
    cp = y1.shape[1]

    # conv_block_one output h = sc1*y1 + sh1: computed inline so XLA fuses it into
    # the res-conv patch build (no standalone full-activation BN pass).
    h5 = (y1[:m1].reshape(n, d1, h1, w1, cp)[..., :nf0].astype(jnp.float32)
          * sc1[0, :nf0] + sh1[0, :nf0]).astype(jnp.bfloat16)

    # res_block_one: Conv3d(7, s=1, p=3) -> ReLU -> BatchNorm3d, then  x + r
    pr, _ = _im2col_3d(h5, nf0, 7, 1, 3)
    yr, sr, qr = matmul_bias_act(pr, params["wr"], params["br"],
                                 relu=True, with_stats=True)
    scr, shr = _bn_scale_shift(sr, qr, m1, params["bnr_g"], params["bnr_b"])
    # Fused: residual add + BN of both branches in a single pass.
    s_rows = res_bn_add(yr, y1, scr, shr, sc1, sh1)          # (Mp1, 128) bf16
    s5 = s_rows[:m1].reshape(n, d1, h1, w1, cp)[..., :nf0]

    # conv_block_two: Conv3d(5, s=2, p=2) -> ReLU -> BatchNorm3d (BN fused into pool)
    p2, (d2, h2, w2) = _im2col_3d(s5, nf0, 5, 2, 2)
    m2 = n * d2 * h2 * w2
    y2, s2, q2 = matmul_bias_act(p2, params["w2"], params["b2"],
                                 relu=True, with_stats=True)
    sc2, sh2 = _bn_scale_shift(s2, q2, m2, params["bn2_g"], params["bn2_b"])
    cp2 = y2.shape[1]

    # MaxPool3d(2) fused with conv_block_two's BatchNorm (width pair -> lane axis).
    do, ho, wo = d2 // 2, h2 // 2, w2 // 2
    y2_5 = y2[:m2].reshape(n, d2, h2, w2, cp2)
    y2_6 = y2_5[:, :2 * do, :2 * ho, :2 * wo, :].reshape(
        n, 2 * do, ho, 2, wo, 2 * cp2)
    pooled = bn_maxpool(y2_6, jnp.tile(sc2, (1, 2)), jnp.tile(sh2, (1, 2)), cp2)

    # flatten in channel-padded NDHWC order (permutation folded into lw1 at init)
    flat = pooled.reshape(n, do * ho * wo * cp2)

    # linear_one -> ReLU -> BatchNorm1d (training mode; skipped for batch==1 like
    # the reference's `if x.shape[0] > 1` guard) -> linear_two
    if n > 1:
        hl, sl, ql = matmul_bias_act(flat, params["lw1"], params["lb1"],
                                     relu=True, with_stats=True,
                                     out_dtype=jnp.float32)
        scl, shl = _bn_scale_shift(sl, ql, n, params["bn1d_g"], params["bn1d_b"])
        f1_rows = bn_apply(hl, scl, shl, out_dtype=jnp.float32)
    else:
        f1_rows = matmul_bias_act(flat, params["lw1"], params["lb1"],
                                  relu=True, with_stats=False,
                                  out_dtype=jnp.float32)

    f2_rows = matmul_bias_act(f1_rows, params["lw2"], params["lb2"],
                              relu=False, with_stats=False,
                              out_dtype=jnp.float32)

    f1 = f1_rows[:n, :100]
    f2 = f2_rows[:n, :num_classes]
    return f2, f1


# ------------------------------ parameter init -------------------------------

def init_params(key, feat_dim, num_filters, num_classes, pool_dim):
    nf0, nf1 = num_filters
    cp2 = _round_up(nf1, _LANE)
    keys = jax.random.split(key, 10)

    def conv_w(k, ksz, cin, cout):
        # Layout (kD,kH,kW,Cin,Cout) flattened -> (k^3*Cin, Cout).  A loader for
        # real PyTorch weights must permute (Cout,Cin,kD,kH,kW) accordingly.
        fan_in = ksz ** 3 * cin
        w = jax.random.normal(k, (ksz, ksz, ksz, cin, cout), jnp.float32)
        return (w / jnp.sqrt(fan_in)).reshape(ksz ** 3 * cin, cout)

    # linear_one weight in channel-padded NDHWC-flatten row order: the PyTorch
    # (C,D,H,W) flatten permutation is folded in here, padded channels -> zero rows.
    lw1 = jax.random.normal(keys[6], (pool_dim, pool_dim, pool_dim, nf1, 100),
                            jnp.float32) / jnp.sqrt(pool_dim ** 3 * nf1)
    lw1 = jnp.pad(lw1, ((0, 0), (0, 0), (0, 0), (0, cp2 - nf1), (0, 0)))
    lw1 = lw1.reshape(pool_dim ** 3 * cp2, 100)

    # linear_two weight padded from 100 -> 128 input rows (extra rows are zero).
    lw2 = jax.random.normal(keys[8], (100, num_classes), jnp.float32) / 10.0
    lw2 = jnp.pad(lw2, ((0, _LANE - 100), (0, 0)))

    return {
        "w1": conv_w(keys[0], 7, feat_dim, nf0),
        "b1": 0.01 * jax.random.normal(keys[1], (nf0,), jnp.float32),
        "wr": conv_w(keys[2], 7, nf0, nf0),
        "br": 0.01 * jax.random.normal(keys[3], (nf0,), jnp.float32),
        "w2": conv_w(keys[4], 5, nf0, nf1),
        "b2": 0.01 * jax.random.normal(keys[5], (nf1,), jnp.float32),
        "bn1_g": jnp.ones((nf0,), jnp.float32), "bn1_b": jnp.zeros((nf0,), jnp.float32),
        "bnr_g": jnp.ones((nf0,), jnp.float32), "bnr_b": jnp.zeros((nf0,), jnp.float32),
        "bn2_g": jnp.ones((nf1,), jnp.float32), "bn2_b": jnp.zeros((nf1,), jnp.float32),
        "lw1": lw1,
        "lb1": 0.01 * jax.random.normal(keys[7], (100,), jnp.float32),
        "bn1d_g": jnp.ones((100,), jnp.float32), "bn1d_b": jnp.zeros((100,), jnp.float32),
        "lw2": lw2,
        "lb2": 0.01 * jax.random.normal(keys[9], (num_classes,), jnp.float32),
    }


# ----------------------------------- main -------------------------------------

if __name__ == "__main__":
    # Small shapes consistent with the module's dimension arithmetic.
    batch, feat_dim, vol_dim = 2, 4, 12
    num_filters = [8, 16]
    num_classes = 2

    conv_dim_one = floor((vol_dim + 2) / 3)          # 4
    conv_dim_two = floor((conv_dim_one + 1) / 2)     # 2
    pool_dim = floor(conv_dim_two / 2)               # 1

    key = jax.random.PRNGKey(0)
    kx, kparam = jax.random.split(key)
    x = jax.random.normal(kx, (batch, feat_dim, vol_dim, vol_dim, vol_dim),
                          jnp.float32)
    params = init_params(kparam, feat_dim, num_filters, num_classes, pool_dim)

    f2, f1 = jax.jit(cnn3d_forward)(x, params)
    jax.block_until_ready((f2, f1))

    assert f2.shape == (batch, num_classes), f2.shape
    assert f1.shape == (batch, 100), f1.shape
    assert bool(jnp.all(jnp.isfinite(f2))) and bool(jnp.all(jnp.isfinite(f1)))
    print("KERNEL_OK")
</pallas_src>

<mosaic_0001>
module attributes {stable_mosaic.version = 11 : i64} {
  func.func @_mm_kernel_single(%arg0: i32, %arg1: i32, %arg2: memref<128x1408xbf16, #tpu.memory_space<vmem>>, %arg3: memref<1408x128xbf16, #tpu.memory_space<vmem>>, %arg4: memref<1x128xf32, #tpu.memory_space<vmem>>, %arg5: memref<128x128xbf16, #tpu.memory_space<vmem>>, %arg6: memref<8x128xf32, #tpu.memory_space<vmem>>) attributes {dimension_semantics = [#tpu.dimension_semantics<parallel>, #tpu.dimension_semantics<parallel>], iteration_bounds = array<i64: 1, 1>, scalar_prefetch = 0 : i64, scratch_operands = 0 : i64, tpu.core_type = #tpu.core_type<tc>, window_params = [{transform_indices = @transform_0, window_bounds = array<i64: 128, 1408>}, {transform_indices = @transform_1, window_bounds = array<i64: 1408, 128>}, {transform_indices = @transform_2, window_bounds = array<i64: 1, 128>}, {transform_indices = @transform_3, window_bounds = array<i64: 128, 128>}, {transform_indices = @transform_4, window_bounds = array<i64: 8, 128>}]} {
    %c0 = arith.constant 0 : index
    %c0_0 = arith.constant 0 : index
    %0 = vector.load %arg2[%c0, %c0_0] : memref<128x1408xbf16, #tpu.memory_space<vmem>>, vector<128x1408xbf16>
    %c0_1 = arith.constant 0 : index
    %c0_2 = arith.constant 0 : index
    %1 = vector.load %arg3[%c0_1, %c0_2] : memref<1408x128xbf16, #tpu.memory_space<vmem>>, vector<1408x128xbf16>
    %cst = arith.constant dense<0.000000e+00> : vector<128x128xf32>
    %2 = tpu.matmul %0, %1, %cst {dimension_numbers = #tpu.dot_dimension_numbers<[1], [0], [0], [1], [0, 0, 1, 1], [], []>} : vector<128x1408xbf16>, vector<1408x128xbf16>, vector<128x128xf32> -> vector<128x128xf32>
    %c0_3 = arith.constant 0 : index
    %c0_4 = arith.constant 0 : index
    %3 = vector.load %arg4[%c0_3, %c0_4] : memref<1x128xf32, #tpu.memory_space<vmem>>, vector<1x128xf32>
    %4 = vector.broadcast %3 : vector<1x128xf32> to vector<128x128xf32>
    %5 = arith.addf %2, %4 : vector<128x128xf32>
    %cst_5 = arith.constant 0.000000e+00 : f32
    %6 = vector.broadcast %cst_5 : f32 to vector<128x128xf32>
    %7 = arith.maximumf %5, %6 : vector<128x128xf32>
    %8 = arith.truncf %7 : vector<128x128xf32> to vector<128x128xbf16>
    %c0_6 = arith.constant 0 : index
    %c0_7 = arith.constant 0 : index
    %9 = vector.load %arg5[%c0_6, %c0_7] : memref<128x128xbf16, #tpu.memory_space<vmem>>, vector<128x128xbf16>
    tpu.vector_store %arg5[%c0_6, %c0_7], %8 {strides = array<i32>} : memref<128x128xbf16, #tpu.memory_space<vmem>>, vector<128x128xbf16>,
    %cst_8 = arith.constant dense<0.000000e+00> : vector<128xf32>
    %10 = vector.multi_reduction <add>, %7, %cst_8 [0] : vector<128x128xf32> to vector<128xf32>
    %11 = vector.shape_cast %10 : vector<128xf32> to vector<1x128xf32>
    %12 = arith.mulf %7, %7 : vector<128x128xf32>
    %cst_9 = arith.constant dense<0.000000e+00> : vector<128xf32>
    %13 = vector.multi_reduction <add>, %12, %cst_9 [0] : vector<128x128xf32> to vector<128xf32>
    %14 = vector.shape_cast %13 : vector<128xf32> to vector<1x128xf32>
    %15 = tpu.iota {dimensions = array<i32: 0>} : vector<8x128xi32>
    %c0_i32 = arith.constant 0 : i32
    %16 = vector.broadcast %c0_i32 : i32 to vector<8x128xi32>
    %17 = arith.cmpi eq, %15, %16 : vector<8x128xi32>
    %18 = vector.shape_cast %11 : vector<1x128xf32> to vector<1x128xf32>
    %19 = vector.broadcast %18 : vector<1x128xf32> to vector<8x128xf32>
    %c1_i32 = arith.constant 1 : i32
    %20 = vector.broadcast %c1_i32 : i32 to vector<8x128xi32>
    %21 = arith.cmpi eq, %15, %20 : vector<8x128xi32>
    %22 = vector.shape_cast %14 : vector<1x128xf32> to vector<1x128xf32>
    %23 = vector.broadcast %22 : vector<1x128xf32> to vector<8x128xf32>
    %cst_10 = arith.constant 0.000000e+00 : f32
    %24 = vector.broadcast %cst_10 : f32 to vector<8x128xf32>
    %25 = arith.select %21, %23, %24 : vector<8x128xi1>, vector<8x128xf32>
    %26 = arith.select %17, %19, %25 : vector<8x128xi1>, vector<8x128xf32>
    %c0_11 = arith.constant 0 : index
    %c0_12 = arith.constant 0 : index
    %27 = vector.load %arg6[%c0_11, %c0_12] : memref<8x128xf32, #tpu.memory_space<vmem>>, vector<8x128xf32>
    tpu.vector_store %arg6[%c0_11, %c0_12], %26 {strides = array<i32>} : memref<8x128xf32, #tpu.memory_space<vmem>>, vector<8x128xf32>,
    return
  }
  func.func @transform_0(%arg0: i32, %arg1: i32) -> (i32, i32) {
    %c0_i32 = arith.constant 0 : i32
    %c0_i32_0 = arith.constant 0 : i32
    return %arg0, %c0_i32 : i32, i32
  }
  func.func @transform_1(%arg0: i32, %arg1: i32) -> (i32, i32) {
    %c0_i32 = arith.constant 0 : i32
    %c0_i32_0 = arith.constant 0 : i32
    return %c0_i32, %arg1 : i32, i32
  }
  func.func @transform_2(%arg0: i32, %arg1: i32) -> (i32, i32) {
    %c0_i32 = arith.constant 0 : i32
    %c0_i32_0 = arith.constant 0 : i32
    return %c0_i32, %arg1 : i32, i32
  }
  func.func @transform_3(%arg0: i32, %arg1: i32) -> (i32, i32) {
    %c0_i32 = arith.constant 0 : i32
    return %arg0, %arg1 : i32, i32
  }
  func.func @transform_4(%arg0: i32, %arg1: i32) -> (i32, i32) {
    %c0_i32 = arith.constant 0 : i32
    return %arg0, %arg1 : i32, i32
  }
}

module attributes {stable_mosaic.version = 11 : i64} {
  func.func @_mm_kernel_single(%arg0: i32, %arg1: i32, %arg2: memref<128x2816xbf16, #tpu.memory_space<vmem>>, %arg3: memref<2816x128xbf16, #tpu.memory_space<vmem>>, %arg4: memref<1x128xf32, #tpu.memory_space<vmem>>, %arg5: memref<128x128xbf16, #tpu.memory_space<vmem>>, %arg6: memref<8x128xf32, #tpu.memory_space<vmem>>) attributes {dimension_semantics = [#tpu.dimension_semantics<parallel>, #tpu.dimension_semantics<parallel>], iteration_bounds = array<i64: 1, 1>, scalar_prefetch = 0 : i64, scratch_operands = 0 : i64, tpu.core_type = #tpu.core_type<tc>, window_params = [{transform_indices = @transform_0, window_bounds = array<i64: 128, 2816>}, {transform_indices = @transform_1, window_bounds = array<i64: 2816, 128>}, {transform_indices = @transform_2, window_bounds = array<i64: 1, 128>}, {transform_indices = @transform_3, window_bounds = array<i64: 128, 128>}, {transform_indices = @transform_4, window_bounds = array<i64: 8, 128>}]} {
    %c0 = arith.constant 0 : index
    %c0_0 = arith.constant 0 : index
    %0 = vector.load %arg2[%c0, %c0_0] : memref<128x2816xbf16, #tpu.memory_space<vmem>>, vector<128x2816xbf16>
    %c0_1 = arith.constant 0 : index
    %c0_2 = arith.constant 0 : index
    %1 = vector.load %arg3[%c0_1, %c0_2] : memref<2816x128xbf16, #tpu.memory_space<vmem>>, vector<2816x128xbf16>
    %cst = arith.constant dense<0.000000e+00> : vector<128x128xf32>
    %2 = tpu.matmul %0, %1, %cst {dimension_numbers = #tpu.dot_dimension_numbers<[1], [0], [0], [1], [0, 0, 1, 1], [], []>} : vector<128x2816xbf16>, vector<2816x128xbf16>, vector<128x128xf32> -> vector<128x128xf32>
    %c0_3 = arith.constant 0 : index
    %c0_4 = arith.constant 0 : index
    %3 = vector.load %arg4[%c0_3, %c0_4] : memref<1x128xf32, #tpu.memory_space<vmem>>, vector<1x128xf32>
    %4 = vector.broadcast %3 : vector<1x128xf32> to vector<128x128xf32>
    %5 = arith.addf %2, %4 : vector<128x128xf32>
    %cst_5 = arith.constant 0.000000e+00 : f32
    %6 = vector.broadcast %cst_5 : f32 to vector<128x128xf32>
    %7 = arith.maximumf %5, %6 : vector<128x128xf32>
    %8 = arith.truncf %7 : vector<128x128xf32> to vector<128x128xbf16>
    %c0_6 = arith.constant 0 : index
    %c0_7 = arith.constant 0 : index
    %9 = vector.load %arg5[%c0_6, %c0_7] : memref<128x128xbf16, #tpu.memory_space<vmem>>, vector<128x128xbf16>
    tpu.vector_store %arg5[%c0_6, %c0_7], %8 {strides = array<i32>} : memref<128x128xbf16, #tpu.memory_space<vmem>>, vector<128x128xbf16>,
    %cst_8 = arith.constant dense<0.000000e+00> : vector<128xf32>
    %10 = vector.multi_reduction <add>, %7, %cst_8 [0] : vector<128x128xf32> to vector<128xf32>
    %11 = vector.shape_cast %10 : vector<128xf32> to vector<1x128xf32>
    %12 = arith.mulf %7, %7 : vector<128x128xf32>
    %cst_9 = arith.constant dense<0.000000e+00> : vector<128xf32>
    %13 = vector.multi_reduction <add>, %12, %cst_9 [0] : vector<128x128xf32> to vector<128xf32>
    %14 = vector.shape_cast %13 : vector<128xf32> to vector<1x128xf32>
    %15 = tpu.iota {dimensions = array<i32: 0>} : vector<8x128xi32>
    %c0_i32 = arith.constant 0 : i32
    %16 = vector.broadcast %c0_i32 : i32 to vector<8x128xi32>
    %17 = arith.cmpi eq, %15, %16 : vector<8x128xi32>
    %18 = vector.shape_cast %11 : vector<1x128xf32> to vector<1x128xf32>
    %19 = vector.broadcast %18 : vector<1x128xf32> to vector<8x128xf32>
    %c1_i32 = arith.constant 1 : i32
    %20 = vector.broadcast %c1_i32 : i32 to vector<8x128xi32>
    %21 = arith.cmpi eq, %15, %20 : vector<8x128xi32>
    %22 = vector.shape_cast %14 : vector<1x128xf32> to vector<1x128xf32>
    %23 = vector.broadcast %22 : vector<1x128xf32> to vector<8x128xf32>
    %cst_10 = arith.constant 0.000000e+00 : f32
    %24 = vector.broadcast %cst_10 : f32 to vector<8x128xf32>
    %25 = arith.select %21, %23, %24 : vector<8x128xi1>, vector<8x128xf32>
    %26 = arith.select %17, %19, %25 : vector<8x128xi1>, vector<8x128xf32>
    %c0_11 = arith.constant 0 : index
    %c0_12 = arith.constant 0 : index
    %27 = vector.load %arg6[%c0_11, %c0_12] : memref<8x128xf32, #tpu.memory_space<vmem>>, vector<8x128xf32>
    tpu.vector_store %arg6[%c0_11, %c0_12], %26 {strides = array<i32>} : memref<8x128xf32, #tpu.memory_space<vmem>>, vector<8x128xf32>,
    return
  }
  func.func @transform_0(%arg0: i32, %arg1: i32) -> (i32, i32) {
    %c0_i32 = arith.constant 0 : i32
    %c0_i32_0 = arith.constant 0 : i32
    return %arg0, %c0_i32 : i32, i32
  }
  func.func @transform_1(%arg0: i32, %arg1: i32) -> (i32, i32) {
    %c0_i32 = arith.constant 0 : i32
    %c0_i32_0 = arith.constant 0 : i32
    return %c0_i32, %arg1 : i32, i32
  }
  func.func @transform_2(%arg0: i32, %arg1: i32) -> (i32, i32) {
    %c0_i32 = arith.constant 0 : i32
    %c0_i32_0 = arith.constant 0 : i32
    return %c0_i32, %arg1 : i32, i32
  }
  func.func @transform_3(%arg0: i32, %arg1: i32) -> (i32, i32) {
    %c0_i32 = arith.constant 0 : i32
    return %arg0, %arg1 : i32, i32
  }
  func.func @transform_4(%arg0: i32, %arg1: i32) -> (i32, i32) {
    %c0_i32 = arith.constant 0 : i32
    return %arg0, %arg1 : i32, i32
  }
}

module attributes {stable_mosaic.version = 11 : i64} {
  func.func @_res_bn_add_kernel(%arg0: i32, %arg1: memref<128x128xbf16, #tpu.memory_space<vmem>>, %arg2: memref<128x128xbf16, #tpu.memory_space<vmem>>, %arg3: memref<1x128xf32, #tpu.memory_space<vmem>>, %arg4: memref<1x128xf32, #tpu.memory_space<vmem>>, %arg5: memref<1x128xf32, #tpu.memory_space<vmem>>, %arg6: memref<1x128xf32, #tpu.memory_space<vmem>>, %arg7: memref<128x128xbf16, #tpu.memory_space<vmem>>) attributes {dimension_semantics = [#tpu.dimension_semantics<parallel>], iteration_bounds = array<i64: 1>, scalar_prefetch = 0 : i64, scratch_operands = 0 : i64, tpu.core_type = #tpu.core_type<tc>, window_params = [{transform_indices = @transform_0, window_bounds = array<i64: 128, 128>}, {transform_indices = @transform_1, window_bounds = array<i64: 128, 128>}, {pipeline_mode = #tpu.pipeline_mode<synchronous>, transform_indices = @transform_2, window_bounds = array<i64: 1, 128>}, {pipeline_mode = #tpu.pipeline_mode<synchronous>, transform_indices = @transform_3, window_bounds = array<i64: 1, 128>}, {pipeline_mode = #tpu.pipeline_mode<synchronous>, transform_indices = @transform_4, window_bounds = array<i64: 1, 128>}, {pipeline_mode = #tpu.pipeline_mode<synchronous>, transform_indices = @transform_5, window_bounds = array<i64: 1, 128>}, {transform_indices = @transform_6, window_bounds = array<i64: 128, 128>}]} {
    %c0 = arith.constant 0 : index
    %c0_0 = arith.constant 0 : index
    %0 = vector.load %arg1[%c0, %c0_0] : memref<128x128xbf16, #tpu.memory_space<vmem>>, vector<128x128xbf16>
    %1 = arith.extf %0 : vector<128x128xbf16> to vector<128x128xf32>
    %c0_1 = arith.constant 0 : index
    %c0_2 = arith.constant 0 : index
    %2 = vector.load %arg3[%c0_1, %c0_2] : memref<1x128xf32, #tpu.memory_space<vmem>>, vector<1x128xf32>
    %3 = vector.broadcast %2 : vector<1x128xf32> to vector<128x128xf32>
    %4 = arith.mulf %1, %3 : vector<128x128xf32>
    %c0_3 = arith.constant 0 : index
    %c0_4 = arith.constant 0 : index
    %5 = vector.load %arg4[%c0_3, %c0_4] : memref<1x128xf32, #tpu.memory_space<vmem>>, vector<1x128xf32>
    %6 = vector.broadcast %5 : vector<1x128xf32> to vector<128x128xf32>
    %7 = arith.addf %4, %6 : vector<128x128xf32>
    %c0_5 = arith.constant 0 : index
    %c0_6 = arith.constant 0 : index
    %8 = vector.load %arg2[%c0_5, %c0_6] : memref<128x128xbf16, #tpu.memory_space<vmem>>, vector<128x128xbf16>
    %9 = arith.extf %8 : vector<128x128xbf16> to vector<128x128xf32>
    %c0_7 = arith.constant 0 : index
    %c0_8 = arith.constant 0 : index
    %10 = vector.load %arg5[%c0_7, %c0_8] : memref<1x128xf32, #tpu.memory_space<vmem>>, vector<1x128xf32>
    %11 = vector.broadcast %10 : vector<1x128xf32> to vector<128x128xf32>
    %12 = arith.mulf %9, %11 : vector<128x128xf32>
    %c0_9 = arith.constant 0 : index
    %c0_10 = arith.constant 0 : index
    %13 = vector.load %arg6[%c0_9, %c0_10] : memref<1x128xf32, #tpu.memory_space<vmem>>, vector<1x128xf32>
    %14 = vector.broadcast %13 : vector<1x128xf32> to vector<128x128xf32>
    %15 = arith.addf %12, %14 : vector<128x128xf32>
    %16 = arith.addf %15, %7 : vector<128x128xf32>
    %17 = arith.truncf %16 : vector<128x128xf32> to vector<128x128xbf16>
    %c0_11 = arith.constant 0 : index
    %c0_12 = arith.constant 0 : index
    %18 = vector.load %arg7[%c0_11, %c0_12] : memref<128x128xbf16, #tpu.memory_space<vmem>>, vector<128x128xbf16>
    tpu.vector_store %arg7[%c0_11, %c0_12], %17 {strides = array<i32>} : memref<128x128xbf16, #tpu.memory_space<vmem>>, vector<128x128xbf16>,
    return
  }
  func.func @transform_0(%arg0: i32) -> (i32, i32) {
    %c0_i32 = arith.constant 0 : i32
    %c0_i32_0 = arith.constant 0 : i32
    return %arg0, %c0_i32 : i32, i32
  }
  func.func @transform_1(%arg0: i32) -> (i32, i32) {
    %c0_i32 = arith.constant 0 : i32
    %c0_i32_0 = arith.constant 0 : i32
    return %arg0, %c0_i32 : i32, i32
  }
  func.func @transform_2(%arg0: i32) -> (i32, i32) {
    %c0_i32 = arith.constant 0 : i32
    %c0_i32_0 = arith.constant 0 : i32
    %c0_i32_1 = arith.constant 0 : i32
    return %c0_i32, %c0_i32_0 : i32, i32
  }
  func.func @transform_3(%arg0: i32) -> (i32, i32) {
    %c0_i32 = arith.constant 0 : i32
    %c0_i32_0 = arith.constant 0 : i32
    %c0_i32_1 = arith.constant 0 : i32
    return %c0_i32, %c0_i32_0 : i32, i32
  }
  func.func @transform_4(%arg0: i32) -> (i32, i32) {
    %c0_i32 = arith.constant 0 : i32
    %c0_i32_0 = arith.constant 0 : i32
    %c0_i32_1 = arith.constant 0 : i32
    return %c0_i32, %c0_i32_0 : i32, i32
  }
  func.func @transform_5(%arg0: i32) -> (i32, i32) {
    %c0_i32 = arith.constant 0 : i32
    %c0_i32_0 = arith.constant 0 : i32
    %c0_i32_1 = arith.constant 0 : i32
    return %c0_i32, %c0_i32_0 : i32, i32
  }
  func.func @transform_6(%arg0: i32) -> (i32, i32) {
    %c0_i32 = arith.constant 0 : i32
    %c0_i32_0 = arith.constant 0 : i32
    return %arg0, %c0_i32 : i32, i32
  }
}

module attributes {stable_mosaic.version = 11 : i64} {
  func.func @_mm_kernel_single(%arg0: i32, %arg1: i32, %arg2: memref<16x1024xbf16, #tpu.memory_space<vmem>>, %arg3: memref<1024x128xbf16, #tpu.memory_space<vmem>>, %arg4: memref<1x128xf32, #tpu.memory_space<vmem>>, %arg5: memref<16x128xbf16, #tpu.memory_space<vmem>>, %arg6: memref<8x128xf32, #tpu.memory_space<vmem>>) attributes {dimension_semantics = [#tpu.dimension_semantics<parallel>, #tpu.dimension_semantics<parallel>], iteration_bounds = array<i64: 1, 1>, scalar_prefetch = 0 : i64, scratch_operands = 0 : i64, tpu.core_type = #tpu.core_type<tc>, window_params = [{transform_indices = @transform_0, window_bounds = array<i64: 16, 1024>}, {transform_indices = @transform_1, window_bounds = array<i64: 1024, 128>}, {transform_indices = @transform_2, window_bounds = array<i64: 1, 128>}, {transform_indices = @transform_3, window_bounds = array<i64: 16, 128>}, {transform_indices = @transform_4, window_bounds = array<i64: 8, 128>}]} {
    %c0 = arith.constant 0 : index
    %c0_0 = arith.constant 0 : index
    %0 = vector.load %arg2[%c0, %c0_0] : memref<16x1024xbf16, #tpu.memory_space<vmem>>, vector<16x1024xbf16>
    %c0_1 = arith.constant 0 : index
    %c0_2 = arith.constant 0 : index
    %1 = vector.load %arg3[%c0_1, %c0_2] : memref<1024x128xbf16, #tpu.memory_space<vmem>>, vector<1024x128xbf16>
    %cst = arith.constant dense<0.000000e+00> : vector<16x128xf32>
    %2 = tpu.matmul %0, %1, %cst {dimension_numbers = #tpu.dot_dimension_numbers<[1], [0], [0], [1], [0, 0, 1, 1], [], []>} : vector<16x1024xbf16>, vector<1024x128xbf16>, vector<16x128xf32> -> vector<16x128xf32>
    %c0_3 = arith.constant 0 : index
    %c0_4 = arith.constant 0 : index
    %3 = vector.load %arg4[%c0_3, %c0_4] : memref<1x128xf32, #tpu.memory_space<vmem>>, vector<1x128xf32>
    %4 = vector.broadcast %3 : vector<1x128xf32> to vector<16x128xf32>
    %5 = arith.addf %2, %4 : vector<16x128xf32>
    %cst_5 = arith.constant 0.000000e+00 : f32
    %6 = vector.broadcast %cst_5 : f32 to vector<16x128xf32>
    %7 = arith.maximumf %5, %6 : vector<16x128xf32>
    %8 = arith.truncf %7 : vector<16x128xf32> to vector<16x128xbf16>
    %c0_6 = arith.constant 0 : index
    %c0_7 = arith.constant 0 : index
    %9 = vector.load %arg5[%c0_6, %c0_7] : memref<16x128xbf16, #tpu.memory_space<vmem>>, vector<16x128xbf16>
    tpu.vector_store %arg5[%c0_6, %c0_7], %8 {strides = array<i32>} : memref<16x128xbf16, #tpu.memory_space<vmem>>, vector<16x128xbf16>,
    %cst_8 = arith.constant dense<0.000000e+00> : vector<128xf32>
    %10 = vector.multi_reduction <add>, %7, %cst_8 [0] : vector<16x128xf32> to vector<128xf32>
    %11 = vector.shape_cast %10 : vector<128xf32> to vector<1x128xf32>
    %12 = arith.mulf %7, %7 : vector<16x128xf32>
    %cst_9 = arith.constant dense<0.000000e+00> : vector<128xf32>
    %13 = vector.multi_reduction <add>, %12, %cst_9 [0] : vector<16x128xf32> to vector<128xf32>
    %14 = vector.shape_cast %13 : vector<128xf32> to vector<1x128xf32>
    %15 = tpu.iota {dimensions = array<i32: 0>} : vector<8x128xi32>
    %c0_i32 = arith.constant 0 : i32
    %16 = vector.broadcast %c0_i32 : i32 to vector<8x128xi32>
    %17 = arith.cmpi eq, %15, %16 : vector<8x128xi32>
    %18 = vector.shape_cast %11 : vector<1x128xf32> to vector<1x128xf32>
    %19 = vector.broadcast %18 : vector<1x128xf32> to vector<8x128xf32>
    %c1_i32 = arith.constant 1 : i32
    %20 = vector.broadcast %c1_i32 : i32 to vector<8x128xi32>
    %21 = arith.cmpi eq, %15, %20 : vector<8x128xi32>
    %22 = vector.shape_cast %14 : vector<1x128xf32> to vector<1x128xf32>
    %23 = vector.broadcast %22 : vector<1x128xf32> to vector<8x128xf32>
    %cst_10 = arith.constant 0.000000e+00 : f32
    %24 = vector.broadcast %cst_10 : f32 to vector<8x128xf32>
    %25 = arith.select %21, %23, %24 : vector<8x128xi1>, vector<8x128xf32>
    %26 = arith.select %17, %19, %25 : vector<8x128xi1>, vector<8x128xf32>
    %c0_11 = arith.constant 0 : index
    %c0_12 = arith.constant 0 : index
    %27 = vector.load %arg6[%c0_11, %c0_12] : memref<8x128xf32, #tpu.memory_space<vmem>>, vector<8x128xf32>
    tpu.vector_store %arg6[%c0_11, %c0_12], %26 {strides = array<i32>} : memref<8x128xf32, #tpu.memory_space<vmem>>, vector<8x128xf32>,
    return
  }
  func.func @transform_0(%arg0: i32, %arg1: i32) -> (i32, i32) {
    %c0_i32 = arith.constant 0 : i32
    %c0_i32_0 = arith.constant 0 : i32
    return %arg0, %c0_i32 : i32, i32
  }
  func.func @transform_1(%arg0: i32, %arg1: i32) -> (i32, i32) {
    %c0_i32 = arith.constant 0 : i32
    %c0_i32_0 = arith.constant 0 : i32
    return %c0_i32, %arg1 : i32, i32
  }
  func.func @transform_2(%arg0: i32, %arg1: i32) -> (i32, i32) {
    %c0_i32 = arith.constant 0 : i32
    %c0_i32_0 = arith.constant 0 : i32
    return %c0_i32, %arg1 : i32, i32
  }
  func.func @transform_3(%arg0: i32, %arg1: i32) -> (i32, i32) {
    %c0_i32 = arith.constant 0 : i32
    return %arg0, %arg1 : i32, i32
  }
  func.func @transform_4(%arg0: i32, %arg1: i32) -> (i32, i32) {
    %c0_i32 = arith.constant 0 : i32
    return %arg0, %arg1 : i32, i32
  }
}

module attributes {stable_mosaic.version = 11 : i64} {
  func.func @_mm_kernel_single(%arg0: i32, %arg1: i32, %arg2: memref<8x128xbf16, #tpu.memory_space<vmem>>, %arg3: memref<128x128xbf16, #tpu.memory_space<vmem>>, %arg4: memref<1x128xf32, #tpu.memory_space<vmem>>, %arg5: memref<8x128xf32, #tpu.memory_space<vmem>>, %arg6: memref<8x128xf32, #tpu.memory_space<vmem>>) attributes {dimension_semantics = [#tpu.dimension_semantics<parallel>, #tpu.dimension_semantics<parallel>], iteration_bounds = array<i64: 1, 1>, scalar_prefetch = 0 : i64, scratch_operands = 0 : i64, tpu.core_type = #tpu.core_type<tc>, window_params = [{transform_indices = @transform_0, window_bounds = array<i64: 8, 128>}, {transform_indices = @transform_1, window_bounds = array<i64: 128, 128>}, {transform_indices = @transform_2, window_bounds = array<i64: 1, 128>}, {transform_indices = @transform_3, window_bounds = array<i64: 8, 128>}, {transform_indices = @transform_4, window_bounds = array<i64: 8, 128>}]} {
    %c0 = arith.constant 0 : index
    %c0_0 = arith.constant 0 : index
    %0 = vector.load %arg2[%c0, %c0_0] : memref<8x128xbf16, #tpu.memory_space<vmem>>, vector<8x128xbf16>
    %c0_1 = arith.constant 0 : index
    %c0_2 = arith.constant 0 : index
    %1 = vector.load %arg3[%c0_1, %c0_2] : memref<128x128xbf16, #tpu.memory_space<vmem>>, vector<128x128xbf16>
    %cst = arith.constant dense<0.000000e+00> : vector<8x128xf32>
    %2 = tpu.matmul %0, %1, %cst {dimension_numbers = #tpu.dot_dimension_numbers<[1], [0], [0], [1], [0, 0, 1, 1], [], []>} : vector<8x128xbf16>, vector<128x128xbf16>, vector<8x128xf32> -> vector<8x128xf32>
    %c0_3 = arith.constant 0 : index
    %c0_4 = arith.constant 0 : index
    %3 = vector.load %arg4[%c0_3, %c0_4] : memref<1x128xf32, #tpu.memory_space<vmem>>, vector<1x128xf32>
    %4 = vector.broadcast %3 : vector<1x128xf32> to vector<8x128xf32>
    %5 = arith.addf %2, %4 : vector<8x128xf32>
    %cst_5 = arith.constant 0.000000e+00 : f32
    %6 = vector.broadcast %cst_5 : f32 to vector<8x128xf32>
    %7 = arith.maximumf %5, %6 : vector<8x128xf32>
    %8 = tpu.iota {dimensions = array<i32: 0>} : vector<8x128xi32>
    %c8_i32 = arith.constant 8 : i32
    %9 = arith.muli %arg0, %c8_i32 : i32
    %10 = vector.broadcast %9 : i32 to vector<8x128xi32>
    %11 = arith.addi %8, %10 : vector<8x128xi32>
    %c2_i32 = arith.constant 2 : i32
    %12 = vector.broadcast %c2_i32 : i32 to vector<8x128xi32>
    %13 = arith.cmpi slt, %11, %12 : vector<8x128xi32>
    %cst_6 = arith.constant 0.000000e+00 : f32
    %14 = vector.broadcast %cst_6 : f32 to vector<8x128xf32>
    %15 = arith.select %13, %7, %14 : vector<8x128xi1>, vector<8x128xf32>
    %c0_7 = arith.constant 0 : index
    %c0_8 = arith.constant 0 : index
    %16 = vector.load %arg5[%c0_7, %c0_8] : memref<8x128xf32, #tpu.memory_space<vmem>>, vector<8x128xf32>
    tpu.vector_store %arg5[%c0_7, %c0_8], %15 {strides = array<i32>} : memref<8x128xf32, #tpu.memory_space<vmem>>, vector<8x128xf32>,
    %cst_9 = arith.constant dense<0.000000e+00> : vector<128xf32>
    %17 = vector.multi_reduction <add>, %15, %cst_9 [0] : vector<8x128xf32> to vector<128xf32>
    %18 = vector.shape_cast %17 : vector<128xf32> to vector<1x128xf32>
    %19 = arith.mulf %15, %15 : vector<8x128xf32>
    %cst_10 = arith.constant dense<0.000000e+00> : vector<128xf32>
    %20 = vector.multi_reduction <add>, %19, %cst_10 [0] : vector<8x128xf32> to vector<128xf32>
    %21 = vector.shape_cast %20 : vector<128xf32> to vector<1x128xf32>
    %22 = tpu.iota {dimensions = array<i32: 0>} : vector<8x128xi32>
    %c0_i32 = arith.constant 0 : i32
    %23 = vector.broadcast %c0_i32 : i32 to vector<8x128xi32>
    %24 = arith.cmpi eq, %22, %23 : vector<8x128xi32>
    %25 = vector.shape_cast %18 : vector<1x128xf32> to vector<1x128xf32>
    %26 = vector.broadcast %25 : vector<1x128xf32> to vector<8x128xf32>
    %c1_i32 = arith.constant 1 : i32
    %27 = vector.broadcast %c1_i32 : i32 to vector<8x128xi32>
    %28 = arith.cmpi eq, %22, %27 : vector<8x128xi32>
    %29 = vector.shape_cast %21 : vector<1x128xf32> to vector<1x128xf32>
    %30 = vector.broadcast %29 : vector<1x128xf32> to vector<8x128xf32>
    %cst_11 = arith.constant 0.000000e+00 : f32
    %31 = vector.broadcast %cst_11 : f32 to vector<8x128xf32>
    %32 = arith.select %28, %30, %31 : vector<8x128xi1>, vector<8x128xf32>
    %33 = arith.select %24, %26, %32 : vector<8x128xi1>, vector<8x128xf32>
    %c0_12 = arith.constant 0 : index
    %c0_13 = arith.constant 0 : index
    %34 = vector.load %arg6[%c0_12, %c0_13] : memref<8x128xf32, #tpu.memory_space<vmem>>, vector<8x128xf32>
    tpu.vector_store %arg6[%c0_12, %c0_13], %33 {strides = array<i32>} : memref<8x128xf32, #tpu.memory_space<vmem>>, vector<8x128xf32>,
    return
  }
  func.func @transform_0(%arg0: i32, %arg1: i32) -> (i32, i32) {
    %c0_i32 = arith.constant 0 : i32
    %c0_i32_0 = arith.constant 0 : i32
    return %arg0, %c0_i32 : i32, i32
  }
  func.func @transform_1(%arg0: i32, %arg1: i32) -> (i32, i32) {
    %c0_i32 = arith.constant 0 : i32
    %c0_i32_0 = arith.constant 0 : i32
    return %c0_i32, %arg1 : i32, i32
  }
  func.func @transform_2(%arg0: i32, %arg1: i32) -> (i32, i32) {
    %c0_i32 = arith.constant 0 : i32
    %c0_i32_0 = arith.constant 0 : i32
    return %c0_i32, %arg1 : i32, i32
  }
  func.func @transform_3(%arg0: i32, %arg1: i32) -> (i32, i32) {
    %c0_i32 = arith.constant 0 : i32
    return %arg0, %arg1 : i32, i32
  }
  func.func @transform_4(%arg0: i32, %arg1: i32) -> (i32, i32) {
    %c0_i32 = arith.constant 0 : i32
    return %arg0, %arg1 : i32, i32
  }
}

module attributes {stable_mosaic.version = 11 : i64} {
  func.func @_bn_maxpool_kernel(%arg0: i32, %arg1: i32, %arg2: memref<1x2x1x2x1x256xbf16, #tpu.memory_space<vmem>>, %arg3: memref<1x256xf32, #tpu.memory_space<vmem>>, %arg4: memref<1x256xf32, #tpu.memory_space<vmem>>, %arg5: memref<1x1x1x1x128xbf16, #tpu.memory_space<vmem>>) attributes {dimension_semantics = [#tpu.dimension_semantics<parallel>, #tpu.dimension_semantics<parallel>], iteration_bounds = array<i64: 2, 1>, scalar_prefetch = 0 : i64, scratch_operands = 0 : i64, tpu.core_type = #tpu.core_type<tc>, window_params = [{transform_indices = @transform_0, window_bounds = array<i64: 1, 2, 1, 2, 1, 256>}, {pipeline_mode = #tpu.pipeline_mode<synchronous>, transform_indices = @transform_1, window_bounds = array<i64: 1, 256>}, {pipeline_mode = #tpu.pipeline_mode<synchronous>, transform_indices = @transform_2, window_bounds = array<i64: 1, 256>}, {transform_indices = @transform_3, window_bounds = array<i64: 1, 1, 1, 1, 128>}]} {
    %c0 = arith.constant 0 : index
    %c0_0 = arith.constant 0 : index
    %0 = vector.load %arg3[%c0, %c0_0] : memref<1x256xf32, #tpu.memory_space<vmem>>, vector<1x256xf32>
    %c0_1 = arith.constant 0 : index
    %c0_2 = arith.constant 0 : index
    %1 = vector.load %arg4[%c0_1, %c0_2] : memref<1x256xf32, #tpu.memory_space<vmem>>, vector<1x256xf32>
    %c0_3 = arith.constant 0 : index
    %c0_4 = arith.constant 0 : index
    %c0_5 = arith.constant 0 : index
    %c0_6 = arith.constant 0 : index
    %c0_7 = arith.constant 0 : index
    %c0_8 = arith.constant 0 : index
    %2 = vector.load %arg2[%c0_3, %c0_4, %c0_5, %c0_6, %c0_7, %c0_8] : memref<1x2x1x2x1x256xbf16, #tpu.memory_space<vmem>>, vector<1x1x1x1x1x256xbf16>
    %3 = vector.shape_cast %2 : vector<1x1x1x1x1x256xbf16> to vector<1x1x256xbf16>
    %4 = arith.extf %3 : vector<1x1x256xbf16> to vector<1x1x256xf32>
    %5 = vector.shape_cast %0 : vector<1x256xf32> to vector<1x1x256xf32>
    %6 = arith.mulf %4, %5 : vector<1x1x256xf32>
    %7 = vector.shape_cast %1 : vector<1x256xf32> to vector<1x1x256xf32>
    %8 = arith.addf %6, %7 : vector<1x1x256xf32>
    %c0_9 = arith.constant 0 : index
    %c0_10 = arith.constant 0 : index
    %c0_11 = arith.constant 0 : index
    %c1 = arith.constant 1 : index
    %c0_12 = arith.constant 0 : index
    %c0_13 = arith.constant 0 : index
    %9 = vector.load %arg2[%c0_9, %c0_10, %c0_11, %c1, %c0_12, %c0_13] : memref<1x2x1x2x1x256xbf16, #tpu.memory_space<vmem>>, vector<1x1x1x1x1x256xbf16>
    %10 = vector.shape_cast %9 : vector<1x1x1x1x1x256xbf16> to vector<1x1x256xbf16>
    %11 = arith.extf %10 : vector<1x1x256xbf16> to vector<1x1x256xf32>
    %12 = vector.shape_cast %0 : vector<1x256xf32> to vector<1x1x256xf32>
    %13 = arith.mulf %11, %12 : vector<1x1x256xf32>
    %14 = vector.shape_cast %1 : vector<1x256xf32> to vector<1x1x256xf32>
    %15 = arith.addf %13, %14 : vector<1x1x256xf32>
    %16 = arith.maximumf %8, %15 : vector<1x1x256xf32>
    %c0_14 = arith.constant 0 : index
    %c1_15 = arith.constant 1 : index
    %c0_16 = arith.constant 0 : index
    %c0_17 = arith.constant 0 : index
    %c0_18 = arith.constant 0 : index
    %c0_19 = arith.constant 0 : index
    %17 = vector.load %arg2[%c0_14, %c1_15, %c0_16, %c0_17, %c0_18, %c0_19] : memref<1x2x1x2x1x256xbf16, #tpu.memory_space<vmem>>, vector<1x1x1x1x1x256xbf16>
    %18 = vector.shape_cast %17 : vector<1x1x1x1x1x256xbf16> to vector<1x1x256xbf16>
    %19 = arith.extf %18 : vector<1x1x256xbf16> to vector<1x1x256xf32>
    %20 = vector.shape_cast %0 : vector<1x256xf32> to vector<1x1x256xf32>
    %21 = arith.mulf %19, %20 : vector<1x1x256xf32>
    %22 = vector.shape_cast %1 : vector<1x256xf32> to vector<1x1x256xf32>
    %23 = arith.addf %21, %22 : vector<1x1x256xf32>
    %24 = arith.maximumf %16, %23 : vector<1x1x256xf32>
    %c0_20 = arith.constant 0 : index
    %c1_21 = arith.constant 1 : index
    %c0_22 = arith.constant 0 : index
    %c1_23 = arith.constant 1 : index
    %c0_24 = arith.constant 0 : index
    %c0_25 = arith.constant 0 : index
    %25 = vector.load %arg2[%c0_20, %c1_21, %c0_22, %c1_23, %c0_24, %c0_25] : memref<1x2x1x2x1x256xbf16, #tpu.memory_space<vmem>>, vector<1x1x1x1x1x256xbf16>
    %26 = vector.shape_cast %25 : vector<1x1x1x1x1x256xbf16> to vector<1x1x256xbf16>
    %27 = arith.extf %26 : vector<1x1x256xbf16> to vector<1x1x256xf32>
    %28 = vector.shape_cast %0 : vector<1x256xf32> to vector<1x1x256xf32>
    %29 = arith.mulf %27, %28 : vector<1x1x256xf32>
    %30 = vector.shape_cast %1 : vector<1x256xf32> to vector<1x1x256xf32>
    %31 = arith.addf %29, %30 : vector<1x1x256xf32>
    %32 = arith.maximumf %24, %31 : vector<1x1x256xf32>
    %33 = vector.extract_strided_slice %32 {offsets = [0, 0, 0], sizes = [1, 1, 128], strides = [1, 1, 1]} : vector<1x1x256xf32> to vector<1x1x128xf32>
    %34 = vector.extract_strided_slice %32 {offsets = [0, 0, 128], sizes = [1, 1, 128], strides = [1, 1, 1]} : vector<1x1x256xf32> to vector<1x1x128xf32>
    %35 = arith.maximumf %33, %34 : vector<1x1x128xf32>
    %36 = arith.truncf %35 : vector<1x1x128xf32> to vector<1x1x128xbf16>
    %c0_26 = arith.constant 0 : index
    %c0_27 = arith.constant 0 : index
    %c0_28 = arith.constant 0 : index
    %c0_29 = arith.constant 0 : index
    %c0_30 = arith.constant 0 : index
    %37 = vector.load %arg5[%c0_26, %c0_27, %c0_28, %c0_29, %c0_30] : memref<1x1x1x1x128xbf16, #tpu.memory_space<vmem>>, vector<1x1x1x1x128xbf16>
    %38 = vector.shape_cast %37 : vector<1x1x1x1x128xbf16> to vector<1x1x128xbf16>
    %39 = vector.shape_cast %36 : vector<1x1x128xbf16> to vector<1x1x1x1x128xbf16>
    tpu.vector_store %arg5[%c0_26, %c0_27, %c0_28, %c0_29, %c0_30], %39 {strides = array<i32>} : memref<1x1x1x1x128xbf16, #tpu.memory_space<vmem>>, vector<1x1x1x1x128xbf16>,
    return
  }
  func.func @transform_0(%arg0: i32, %arg1: i32) -> (i32, i32, i32, i32, i32, i32) {
    %c0_i32 = arith.constant 0 : i32
    %c0_i32_0 = arith.constant 0 : i32
    %c0_i32_1 = arith.constant 0 : i32
    %c0_i32_2 = arith.constant 0 : i32
    %c0_i32_3 = arith.constant 0 : i32
    return %arg0, %arg1, %c0_i32, %c0_i32_0, %c0_i32_1, %c0_i32_2 : i32, i32, i32, i32, i32, i32
  }
  func.func @transform_1(%arg0: i32, %arg1: i32) -> (i32, i32) {
    %c0_i32 = arith.constant 0 : i32
    %c0_i32_0 = arith.constant 0 : i32
    %c0_i32_1 = arith.constant 0 : i32
    return %c0_i32, %c0_i32_0 : i32, i32
  }
  func.func @transform_2(%arg0: i32, %arg1: i32) -> (i32, i32) {
    %c0_i32 = arith.constant 0 : i32
    %c0_i32_0 = arith.constant 0 : i32
    %c0_i32_1 = arith.constant 0 : i32
    return %c0_i32, %c0_i32_0 : i32, i32
  }
  func.func @transform_3(%arg0: i32, %arg1: i32) -> (i32, i32, i32, i32, i32) {
    %c0_i32 = arith.constant 0 : i32
    %c0_i32_0 = arith.constant 0 : i32
    %c0_i32_1 = arith.constant 0 : i32
    %c0_i32_2 = arith.constant 0 : i32
    return %arg0, %arg1, %c0_i32, %c0_i32_0, %c0_i32_1 : i32, i32, i32, i32, i32
  }
}

module attributes {stable_mosaic.version = 11 : i64} {
  func.func @_mm_kernel_single(%arg0: i32, %arg1: i32, %arg2: memref<8x128xbf16, #tpu.memory_space<vmem>>, %arg3: memref<128x128xbf16, #tpu.memory_space<vmem>>, %arg4: memref<1x128xf32, #tpu.memory_space<vmem>>, %arg5: memref<8x128xf32, #tpu.memory_space<vmem>>) attributes {dimension_semantics = [#tpu.dimension_semantics<parallel>, #tpu.dimension_semantics<parallel>], iteration_bounds = array<i64: 1, 1>, scalar_prefetch = 0 : i64, scratch_operands = 0 : i64, tpu.core_type = #tpu.core_type<tc>, window_params = [{transform_indices = @transform_0, window_bounds = array<i64: 8, 128>}, {transform_indices = @transform_1, window_bounds = array<i64: 128, 128>}, {transform_indices = @transform_2, window_bounds = array<i64: 1, 128>}, {transform_indices = @transform_3, window_bounds = array<i64: 8, 128>}]} {
    %c0 = arith.constant 0 : index
    %c0_0 = arith.constant 0 : index
    %0 = vector.load %arg2[%c0, %c0_0] : memref<8x128xbf16, #tpu.memory_space<vmem>>, vector<8x128xbf16>
    %c0_1 = arith.constant 0 : index
    %c0_2 = arith.constant 0 : index
    %1 = vector.load %arg3[%c0_1, %c0_2] : memref<128x128xbf16, #tpu.memory_space<vmem>>, vector<128x128xbf16>
    %cst = arith.constant dense<0.000000e+00> : vector<8x128xf32>
    %2 = tpu.matmul %0, %1, %cst {dimension_numbers = #tpu.dot_dimension_numbers<[1], [0], [0], [1], [0, 0, 1, 1], [], []>} : vector<8x128xbf16>, vector<128x128xbf16>, vector<8x128xf32> -> vector<8x128xf32>
    %c0_3 = arith.constant 0 : index
    %c0_4 = arith.constant 0 : index
    %3 = vector.load %arg4[%c0_3, %c0_4] : memref<1x128xf32, #tpu.memory_space<vmem>>, vector<1x128xf32>
    %4 = vector.broadcast %3 : vector<1x128xf32> to vector<8x128xf32>
    %5 = arith.addf %2, %4 : vector<8x128xf32>
    %c0_5 = arith.constant 0 : index
    %c0_6 = arith.constant 0 : index
    %6 = vector.load %arg5[%c0_5, %c0_6] : memref<8x128xf32, #tpu.memory_space<vmem>>, vector<8x128xf32>
    tpu.vector_store %arg5[%c0_5, %c0_6], %5 {strides = array<i32>} : memref<8x128xf32, #tpu.memory_space<vmem>>, vector<8x128xf32>,
    return
  }
  func.func @transform_0(%arg0: i32, %arg1: i32) -> (i32, i32) {
    %c0_i32 = arith.constant 0 : i32
    %c0_i32_0 = arith.constant 0 : i32
    return %arg0, %c0_i32 : i32, i32
  }
  func.func @transform_1(%arg0: i32, %arg1: i32) -> (i32, i32) {
    %c0_i32 = arith.constant 0 : i32
    %c0_i32_0 = arith.constant 0 : i32
    return %c0_i32, %arg1 : i32, i32
  }
  func.func @transform_2(%arg0: i32, %arg1: i32) -> (i32, i32) {
    %c0_i32 = arith.constant 0 : i32
    %c0_i32_0 = arith.constant 0 : i32
    return %c0_i32, %arg1 : i32, i32
  }
  func.func @transform_3(%arg0: i32, %arg1: i32) -> (i32, i32) {
    %c0_i32 = arith.constant 0 : i32
    return %arg0, %arg1 : i32, i32
  }
}

module attributes {stable_mosaic.version = 11 : i64} {
  func.func @_scale_shift_kernel(%arg0: i32, %arg1: memref<8x128xf32, #tpu.memory_space<vmem>>, %arg2: memref<1x128xf32, #tpu.memory_space<vmem>>, %arg3: memref<1x128xf32, #tpu.memory_space<vmem>>, %arg4: memref<8x128xf32, #tpu.memory_space<vmem>>) attributes {dimension_semantics = [#tpu.dimension_semantics<parallel>], iteration_bounds = array<i64: 1>, scalar_prefetch = 0 : i64, scratch_operands = 0 : i64, tpu.core_type = #tpu.core_type<tc>, window_params = [{transform_indices = @transform_0, window_bounds = array<i64: 8, 128>}, {pipeline_mode = #tpu.pipeline_mode<synchronous>, transform_indices = @transform_1, window_bounds = array<i64: 1, 128>}, {pipeline_mode = #tpu.pipeline_mode<synchronous>, transform_indices = @transform_2, window_bounds = array<i64: 1, 128>}, {transform_indices = @transform_3, window_bounds = array<i64: 8, 128>}]} {
    %c0 = arith.constant 0 : index
    %c0_0 = arith.constant 0 : index
    %0 = vector.load %arg1[%c0, %c0_0] : memref<8x128xf32, #tpu.memory_space<vmem>>, vector<8x128xf32>
    %c0_1 = arith.constant 0 : index
    %c0_2 = arith.constant 0 : index
    %1 = vector.load %arg2[%c0_1, %c0_2] : memref<1x128xf32, #tpu.memory_space<vmem>>, vector<1x128xf32>
    %2 = vector.broadcast %1 : vector<1x128xf32> to vector<8x128xf32>
    %3 = arith.mulf %0, %2 : vector<8x128xf32>
    %c0_3 = arith.constant 0 : index
    %c0_4 = arith.constant 0 : index
    %4 = vector.load %arg3[%c0_3, %c0_4] : memref<1x128xf32, #tpu.memory_space<vmem>>, vector<1x128xf32>
    %5 = vector.broadcast %4 : vector<1x128xf32> to vector<8x128xf32>
    %6 = arith.addf %3, %5 : vector<8x128xf32>
    %c0_5 = arith.constant 0 : index
    %c0_6 = arith.constant 0 : index
    %7 = vector.load %arg4[%c0_5, %c0_6] : memref<8x128xf32, #tpu.memory_space<vmem>>, vector<8x128xf32>
    tpu.vector_store %arg4[%c0_5, %c0_6], %6 {strides = array<i32>} : memref<8x128xf32, #tpu.memory_space<vmem>>, vector<8x128xf32>,
    return
  }
  func.func @transform_0(%arg0: i32) -> (i32, i32) {
    %c0_i32 = arith.constant 0 : i32
    %c0_i32_0 = arith.constant 0 : i32
    return %arg0, %c0_i32 : i32, i32
  }
  func.func @transform_1(%arg0: i32) -> (i32, i32) {
    %c0_i32 = arith.constant 0 : i32
    %c0_i32_0 = arith.constant 0 : i32
    %c0_i32_1 = arith.constant 0 : i32
    return %c0_i32, %c0_i32_0 : i32, i32
  }
  func.func @transform_2(%arg0: i32) -> (i32, i32) {
    %c0_i32 = arith.constant 0 : i32
    %c0_i32_0 = arith.constant 0 : i32
    %c0_i32_1 = arith.constant 0 : i32
    return %c0_i32, %c0_i32_0 : i32, i32
  }
  func.func @transform_3(%arg0: i32) -> (i32, i32) {
    %c0_i32 = arith.constant 0 : i32
    %c0_i32_0 = arith.constant 0 : i32
    return %arg0, %c0_i32 : i32, i32
  }
}

</mosaic_0001>

<llo_original>
// kernel: cnn3d_forward.8
$region0: #{cnn3d_forward.8}
  #allocation0 [shape = 'u32[]', space=smem, size = 0x4, offset = 0x4, fixed_abs, tag = 'smem constant byte address 0x4 - core index']
  #allocation1 [shape = 'u32[144,128]{1,0:T(1,128)}', space=vmem, size = 0x12000, scoped, tag = 'internal scratch']
  %s0 = inlined_call_operand.vmem [shape: bf16[128,1408], index: 0, kind: input, shape index: {}]
  %s1 = inlined_call_operand.vmem [shape: bf16[1408,128], index: 1, kind: input, shape index: {}]
  %s2 = inlined_call_operand.vmem [shape: f32[1,128], index: 2, kind: input, shape index: {}]
  %s3 = inlined_call_operand.vmem [shape: bf16[128,128], index: 3, kind: output, shape index: {0}]
  %s4 = inlined_call_operand.vmem [shape: f32[8,128], index: 4, kind: output, shape index: {1}]
  %5 = xla_tuple %s3, %s4
  %s6 = sld [smem:[#allocation0]]
  $region30: #{cnn3d_forward.8} parent=0
    _
  %s8 = ssub.s32 1, %s6
  %s9 = scalar_select 0, %s8, %s6
  // Predicated region
  $region2: #{cnn3d_forward.8} parent=0 // pred_check
    _
  $region3: #{cnn3d_forward.8} parent=0 // pred_check_branch
    %11 = sbr.rel (0) target = $region5
  $region4: #{cnn3d_forward.8} parent=0 // pred_region
    _
  $region5: #{cnn3d_forward.8} parent=0 // pred_fallthru
    _
  // Predicated region
  $region6: #{cnn3d_forward.8} parent=0 // pred_check
    _
  $region7: #{cnn3d_forward.8} parent=0 // pred_check_branch
    %13 = sbr.rel (0) target = $region9
  $region8: #{cnn3d_forward.8} parent=0 // pred_region
    _
  $region9: #{cnn3d_forward.8} parent=0 // pred_fallthru
    _
  // Predicated region
  $region10: #{cnn3d_forward.8} parent=0 // pred_check
    _
  $region11: #{cnn3d_forward.8} parent=0 // pred_check_branch
    %15 = sbr.rel (0) target = $region13
  $region12: #{cnn3d_forward.8} parent=0 // pred_region
    _
  $region13: #{cnn3d_forward.8} parent=0 // pred_fallthru
    _
  %v17 = vld [vmem:[%s0] sm:$0xff]
  %v18 = vld [vmem:[%s0 + $0x8] sm:$0xff]
  %v19 = vld [vmem:[%s0 + $0x10] sm:$0xff]
  %v20 = vld [vmem:[%s0 + $0x18] sm:$0xff]
  %v21 = vld [vmem:[%s0 + $0x20] sm:$0xff]
  %v22 = vld [vmem:[%s0 + $0x28] sm:$0xf]
  %v23 = vld [vmem:[%s0 + $0x2c] sm:$0xff]
  %v24 = vld [vmem:[%s0 + $0x34] sm:$0xff]
  %v25 = vld [vmem:[%s0 + $0x3c] sm:$0xff]
  %v26 = vld [vmem:[%s0 + $0x44] sm:$0xff]
  %v27 = vld [vmem:[%s0 + $0x4c] sm:$0xff]
  %v28 = vld [vmem:[%s0 + $0x54] sm:$0xf]
  %v29 = vld [vmem:[%s0 + $0x58] sm:$0xff]
  %v30 = vld [vmem:[%s0 + $0x60] sm:$0xff]
  %v31 = vld [vmem:[%s0 + $0x68] sm:$0xff]
  %v32 = vld [vmem:[%s0 + $0x70] sm:$0xff]
  %v33 = vld [vmem:[%s0 + $0x78] sm:$0xff]
  %v34 = vld [vmem:[%s0 + $0x80] sm:$0xf]
  %v35 = vld [vmem:[%s0 + $0x84] sm:$0xff]
  %v36 = vld [vmem:[%s0 + $0x8c] sm:$0xff]
  %v37 = vld [vmem:[%s0 + $0x94] sm:$0xff]
  %v38 = vld [vmem:[%s0 + $0x9c] sm:$0xff]
  %v39 = vld [vmem:[%s0 + $0xa4] sm:$0xff]
  %v40 = vld [vmem:[%s0 + $0xac] sm:$0xf]
  %v41 = vld [vmem:[%s0 + $0xb0] sm:$0xff]
  %v42 = vld [vmem:[%s0 + $0xb8] sm:$0xff]
  %v43 = vld [vmem:[%s0 + $0xc0] sm:$0xff]
  %v44 = vld [vmem:[%s0 + $0xc8] sm:$0xff]
  %v45 = vld [vmem:[%s0 + $0xd0] sm:$0xff]
  %v46 = vld [vmem:[%s0 + $0xd8] sm:$0xf]
  %v47 = vld [vmem:[%s0 + $0xdc] sm:$0xff]
  %v48 = vld [vmem:[%s0 + $0xe4] sm:$0xff]
  %v49 = vld [vmem:[%s0 + $0xec] sm:$0xff]
  %v50 = vld [vmem:[%s0 + $0xf4] sm:$0xff]
  %v51 = vld [vmem:[%s0 + $0xfc] sm:$0xff]
  %v52 = vld [vmem:[%s0 + $0x104] sm:$0xf]
  %v53 = vld [vmem:[%s0 + $0x108] sm:$0xff]
  %v54 = vld [vmem:[%s0 + $0x110] sm:$0xff]
  %v55 = vld [vmem:[%s0 + $0x118] sm:$0xff]
  %v56 = vld [vmem:[%s0 + $0x120] sm:$0xff]
  %v57 = vld [vmem:[%s0 + $0x128] sm:$0xff]
  %v58 = vld [vmem:[%s0 + $0x130] sm:$0xf]
  %v59 = vld [vmem:[%s0 + $0x134] sm:$0xff]
  %v60 = vld [vmem:[%s0 + $0x13c] sm:$0xff]
  %v61 = vld [vmem:[%s0 + $0x144] sm:$0xff]
  %v62 = vld [vmem:[%s0 + $0x14c] sm:$0xff]
  %v63 = vld [vmem:[%s0 + $0x154] sm:$0xff]
  %v64 = vld [vmem:[%s0 + $0x15c] sm:$0xf]
  %v65 = vld [vmem:[%s0 + $0x160] sm:$0xff]
  %v66 = vld [vmem:[%s0 + $0x168] sm:$0xff]
  %v67 = vld [vmem:[%s0 + $0x170] sm:$0xff]
  %v68 = vld [vmem:[%s0 + $0x178] sm:$0xff]
  %v69 = vld [vmem:[%s0 + $0x180] sm:$0xff]
  %v70 = vld [vmem:[%s0 + $0x188] sm:$0xf]
  %v71 = vld [vmem:[%s0 + $0x18c] sm:$0xff]
  %v72 = vld [vmem:[%s0 + $0x194] sm:$0xff]
  %v73 = vld [vmem:[%s0 + $0x19c] sm:$0xff]
  %v74 = vld [vmem:[%s0 + $0x1a4] sm:$0xff]
  %v75 = vld [vmem:[%s0 + $0x1ac] sm:$0xff]
  %v76 = vld [vmem:[%s0 + $0x1b4] sm:$0xf]
  %v77 = vld [vmem:[%s0 + $0x1b8] sm:$0xff]
  %v78 = vld [vmem:[%s0 + $0x1c0] sm:$0xff]
  %v79 = vld [vmem:[%s0 + $0x1c8] sm:$0xff]
  %v80 = vld [vmem:[%s0 + $0x1d0] sm:$0xff]
  %v81 = vld [vmem:[%s0 + $0x1d8] sm:$0xff]
  %v82 = vld [vmem:[%s0 + $0x1e0] sm:$0xf]
  %v83 = vld [vmem:[%s0 + $0x1e4] sm:$0xff]
  %v84 = vld [vmem:[%s0 + $0x1ec] sm:$0xff]
  %v85 = vld [vmem:[%s0 + $0x1f4] sm:$0xff]
  %v86 = vld [vmem:[%s0 + $0x1fc] sm:$0xff]
  %v87 = vld [vmem:[%s0 + $0x204] sm:$0xff]
  %v88 = vld [vmem:[%s0 + $0x20c] sm:$0xf]
  %v89 = vld [vmem:[%s0 + $0x210] sm:$0xff]
  %v90 = vld [vmem:[%s0 + $0x218] sm:$0xff]
  %v91 = vld [vmem:[%s0 + $0x220] sm:$0xff]
  %v92 = vld [vmem:[%s0 + $0x228] sm:$0xff]
  %v93 = vld [vmem:[%s0 + $0x230] sm:$0xff]
  %v94 = vld [vmem:[%s0 + $0x238] sm:$0xf]
  %v95 = vld [vmem:[%s0 + $0x23c] sm:$0xff]
  %v96 = vld [vmem:[%s0 + $0x244] sm:$0xff]
  %v97 = vld [vmem:[%s0 + $0x24c] sm:$0xff]
  %v98 = vld [vmem:[%s0 + $0x254] sm:$0xff]
  %v99 = vld [vmem:[%s0 + $0x25c] sm:$0xff]
  %v100 = vld [vmem:[%s0 + $0x264] sm:$0xf]
  %v101 = vld [vmem:[%s0 + $0x268] sm:$0xff]
  %v102 = vld [vmem:[%s0 + $0x270] sm:$0xff]
  %v103 = vld [vmem:[%s0 + $0x278] sm:$0xff]
  %v104 = vld [vmem:[%s0 + $0x280] sm:$0xff]
  %v105 = vld [vmem:[%s0 + $0x288] sm:$0xff]
  %v106 = vld [vmem:[%s0 + $0x290] sm:$0xf]
  %v107 = vld [vmem:[%s0 + $0x294] sm:$0xff]
  %v108 = vld [vmem:[%s0 + $0x29c] sm:$0xff]
  %v109 = vld [vmem:[%s0 + $0x2a4] sm:$0xff]
  %v110 = vld [vmem:[%s0 + $0x2ac] sm:$0xff]
  %v111 = vld [vmem:[%s0 + $0x2b4] sm:$0xff]
  %v112 = vld [vmem:[%s0 + $0x2bc] sm:$0xf]
  %v113 = vld [vmem:[%s1] sm:$0xf]
  %v114 = vld [vmem:[%s1 + $0x4] sm:$0xf]
  %v115 = vld [vmem:[%s1 + $0x8] sm:$0xf]
  %v116 = vld [vmem:[%s1 + $0xc] sm:$0xf]
  %v117 = vld [vmem:[%s1 + $0x10] sm:$0xf]
  %v118 = vld [vmem:[%s1 + $0x14] sm:$0xf]
  %v119 = vld [vmem:[%s1 + $0x18] sm:$0xf]
  %v120 = vld [vmem:[%s1 + $0x1c] sm:$0xf]
  %v121 = vld [vmem:[%s1 + $0x20] sm:$0xf]
  %v122 = vld [vmem:[%s1 + $0x24] sm:$0xf]
  %v123 = vld [vmem:[%s1 + $0x28] sm:$0xf]
  %v124 = vld [vmem:[%s1 + $0x2c] sm:$0xf]
  %v125 = vld [vmem:[%s1 + $0x30] sm:$0xf]
  %v126 = vld [vmem:[%s1 + $0x34] sm:$0xf]
  %v127 = vld [vmem:[%s1 + $0x38] sm:$0xf]
  %v128 = vld [vmem:[%s1 + $0x3c] sm:$0xf]
  %v129 = vld [vmem:[%s1 + $0x40] sm:$0xf]
  %v130 = vld [vmem:[%s1 + $0x44] sm:$0xf]
  %v131 = vld [vmem:[%s1 + $0x48] sm:$0xf]
  %v132 = vld [vmem:[%s1 + $0x4c] sm:$0xf]
  %v133 = vld [vmem:[%s1 + $0x50] sm:$0xf]
  %v134 = vld [vmem:[%s1 + $0x54] sm:$0xf]
  %v135 = vld [vmem:[%s1 + $0x58] sm:$0xf]
  %v136 = vld [vmem:[%s1 + $0x5c] sm:$0xf]
  %v137 = vld [vmem:[%s1 + $0x60] sm:$0xf]
  %v138 = vld [vmem:[%s1 + $0x64] sm:$0xf]
  %v139 = vld [vmem:[%s1 + $0x68] sm:$0xf]
  %v140 = vld [vmem:[%s1 + $0x6c] sm:$0xf]
  %v141 = vld [vmem:[%s1 + $0x70] sm:$0xf]
  %v142 = vld [vmem:[%s1 + $0x74] sm:$0xf]
  %v143 = vld [vmem:[%s1 + $0x78] sm:$0xf]
  %v144 = vld [vmem:[%s1 + $0x7c] sm:$0xf]
  %v145 = vld [vmem:[%s1 + $0x80] sm:$0xf]
  %v146 = vld [vmem:[%s1 + $0x84] sm:$0xf]
  %v147 = vld [vmem:[%s1 + $0x88] sm:$0xf]
  %v148 = vld [vmem:[%s1 + $0x8c] sm:$0xf]
  %v149 = vld [vmem:[%s1 + $0x90] sm:$0xf]
  %v150 = vld [vmem:[%s1 + $0x94] sm:$0xf]
  %v151 = vld [vmem:[%s1 + $0x98] sm:$0xf]
  %v152 = vld [vmem:[%s1 + $0x9c] sm:$0xf]
  %v153 = vld [vmem:[%s1 + $0xa0] sm:$0xf]
  %v154 = vld [vmem:[%s1 + $0xa4] sm:$0xf]
  %v155 = vld [vmem:[%s1 + $0xa8] sm:$0xf]
  %v156 = vld [vmem:[%s1 + $0xac] sm:$0xf]
  %v157 = vld [vmem:[%s1 + $0xb0] sm:$0xf]
  %v158 = vld [vmem:[%s1 + $0xb4] sm:$0xf]
  %v159 = vld [vmem:[%s1 + $0xb8] sm:$0xf]
  %v160 = vld [vmem:[%s1 + $0xbc] sm:$0xf]
  %v161 = vld [vmem:[%s1 + $0xc0] sm:$0xf]
  %v162 = vld [vmem:[%s1 + $0xc4] sm:$0xf]
  %v163 = vld [vmem:[%s1 + $0xc8] sm:$0xf]
  %v164 = vld [vmem:[%s1 + $0xcc] sm:$0xf]
  %v165 = vld [vmem:[%s1 + $0xd0] sm:$0xf]
  %v166 = vld [vmem:[%s1 + $0xd4] sm:$0xf]
  %v167 = vld [vmem:[%s1 + $0xd8] sm:$0xf]
  %v168 = vld [vmem:[%s1 + $0xdc] sm:$0xf]
  %v169 = vld [vmem:[%s1 + $0xe0] sm:$0xf]
  %v170 = vld [vmem:[%s1 + $0xe4] sm:$0xf]
  %v171 = vld [vmem:[%s1 + $0xe8] sm:$0xf]
  %v172 = vld [vmem:[%s1 + $0xec] sm:$0xf]
  %v173 = vld [vmem:[%s1 + $0xf0] sm:$0xf]
  %v174 = vld [vmem:[%s1 + $0xf4] sm:$0xf]
  %v175 = vld [vmem:[%s1 + $0xf8] sm:$0xf]
  %v176 = vld [vmem:[%s1 + $0xfc] sm:$0xf]
  %v177 = vld [vmem:[%s1 + $0x100] sm:$0xf]
  %v178 = vld [vmem:[%s1 + $0x104] sm:$0xf]
  %v179 = vld [vmem:[%s1 + $0x108] sm:$0xf]
  %v180 = vld [vmem:[%s1 + $0x10c] sm:$0xf]
  %v181 = vld [vmem:[%s1 + $0x110] sm:$0xf]
  %v182 = vld [vmem:[%s1 + $0x114] sm:$0xf]
  %v183 = vld [vmem:[%s1 + $0x118] sm:$0xf]
  %v184 = vld [vmem:[%s1 + $0x11c] sm:$0xf]
  %v185 = vld [vmem:[%s1 + $0x120] sm:$0xf]
  %v186 = vld [vmem:[%s1 + $0x124] sm:$0xf]
  %v187 = vld [vmem:[%s1 + $0x128] sm:$0xf]
  %v188 = vld [vmem:[%s1 + $0x12c] sm:$0xf]
  %v189 = vld [vmem:[%s1 + $0x130] sm:$0xf]
  %v190 = vld [vmem:[%s1 + $0x134] sm:$0xf]
  %v191 = vld [vmem:[%s1 + $0x138] sm:$0xf]
  %v192 = vld [vmem:[%s1 + $0x13c] sm:$0xf]
  %v193 = vld [vmem:[%s1 + $0x140] sm:$0xf]
  %v194 = vld [vmem:[%s1 + $0x144] sm:$0xf]
  %v195 = vld [vmem:[%s1 + $0x148] sm:$0xf]
  %v196 = vld [vmem:[%s1 + $0x14c] sm:$0xf]
  %v197 = vld [vmem:[%s1 + $0x150] sm:$0xf]
  %v198 = vld [vmem:[%s1 + $0x154] sm:$0xf]
  %v199 = vld [vmem:[%s1 + $0x158] sm:$0xf]
  %v200 = vld [vmem:[%s1 + $0x15c] sm:$0xf]
  %v201 = vld [vmem:[%s1 + $0x160] sm:$0xf]
  %v202 = vld [vmem:[%s1 + $0x164] sm:$0xf]
  %v203 = vld [vmem:[%s1 + $0x168] sm:$0xf]
  %v204 = vld [vmem:[%s1 + $0x16c] sm:$0xf]
  %v205 = vld [vmem:[%s1 + $0x170] sm:$0xf]
  %v206 = vld [vmem:[%s1 + $0x174] sm:$0xf]
  %v207 = vld [vmem:[%s1 + $0x178] sm:$0xf]
  %v208 = vld [vmem:[%s1 + $0x17c] sm:$0xf]
  %v209 = vld [vmem:[%s1 + $0x180] sm:$0xf]
  %v210 = vld [vmem:[%s1 + $0x184] sm:$0xf]
  %v211 = vld [vmem:[%s1 + $0x188] sm:$0xf]
  %v212 = vld [vmem:[%s1 + $0x18c] sm:$0xf]
  %v213 = vld [vmem:[%s1 + $0x190] sm:$0xf]
  %v214 = vld [vmem:[%s1 + $0x194] sm:$0xf]
  %v215 = vld [vmem:[%s1 + $0x198] sm:$0xf]
  %v216 = vld [vmem:[%s1 + $0x19c] sm:$0xf]
  %v217 = vld [vmem:[%s1 + $0x1a0] sm:$0xf]
  %v218 = vld [vmem:[%s1 + $0x1a4] sm:$0xf]
  %v219 = vld [vmem:[%s1 + $0x1a8] sm:$0xf]
  %v220 = vld [vmem:[%s1 + $0x1ac] sm:$0xf]
  %v221 = vld [vmem:[%s1 + $0x1b0] sm:$0xf]
  %v222 = vld [vmem:[%s1 + $0x1b4] sm:$0xf]
  %v223 = vld [vmem:[%s1 + $0x1b8] sm:$0xf]
  %v224 = vld [vmem:[%s1 + $0x1bc] sm:$0xf]
  %v225 = vld [vmem:[%s1 + $0x1c0] sm:$0xf]
  %v226 = vld [vmem:[%s1 + $0x1c4] sm:$0xf]
  %v227 = vld [vmem:[%s1 + $0x1c8] sm:$0xf]
  %v228 = vld [vmem:[%s1 + $0x1cc] sm:$0xf]
  %v229 = vld [vmem:[%s1 + $0x1d0] sm:$0xf]
  %v230 = vld [vmem:[%s1 + $0x1d4] sm:$0xf]
  %v231 = vld [vmem:[%s1 + $0x1d8] sm:$0xf]
  %v232 = vld [vmem:[%s1 + $0x1dc] sm:$0xf]
  %v233 = vld [vmem:[%s1 + $0x1e0] sm:$0xf]
  %v234 = vld [vmem:[%s1 + $0x1e4] sm:$0xf]
  %v235 = vld [vmem:[%s1 + $0x1e8] sm:$0xf]
  %v236 = vld [vmem:[%s1 + $0x1ec] sm:$0xf]
  %v237 = vld [vmem:[%s1 + $0x1f0] sm:$0xf]
  %v238 = vld [vmem:[%s1 + $0x1f4] sm:$0xf]
  %v239 = vld [vmem:[%s1 + $0x1f8] sm:$0xf]
  %v240 = vld [vmem:[%s1 + $0x1fc] sm:$0xf]
  %v241 = vld [vmem:[%s1 + $0x200] sm:$0xf]
  %v242 = vld [vmem:[%s1 + $0x204] sm:$0xf]
  %v243 = vld [vmem:[%s1 + $0x208] sm:$0xf]
  %v244 = vld [vmem:[%s1 + $0x20c] sm:$0xf]
  %v245 = vld [vmem:[%s1 + $0x210] sm:$0xf]
  %v246 = vld [vmem:[%s1 + $0x214] sm:$0xf]
  %v247 = vld [vmem:[%s1 + $0x218] sm:$0xf]
  %v248 = vld [vmem:[%s1 + $0x21c] sm:$0xf]
  %v249 = vld [vmem:[%s1 + $0x220] sm:$0xf]
  %v250 = vld [vmem:[%s1 + $0x224] sm:$0xf]
  %v251 = vld [vmem:[%s1 + $0x228] sm:$0xf]
  %v252 = vld [vmem:[%s1 + $0x22c] sm:$0xf]
  %v253 = vld [vmem:[%s1 + $0x230] sm:$0xf]
  %v254 = vld [vmem:[%s1 + $0x234] sm:$0xf]
  %v255 = vld [vmem:[%s1 + $0x238] sm:$0xf]
  %v256 = vld [vmem:[%s1 + $0x23c] sm:$0xf]
  %v257 = vld [vmem:[%s1 + $0x240] sm:$0xf]
  %v258 = vld [vmem:[%s1 + $0x244] sm:$0xf]
  %v259 = vld [vmem:[%s1 + $0x248] sm:$0xf]
  %v260 = vld [vmem:[%s1 + $0x24c] sm:$0xf]
  %v261 = vld [vmem:[%s1 + $0x250] sm:$0xf]
  %v262 = vld [vmem:[%s1 + $0x254] sm:$0xf]
  %v263 = vld [vmem:[%s1 + $0x258] sm:$0xf]
  %v264 = vld [vmem:[%s1 + $0x25c] sm:$0xf]
  %v265 = vld [vmem:[%s1 + $0x260] sm:$0xf]
  %v266 = vld [vmem:[%s1 + $0x264] sm:$0xf]
  %v267 = vld [vmem:[%s1 + $0x268] sm:$0xf]
  %v268 = vld [vmem:[%s1 + $0x26c] sm:$0xf]
  %v269 = vld [vmem:[%s1 + $0x270] sm:$0xf]
  %v270 = vld [vmem:[%s1 + $0x274] sm:$0xf]
  %v271 = vld [vmem:[%s1 + $0x278] sm:$0xf]
  %v272 = vld [vmem:[%s1 + $0x27c] sm:$0xf]
  %v273 = vld [vmem:[%s1 + $0x280] sm:$0xf]
  %v274 = vld [vmem:[%s1 + $0x284] sm:$0xf]
  %v275 = vld [vmem:[%s1 + $0x288] sm:$0xf]
  %v276 = vld [vmem:[%s1 + $0x28c] sm:$0xf]
  %v277 = vld [vmem:[%s1 + $0x290] sm:$0xf]
  %v278 = vld [vmem:[%s1 + $0x294] sm:$0xf]
  %v279 = vld [vmem:[%s1 + $0x298] sm:$0xf]
  %v280 = vld [vmem:[%s1 + $0x29c] sm:$0xf]
  %v281 = vld [vmem:[%s1 + $0x2a0] sm:$0xf]
  %v282 = vld [vmem:[%s1 + $0x2a4] sm:$0xf]
  %v283 = vld [vmem:[%s1 + $0x2a8] sm:$0xf]
  %v284 = vld [vmem:[%s1 + $0x2ac] sm:$0xf]
  %v285 = vld [vmem:[%s1 + $0x2b0] sm:$0xf]
  %v286 = vld [vmem:[%s1 + $0x2b4] sm:$0xf]
  %v287 = vld [vmem:[%s1 + $0x2b8] sm:$0xf]
  %v288 = vld [vmem:[%s1 + $0x2bc] sm:$0xf]
  %v289 = vld [vmem:[%s2] sm:$0x1]
  %v291 = vlaneseq
  %v292 = vshrl.u32 %v291, 7
  %v293 = vsub.s32 0, %v292
  %v294 = vrot.slane %v289, %v293
  %v392 = vunpack.c.l.b16 %v17
  %v393 = vunpack.c.h.b16 %v17
  %v394 = vunpack.c.l.b16 %v18
  %v395 = vunpack.c.h.b16 %v18
  %v396 = vunpack.c.l.b16 %v19
  %v397 = vunpack.c.h.b16 %v19
  %v398 = vunpack.c.l.b16 %v20
  %v399 = vunpack.c.h.b16 %v20
  %v400 = vunpack.c.l.b16 %v21
  %v401 = vunpack.c.h.b16 %v21
  %v402 = vunpack.c.l.b16 %v22
  %v403 = vunpack.c.l.b16 %v23
  %v404 = vunpack.c.h.b16 %v23
  %v405 = vunpack.c.l.b16 %v24
  %v406 = vunpack.c.h.b16 %v24
  %v407 = vunpack.c.l.b16 %v25
  %v408 = vunpack.c.h.b16 %v25
  %v409 = vunpack.c.l.b16 %v26
  %v410 = vunpack.c.h.b16 %v26
  %v411 = vunpack.c.l.b16 %v27
  %v412 = vunpack.c.h.b16 %v27
  %v413 = vunpack.c.l.b16 %v28
  %v414 = vunpack.c.l.b16 %v29
  %v415 = vunpack.c.h.b16 %v29
  %v416 = vunpack.c.l.b16 %v30
  %v417 = vunpack.c.h.b16 %v30
  %v418 = vunpack.c.l.b16 %v31
  %v419 = vunpack.c.h.b16 %v31
  %v420 = vunpack.c.l.b16 %v32
  %v421 = vunpack.c.h.b16 %v32
  %v422 = vunpack.c.l.b16 %v33
  %v423 = vunpack.c.h.b16 %v33
  %v424 = vunpack.c.l.b16 %v34
  %v425 = vunpack.c.l.b16 %v35
  %v426 = vunpack.c.h.b16 %v35
  %v427 = vunpack.c.l.b16 %v36
  %v428 = vunpack.c.h.b16 %v36
  %v429 = vunpack.c.l.b16 %v37
  %v430 = vunpack.c.h.b16 %v37
  %v431 = vunpack.c.l.b16 %v38
  %v432 = vunpack.c.h.b16 %v38
  %v433 = vunpack.c.l.b16 %v39
  %v434 = vunpack.c.h.b16 %v39
  %v435 = vunpack.c.l.b16 %v40
  %v436 = vunpack.c.l.b16 %v41
  %v437 = vunpack.c.h.b16 %v41
  %v438 = vunpack.c.l.b16 %v42
  %v439 = vunpack.c.h.b16 %v42
  %v440 = vunpack.c.l.b16 %v43
  %v441 = vunpack.c.h.b16 %v43
  %v442 = vunpack.c.l.b16 %v44
  %v443 = vunpack.c.h.b16 %v44
  %v444 = vunpack.c.l.b16 %v45
  %v445 = vunpack.c.h.b16 %v45
  %v446 = vunpack.c.l.b16 %v46
  %v447 = vunpack.c.l.b16 %v47
  %v448 = vunpack.c.h.b16 %v47
  %v449 = vunpack.c.l.b16 %v48
  %v450 = vunpack.c.h.b16 %v48
  %v451 = vunpack.c.l.b16 %v49
  %v452 = vunpack.c.h.b16 %v49
  %v453 = vunpack.c.l.b16 %v50
  %v454 = vunpack.c.h.b16 %v50
  %v455 = vunpack.c.l.b16 %v51
  %v456 = vunpack.c.h.b16 %v51
  %v457 = vunpack.c.l.b16 %v52
  %v458 = vunpack.c.l.b16 %v53
  %v459 = vunpack.c.h.b16 %v53
  %v460 = vunpack.c.l.b16 %v54
  %v461 = vunpack.c.h.b16 %v54
  %v462 = vunpack.c.l.b16 %v55
  %v463 = vunpack.c.h.b16 %v55
  %v464 = vunpack.c.l.b16 %v56
  %v465 = vunpack.c.h.b16 %v56
  %v466 = vunpack.c.l.b16 %v57
  %v467 = vunpack.c.h.b16 %v57
  %v468 = vunpack.c.l.b16 %v58
  %v469 = vunpack.c.l.b16 %v59
  %v470 = vunpack.c.h.b16 %v59
  %v471 = vunpack.c.l.b16 %v60
  %v472 = vunpack.c.h.b16 %v60
  %v473 = vunpack.c.l.b16 %v61
  %v474 = vunpack.c.h.b16 %v61
  %v475 = vunpack.c.l.b16 %v62
  %v476 = vunpack.c.h.b16 %v62
  %v477 = vunpack.c.l.b16 %v63
  %v478 = vunpack.c.h.b16 %v63
  %v479 = vunpack.c.l.b16 %v64
  %v480 = vunpack.c.l.b16 %v65
  %v481 = vunpack.c.h.b16 %v65
  %v482 = vunpack.c.l.b16 %v66
  %v483 = vunpack.c.h.b16 %v66
  %v484 = vunpack.c.l.b16 %v67
  %v485 = vunpack.c.h.b16 %v67
  %v486 = vunpack.c.l.b16 %v68
  %v487 = vunpack.c.h.b16 %v68
  %v488 = vunpack.c.l.b16 %v69
  %v489 = vunpack.c.h.b16 %v69
  %v490 = vunpack.c.l.b16 %v70
  %v491 = vunpack.c.l.b16 %v71
  %v492 = vunpack.c.h.b16 %v71
  %v493 = vunpack.c.l.b16 %v72
  %v494 = vunpack.c.h.b16 %v72
  %v495 = vunpack.c.l.b16 %v73
  %v496 = vunpack.c.h.b16 %v73
  %v497 = vunpack.c.l.b16 %v74
  %v498 = vunpack.c.h.b16 %v74
  %v499 = vunpack.c.l.b16 %v75
  %v500 = vunpack.c.h.b16 %v75
  %v501 = vunpack.c.l.b16 %v76
  %v502 = vunpack.c.l.b16 %v77
  %v503 = vunpack.c.h.b16 %v77
  %v504 = vunpack.c.l.b16 %v78
  %v505 = vunpack.c.h.b16 %v78
  %v506 = vunpack.c.l.b16 %v79
  %v507 = vunpack.c.h.b16 %v79
  %v508 = vunpack.c.l.b16 %v80
  %v509 = vunpack.c.h.b16 %v80
  %v510 = vunpack.c.l.b16 %v81
  %v511 = vunpack.c.h.b16 %v81
  %v512 = vunpack.c.l.b16 %v82
  %v513 = vunpack.c.l.b16 %v83
  %v514 = vunpack.c.h.b16 %v83
  %v515 = vunpack.c.l.b16 %v84
  %v516 = vunpack.c.h.b16 %v84
  %v517 = vunpack.c.l.b16 %v85
  %v518 = vunpack.c.h.b16 %v85
  %v519 = vunpack.c.l.b16 %v86
  %v520 = vunpack.c.h.b16 %v86
  %v521 = vunpack.c.l.b16 %v87
  %v522 = vunpack.c.h.b16 %v87
  %v523 = vunpack.c.l.b16 %v88
  %v524 = vunpack.c.l.b16 %v89
  %v525 = vunpack.c.h.b16 %v89
  %v526 = vunpack.c.l.b16 %v90
  %v527 = vunpack.c.h.b16 %v90
  %v528 = vunpack.c.l.b16 %v91
  %v529 = vunpack.c.h.b16 %v91
  %v530 = vunpack.c.l.b16 %v92
  %v531 = vunpack.c.h.b16 %v92
  %v532 = vunpack.c.l.b16 %v93
  %v533 = vunpack.c.h.b16 %v93
  %v534 = vunpack.c.l.b16 %v94
  %v535 = vunpack.c.l.b16 %v95
  %v536 = vunpack.c.h.b16 %v95
  %v537 = vunpack.c.l.b16 %v96
  %v538 = vunpack.c.h.b16 %v96
  %v539 = vunpack.c.l.b16 %v97
  %v540 = vunpack.c.h.b16 %v97
  %v541 = vunpack.c.l.b16 %v98
  %v542 = vunpack.c.h.b16 %v98
  %v543 = vunpack.c.l.b16 %v99
  %v544 = vunpack.c.h.b16 %v99
  %v545 = vunpack.c.l.b16 %v100
  %v546 = vunpack.c.l.b16 %v101
  %v547 = vunpack.c.h.b16 %v101
  %v548 = vunpack.c.l.b16 %v102
  %v549 = vunpack.c.h.b16 %v102
  %v550 = vunpack.c.l.b16 %v103
  %v551 = vunpack.c.h.b16 %v103
  %v552 = vunpack.c.l.b16 %v104
  %v553 = vunpack.c.h.b16 %v104
  %v554 = vunpack.c.l.b16 %v105
  %v555 = vunpack.c.h.b16 %v105
  %v556 = vunpack.c.l.b16 %v106
  %v557 = vunpack.c.l.b16 %v107
  %v558 = vunpack.c.h.b16 %v107
  %v559 = vunpack.c.l.b16 %v108
  %v560 = vunpack.c.h.b16 %v108
  %v561 = vunpack.c.l.b16 %v109
  %v562 = vunpack.c.h.b16 %v109
  %v563 = vunpack.c.l.b16 %v110
  %v564 = vunpack.c.h.b16 %v110
  %v565 = vunpack.c.l.b16 %v111
  %v566 = vunpack.c.h.b16 %v111
  %v567 = vunpack.c.l.b16 %v112
  %v568 = vpack.c.b16 %v403, %v392
  %v569 = vpack.c.b16 %v404, %v393
  %v570 = vpack.c.b16 %v405, %v394
  %v571 = vpack.c.b16 %v406, %v395
  %v572 = vpack.c.b16 %v407, %v396
  %v573 = vpack.c.b16 %v408, %v397
  %v574 = vpack.c.b16 %v409, %v398
  %v575 = vpack.c.b16 %v410, %v399
  %v576 = vpack.c.b16 %v411, %v400
  %v577 = vpack.c.b16 %v412, %v401
  %v578 = vpack.c.b16 %v413, %v402
  %v579 = vpack.c.b16 %v425, %v414
  %v580 = vpack.c.b16 %v426, %v415
  %v581 = vpack.c.b16 %v427, %v416
  %v582 = vpack.c.b16 %v428, %v417
  %v583 = vpack.c.b16 %v429, %v418
  %v584 = vpack.c.b16 %v430, %v419
  %v585 = vpack.c.b16 %v431, %v420
  %v586 = vpack.c.b16 %v432, %v421
  %v587 = vpack.c.b16 %v433, %v422
  %v588 = vpack.c.b16 %v434, %v423
  %v589 = vpack.c.b16 %v435, %v424
  %v590 = vpack.c.b16 %v447, %v436
  %v591 = vpack.c.b16 %v448, %v437
  %v592 = vpack.c.b16 %v449, %v438
  %v593 = vpack.c.b16 %v450, %v439
  %v594 = vpack.c.b16 %v451, %v440
  %v595 = vpack.c.b16 %v452, %v441
  %v596 = vpack.c.b16 %v453, %v442
  %v597 = vpack.c.b16 %v454, %v443
  %v598 = vpack.c.b16 %v455, %v444
  %v599 = vpack.c.b16 %v456, %v445
  %v600 = vpack.c.b16 %v457, %v446
  %v601 = vpack.c.b16 %v469, %v458
  %v602 = vpack.c.b16 %v470, %v459
  %v603 = vpack.c.b16 %v471, %v460
  %v604 = vpack.c.b16 %v472, %v461
  %v605 = vpack.c.b16 %v473, %v462
  %v606 = vpack.c.b16 %v474, %v463
  %v607 = vpack.c.b16 %v475, %v464
  %v608 = vpack.c.b16 %v476, %v465
  %v609 = vpack.c.b16 %v477, %v466
  %v610 = vpack.c.b16 %v478, %v467
  %v611 = vpack.c.b16 %v479, %v468
  %v612 = vpack.c.b16 %v491, %v480
  %v613 = vpack.c.b16 %v492, %v481
  %v614 = vpack.c.b16 %v493, %v482
  %v615 = vpack.c.b16 %v494, %v483
  %v616 = vpack.c.b16 %v495, %v484
  %v617 = vpack.c.b16 %v496, %v485
  %v618 = vpack.c.b16 %v497, %v486
  %v619 = vpack.c.b16 %v498, %v487
  %v620 = vpack.c.b16 %v499, %v488
  %v621 = vpack.c.b16 %v500, %v489
  %v622 = vpack.c.b16 %v501, %v490
  %v623 = vpack.c.b16 %v513, %v502
  %v624 = vpack.c.b16 %v514, %v503
  %v625 = vpack.c.b16 %v515, %v504
  %v626 = vpack.c.b16 %v516, %v505
  %v627 = vpack.c.b16 %v517, %v506
  %v628 = vpack.c.b16 %v518, %v507
  %v629 = vpack.c.b16 %v519, %v508
  %v630 = vpack.c.b16 %v520, %v509
  %v631 = vpack.c.b16 %v521, %v510
  %v632 = vpack.c.b16 %v522, %v511
  %v633 = vpack.c.b16 %v523, %v512
  %v634 = vpack.c.b16 %v535, %v524
  %v635 = vpack.c.b16 %v536, %v525
  %v636 = vpack.c.b16 %v537, %v526
  %v637 = vpack.c.b16 %v538, %v527
  %v638 = vpack.c.b16 %v539, %v528
  %v639 = vpack.c.b16 %v540, %v529
  %v640 = vpack.c.b16 %v541, %v530
  %v641 = vpack.c.b16 %v542, %v531
  %v642 = vpack.c.b16 %v543, %v532
  %v643 = vpack.c.b16 %v544, %v533
  %v644 = vpack.c.b16 %v545, %v534
  %v645 = vpack.c.b16 %v557, %v546
  %v646 = vpack.c.b16 %v558, %v547
  %v647 = vpack.c.b16 %v559, %v548
  %v648 = vpack.c.b16 %v560, %v549
  %v649 = vpack.c.b16 %v561, %v550
  %v650 = vpack.c.b16 %v562, %v551
  %v651 = vpack.c.b16 %v563, %v552
  %v652 = vpack.c.b16 %v564, %v553
  %v653 = vpack.c.b16 %v565, %v554
  %v654 = vpack.c.b16 %v566, %v555
  %v655 = vpack.c.b16 %v567, %v556
  %v920 = vunpack.c.l.b16 %v113
  %v921 = vunpack.c.l.b16 %v114
  %v922 = vunpack.c.l.b16 %v115
  %v923 = vunpack.c.l.b16 %v116
  %v924 = vunpack.c.l.b16 %v117
  %v925 = vunpack.c.l.b16 %v118
  %v926 = vunpack.c.l.b16 %v119
  %v927 = vunpack.c.l.b16 %v120
  %v928 = vunpack.c.l.b16 %v121
  %v929 = vunpack.c.l.b16 %v122
  %v930 = vunpack.c.l.b16 %v123
  %v931 = vunpack.c.l.b16 %v124
  %v932 = vunpack.c.l.b16 %v125
  %v933 = vunpack.c.l.b16 %v126
  %v934 = vunpack.c.l.b16 %v127
  %v935 = vunpack.c.l.b16 %v128
  %v936 = vunpack.c.l.b16 %v129
  %v937 = vunpack.c.l.b16 %v130
  %v938 = vunpack.c.l.b16 %v131
  %v939 = vunpack.c.l.b16 %v132
  %v940 = vunpack.c.l.b16 %v133
  %v941 = vunpack.c.l.b16 %v134
  %v942 = vunpack.c.l.b16 %v135
  %v943 = vunpack.c.l.b16 %v136
  %v944 = vunpack.c.l.b16 %v137
  %v945 = vunpack.c.l.b16 %v138
  %v946 = vunpack.c.l.b16 %v139
  %v947 = vunpack.c.l.b16 %v140
  %v948 = vunpack.c.l.b16 %v141
  %v949 = vunpack.c.l.b16 %v142
  %v950 = vunpack.c.l.b16 %v143
  %v951 = vunpack.c.l.b16 %v144
  %v952 = vunpack.c.l.b16 %v145
  %v953 = vunpack.c.l.b16 %v146
  %v954 = vunpack.c.l.b16 %v147
  %v955 = vunpack.c.l.b16 %v148
  %v956 = vunpack.c.l.b16 %v149
  %v957 = vunpack.c.l.b16 %v150
  %v958 = vunpack.c.l.b16 %v151
  %v959 = vunpack.c.l.b16 %v152
  %v960 = vunpack.c.l.b16 %v153
  %v961 = vunpack.c.l.b16 %v154
  %v962 = vunpack.c.l.b16 %v155
  %v963 = vunpack.c.l.b16 %v156
  %v964 = vunpack.c.l.b16 %v157
  %v965 = vunpack.c.l.b16 %v158
  %v966 = vunpack.c.l.b16 %v159
  %v967 = vunpack.c.l.b16 %v160
  %v968 = vunpack.c.l.b16 %v161
  %v969 = vunpack.c.l.b16 %v162
  %v970 = vunpack.c.l.b16 %v163
  %v971 = vunpack.c.l.b16 %v164
  %v972 = vunpack.c.l.b16 %v165
  %v973 = vunpack.c.l.b16 %v166
  %v974 = vunpack.c.l.b16 %v167
  %v975 = vunpack.c.l.b16 %v168
  %v976 = vunpack.c.l.b16 %v169
  %v977 = vunpack.c.l.b16 %v170
  %v978 = vunpack.c.l.b16 %v171
  %v979 = vunpack.c.l.b16 %v172
  %v980 = vunpack.c.l.b16 %v173
  %v981 = vunpack.c.l.b16 %v174
  %v982 = vunpack.c.l.b16 %v175
  %v983 = vunpack.c.l.b16 %v176
  %v984 = vunpack.c.l.b16 %v177
  %v985 = vunpack.c.l.b16 %v178
  %v986 = vunpack.c.l.b16 %v179
  %v987 = vunpack.c.l.b16 %v180
  %v988 = vunpack.c.l.b16 %v181
  %v989 = vunpack.c.l.b16 %v182
  %v990 = vunpack.c.l.b16 %v183
  %v991 = vunpack.c.l.b16 %v184
  %v992 = vunpack.c.l.b16 %v185
  %v993 = vunpack.c.l.b16 %v186
  %v994 = vunpack.c.l.b16 %v187
  %v995 = vunpack.c.l.b16 %v188
  %v996 = vunpack.c.l.b16 %v189
  %v997 = vunpack.c.l.b16 %v190
  %v998 = vunpack.c.l.b16 %v191
  %v999 = vunpack.c.l.b16 %v192
  %v1000 = vunpack.c.l.b16 %v193
  %v1001 = vunpack.c.l.b16 %v194
  %v1002 = vunpack.c.l.b16 %v195
  %v1003 = vunpack.c.l.b16 %v196
  %v1004 = vunpack.c.l.b16 %v197
  %v1005 = vunpack.c.l.b16 %v198
  %v1006 = vunpack.c.l.b16 %v199
  %v1007 = vunpack.c.l.b16 %v200
  %v1008 = vunpack.c.l.b16 %v201
  %v1009 = vunpack.c.l.b16 %v202
  %v1010 = vunpack.c.l.b16 %v203
  %v1011 = vunpack.c.l.b16 %v204
  %v1012 = vunpack.c.l.b16 %v205
  %v1013 = vunpack.c.l.b16 %v206
  %v1014 = vunpack.c.l.b16 %v207
  %v1015 = vunpack.c.l.b16 %v208
  %v1016 = vunpack.c.l.b16 %v209
  %v1017 = vunpack.c.l.b16 %v210
  %v1018 = vunpack.c.l.b16 %v211
  %v1019 = vunpack.c.l.b16 %v212
  %v1020 = vunpack.c.l.b16 %v213
  %v1021 = vunpack.c.l.b16 %v214
  %v1022 = vunpack.c.l.b16 %v215
  %v1023 = vunpack.c.l.b16 %v216
  %v1024 = vunpack.c.l.b16 %v217
  %v1025 = vunpack.c.l.b16 %v218
  %v1026 = vunpack.c.l.b16 %v219
  %v1027 = vunpack.c.l.b16 %v220
  %v1028 = vunpack.c.l.b16 %v221
  %v1029 = vunpack.c.l.b16 %v222
  %v1030 = vunpack.c.l.b16 %v223
  %v1031 = vunpack.c.l.b16 %v224
  %v1032 = vunpack.c.l.b16 %v225
  %v1033 = vunpack.c.l.b16 %v226
  %v1034 = vunpack.c.l.b16 %v227
  %v1035 = vunpack.c.l.b16 %v228
  %v1036 = vunpack.c.l.b16 %v229
  %v1037 = vunpack.c.l.b16 %v230
  %v1038 = vunpack.c.l.b16 %v231
  %v1039 = vunpack.c.l.b16 %v232
  %v1040 = vunpack.c.l.b16 %v233
  %v1041 = vunpack.c.l.b16 %v234
  %v1042 = vunpack.c.l.b16 %v235
  %v1043 = vunpack.c.l.b16 %v236
  %v1044 = vunpack.c.l.b16 %v237
  %v1045 = vunpack.c.l.b16 %v238
  %v1046 = vunpack.c.l.b16 %v239
  %v1047 = vunpack.c.l.b16 %v240
  %v1048 = vunpack.c.l.b16 %v241
  %v1049 = vunpack.c.l.b16 %v242
  %v1050 = vunpack.c.l.b16 %v243
  %v1051 = vunpack.c.l.b16 %v244
  %v1052 = vunpack.c.l.b16 %v245
  %v1053 = vunpack.c.l.b16 %v246
  %v1054 = vunpack.c.l.b16 %v247
  %v1055 = vunpack.c.l.b16 %v248
  %v1056 = vunpack.c.l.b16 %v249
  %v1057 = vunpack.c.l.b16 %v250
  %v1058 = vunpack.c.l.b16 %v251
  %v1059 = vunpack.c.l.b16 %v252
  %v1060 = vunpack.c.l.b16 %v253
  %v1061 = vunpack.c.l.b16 %v254
  %v1062 = vunpack.c.l.b16 %v255
  %v1063 = vunpack.c.l.b16 %v256
  %v1064 = vunpack.c.l.b16 %v257
  %v1065 = vunpack.c.l.b16 %v258
  %v1066 = vunpack.c.l.b16 %v259
  %v1067 = vunpack.c.l.b16 %v260
  %v1068 = vunpack.c.l.b16 %v261
  %v1069 = vunpack.c.l.b16 %v262
  %v1070 = vunpack.c.l.b16 %v263
  %v1071 = vunpack.c.l.b16 %v264
  %v1072 = vunpack.c.l.b16 %v265
  %v1073 = vunpack.c.l.b16 %v266
  %v1074 = vunpack.c.l.b16 %v267
  %v1075 = vunpack.c.l.b16 %v268
  %v1076 = vunpack.c.l.b16 %v269
  %v1077 = vunpack.c.l.b16 %v270
  %v1078 = vunpack.c.l.b16 %v271
  %v1079 = vunpack.c.l.b16 %v272
  %v1080 = vunpack.c.l.b16 %v273
  %v1081 = vunpack.c.l.b16 %v274
  %v1082 = vunpack.c.l.b16 %v275
  %v1083 = vunpack.c.l.b16 %v276
  %v1084 = vunpack.c.l.b16 %v277
  %v1085 = vunpack.c.l.b16 %v278
  %v1086 = vunpack.c.l.b16 %v279
  %v1087 = vunpack.c.l.b16 %v280
  %v1088 = vunpack.c.l.b16 %v281
  %v1089 = vunpack.c.l.b16 %v282
  %v1090 = vunpack.c.l.b16 %v283
  %v1091 = vunpack.c.l.b16 %v284
  %v1092 = vunpack.c.l.b16 %v285
  %v1093 = vunpack.c.l.b16 %v286
  %v1094 = vunpack.c.l.b16 %v287
  %v1095 = vunpack.c.l.b16 %v288
  %v1096 = vpack.c.b16 %v921, %v920
  %v1097 = vpack.c.b16 %v923, %v922
  %v1098 = vpack.c.b16 %v925, %v924
  %v1099 = vpack.c.b16 %v927, %v926
  %v1100 = vpack.c.b16 %v929, %v928
  %v1101 = vpack.c.b16 %v931, %v930
  %v1102 = vpack.c.b16 %v933, %v932
  %v1103 = vpack.c.b16 %v935, %v934
  %v1104 = vpack.c.b16 %v937, %v936
  %v1105 = vpack.c.b16 %v939, %v938
  %v1106 = vpack.c.b16 %v941, %v940
  %v1107 = vpack.c.b16 %v943, %v942
  %v1108 = vpack.c.b16 %v945, %v944
  %v1109 = vpack.c.b16 %v947, %v946
  %v1110 = vpack.c.b16 %v949, %v948
  %v1111 = vpack.c.b16 %v951, %v950
  %v1112 = vpack.c.b16 %v953, %v952
  %v1113 = vpack.c.b16 %v955, %v954
  %v1114 = vpack.c.b16 %v957, %v956
  %v1115 = vpack.c.b16 %v959, %v958
  %v1116 = vpack.c.b16 %v961, %v960
  %v1117 = vpack.c.b16 %v963, %v962
  %v1118 = vpack.c.b16 %v965, %v964
  %v1119 = vpack.c.b16 %v967, %v966
  %v1120 = vpack.c.b16 %v969, %v968
  %v1121 = vpack.c.b16 %v971, %v970
  %v1122 = vpack.c.b16 %v973, %v972
  %v1123 = vpack.c.b16 %v975, %v974
  %v1124 = vpack.c.b16 %v977, %v976
  %v1125 = vpack.c.b16 %v979, %v978
  %v1126 = vpack.c.b16 %v981, %v980
  %v1127 = vpack.c.b16 %v983, %v982
  %v1128 = vpack.c.b16 %v985, %v984
  %v1129 = vpack.c.b16 %v987, %v986
  %v1130 = vpack.c.b16 %v989, %v988
  %v1131 = vpack.c.b16 %v991, %v990
  %v1132 = vpack.c.b16 %v993, %v992
  %v1133 = vpack.c.b16 %v995, %v994
  %v1134 = vpack.c.b16 %v997, %v996
  %v1135 = vpack.c.b16 %v999, %v998
  %v1136 = vpack.c.b16 %v1001, %v1000
  %v1137 = vpack.c.b16 %v1003, %v1002
  %v1138 = vpack.c.b16 %v1005, %v1004
  %v1139 = vpack.c.b16 %v1007, %v1006
  %v1140 = vpack.c.b16 %v1009, %v1008
  %v1141 = vpack.c.b16 %v1011, %v1010
  %v1142 = vpack.c.b16 %v1013, %v1012
  %v1143 = vpack.c.b16 %v1015, %v1014
  %v1144 = vpack.c.b16 %v1017, %v1016
  %v1145 = vpack.c.b16 %v1019, %v1018
  %v1146 = vpack.c.b16 %v1021, %v1020
  %v1147 = vpack.c.b16 %v1023, %v1022
  %v1148 = vpack.c.b16 %v1025, %v1024
  %v1149 = vpack.c.b16 %v1027, %v1026
  %v1150 = vpack.c.b16 %v1029, %v1028
  %v1151 = vpack.c.b16 %v1031, %v1030
  %v1152 = vpack.c.b16 %v1033, %v1032
  %v1153 = vpack.c.b16 %v1035, %v1034
  %v1154 = vpack.c.b16 %v1037, %v1036
  %v1155 = vpack.c.b16 %v1039, %v1038
  %v1156 = vpack.c.b16 %v1041, %v1040
  %v1157 = vpack.c.b16 %v1043, %v1042
  %v1158 = vpack.c.b16 %v1045, %v1044
  %v1159 = vpack.c.b16 %v1047, %v1046
  %v1160 = vpack.c.b16 %v1049, %v1048
  %v1161 = vpack.c.b16 %v1051, %v1050
  %v1162 = vpack.c.b16 %v1053, %v1052
  %v1163 = vpack.c.b16 %v1055, %v1054
  %v1164 = vpack.c.b16 %v1057, %v1056
  %v1165 = vpack.c.b16 %v1059, %v1058
  %v1166 = vpack.c.b16 %v1061, %v1060
  %v1167 = vpack.c.b16 %v1063, %v1062
  %v1168 = vpack.c.b16 %v1065, %v1064
  %v1169 = vpack.c.b16 %v1067, %v1066
  %v1170 = vpack.c.b16 %v1069, %v1068
  %v1171 = vpack.c.b16 %v1071, %v1070
  %v1172 = vpack.c.b16 %v1073, %v1072
  %v1173 = vpack.c.b16 %v1075, %v1074
  %v1174 = vpack.c.b16 %v1077, %v1076
  %v1175 = vpack.c.b16 %v1079, %v1078
  %v1176 = vpack.c.b16 %v1081, %v1080
  %v1177 = vpack.c.b16 %v1083, %v1082
  %v1178 = vpack.c.b16 %v1085, %v1084
  %v1179 = vpack.c.b16 %v1087, %v1086
  %v1180 = vpack.c.b16 %v1089, %v1088
  %v1181 = vpack.c.b16 %v1091, %v1090
  %v1182 = vpack.c.b16 %v1093, %v1092
  %v1183 = vpack.c.b16 %v1095, %v1094
  %1272 = vmatprep.subr.bf16.mxu0 0
  %1273 = vmatpush1.bf16.msra.mxu0 %v1103
  %1274 = vmatprep.subr.bf16.mxu0 0
  %1275 = vmatpush1.bf16.msra.mxu0 %v1102
  %1276 = vmatprep.subr.bf16.mxu0 0
  %1277 = vmatpush1.bf16.msra.mxu0 %v1101
  %1278 = vmatprep.subr.bf16.mxu0 0
  %1279 = vmatpush1.bf16.msra.mxu0 %v1100
  %1280 = vmatprep.subr.bf16.mxu0 0
  %1281 = vmatpush1.bf16.msra.mxu0 %v1099
  %1282 = vmatprep.subr.bf16.mxu0 0
  %1283 = vmatpush1.bf16.msra.mxu0 %v1098
  %1284 = vmatprep.subr.bf16.mxu0 0
  %1285 = vmatpush1.bf16.msra.mxu0 %v1097
  %1286 = vmatprep.subr.bf16.mxu0 0
  %1287 = vmatpush1.bf16.msra.mxu0 %v1096
  %1288 = vmatprep.subr.bf16.mxu0 0
  %1289 = vmatpush2.bf16.msra.mxu0 %v1111
  %1290 = vmatprep.subr.bf16.mxu0 0
  %1291 = vmatpush2.bf16.msra.mxu0 %v1110
  %1292 = vmatprep.subr.bf16.mxu0 0
  %1293 = vmatpush2.bf16.msra.mxu0 %v1109
  %1294 = vmatprep.subr.bf16.mxu0 0
  %1295 = vmatpush2.bf16.msra.mxu0 %v1108
  %1296 = vmatprep.subr.bf16.mxu0 0
  %1297 = vmatpush2.bf16.msra.mxu0 %v1107
  %1298 = vmatprep.subr.bf16.mxu0 0
  %1299 = vmatpush2.bf16.msra.mxu0 %v1106
  %1300 = vmatprep.subr.bf16.mxu0 0
  %1301 = vmatpush2.bf16.msra.mxu0 %v1105
  %1302 = vmatprep.subr.bf16.mxu0 0
  %1303 = vmatpush2.bf16.msra.mxu0 %v1104
  %1304 = vmatprep.mubr.bf16.mxu0 %v569
  %1305 = vmatmul.mubr.bf16.gmra.mxu0 %v568
  %v1306 = vpop.f32.mrf.mxu0
  %v1307 = vadd.f32 %v294, %v1306
  %v1308 = vpop.f32.mrf.mxu0
  %v1309 = vpop.f32.mrf.mxu0
  %v1310 = vadd.f32 %v294, %v1309
  %v1311 = vpop.f32.mrf.mxu0
  %1312 = vmatprep.mubr.bf16.mxu0 %v580
  %1313 = vmatmul.mubr.bf16.gmra.mxu0 %v579
  %v1314 = vpop.f32.mrf.mxu0
  %v1315 = vadd.f32 %v294, %v1314
  %v1316 = vpop.f32.mrf.mxu0
  %v1317 = vpop.f32.mrf.mxu0
  %v1318 = vadd.f32 %v294, %v1317
  %v1319 = vpop.f32.mrf.mxu0
  %1320 = vmatprep.mubr.bf16.mxu0 %v591
  %1321 = vmatmul.mubr.bf16.gmra.mxu0 %v590
  %v1322 = vpop.f32.mrf.mxu0
  %v1323 = vadd.f32 %v294, %v1322
  %v1324 = vpop.f32.mrf.mxu0
  %v1325 = vpop.f32.mrf.mxu0
  %v1326 = vadd.f32 %v294, %v1325
  %v1327 = vpop.f32.mrf.mxu0
  %1328 = vmatprep.mubr.bf16.mxu0 %v602
  %1329 = vmatmul.mubr.bf16.gmra.mxu0 %v601
  %v1330 = vpop.f32.mrf.mxu0
  %v1331 = vadd.f32 %v294, %v1330
  %v1332 = vpop.f32.mrf.mxu0
  %v1333 = vpop.f32.mrf.mxu0
  %v1334 = vadd.f32 %v294, %v1333
  %v1335 = vpop.f32.mrf.mxu0
  %1336 = vmatprep.mubr.bf16.mxu0 %v613
  %1337 = vmatmul.mubr.bf16.gmra.mxu0 %v612
  %v1338 = vpop.f32.mrf.mxu0
  %v1339 = vadd.f32 %v294, %v1338
  %v1340 = vpop.f32.mrf.mxu0
  %v1341 = vpop.f32.mrf.mxu0
  %v1342 = vadd.f32 %v294, %v1341
  %v1343 = vpop.f32.mrf.mxu0
  %1344 = vmatprep.mubr.bf16.mxu0 %v624
  %1345 = vmatmul.mubr.bf16.gmra.mxu0 %v623
  %v1346 = vpop.f32.mrf.mxu0
  %v1347 = vadd.f32 %v294, %v1346
  %v1348 = vpop.f32.mrf.mxu0
  %v1349 = vpop.f32.mrf.mxu0
  %v1350 = vadd.f32 %v294, %v1349
  %v1351 = vpop.f32.mrf.mxu0
  %1352 = vmatprep.mubr.bf16.mxu0 %v635
  %1353 = vmatmul.mubr.bf16.gmra.mxu0 %v634
  %v1354 = vpop.f32.mrf.mxu0
  %v1355 = vadd.f32 %v294, %v1354
  %v1356 = vpop.f32.mrf.mxu0
  %v1357 = vpop.f32.mrf.mxu0
  %v1358 = vadd.f32 %v294, %v1357
  %v1359 = vpop.f32.mrf.mxu0
  %1360 = vmatprep.mubr.bf16.mxu0 %v646
  %1361 = vmatmul.mubr.bf16.gmra.mxu0 %v645
  %v1362 = vpop.f32.mrf.mxu0
  %v1363 = vadd.f32 %v294, %v1362
  %v1364 = vpop.f32.mrf.mxu0
  %v1365 = vpop.f32.mrf.mxu0
  %v1366 = vadd.f32 %v294, %v1365
  %v1367 = vpop.f32.mrf.mxu0
  %1368 = vdwg.mxu0
  %1369 = vmatprep.subr.bf16.mxu0 0
  %1370 = vmatpush1.bf16.msra.mxu0 %v1119
  %1371 = vmatprep.subr.bf16.mxu0 0
  %1372 = vmatpush1.bf16.msra.mxu0 %v1118
  %1373 = vmatprep.subr.bf16.mxu0 0
  %1374 = vmatpush1.bf16.msra.mxu0 %v1117
  %1375 = vmatprep.subr.bf16.mxu0 0
  %1376 = vmatpush1.bf16.msra.mxu0 %v1116
  %1377 = vmatprep.subr.bf16.mxu0 0
  %1378 = vmatpush1.bf16.msra.mxu0 %v1115
  %1379 = vmatprep.subr.bf16.mxu0 0
  %1380 = vmatpush1.bf16.msra.mxu0 %v1114
  %1381 = vmatprep.subr.bf16.mxu0 0
  %1382 = vmatpush1.bf16.msra.mxu0 %v1113
  %1383 = vmatprep.subr.bf16.mxu0 0
  %1384 = vmatpush1.bf16.msra.mxu0 %v1112
  %1385 = vmatprep.subr.bf16.mxu0 0
  %1386 = vmatpush2.bf16.msra.mxu0 %v1127
  %1387 = vmatprep.subr.bf16.mxu0 0
  %1388 = vmatpush2.bf16.msra.mxu0 %v1126
  %1389 = vmatprep.subr.bf16.mxu0 0
  %1390 = vmatpush2.bf16.msra.mxu0 %v1125
  %1391 = vmatprep.subr.bf16.mxu0 0
  %1392 = vmatpush2.bf16.msra.mxu0 %v1124
  %1393 = vmatprep.subr.bf16.mxu0 0
  %1394 = vmatpush2.bf16.msra.mxu0 %v1123
  %1395 = vmatprep.subr.bf16.mxu0 0
  %1396 = vmatpush2.bf16.msra.mxu0 %v1122
  %1397 = vmatprep.subr.bf16.mxu0 0
  %1398 = vmatpush2.bf16.msra.mxu0 %v1121
  %1399 = vmatprep.subr.bf16.mxu0 0
  %1400 = vmatpush2.bf16.msra.mxu0 %v1120
  %1401 = vmatprep.mubr.bf16.mxu0 %v571
  %1402 = vmatmul.mubr.bf16.gmra.mxu0 %v570
  %v1403 = vpop.f32.mrf.mxu0
  %v1404 = vadd.f32 %v1307, %v1403
  %v1405 = vpop.f32.mrf.mxu0
  %v1406 = vpop.f32.mrf.mxu0
  %v1407 = vadd.f32 %v1310, %v1406
  %v1408 = vpop.f32.mrf.mxu0
  %1409 = vmatprep.mubr.bf16.mxu0 %v582
  %1410 = vmatmul.mubr.bf16.gmra.mxu0 %v581
  %v1411 = vpop.f32.mrf.mxu0
  %v1412 = vadd.f32 %v1315, %v1411
  %v1413 = vpop.f32.mrf.mxu0
  %v1414 = vpop.f32.mrf.mxu0
  %v1415 = vadd.f32 %v1318, %v1414
  %v1416 = vpop.f32.mrf.mxu0
  %1417 = vmatprep.mubr.bf16.mxu0 %v593
  %1418 = vmatmul.mubr.bf16.gmra.mxu0 %v592
  %v1419 = vpop.f32.mrf.mxu0
  %v1420 = vadd.f32 %v1323, %v1419
  %v1421 = vpop.f32.mrf.mxu0
  %v1422 = vpop.f32.mrf.mxu0
  %v1423 = vadd.f32 %v1326, %v1422
  %v1424 = vpop.f32.mrf.mxu0
  %1425 = vmatprep.mubr.bf16.mxu0 %v604
  %1426 = vmatmul.mubr.bf16.gmra.mxu0 %v603
  %v1427 = vpop.f32.mrf.mxu0
  %v1428 = vadd.f32 %v1331, %v1427
  %v1429 = vpop.f32.mrf.mxu0
  %v1430 = vpop.f32.mrf.mxu0
  %v1431 = vadd.f32 %v1334, %v1430
  %v1432 = vpop.f32.mrf.mxu0
  %1433 = vmatprep.mubr.bf16.mxu0 %v615
  %1434 = vmatmul.mubr.bf16.gmra.mxu0 %v614
  %v1435 = vpop.f32.mrf.mxu0
  %v1436 = vadd.f32 %v1339, %v1435
  %v1437 = vpop.f32.mrf.mxu0
  %v1438 = vpop.f32.mrf.mxu0
  %v1439 = vadd.f32 %v1342, %v1438
  %v1440 = vpop.f32.mrf.mxu0
  %1441 = vmatprep.mubr.bf16.mxu0 %v626
  %1442 = vmatmul.mubr.bf16.gmra.mxu0 %v625
  %v1443 = vpop.f32.mrf.mxu0
  %v1444 = vadd.f32 %v1347, %v1443
  %v1445 = vpop.f32.mrf.mxu0
  %v1446 = vpop.f32.mrf.mxu0
  %v1447 = vadd.f32 %v1350, %v1446
  %v1448 = vpop.f32.mrf.mxu0
  %1449 = vmatprep.mubr.bf16.mxu0 %v637
  %1450 = vmatmul.mubr.bf16.gmra.mxu0 %v636
  %v1451 = vpop.f32.mrf.mxu0
  %v1452 = vadd.f32 %v1355, %v1451
  %v1453 = vpop.f32.mrf.mxu0
  %v1454 = vpop.f32.mrf.mxu0
  %v1455 = vadd.f32 %v1358, %v1454
  %v1456 = vpop.f32.mrf.mxu0
  %1457 = vmatprep.mubr.bf16.mxu0 %v648
  %1458 = vmatmul.mubr.bf16.gmra.mxu0 %v647
  %v1459 = vpop.f32.mrf.mxu0
  %v1460 = vadd.f32 %v1363, %v1459
  %v1461 = vpop.f32.mrf.mxu0
  %v1462 = vpop.f32.mrf.mxu0
  %v1463 = vadd.f32 %v1366, %v1462
  %v1464 = vpop.f32.mrf.mxu0
  %1465 = vdwg.mxu0
  %1466 = vmatprep.subr.bf16.mxu0 0
  %1467 = vmatpush1.bf16.msra.mxu0 %v1135
  %1468 = vmatprep.subr.bf16.mxu0 0
  %1469 = vmatpush1.bf16.msra.mxu0 %v1134
  %1470 = vmatprep.subr.bf16.mxu0 0
  %1471 = vmatpush1.bf16.msra.mxu0 %v1133
  %1472 = vmatprep.subr.bf16.mxu0 0
  %1473 = vmatpush1.bf16.msra.mxu0 %v1132
  %1474 = vmatprep.subr.bf16.mxu0 0
  %1475 = vmatpush1.bf16.msra.mxu0 %v1131
  %1476 = vmatprep.subr.bf16.mxu0 0
  %1477 = vmatpush1.bf16.msra.mxu0 %v1130
  %1478 = vmatprep.subr.bf16.mxu0 0
  %1479 = vmatpush1.bf16.msra.mxu0 %v1129
  %1480 = vmatprep.subr.bf16.mxu0 0
  %1481 = vmatpush1.bf16.msra.mxu0 %v1128
  %1482 = vmatprep.subr.bf16.mxu0 0
  %1483 = vmatpush2.bf16.msra.mxu0 %v1143
  %1484 = vmatprep.subr.bf16.mxu0 0
  %1485 = vmatpush2.bf16.msra.mxu0 %v1142
  %1486 = vmatprep.subr.bf16.mxu0 0
  %1487 = vmatpush2.bf16.msra.mxu0 %v1141
  %1488 = vmatprep.subr.bf16.mxu0 0
  %1489 = vmatpush2.bf16.msra.mxu0 %v1140
  %1490 = vmatprep.subr.bf16.mxu0 0
  %1491 = vmatpush2.bf16.msra.mxu0 %v1139
  %1492 = vmatprep.subr.bf16.mxu0 0
  %1493 = vmatpush2.bf16.msra.mxu0 %v1138
  %1494 = vmatprep.subr.bf16.mxu0 0
  %1495 = vmatpush2.bf16.msra.mxu0 %v1137
  %1496 = vmatprep.subr.bf16.mxu0 0
  %1497 = vmatpush2.bf16.msra.mxu0 %v1136
  %1498 = vmatprep.mubr.bf16.mxu0 %v573
  %1499 = vmatmul.mubr.bf16.gmra.mxu0 %v572
  %v1500 = vpop.f32.mrf.mxu0
  %v1501 = vadd.f32 %v1404, %v1500
  %v1502 = vpop.f32.mrf.mxu0
  %v1503 = vpop.f32.mrf.mxu0
  %v1504 = vadd.f32 %v1407, %v1503
  %v1505 = vpop.f32.mrf.mxu0
  %1506 = vmatprep.mubr.bf16.mxu0 %v584
  %1507 = vmatmul.mubr.bf16.gmra.mxu0 %v583
  %v1508 = vpop.f32.mrf.mxu0
  %v1509 = vadd.f32 %v1412, %v1508
  %v1510 = vpop.f32.mrf.mxu0
  %v1511 = vpop.f32.mrf.mxu0
  %v1512 = vadd.f32 %v1415, %v1511
  %v1513 = vpop.f32.mrf.mxu0
  %1514 = vmatprep.mubr.bf16.mxu0 %v595
  %1515 = vmatmul.mubr.bf16.gmra.mxu0 %v594
  %v1516 = vpop.f32.mrf.mxu0
  %v1517 = vadd.f32 %v1420, %v1516
  %v1518 = vpop.f32.mrf.mxu0
  %v1519 = vpop.f32.mrf.mxu0
  %v1520 = vadd.f32 %v1423, %v1519
  %v1521 = vpop.f32.mrf.mxu0
  %1522 = vmatprep.mubr.bf16.mxu0 %v606
  %1523 = vmatmul.mubr.bf16.gmra.mxu0 %v605
  %v1524 = vpop.f32.mrf.mxu0
  %v1525 = vadd.f32 %v1428, %v1524
  %v1526 = vpop.f32.mrf.mxu0
  %v1527 = vpop.f32.mrf.mxu0
  %v1528 = vadd.f32 %v1431, %v1527
  %v1529 = vpop.f32.mrf.mxu0
  %1530 = vmatprep.mubr.bf16.mxu0 %v617
  %1531 = vmatmul.mubr.bf16.gmra.mxu0 %v616
  %v1532 = vpop.f32.mrf.mxu0
  %v1533 = vadd.f32 %v1436, %v1532
  %v1534 = vpop.f32.mrf.mxu0
  %v1535 = vpop.f32.mrf.mxu0
  %v1536 = vadd.f32 %v1439, %v1535
  %v1537 = vpop.f32.mrf.mxu0
  %1538 = vmatprep.mubr.bf16.mxu0 %v628
  %1539 = vmatmul.mubr.bf16.gmra.mxu0 %v627
  %v1540 = vpop.f32.mrf.mxu0
  %v1541 = vadd.f32 %v1444, %v1540
  %v1542 = vpop.f32.mrf.mxu0
  %v1543 = vpop.f32.mrf.mxu0
  %v1544 = vadd.f32 %v1447, %v1543
  %v1545 = vpop.f32.mrf.mxu0
  %1546 = vmatprep.mubr.bf16.mxu0 %v639
  %1547 = vmatmul.mubr.bf16.gmra.mxu0 %v638
  %v1548 = vpop.f32.mrf.mxu0
  %v1549 = vadd.f32 %v1452, %v1548
  %v1550 = vpop.f32.mrf.mxu0
  %v1551 = vpop.f32.mrf.mxu0
  %v1552 = vadd.f32 %v1455, %v1551
  %v1553 = vpop.f32.mrf.mxu0
  %1554 = vmatprep.mubr.bf16.mxu0 %v650
  %1555 = vmatmul.mubr.bf16.gmra.mxu0 %v649
  %v1556 = vpop.f32.mrf.mxu0
  %v1557 = vadd.f32 %v1460, %v1556
  %v1558 = vpop.f32.mrf.mxu0
  %v1559 = vpop.f32.mrf.mxu0
  %v1560 = vadd.f32 %v1463, %v1559
  %v1561 = vpop.f32.mrf.mxu0
  %1562 = vdwg.mxu0
  %1563 = vmatprep.subr.bf16.mxu0 0
  %1564 = vmatpush1.bf16.msra.mxu0 %v1151
  %1565 = vmatprep.subr.bf16.mxu0 0
  %1566 = vmatpush1.bf16.msra.mxu0 %v1150
  %1567 = vmatprep.subr.bf16.mxu0 0
  %1568 = vmatpush1.bf16.msra.mxu0 %v1149
  %1569 = vmatprep.subr.bf16.mxu0 0
  %1570 = vmatpush1.bf16.msra.mxu0 %v1148
  %1571 = vmatprep.subr.bf16.mxu0 0
  %1572 = vmatpush1.bf16.msra.mxu0 %v1147
  %1573 = vmatprep.subr.bf16.mxu0 0
  %1574 = vmatpush1.bf16.msra.mxu0 %v1146
  %1575 = vmatprep.subr.bf16.mxu0 0
  %1576 = vmatpush1.bf16.msra.mxu0 %v1145
  %1577 = vmatprep.subr.bf16.mxu0 0
  %1578 = vmatpush1.bf16.msra.mxu0 %v1144
  %1579 = vmatprep.subr.bf16.mxu0 0
  %1580 = vmatpush2.bf16.msra.mxu0 %v1159
  %1581 = vmatprep.subr.bf16.mxu0 0
  %1582 = vmatpush2.bf16.msra.mxu0 %v1158
  %1583 = vmatprep.subr.bf16.mxu0 0
  %1584 = vmatpush2.bf16.msra.mxu0 %v1157
  %1585 = vmatprep.subr.bf16.mxu0 0
  %1586 = vmatpush2.bf16.msra.mxu0 %v1156
  %1587 = vmatprep.subr.bf16.mxu0 0
  %1588 = vmatpush2.bf16.msra.mxu0 %v1155
  %1589 = vmatprep.subr.bf16.mxu0 0
  %1590 = vmatpush2.bf16.msra.mxu0 %v1154
  %1591 = vmatprep.subr.bf16.mxu0 0
  %1592 = vmatpush2.bf16.msra.mxu0 %v1153
  %1593 = vmatprep.subr.bf16.mxu0 0
  %1594 = vmatpush2.bf16.msra.mxu0 %v1152
  %1595 = vmatprep.mubr.bf16.mxu0 %v575
  %1596 = vmatmul.mubr.bf16.gmra.mxu0 %v574
  %v1597 = vpop.f32.mrf.mxu0
  %v1598 = vadd.f32 %v1501, %v1597
  %v1599 = vpop.f32.mrf.mxu0
  %v1600 = vpop.f32.mrf.mxu0
  %v1601 = vadd.f32 %v1504, %v1600
  %v1602 = vpop.f32.mrf.mxu0
  %1603 = vmatprep.mubr.bf16.mxu0 %v586
  %1604 = vmatmul.mubr.bf16.gmra.mxu0 %v585
  %v1605 = vpop.f32.mrf.mxu0
  %v1606 = vadd.f32 %v1509, %v1605
  %v1607 = vpop.f32.mrf.mxu0
  %v1608 = vpop.f32.mrf.mxu0
  %v1609 = vadd.f32 %v1512, %v1608
  %v1610 = vpop.f32.mrf.mxu0
  %1611 = vmatprep.mubr.bf16.mxu0 %v597
  %1612 = vmatmul.mubr.bf16.gmra.mxu0 %v596
  %v1613 = vpop.f32.mrf.mxu0
  %v1614 = vadd.f32 %v1517, %v1613
  %v1615 = vpop.f32.mrf.mxu0
  %v1616 = vpop.f32.mrf.mxu0
  %v1617 = vadd.f32 %v1520, %v1616
  %v1618 = vpop.f32.mrf.mxu0
  %1619 = vmatprep.mubr.bf16.mxu0 %v608
  %1620 = vmatmul.mubr.bf16.gmra.mxu0 %v607
  %v1621 = vpop.f32.mrf.mxu0
  %v1622 = vadd.f32 %v1525, %v1621
  %v1623 = vpop.f32.mrf.mxu0
  %v1624 = vpop.f32.mrf.mxu0
  %v1625 = vadd.f32 %v1528, %v1624
  %v1626 = vpop.f32.mrf.mxu0
  %1627 = vmatprep.mubr.bf16.mxu0 %v619
  %1628 = vmatmul.mubr.bf16.gmra.mxu0 %v618
  %v1629 = vpop.f32.mrf.mxu0
  %v1630 = vadd.f32 %v1533, %v1629
  %v1631 = vpop.f32.mrf.mxu0
  %v1632 = vpop.f32.mrf.mxu0
  %v1633 = vadd.f32 %v1536, %v1632
  %v1634 = vpop.f32.mrf.mxu0
  %1635 = vmatprep.mubr.bf16.mxu0 %v630
  %1636 = vmatmul.mubr.bf16.gmra.mxu0 %v629
  %v1637 = vpop.f32.mrf.mxu0
  %v1638 = vadd.f32 %v1541, %v1637
  %v1639 = vpop.f32.mrf.mxu0
  %v1640 = vpop.f32.mrf.mxu0
  %v1641 = vadd.f32 %v1544, %v1640
  %v1642 = vpop.f32.mrf.mxu0
  %1643 = vmatprep.mubr.bf16.mxu0 %v641
  %1644 = vmatmul.mubr.bf16.gmra.mxu0 %v640
  %v1645 = vpop.f32.mrf.mxu0
  %v1646 = vadd.f32 %v1549, %v1645
  %v1647 = vpop.f32.mrf.mxu0
  %v1648 = vpop.f32.mrf.mxu0
  %v1649 = vadd.f32 %v1552, %v1648
  %v1650 = vpop.f32.mrf.mxu0
  %1651 = vmatprep.mubr.bf16.mxu0 %v652
  %1652 = vmatmul.mubr.bf16.gmra.mxu0 %v651
  %v1653 = vpop.f32.mrf.mxu0
  %v1654 = vadd.f32 %v1557, %v1653
  %v1655 = vpop.f32.mrf.mxu0
  %v1656 = vpop.f32.mrf.mxu0
  %v1657 = vadd.f32 %v1560, %v1656
  %v1658 = vpop.f32.mrf.mxu0
  %1659 = vdwg.mxu0
  %1660 = vmatprep.subr.bf16.mxu0 0
  %1661 = vmatpush1.bf16.msra.mxu0 %v1167
  %1662 = vmatprep.subr.bf16.mxu0 0
  %1663 = vmatpush1.bf16.msra.mxu0 %v1166
  %1664 = vmatprep.subr.bf16.mxu0 0
  %1665 = vmatpush1.bf16.msra.mxu0 %v1165
  %1666 = vmatprep.subr.bf16.mxu0 0
  %1667 = vmatpush1.bf16.msra.mxu0 %v1164
  %1668 = vmatprep.subr.bf16.mxu0 0
  %1669 = vmatpush1.bf16.msra.mxu0 %v1163
  %1670 = vmatprep.subr.bf16.mxu0 0
  %1671 = vmatpush1.bf16.msra.mxu0 %v1162
  %1672 = vmatprep.subr.bf16.mxu0 0
  %1673 = vmatpush1.bf16.msra.mxu0 %v1161
  %1674 = vmatprep.subr.bf16.mxu0 0
  %1675 = vmatpush1.bf16.msra.mxu0 %v1160
  %1676 = vmatprep.subr.bf16.mxu0 0
  %1677 = vmatpush2.bf16.msra.mxu0 %v1175
  %1678 = vmatprep.subr.bf16.mxu0 0
  %1679 = vmatpush2.bf16.msra.mxu0 %v1174
  %1680 = vmatprep.subr.bf16.mxu0 0
  %1681 = vmatpush2.bf16.msra.mxu0 %v1173
  %1682 = vmatprep.subr.bf16.mxu0 0
  %1683 = vmatpush2.bf16.msra.mxu0 %v1172
  %1684 = vmatprep.subr.bf16.mxu0 0
  %1685 = vmatpush2.bf16.msra.mxu0 %v1171
  %1686 = vmatprep.subr.bf16.mxu0 0
  %1687 = vmatpush2.bf16.msra.mxu0 %v1170
  %1688 = vmatprep.subr.bf16.mxu0 0
  %1689 = vmatpush2.bf16.msra.mxu0 %v1169
  %1690 = vmatprep.subr.bf16.mxu0 0
  %1691 = vmatpush2.bf16.msra.mxu0 %v1168
  %1692 = vmatprep.mubr.bf16.mxu0 %v577
  %1693 = vmatmul.mubr.bf16.gmra.mxu0 %v576
  %v1694 = vpop.f32.mrf.mxu0
  %v1695 = vadd.f32 %v1598, %v1694
  %v1696 = vpop.f32.mrf.mxu0
  %v1697 = vpop.f32.mrf.mxu0
  %v1698 = vadd.f32 %v1601, %v1697
  %v1699 = vpop.f32.mrf.mxu0
  %1700 = vmatprep.mubr.bf16.mxu0 %v588
  %1701 = vmatmul.mubr.bf16.gmra.mxu0 %v587
  %v1702 = vpop.f32.mrf.mxu0
  %v1703 = vadd.f32 %v1606, %v1702
  %v1704 = vpop.f32.mrf.mxu0
  %v1705 = vpop.f32.mrf.mxu0
  %v1706 = vadd.f32 %v1609, %v1705
  %v1707 = vpop.f32.mrf.mxu0
  %1708 = vmatprep.mubr.bf16.mxu0 %v599
  %1709 = vmatmul.mubr.bf16.gmra.mxu0 %v598
  %v1710 = vpop.f32.mrf.mxu0
  %v1711 = vadd.f32 %v1614, %v1710
  %v1712 = vpop.f32.mrf.mxu0
  %v1713 = vpop.f32.mrf.mxu0
  %v1714 = vadd.f32 %v1617, %v1713
  %v1715 = vpop.f32.mrf.mxu0
  %1716 = vmatprep.mubr.bf16.mxu0 %v610
  %1717 = vmatmul.mubr.bf16.gmra.mxu0 %v609
  %v1718 = vpop.f32.mrf.mxu0
  %v1719 = vadd.f32 %v1622, %v1718
  %v1720 = vpop.f32.mrf.mxu0
  %v1721 = vpop.f32.mrf.mxu0
  %v1722 = vadd.f32 %v1625, %v1721
  %v1723 = vpop.f32.mrf.mxu0
  %1724 = vmatprep.mubr.bf16.mxu0 %v621
  %1725 = vmatmul.mubr.bf16.gmra.mxu0 %v620
  %v1726 = vpop.f32.mrf.mxu0
  %v1727 = vadd.f32 %v1630, %v1726
  %v1728 = vpop.f32.mrf.mxu0
  %v1729 = vpop.f32.mrf.mxu0
  %v1730 = vadd.f32 %v1633, %v1729
  %v1731 = vpop.f32.mrf.mxu0
  %1732 = vmatprep.mubr.bf16.mxu0 %v632
  %1733 = vmatmul.mubr.bf16.gmra.mxu0 %v631
  %v1734 = vpop.f32.mrf.mxu0
  %v1735 = vadd.f32 %v1638, %v1734
  %v1736 = vpop.f32.mrf.mxu0
  %v1737 = vpop.f32.mrf.mxu0
  %v1738 = vadd.f32 %v1641, %v1737
  %v1739 = vpop.f32.mrf.mxu0
  %1740 = vmatprep.mubr.bf16.mxu0 %v643
  %1741 = vmatmul.mubr.bf16.gmra.mxu0 %v642
  %v1742 = vpop.f32.mrf.mxu0
  %v1743 = vadd.f32 %v1646, %v1742
  %v1744 = vpop.f32.mrf.mxu0
  %v1745 = vpop.f32.mrf.mxu0
  %v1746 = vadd.f32 %v1649, %v1745
  %v1747 = vpop.f32.mrf.mxu0
  %1748 = vmatprep.mubr.bf16.mxu0 %v654
  %1749 = vmatmul.mubr.bf16.gmra.mxu0 %v653
  %v1750 = vpop.f32.mrf.mxu0
  %v1751 = vadd.f32 %v1654, %v1750
  %v1752 = vpop.f32.mrf.mxu0
  %v1753 = vpop.f32.mrf.mxu0
  %v1754 = vadd.f32 %v1657, %v1753
  %v1755 = vpop.f32.mrf.mxu0
  %1756 = vdwg.mxu0
  %1757 = vmatprep.subr.bf16.mxu0 0
  %1758 = vmatpush1.bf16.msra.mxu0 %v1183
  %1759 = vmatprep.subr.bf16.mxu0 0
  %1760 = vmatpush1.bf16.msra.mxu0 %v1182
  %1761 = vmatprep.subr.bf16.mxu0 0
  %1762 = vmatpush1.bf16.msra.mxu0 %v1181
  %1763 = vmatprep.subr.bf16.mxu0 0
  %1764 = vmatpush1.bf16.msra.mxu0 %v1180
  %1765 = vmatprep.subr.bf16.mxu0 0
  %1766 = vmatpush1.bf16.msra.mxu0 %v1179
  %1767 = vmatprep.subr.bf16.mxu0 0
  %1768 = vmatpush1.bf16.msra.mxu0 %v1178
  %1769 = vmatprep.subr.bf16.mxu0 0
  %1770 = vmatpush1.bf16.msra.mxu0 %v1177
  %1771 = vmatprep.subr.bf16.mxu0 0
  %1772 = vmatpush1.bf16.msra.mxu0 %v1176
  %1773 = vmatprep.subr.bf16.mxu0 0
  %1774 = vmatpush2.bf16.msra.mxu0 0
  %1775 = vmatprep.subr.bf16.mxu0 0
  %1776 = vmatpush2.bf16.msra.mxu0 0
  %1777 = vmatprep.subr.bf16.mxu0 0
  %1778 = vmatpush2.bf16.msra.mxu0 0
  %1779 = vmatprep.subr.bf16.mxu0 0
  %1780 = vmatpush2.bf16.msra.mxu0 0
  %1781 = vmatprep.subr.bf16.mxu0 0
  %1782 = vmatpush2.bf16.msra.mxu0 0
  %1783 = vmatprep.subr.bf16.mxu0 0
  %1784 = vmatpush2.bf16.msra.mxu0 0
  %1785 = vmatprep.subr.bf16.mxu0 0
  %1786 = vmatpush2.bf16.msra.mxu0 0
  %1787 = vmatprep.subr.bf16.mxu0 0
  %1788 = vmatpush2.bf16.msra.mxu0 0
  %1789 = vmatprep.mubr.bf16.mxu0 0
  %1790 = vmatmul.mubr.bf16.gmra.mxu0 %v578
  %v1791 = vpop.f32.mrf.mxu0
  %v1792 = vadd.f32 %v1695, %v1791
  %v1793 = vpop.f32.mrf.mxu0
  %v1794 = vpop.f32.mrf.mxu0
  %v1795 = vadd.f32 %v1698, %v1794
  %v1796 = vpop.f32.mrf.mxu0
  %1797 = vmatprep.mubr.bf16.mxu0 0
  %1798 = vmatmul.mubr.bf16.gmra.mxu0 %v589
  %v1799 = vpop.f32.mrf.mxu0
  %v1800 = vadd.f32 %v1703, %v1799
  %v1801 = vpop.f32.mrf.mxu0
  %v1802 = vpop.f32.mrf.mxu0
  %v1803 = vadd.f32 %v1706, %v1802
  %v1804 = vpop.f32.mrf.mxu0
  %1805 = vmatprep.mubr.bf16.mxu0 0
  %1806 = vmatmul.mubr.bf16.gmra.mxu0 %v600
  %v1807 = vpop.f32.mrf.mxu0
  %v1808 = vadd.f32 %v1711, %v1807
  %v1809 = vpop.f32.mrf.mxu0
  %v1810 = vpop.f32.mrf.mxu0
  %v1811 = vadd.f32 %v1714, %v1810
  %v1812 = vpop.f32.mrf.mxu0
  %1813 = vmatprep.mubr.bf16.mxu0 0
  %1814 = vmatmul.mubr.bf16.gmra.mxu0 %v611
  %v1815 = vpop.f32.mrf.mxu0
  %v1816 = vadd.f32 %v1719, %v1815
  %v1817 = vpop.f32.mrf.mxu0
  %v1818 = vpop.f32.mrf.mxu0
  %v1819 = vadd.f32 %v1722, %v1818
  %v1820 = vpop.f32.mrf.mxu0
  %1821 = vmatprep.mubr.bf16.mxu0 0
  %1822 = vmatmul.mubr.bf16.gmra.mxu0 %v622
  %v1823 = vpop.f32.mrf.mxu0
  %v1824 = vadd.f32 %v1727, %v1823
  %v1825 = vpop.f32.mrf.mxu0
  %v1826 = vpop.f32.mrf.mxu0
  %v1827 = vadd.f32 %v1730, %v1826
  %v1828 = vpop.f32.mrf.mxu0
  %1829 = vmatprep.mubr.bf16.mxu0 0
  %1830 = vmatmul.mubr.bf16.gmra.mxu0 %v633
  %v1831 = vpop.f32.mrf.mxu0
  %v1832 = vadd.f32 %v1735, %v1831
  %v1833 = vpop.f32.mrf.mxu0
  %v1834 = vpop.f32.mrf.mxu0
  %v1835 = vadd.f32 %v1738, %v1834
  %v1836 = vpop.f32.mrf.mxu0
  %1837 = vmatprep.mubr.bf16.mxu0 0
  %1838 = vmatmul.mubr.bf16.gmra.mxu0 %v644
  %v1839 = vpop.f32.mrf.mxu0
  %v1840 = vadd.f32 %v1743, %v1839
  %v1841 = vpop.f32.mrf.mxu0
  %v1842 = vpop.f32.mrf.mxu0
  %v1843 = vadd.f32 %v1746, %v1842
  %v1844 = vpop.f32.mrf.mxu0
  %1845 = vmatprep.mubr.bf16.mxu0 0
  %1846 = vmatmul.mubr.bf16.gmra.mxu0 %v655
  %v1847 = vpop.f32.mrf.mxu0
  %v1848 = vadd.f32 %v1751, %v1847
  %v1849 = vpop.f32.mrf.mxu0
  %v1850 = vpop.f32.mrf.mxu0
  %v1851 = vadd.f32 %v1754, %v1850
  %v1852 = vpop.f32.mrf.mxu0
  %1853 = vdwg.mxu0
  %v1854 = vmax.f32 %v1792, 0.0
  %v1855 = vmax.f32 %v1795, 0.0
  %v1856 = vmax.f32 %v1800, 0.0
  %v1857 = vmax.f32 %v1803, 0.0
  %v1858 = vmax.f32 %v1808, 0.0
  %v1859 = vmax.f32 %v1811, 0.0
  %v1860 = vmax.f32 %v1816, 0.0
  %v1861 = vmax.f32 %v1819, 0.0
  %v1862 = vmax.f32 %v1824, 0.0
  %v1863 = vmax.f32 %v1827, 0.0
  %v1864 = vmax.f32 %v1832, 0.0
  %v1865 = vmax.f32 %v1835, 0.0
  %v1866 = vmax.f32 %v1840, 0.0
  %v1867 = vmax.f32 %v1843, 0.0
  %v1868 = vmax.f32 %v1848, 0.0
  %v1869 = vmax.f32 %v1851, 0.0
  %v1870 = vpack.c.bf16 %v1855, %v1854
  %v1871 = vpack.c.bf16 %v1857, %v1856
  %v1872 = vpack.c.bf16 %v1859, %v1858
  %v1873 = vpack.c.bf16 %v1861, %v1860
  %v1874 = vpack.c.bf16 %v1863, %v1862
  %v1875 = vpack.c.bf16 %v1865, %v1864
  %v1876 = vpack.c.bf16 %v1867, %v1866
  %v1877 = vpack.c.bf16 %v1869, %v1868
  %v1886 = vunpack.c.l.b16 %v1870
  %v1887 = vunpack.c.h.b16 %v1870
  %v1888 = vunpack.c.l.b16 %v1871
  %v1889 = vunpack.c.h.b16 %v1871
  %v1890 = vunpack.c.l.b16 %v1872
  %v1891 = vunpack.c.h.b16 %v1872
  %v1892 = vunpack.c.l.b16 %v1873
  %v1893 = vunpack.c.h.b16 %v1873
  %v1894 = vunpack.c.l.b16 %v1874
  %v1895 = vunpack.c.h.b16 %v1874
  %v1896 = vunpack.c.l.b16 %v1875
  %v1897 = vunpack.c.h.b16 %v1875
  %v1898 = vunpack.c.l.b16 %v1876
  %v1899 = vunpack.c.h.b16 %v1876
  %v1900 = vunpack.c.l.b16 %v1877
  %v1901 = vunpack.c.h.b16 %v1877
  %v1902 = vpack.c.b16 %v1886, %v1886
  %v1903 = vpack.c.b16 %v1887, %v1887
  %v1904 = vpack.c.b16 %v1888, %v1888
  %v1905 = vpack.c.b16 %v1889, %v1889
  %v1906 = vpack.c.b16 %v1890, %v1890
  %v1907 = vpack.c.b16 %v1891, %v1891
  %v1908 = vpack.c.b16 %v1892, %v1892
  %v1909 = vpack.c.b16 %v1893, %v1893
  %v1910 = vpack.c.b16 %v1894, %v1894
  %v1911 = vpack.c.b16 %v1895, %v1895
  %v1912 = vpack.c.b16 %v1896, %v1896
  %v1913 = vpack.c.b16 %v1897, %v1897
  %v1914 = vpack.c.b16 %v1898, %v1898
  %v1915 = vpack.c.b16 %v1899, %v1899
  %v1916 = vpack.c.b16 %v1900, %v1900
  %v1917 = vpack.c.b16 %v1901, %v1901
  %1934 = vst [vmem:[%s3] sm:$0xf] %v1902
  %1935 = vst [vmem:[%s3 + $0x4] sm:$0xf] %v1903
  %1936 = vst [vmem:[%s3 + $0x8] sm:$0xf] %v1904
  %1937 = vst [vmem:[%s3 + $0xc] sm:$0xf] %v1905
  %1938 = vst [vmem:[%s3 + $0x10] sm:$0xf] %v1906
  %1939 = vst [vmem:[%s3 + $0x14] sm:$0xf] %v1907
  %1940 = vst [vmem:[%s3 + $0x18] sm:$0xf] %v1908
  %1941 = vst [vmem:[%s3 + $0x1c] sm:$0xf] %v1909
  %1942 = vst [vmem:[%s3 + $0x20] sm:$0xf] %v1910
  %1943 = vst [vmem:[%s3 + $0x24] sm:$0xf] %v1911
  %1944 = vst [vmem:[%s3 + $0x28] sm:$0xf] %v1912
  %1945 = vst [vmem:[%s3 + $0x2c] sm:$0xf] %v1913
  %1946 = vst [vmem:[%s3 + $0x30] sm:$0xf] %v1914
  %1947 = vst [vmem:[%s3 + $0x34] sm:$0xf] %v1915
  %1948 = vst [vmem:[%s3 + $0x38] sm:$0xf] %v1916
  %1949 = vst [vmem:[%s3 + $0x3c] sm:$0xf] %v1917
  %v1950 = vadd.f32 %v1854, %v1855
  %v1951 = vadd.f32 %v1950, %v1856
  %v1952 = vadd.f32 %v1951, %v1857
  %v1953 = vadd.f32 %v1952, %v1858
  %v1954 = vadd.f32 %v1953, %v1859
  %v1955 = vadd.f32 %v1954, %v1860
  %v1956 = vadd.f32 %v1955, %v1861
  %v1957 = vadd.f32 %v1956, %v1862
  %v1958 = vadd.f32 %v1957, %v1863
  %v1959 = vadd.f32 %v1958, %v1864
  %v1960 = vadd.f32 %v1959, %v1865
  %v1961 = vadd.f32 %v1960, %v1866
  %v1962 = vadd.f32 %v1961, %v1867
  %v1963 = vadd.f32 %v1962, %v1868
  %v1964 = vadd.f32 %v1963, %v1869
  %v1965 = vrot.slane %v1964, 4
  %v1966 = vadd.f32 %v1964, %v1965
  %v1967 = vrot.slane %v1966, 2
  %v1968 = vadd.f32 %v1966, %v1967
  %v1969 = vrot.slane %v1968, 1
  %v1970 = vadd.f32 %v1968, %v1969
  %v1971 = vmul.f32 %v1854, %v1854
  %v1972 = vmul.f32 %v1855, %v1855
  %v1973 = vmul.f32 %v1856, %v1856
  %v1974 = vmul.f32 %v1857, %v1857
  %v1975 = vmul.f32 %v1858, %v1858
  %v1976 = vmul.f32 %v1859, %v1859
  %v1977 = vmul.f32 %v1860, %v1860
  %v1978 = vmul.f32 %v1861, %v1861
  %v1979 = vmul.f32 %v1862, %v1862
  %v1980 = vmul.f32 %v1863, %v1863
  %v1981 = vmul.f32 %v1864, %v1864
  %v1982 = vmul.f32 %v1865, %v1865
  %v1983 = vmul.f32 %v1866, %v1866
  %v1984 = vmul.f32 %v1867, %v1867
  %v1985 = vmul.f32 %v1868, %v1868
  %v1986 = vmul.f32 %v1869, %v1869
  %v1987 = vadd.f32 %v1971, %v1972
  %v1988 = vadd.f32 %v1987, %v1973
  %v1989 = vadd.f32 %v1988, %v1974
  %v1990 = vadd.f32 %v1989, %v1975
  %v1991 = vadd.f32 %v1990, %v1976
  %v1992 = vadd.f32 %v1991, %v1977
  %v1993 = vadd.f32 %v1992, %v1978
  %v1994 = vadd.f32 %v1993, %v1979
  %v1995 = vadd.f32 %v1994, %v1980
  %v1996 = vadd.f32 %v1995, %v1981
  %v1997 = vadd.f32 %v1996, %v1982
  %v1998 = vadd.f32 %v1997, %v1983
  %v1999 = vadd.f32 %v1998, %v1984
  %v2000 = vadd.f32 %v1999, %v1985
  %v2001 = vadd.f32 %v2000, %v1986
  %v2002 = vrot.slane %v2001, 4
  %v2003 = vadd.f32 %v2001, %v2002
  %v2004 = vrot.slane %v2003, 2
  %v2005 = vadd.f32 %v2003, %v2004
  %v2006 = vrot.slane %v2005, 1
  %v2007 = vadd.f32 %v2005, %v2006
  %v2008 = vlaneseq
  %v2009 = vshrl.u32 %v2008, 7
  %vm2010 = vcmp.eq.s32.totalorder %v2009, 0
  %vm2011 = vcmp.eq.s32.totalorder %v2009, 1
  %v2012 = vsel %vm2011, %v2007, 0.0
  %v2013 = vsel %vm2010, %v1970, %v2012
  %2014 = vst [vmem:[%s4] sm:$0xff] %v2013
  // Predicated region
  $region14: #{cnn3d_forward.8} parent=0 // pred_check
    _
  $region15: #{cnn3d_forward.8} parent=0 // pred_check_branch
    %2016 = sbr.rel (0) target = $region17
  $region16: #{cnn3d_forward.8} parent=0 // pred_region
    _
  $region17: #{cnn3d_forward.8} parent=0 // pred_fallthru
    _
  // Predicated region
  $region18: #{cnn3d_forward.8} parent=0 // pred_check
    _
  $region19: #{cnn3d_forward.8} parent=0 // pred_check_branch
    %2018 = sbr.rel (0) target = $region21
  $region20: #{cnn3d_forward.8} parent=0 // pred_region
    _
  $region21: #{cnn3d_forward.8} parent=0 // pred_fallthru
    _
  // Predicated region
  $region22: #{cnn3d_forward.8} parent=0 // pred_check
    _
  $region23: #{cnn3d_forward.8} parent=0 // pred_check_branch
    %2020 = sbr.rel (0) target = $region25
  $region24: #{cnn3d_forward.8} parent=0 // pred_region
    _
  $region25: #{cnn3d_forward.8} parent=0 // pred_fallthru
    _
  // Predicated region
  $region26: #{cnn3d_forward.8} parent=0 // pred_check
    _
  $region27: #{cnn3d_forward.8} parent=0 // pred_check_branch
    %2022 = sbr.rel (0) target = $region29
  $region28: #{cnn3d_forward.8} parent=0 // pred_region
    _
  $region29: #{cnn3d_forward.8} parent=0 // pred_fallthru
    _

// kernel: cnn3d_forward.10
$region0: #{cnn3d_forward.10}
  #allocation0 [shape = 'u32[]', space=smem, size = 0x4, offset = 0x4, fixed_abs, tag = 'smem constant byte address 0x4 - core index']
  #allocation1 [shape = 'u32[144,128]{1,0:T(1,128)}', space=vmem, size = 0x12000, scoped, tag = 'internal scratch']
  %s0 = inlined_call_operand.vmem [shape: bf16[128,128], index: 0, kind: input, shape index: {}]
  %s1 = inlined_call_operand.vmem [shape: bf16[128,128], index: 1, kind: input, shape index: {}]
  %s2 = inlined_call_operand.vmem [shape: f32[1,128], index: 2, kind: input, shape index: {}]
  %s3 = inlined_call_operand.vmem [shape: f32[1,128], index: 3, kind: input, shape index: {}]
  %s4 = inlined_call_operand.vmem [shape: f32[1,128], index: 4, kind: input, shape index: {}]
  %s5 = inlined_call_operand.vmem [shape: f32[1,128], index: 5, kind: input, shape index: {}]
  %s6 = inlined_call_operand.vmem [shape: bf16[128,128], index: 6, kind: output, shape index: {}]
  %s7 = sld [smem:[#allocation0]]
  $region34: #{cnn3d_forward.10} parent=0
    _
  %s9 = ssub.s32 1, %s7
  %s10 = scalar_select 0, %s9, %s7
  // Predicated region
  $region2: #{cnn3d_forward.10} parent=0 // pred_check
    _
  $region3: #{cnn3d_forward.10} parent=0 // pred_check_branch
    %12 = sbr.rel (0) target = $region5
  $region4: #{cnn3d_forward.10} parent=0 // pred_region
    _
  $region5: #{cnn3d_forward.10} parent=0 // pred_fallthru
    _
  // Predicated region
  $region6: #{cnn3d_forward.10} parent=0 // pred_check
    _
  $region7: #{cnn3d_forward.10} parent=0 // pred_check_branch
    %14 = sbr.rel (0) target = $region9
  $region8: #{cnn3d_forward.10} parent=0 // pred_region
    _
  $region9: #{cnn3d_forward.10} parent=0 // pred_fallthru
    _
  // Predicated region
  $region10: #{cnn3d_forward.10} parent=0 // pred_check
    _
  $region11: #{cnn3d_forward.10} parent=0 // pred_check_branch
    %16 = sbr.rel (0) target = $region13
  $region12: #{cnn3d_forward.10} parent=0 // pred_region
    _
  $region13: #{cnn3d_forward.10} parent=0 // pred_fallthru
    _
  // Predicated region
  $region14: #{cnn3d_forward.10} parent=0 // pred_check
    _
  $region15: #{cnn3d_forward.10} parent=0 // pred_check_branch
    %18 = sbr.rel (0) target = $region17
  $region16: #{cnn3d_forward.10} parent=0 // pred_region
    _
  $region17: #{cnn3d_forward.10} parent=0 // pred_fallthru
    _
  // Predicated region
  $region18: #{cnn3d_forward.10} parent=0 // pred_check
    _
  $region19: #{cnn3d_forward.10} parent=0 // pred_check_branch
    %20 = sbr.rel (0) target = $region21
  $region20: #{cnn3d_forward.10} parent=0 // pred_region
    _
  $region21: #{cnn3d_forward.10} parent=0 // pred_fallthru
    _
  // Predicated region
  $region22: #{cnn3d_forward.10} parent=0 // pred_check
    _
  $region23: #{cnn3d_forward.10} parent=0 // pred_check_branch
    %22 = sbr.rel (0) target = $region25
  $region24: #{cnn3d_forward.10} parent=0 // pred_region
    _
  $region25: #{cnn3d_forward.10} parent=0 // pred_fallthru
    _
  %v23 = vld [vmem:[%s0] sm:$0xf]
  %v24 = vld [vmem:[%s0 + $0x4] sm:$0xf]
  %v25 = vld [vmem:[%s0 + $0x8] sm:$0xf]
  %v26 = vld [vmem:[%s0 + $0xc] sm:$0xf]
  %v27 = vld [vmem:[%s0 + $0x10] sm:$0xf]
  %v28 = vld [vmem:[%s0 + $0x14] sm:$0xf]
  %v29 = vld [vmem:[%s0 + $0x18] sm:$0xf]
  %v30 = vld [vmem:[%s0 + $0x1c] sm:$0xf]
  %v31 = vld [vmem:[%s0 + $0x20] sm:$0xf]
  %v32 = vld [vmem:[%s0 + $0x24] sm:$0xf]
  %v33 = vld [vmem:[%s0 + $0x28] sm:$0xf]
  %v34 = vld [vmem:[%s0 + $0x2c] sm:$0xf]
  %v35 = vld [vmem:[%s0 + $0x30] sm:$0xf]
  %v36 = vld [vmem:[%s0 + $0x34] sm:$0xf]
  %v37 = vld [vmem:[%s0 + $0x38] sm:$0xf]
  %v38 = vld [vmem:[%s0 + $0x3c] sm:$0xf]
  %v39 = vunpack.c.l.bf16 %v23
  %v40 = vunpack.c.l.bf16 %v24
  %v41 = vunpack.c.l.bf16 %v25
  %v42 = vunpack.c.l.bf16 %v26
  %v43 = vunpack.c.l.bf16 %v27
  %v44 = vunpack.c.l.bf16 %v28
  %v45 = vunpack.c.l.bf16 %v29
  %v46 = vunpack.c.l.bf16 %v30
  %v47 = vunpack.c.l.bf16 %v31
  %v48 = vunpack.c.l.bf16 %v32
  %v49 = vunpack.c.l.bf16 %v33
  %v50 = vunpack.c.l.bf16 %v34
  %v51 = vunpack.c.l.bf16 %v35
  %v52 = vunpack.c.l.bf16 %v36
  %v53 = vunpack.c.l.bf16 %v37
  %v54 = vunpack.c.l.bf16 %v38
  %v55 = vld [vmem:[%s2] sm:$0x1]
  %v57 = vlaneseq
  %v58 = vshrl.u32 %v57, 7
  %v59 = vsub.s32 0, %v58
  %v60 = vrot.slane %v55, %v59
  %v62 = vmul.f32 %v39, %v60
  %v63 = vmul.f32 %v40, %v60
  %v64 = vmul.f32 %v41, %v60
  %v65 = vmul.f32 %v42, %v60
  %v66 = vmul.f32 %v43, %v60
  %v67 = vmul.f32 %v44, %v60
  %v68 = vmul.f32 %v45, %v60
  %v69 = vmul.f32 %v46, %v60
  %v70 = vmul.f32 %v47, %v60
  %v71 = vmul.f32 %v48, %v60
  %v72 = vmul.f32 %v49, %v60
  %v73 = vmul.f32 %v50, %v60
  %v74 = vmul.f32 %v51, %v60
  %v75 = vmul.f32 %v52, %v60
  %v76 = vmul.f32 %v53, %v60
  %v77 = vmul.f32 %v54, %v60
  %v78 = vld [vmem:[%s3] sm:$0x1]
  %v80 = vlaneseq
  %v81 = vshrl.u32 %v80, 7
  %v82 = vsub.s32 0, %v81
  %v83 = vrot.slane %v78, %v82
  %v85 = vadd.f32 %v62, %v83
  %v86 = vadd.f32 %v63, %v83
  %v87 = vadd.f32 %v64, %v83
  %v88 = vadd.f32 %v65, %v83
  %v89 = vadd.f32 %v66, %v83
  %v90 = vadd.f32 %v67, %v83
  %v91 = vadd.f32 %v68, %v83
  %v92 = vadd.f32 %v69, %v83
  %v93 = vadd.f32 %v70, %v83
  %v94 = vadd.f32 %v71, %v83
  %v95 = vadd.f32 %v72, %v83
  %v96 = vadd.f32 %v73, %v83
  %v97 = vadd.f32 %v74, %v83
  %v98 = vadd.f32 %v75, %v83
  %v99 = vadd.f32 %v76, %v83
  %v100 = vadd.f32 %v77, %v83
  %v101 = vld [vmem:[%s1] sm:$0xf]
  %v102 = vld [vmem:[%s1 + $0x4] sm:$0xf]
  %v103 = vld [vmem:[%s1 + $0x8] sm:$0xf]
  %v104 = vld [vmem:[%s1 + $0xc] sm:$0xf]
  %v105 = vld [vmem:[%s1 + $0x10] sm:$0xf]
  %v106 = vld [vmem:[%s1 + $0x14] sm:$0xf]
  %v107 = vld [vmem:[%s1 + $0x18] sm:$0xf]
  %v108 = vld [vmem:[%s1 + $0x1c] sm:$0xf]
  %v109 = vld [vmem:[%s1 + $0x20] sm:$0xf]
  %v110 = vld [vmem:[%s1 + $0x24] sm:$0xf]
  %v111 = vld [vmem:[%s1 + $0x28] sm:$0xf]
  %v112 = vld [vmem:[%s1 + $0x2c] sm:$0xf]
  %v113 = vld [vmem:[%s1 + $0x30] sm:$0xf]
  %v114 = vld [vmem:[%s1 + $0x34] sm:$0xf]
  %v115 = vld [vmem:[%s1 + $0x38] sm:$0xf]
  %v116 = vld [vmem:[%s1 + $0x3c] sm:$0xf]
  %v117 = vunpack.c.l.bf16 %v101
  %v118 = vunpack.c.l.bf16 %v102
  %v119 = vunpack.c.l.bf16 %v103
  %v120 = vunpack.c.l.bf16 %v104
  %v121 = vunpack.c.l.bf16 %v105
  %v122 = vunpack.c.l.bf16 %v106
  %v123 = vunpack.c.l.bf16 %v107
  %v124 = vunpack.c.l.bf16 %v108
  %v125 = vunpack.c.l.bf16 %v109
  %v126 = vunpack.c.l.bf16 %v110
  %v127 = vunpack.c.l.bf16 %v111
  %v128 = vunpack.c.l.bf16 %v112
  %v129 = vunpack.c.l.bf16 %v113
  %v130 = vunpack.c.l.bf16 %v114
  %v131 = vunpack.c.l.bf16 %v115
  %v132 = vunpack.c.l.bf16 %v116
  %v133 = vld [vmem:[%s4] sm:$0x1]
  %v135 = vlaneseq
  %v136 = vshrl.u32 %v135, 7
  %v137 = vsub.s32 0, %v136
  %v138 = vrot.slane %v133, %v137
  %v140 = vmul.f32 %v117, %v138
  %v141 = vmul.f32 %v118, %v138
  %v142 = vmul.f32 %v119, %v138
  %v143 = vmul.f32 %v120, %v138
  %v144 = vmul.f32 %v121, %v138
  %v145 = vmul.f32 %v122, %v138
  %v146 = vmul.f32 %v123, %v138
  %v147 = vmul.f32 %v124, %v138
  %v148 = vmul.f32 %v125, %v138
  %v149 = vmul.f32 %v126, %v138
  %v150 = vmul.f32 %v127, %v138
  %v151 = vmul.f32 %v128, %v138
  %v152 = vmul.f32 %v129, %v138
  %v153 = vmul.f32 %v130, %v138
  %v154 = vmul.f32 %v131, %v138
  %v155 = vmul.f32 %v132, %v138
  %v156 = vld [vmem:[%s5] sm:$0x1]
  %v158 = vlaneseq
  %v159 = vshrl.u32 %v158, 7
  %v160 = vsub.s32 0, %v159
  %v161 = vrot.slane %v156, %v160
  %v163 = vadd.f32 %v140, %v161
  %v164 = vadd.f32 %v141, %v161
  %v165 = vadd.f32 %v142, %v161
  %v166 = vadd.f32 %v143, %v161
  %v167 = vadd.f32 %v144, %v161
  %v168 = vadd.f32 %v145, %v161
  %v169 = vadd.f32 %v146, %v161
  %v170 = vadd.f32 %v147, %v161
  %v171 = vadd.f32 %v148, %v161
  %v172 = vadd.f32 %v149, %v161
  %v173 = vadd.f32 %v150, %v161
  %v174 = vadd.f32 %v151, %v161
  %v175 = vadd.f32 %v152, %v161
  %v176 = vadd.f32 %v153, %v161
  %v177 = vadd.f32 %v154, %v161
  %v178 = vadd.f32 %v155, %v161
  %v179 = vadd.f32 %v163, %v85
  %v180 = vadd.f32 %v164, %v86
  %v181 = vadd.f32 %v165, %v87
  %v182 = vadd.f32 %v166, %v88
  %v183 = vadd.f32 %v167, %v89
  %v184 = vadd.f32 %v168, %v90
  %v185 = vadd.f32 %v169, %v91
  %v186 = vadd.f32 %v170, %v92
  %v187 = vadd.f32 %v171, %v93
  %v188 = vadd.f32 %v172, %v94
  %v189 = vadd.f32 %v173, %v95
  %v190 = vadd.f32 %v174, %v96
  %v191 = vadd.f32 %v175, %v97
  %v192 = vadd.f32 %v176, %v98
  %v193 = vadd.f32 %v177, %v99
  %v194 = vadd.f32 %v178, %v100
  %v195 = vpack.c.bf16 %v180, %v179
  %v196 = vpack.c.bf16 %v182, %v181
  %v197 = vpack.c.bf16 %v184, %v183
  %v198 = vpack.c.bf16 %v186, %v185
  %v199 = vpack.c.bf16 %v188, %v187
  %v200 = vpack.c.bf16 %v190, %v189
  %v201 = vpack.c.bf16 %v192, %v191
  %v202 = vpack.c.bf16 %v194, %v193
  %v211 = vunpack.c.l.b16 %v195
  %v212 = vunpack.c.h.b16 %v195
  %v213 = vunpack.c.l.b16 %v196
  %v214 = vunpack.c.h.b16 %v196
  %v215 = vunpack.c.l.b16 %v197
  %v216 = vunpack.c.h.b16 %v197
  %v217 = vunpack.c.l.b16 %v198
  %v218 = vunpack.c.h.b16 %v198
  %v219 = vunpack.c.l.b16 %v199
  %v220 = vunpack.c.h.b16 %v199
  %v221 = vunpack.c.l.b16 %v200
  %v222 = vunpack.c.h.b16 %v200
  %v223 = vunpack.c.l.b16 %v201
  %v224 = vunpack.c.h.b16 %v201
  %v225 = vunpack.c.l.b16 %v202
  %v226 = vunpack.c.h.b16 %v202
  %v227 = vpack.c.b16 %v211, %v211
  %v228 = vpack.c.b16 %v212, %v212
  %v229 = vpack.c.b16 %v213, %v213
  %v230 = vpack.c.b16 %v214, %v214
  %v231 = vpack.c.b16 %v215, %v215
  %v232 = vpack.c.b16 %v216, %v216
  %v233 = vpack.c.b16 %v217, %v217
  %v234 = vpack.c.b16 %v218, %v218
  %v235 = vpack.c.b16 %v219, %v219
  %v236 = vpack.c.b16 %v220, %v220
  %v237 = vpack.c.b16 %v221, %v221
  %v238 = vpack.c.b16 %v222, %v222
  %v239 = vpack.c.b16 %v223, %v223
  %v240 = vpack.c.b16 %v224, %v224
  %v241 = vpack.c.b16 %v225, %v225
  %v242 = vpack.c.b16 %v226, %v226
  %259 = vst [vmem:[%s6] sm:$0xf] %v227
  %260 = vst [vmem:[%s6 + $0x4] sm:$0xf] %v228
  %261 = vst [vmem:[%s6 + $0x8] sm:$0xf] %v229
  %262 = vst [vmem:[%s6 + $0xc] sm:$0xf] %v230
  %263 = vst [vmem:[%s6 + $0x10] sm:$0xf] %v231
  %264 = vst [vmem:[%s6 + $0x14] sm:$0xf] %v232
  %265 = vst [vmem:[%s6 + $0x18] sm:$0xf] %v233
  %266 = vst [vmem:[%s6 + $0x1c] sm:$0xf] %v234
  %267 = vst [vmem:[%s6 + $0x20] sm:$0xf] %v235
  %268 = vst [vmem:[%s6 + $0x24] sm:$0xf] %v236
  %269 = vst [vmem:[%s6 + $0x28] sm:$0xf] %v237
  %270 = vst [vmem:[%s6 + $0x2c] sm:$0xf] %v238
  %271 = vst [vmem:[%s6 + $0x30] sm:$0xf] %v239
  %272 = vst [vmem:[%s6 + $0x34] sm:$0xf] %v240
  %273 = vst [vmem:[%s6 + $0x38] sm:$0xf] %v241
  %274 = vst [vmem:[%s6 + $0x3c] sm:$0xf] %v242
  // Predicated region
  $region26: #{cnn3d_forward.10} parent=0 // pred_check
    _
  $region27: #{cnn3d_forward.10} parent=0 // pred_check_branch
    %276 = sbr.rel (0) target = $region29
  $region28: #{cnn3d_forward.10} parent=0 // pred_region
    _
  $region29: #{cnn3d_forward.10} parent=0 // pred_fallthru
    _
  // Predicated region
  $region30: #{cnn3d_forward.10} parent=0 // pred_check
    _
  $region31: #{cnn3d_forward.10} parent=0 // pred_check_branch
    %278 = sbr.rel (0) target = $region33
  $region32: #{cnn3d_forward.10} parent=0 // pred_region
    _
  $region33: #{cnn3d_forward.10} parent=0 // pred_fallthru
    _

// kernel: cnn3d_forward.9
$region0: #{cnn3d_forward.9}
  #allocation0 [shape = 'u32[]', space=smem, size = 0x4, offset = 0x4, fixed_abs, tag = 'smem constant byte address 0x4 - core index']
  #allocation1 [shape = 'u32[144,128]{1,0:T(1,128)}', space=vmem, size = 0x12000, scoped, tag = 'internal scratch']
  %s0 = inlined_call_operand.vmem [shape: bf16[128,2816], index: 0, kind: input, shape index: {}]
  %s1 = inlined_call_operand.vmem [shape: bf16[2816,128], index: 1, kind: input, shape index: {}]
  %s2 = inlined_call_operand.vmem [shape: f32[1,128], index: 2, kind: input, shape index: {}]
  %s3 = inlined_call_operand.vmem [shape: bf16[128,128], index: 3, kind: output, shape index: {0}]
  %s4 = inlined_call_operand.vmem [shape: f32[8,128], index: 4, kind: output, shape index: {1}]
  %5 = xla_tuple %s3, %s4
  %s6 = sld [smem:[#allocation0]]
  $region30: #{cnn3d_forward.9} parent=0
    _
  %s8 = ssub.s32 1, %s6
  %s9 = scalar_select 0, %s8, %s6
  // Predicated region
  $region2: #{cnn3d_forward.9} parent=0 // pred_check
    _
  $region3: #{cnn3d_forward.9} parent=0 // pred_check_branch
    %11 = sbr.rel (0) target = $region5
  $region4: #{cnn3d_forward.9} parent=0 // pred_region
    _
  $region5: #{cnn3d_forward.9} parent=0 // pred_fallthru
    _
  // Predicated region
  $region6: #{cnn3d_forward.9} parent=0 // pred_check
    _
  $region7: #{cnn3d_forward.9} parent=0 // pred_check_branch
    %13 = sbr.rel (0) target = $region9
  $region8: #{cnn3d_forward.9} parent=0 // pred_region
    _
  $region9: #{cnn3d_forward.9} parent=0 // pred_fallthru
    _
  // Predicated region
  $region10: #{cnn3d_forward.9} parent=0 // pred_check
    _
  $region11: #{cnn3d_forward.9} parent=0 // pred_check_branch
    %15 = sbr.rel (0) target = $region13
  $region12: #{cnn3d_forward.9} parent=0 // pred_region
    _
  $region13: #{cnn3d_forward.9} parent=0 // pred_fallthru
    _
  %v17 = vld [vmem:[%s0] sm:$0xff]
  %v18 = vld [vmem:[%s0 + $0x8] sm:$0xff]
  %v19 = vld [vmem:[%s0 + $0x10] sm:$0xff]
  %v20 = vld [vmem:[%s0 + $0x18] sm:$0xff]
  %v21 = vld [vmem:[%s0 + $0x20] sm:$0xff]
  %v22 = vld [vmem:[%s0 + $0x28] sm:$0xff]
  %v23 = vld [vmem:[%s0 + $0x30] sm:$0xff]
  %v24 = vld [vmem:[%s0 + $0x38] sm:$0xff]
  %v25 = vld [vmem:[%s0 + $0x40] sm:$0xff]
  %v26 = vld [vmem:[%s0 + $0x48] sm:$0xff]
  %v27 = vld [vmem:[%s0 + $0x50] sm:$0xff]
  %v28 = vld [vmem:[%s0 + $0x58] sm:$0xff]
  %v29 = vld [vmem:[%s0 + $0x60] sm:$0xff]
  %v30 = vld [vmem:[%s0 + $0x68] sm:$0xff]
  %v31 = vld [vmem:[%s0 + $0x70] sm:$0xff]
  %v32 = vld [vmem:[%s0 + $0x78] sm:$0xff]
  %v33 = vld [vmem:[%s0 + $0x80] sm:$0xff]
  %v34 = vld [vmem:[%s0 + $0x88] sm:$0xff]
  %v35 = vld [vmem:[%s0 + $0x90] sm:$0xff]
  %v36 = vld [vmem:[%s0 + $0x98] sm:$0xff]
  %v37 = vld [vmem:[%s0 + $0xa0] sm:$0xff]
  %v38 = vld [vmem:[%s0 + $0xa8] sm:$0xff]
  %v39 = vld [vmem:[%s0 + $0xb0] sm:$0xff]
  %v40 = vld [vmem:[%s0 + $0xb8] sm:$0xff]
  %v41 = vld [vmem:[%s0 + $0xc0] sm:$0xff]
  %v42 = vld [vmem:[%s0 + $0xc8] sm:$0xff]
  %v43 = vld [vmem:[%s0 + $0xd0] sm:$0xff]
  %v44 = vld [vmem:[%s0 + $0xd8] sm:$0xff]
  %v45 = vld [vmem:[%s0 + $0xe0] sm:$0xff]
  %v46 = vld [vmem:[%s0 + $0xe8] sm:$0xff]
  %v47 = vld [vmem:[%s0 + $0xf0] sm:$0xff]
  %v48 = vld [vmem:[%s0 + $0xf8] sm:$0xff]
  %v49 = vld [vmem:[%s0 + $0x100] sm:$0xff]
  %v50 = vld [vmem:[%s0 + $0x108] sm:$0xff]
  %v51 = vld [vmem:[%s0 + $0x110] sm:$0xff]
  %v52 = vld [vmem:[%s0 + $0x118] sm:$0xff]
  %v53 = vld [vmem:[%s0 + $0x120] sm:$0xff]
  %v54 = vld [vmem:[%s0 + $0x128] sm:$0xff]
  %v55 = vld [vmem:[%s0 + $0x130] sm:$0xff]
  %v56 = vld [vmem:[%s0 + $0x138] sm:$0xff]
  %v57 = vld [vmem:[%s0 + $0x140] sm:$0xff]
  %v58 = vld [vmem:[%s0 + $0x148] sm:$0xff]
  %v59 = vld [vmem:[%s0 + $0x150] sm:$0xff]
  %v60 = vld [vmem:[%s0 + $0x158] sm:$0xff]
  %v61 = vld [vmem:[%s0 + $0x160] sm:$0xff]
  %v62 = vld [vmem:[%s0 + $0x168] sm:$0xff]
  %v63 = vld [vmem:[%s0 + $0x170] sm:$0xff]
  %v64 = vld [vmem:[%s0 + $0x178] sm:$0xff]
  %v65 = vld [vmem:[%s0 + $0x180] sm:$0xff]
  %v66 = vld [vmem:[%s0 + $0x188] sm:$0xff]
  %v67 = vld [vmem:[%s0 + $0x190] sm:$0xff]
  %v68 = vld [vmem:[%s0 + $0x198] sm:$0xff]
  %v69 = vld [vmem:[%s0 + $0x1a0] sm:$0xff]
  %v70 = vld [vmem:[%s0 + $0x1a8] sm:$0xff]
  %v71 = vld [vmem:[%s0 + $0x1b0] sm:$0xff]
  %v72 = vld [vmem:[%s0 + $0x1b8] sm:$0xff]
  %v73 = vld [vmem:[%s0 + $0x1c0] sm:$0xff]
  %v74 = vld [vmem:[%s0 + $0x1c8] sm:$0xff]
  %v75 = vld [vmem:[%s0 + $0x1d0] sm:$0xff]
  %v76 = vld [vmem:[%s0 + $0x1d8] sm:$0xff]
  %v77 = vld [vmem:[%s0 + $0x1e0] sm:$0xff]
  %v78 = vld [vmem:[%s0 + $0x1e8] sm:$0xff]
  %v79 = vld [vmem:[%s0 + $0x1f0] sm:$0xff]
  %v80 = vld [vmem:[%s0 + $0x1f8] sm:$0xff]
  %v81 = vld [vmem:[%s0 + $0x200] sm:$0xff]
  %v82 = vld [vmem:[%s0 + $0x208] sm:$0xff]
  %v83 = vld [vmem:[%s0 + $0x210] sm:$0xff]
  %v84 = vld [vmem:[%s0 + $0x218] sm:$0xff]
  %v85 = vld [vmem:[%s0 + $0x220] sm:$0xff]
  %v86 = vld [vmem:[%s0 + $0x228] sm:$0xff]
  %v87 = vld [vmem:[%s0 + $0x230] sm:$0xff]
  %v88 = vld [vmem:[%s0 + $0x238] sm:$0xff]
  %v89 = vld [vmem:[%s0 + $0x240] sm:$0xff]
  %v90 = vld [vmem:[%s0 + $0x248] sm:$0xff]
  %v91 = vld [vmem:[%s0 + $0x250] sm:$0xff]
  %v92 = vld [vmem:[%s0 + $0x258] sm:$0xff]
  %v93 = vld [vmem:[%s0 + $0x260] sm:$0xff]
  %v94 = vld [vmem:[%s0 + $0x268] sm:$0xff]
  %v95 = vld [vmem:[%s0 + $0x270] sm:$0xff]
  %v96 = vld [vmem:[%s0 + $0x278] sm:$0xff]
  %v97 = vld [vmem:[%s0 + $0x280] sm:$0xff]
  %v98 = vld [vmem:[%s0 + $0x288] sm:$0xff]
  %v99 = vld [vmem:[%s0 + $0x290] sm:$0xff]
  %v100 = vld [vmem:[%s0 + $0x298] sm:$0xff]
  %v101 = vld [vmem:[%s0 + $0x2a0] sm:$0xff]
  %v102 = vld [vmem:[%s0 + $0x2a8] sm:$0xff]
  %v103 = vld [vmem:[%s0 + $0x2b0] sm:$0xff]
  %v104 = vld [vmem:[%s0 + $0x2b8] sm:$0xff]
  %v105 = vld [vmem:[%s0 + $0x2c0] sm:$0xff]
  %v106 = vld [vmem:[%s0 + $0x2c8] sm:$0xff]
  %v107 = vld [vmem:[%s0 + $0x2d0] sm:$0xff]
  %v108 = vld [vmem:[%s0 + $0x2d8] sm:$0xff]
  %v109 = vld [vmem:[%s0 + $0x2e0] sm:$0xff]
  %v110 = vld [vmem:[%s0 + $0x2e8] sm:$0xff]
  %v111 = vld [vmem:[%s0 + $0x2f0] sm:$0xff]
  %v112 = vld [vmem:[%s0 + $0x2f8] sm:$0xff]
  %v113 = vld [vmem:[%s0 + $0x300] sm:$0xff]
  %v114 = vld [vmem:[%s0 + $0x308] sm:$0xff]
  %v115 = vld [vmem:[%s0 + $0x310] sm:$0xff]
  %v116 = vld [vmem:[%s0 + $0x318] sm:$0xff]
  %v117 = vld [vmem:[%s0 + $0x320] sm:$0xff]
  %v118 = vld [vmem:[%s0 + $0x328] sm:$0xff]
  %v119 = vld [vmem:[%s0 + $0x330] sm:$0xff]
  %v120 = vld [vmem:[%s0 + $0x338] sm:$0xff]
  %v121 = vld [vmem:[%s0 + $0x340] sm:$0xff]
  %v122 = vld [vmem:[%s0 + $0x348] sm:$0xff]
  %v123 = vld [vmem:[%s0 + $0x350] sm:$0xff]
  %v124 = vld [vmem:[%s0 + $0x358] sm:$0xff]
  %v125 = vld [vmem:[%s0 + $0x360] sm:$0xff]
  %v126 = vld [vmem:[%s0 + $0x368] sm:$0xff]
  %v127 = vld [vmem:[%s0 + $0x370] sm:$0xff]
  %v128 = vld [vmem:[%s0 + $0x378] sm:$0xff]
  %v129 = vld [vmem:[%s0 + $0x380] sm:$0xff]
  %v130 = vld [vmem:[%s0 + $0x388] sm:$0xff]
  %v131 = vld [vmem:[%s0 + $0x390] sm:$0xff]
  %v132 = vld [vmem:[%s0 + $0x398] sm:$0xff]
  %v133 = vld [vmem:[%s0 + $0x3a0] sm:$0xff]
  %v134 = vld [vmem:[%s0 + $0x3a8] sm:$0xff]
  %v135 = vld [vmem:[%s0 + $0x3b0] sm:$0xff]
  %v136 = vld [vmem:[%s0 + $0x3b8] sm:$0xff]
  %v137 = vld [vmem:[%s0 + $0x3c0] sm:$0xff]
  %v138 = vld [vmem:[%s0 + $0x3c8] sm:$0xff]
  %v139 = vld [vmem:[%s0 + $0x3d0] sm:$0xff]
  %v140 = vld [vmem:[%s0 + $0x3d8] sm:$0xff]
  %v141 = vld [vmem:[%s0 + $0x3e0] sm:$0xff]
  %v142 = vld [vmem:[%s0 + $0x3e8] sm:$0xff]
  %v143 = vld [vmem:[%s0 + $0x3f0] sm:$0xff]
  %v144 = vld [vmem:[%s0 + $0x3f8] sm:$0xff]
  %v145 = vld [vmem:[%s0 + $0x400] sm:$0xff]
  %v146 = vld [vmem:[%s0 + $0x408] sm:$0xff]
  %v147 = vld [vmem:[%s0 + $0x410] sm:$0xff]
  %v148 = vld [vmem:[%s0 + $0x418] sm:$0xff]
  %v149 = vld [vmem:[%s0 + $0x420] sm:$0xff]
  %v150 = vld [vmem:[%s0 + $0x428] sm:$0xff]
  %v151 = vld [vmem:[%s0 + $0x430] sm:$0xff]
  %v152 = vld [vmem:[%s0 + $0x438] sm:$0xff]
  %v153 = vld [vmem:[%s0 + $0x440] sm:$0xff]
  %v154 = vld [vmem:[%s0 + $0x448] sm:$0xff]
  %v155 = vld [vmem:[%s0 + $0x450] sm:$0xff]
  %v156 = vld [vmem:[%s0 + $0x458] sm:$0xff]
  %v157 = vld [vmem:[%s0 + $0x460] sm:$0xff]
  %v158 = vld [vmem:[%s0 + $0x468] sm:$0xff]
  %v159 = vld [vmem:[%s0 + $0x470] sm:$0xff]
  %v160 = vld [vmem:[%s0 + $0x478] sm:$0xff]
  %v161 = vld [vmem:[%s0 + $0x480] sm:$0xff]
  %v162 = vld [vmem:[%s0 + $0x488] sm:$0xff]
  %v163 = vld [vmem:[%s0 + $0x490] sm:$0xff]
  %v164 = vld [vmem:[%s0 + $0x498] sm:$0xff]
  %v165 = vld [vmem:[%s0 + $0x4a0] sm:$0xff]
  %v166 = vld [vmem:[%s0 + $0x4a8] sm:$0xff]
  %v167 = vld [vmem:[%s0 + $0x4b0] sm:$0xff]
  %v168 = vld [vmem:[%s0 + $0x4b8] sm:$0xff]
  %v169 = vld [vmem:[%s0 + $0x4c0] sm:$0xff]
  %v170 = vld [vmem:[%s0 + $0x4c8] sm:$0xff]
  %v171 = vld [vmem:[%s0 + $0x4d0] sm:$0xff]
  %v172 = vld [vmem:[%s0 + $0x4d8] sm:$0xff]
  %v173 = vld [vmem:[%s0 + $0x4e0] sm:$0xff]
  %v174 = vld [vmem:[%s0 + $0x4e8] sm:$0xff]
  %v175 = vld [vmem:[%s0 + $0x4f0] sm:$0xff]
  %v176 = vld [vmem:[%s0 + $0x4f8] sm:$0xff]
  %v177 = vld [vmem:[%s0 + $0x500] sm:$0xff]
  %v178 = vld [vmem:[%s0 + $0x508] sm:$0xff]
  %v179 = vld [vmem:[%s0 + $0x510] sm:$0xff]
  %v180 = vld [vmem:[%s0 + $0x518] sm:$0xff]
  %v181 = vld [vmem:[%s0 + $0x520] sm:$0xff]
  %v182 = vld [vmem:[%s0 + $0x528] sm:$0xff]
  %v183 = vld [vmem:[%s0 + $0x530] sm:$0xff]
  %v184 = vld [vmem:[%s0 + $0x538] sm:$0xff]
  %v185 = vld [vmem:[%s0 + $0x540] sm:$0xff]
  %v186 = vld [vmem:[%s0 + $0x548] sm:$0xff]
  %v187 = vld [vmem:[%s0 + $0x550] sm:$0xff]
  %v188 = vld [vmem:[%s0 + $0x558] sm:$0xff]
  %v189 = vld [vmem:[%s0 + $0x560] sm:$0xff]
  %v190 = vld [vmem:[%s0 + $0x568] sm:$0xff]
  %v191 = vld [vmem:[%s0 + $0x570] sm:$0xff]
  %v192 = vld [vmem:[%s0 + $0x578] sm:$0xff]
  %v193 = vld [vmem:[%s1] sm:$0xf]
  %v194 = vld [vmem:[%s1 + $0x4] sm:$0xf]
  %v195 = vld [vmem:[%s1 + $0x8] sm:$0xf]
  %v196 = vld [vmem:[%s1 + $0xc] sm:$0xf]
  %v197 = vld [vmem:[%s1 + $0x10] sm:$0xf]
  %v198 = vld [vmem:[%s1 + $0x14] sm:$0xf]
  %v199 = vld [vmem:[%s1 + $0x18] sm:$0xf]
  %v200 = vld [vmem:[%s1 + $0x1c] sm:$0xf]
  %v201 = vld [vmem:[%s1 + $0x20] sm:$0xf]
  %v202 = vld [vmem:[%s1 + $0x24] sm:$0xf]
  %v203 = vld [vmem:[%s1 + $0x28] sm:$0xf]
  %v204 = vld [vmem:[%s1 + $0x2c] sm:$0xf]
  %v205 = vld [vmem:[%s1 + $0x30] sm:$0xf]
  %v206 = vld [vmem:[%s1 + $0x34] sm:$0xf]
  %v207 = vld [vmem:[%s1 + $0x38] sm:$0xf]
  %v208 = vld [vmem:[%s1 + $0x3c] sm:$0xf]
  %v209 = vld [vmem:[%s1 + $0x40] sm:$0xf]
  %v210 = vld [vmem:[%s1 + $0x44] sm:$0xf]
  %v211 = vld [vmem:[%s1 + $0x48] sm:$0xf]
  %v212 = vld [vmem:[%s1 + $0x4c] sm:$0xf]
  %v213 = vld [vmem:[%s1 + $0x50] sm:$0xf]
  %v214 = vld [vmem:[%s1 + $0x54] sm:$0xf]
  %v215 = vld [vmem:[%s1 + $0x58] sm:$0xf]
  %v216 = vld [vmem:[%s1 + $0x5c] sm:$0xf]
  %v217 = vld [vmem:[%s1 + $0x60] sm:$0xf]
  %v218 = vld [vmem:[%s1 + $0x64] sm:$0xf]
  %v219 = vld [vmem:[%s1 + $0x68] sm:$0xf]
  %v220 = vld [vmem:[%s1 + $0x6c] sm:$0xf]
  %v221 = vld [vmem:[%s1 + $0x70] sm:$0xf]
  %v222 = vld [vmem:[%s1 + $0x74] sm:$0xf]
  %v223 = vld [vmem:[%s1 + $0x78] sm:$0xf]
  %v224 = vld [vmem:[%s1 + $0x7c] sm:$0xf]
  %v225 = vld [vmem:[%s1 + $0x80] sm:$0xf]
  %v226 = vld [vmem:[%s1 + $0x84] sm:$0xf]
  %v227 = vld [vmem:[%s1 + $0x88] sm:$0xf]
  %v228 = vld [vmem:[%s1 + $0x8c] sm:$0xf]
  %v229 = vld [vmem:[%s1 + $0x90] sm:$0xf]
  %v230 = vld [vmem:[%s1 + $0x94] sm:$0xf]
  %v231 = vld [vmem:[%s1 + $0x98] sm:$0xf]
  %v232 = vld [vmem:[%s1 + $0x9c] sm:$0xf]
  %v233 = vld [vmem:[%s1 + $0xa0] sm:$0xf]
  %v234 = vld [vmem:[%s1 + $0xa4] sm:$0xf]
  %v235 = vld [vmem:[%s1 + $0xa8] sm:$0xf]
  %v236 = vld [vmem:[%s1 + $0xac] sm:$0xf]
  %v237 = vld [vmem:[%s1 + $0xb0] sm:$0xf]
  %v238 = vld [vmem:[%s1 + $0xb4] sm:$0xf]
  %v239 = vld [vmem:[%s1 + $0xb8] sm:$0xf]
  %v240 = vld [vmem:[%s1 + $0xbc] sm:$0xf]
  %v241 = vld [vmem:[%s1 + $0xc0] sm:$0xf]
  %v242 = vld [vmem:[%s1 + $0xc4] sm:$0xf]
  %v243 = vld [vmem:[%s1 + $0xc8] sm:$0xf]
  %v244 = vld [vmem:[%s1 + $0xcc] sm:$0xf]
  %v245 = vld [vmem:[%s1 + $0xd0] sm:$0xf]
  %v246 = vld [vmem:[%s1 + $0xd4] sm:$0xf]
  %v247 = vld [vmem:[%s1 + $0xd8] sm:$0xf]
  %v248 = vld [vmem:[%s1 + $0xdc] sm:$0xf]
  %v249 = vld [vmem:[%s1 + $0xe0] sm:$0xf]
  %v250 = vld [vmem:[%s1 + $0xe4] sm:$0xf]
  %v251 = vld [vmem:[%s1 + $0xe8] sm:$0xf]
  %v252 = vld [vmem:[%s1 + $0xec] sm:$0xf]
  %v253 = vld [vmem:[%s1 + $0xf0] sm:$0xf]
  %v254 = vld [vmem:[%s1 + $0xf4] sm:$0xf]
  %v255 = vld [vmem:[%s1 + $0xf8] sm:$0xf]
  %v256 = vld [vmem:[%s1 + $0xfc] sm:$0xf]
  %v257 = vld [vmem:[%s1 + $0x100] sm:$0xf]
  %v258 = vld [vmem:[%s1 + $0x104] sm:$0xf]
  %v259 = vld [vmem:[%s1 + $0x108] sm:$0xf]
  %v260 = vld [vmem:[%s1 + $0x10c] sm:$0xf]
  %v261 = vld [vmem:[%s1 + $0x110] sm:$0xf]
  %v262 = vld [vmem:[%s1 + $0x114] sm:$0xf]
  %v263 = vld [vmem:[%s1 + $0x118] sm:$0xf]
  %v264 = vld [vmem:[%s1 + $0x11c] sm:$0xf]
  %v265 = vld [vmem:[%s1 + $0x120] sm:$0xf]
  %v266 = vld [vmem:[%s1 + $0x124] sm:$0xf]
  %v267 = vld [vmem:[%s1 + $0x128] sm:$0xf]
  %v268 = vld [vmem:[%s1 + $0x12c] sm:$0xf]
  %v269 = vld [vmem:[%s1 + $0x130] sm:$0xf]
  %v270 = vld [vmem:[%s1 + $0x134] sm:$0xf]
  %v271 = vld [vmem:[%s1 + $0x138] sm:$0xf]
  %v272 = vld [vmem:[%s1 + $0x13c] sm:$0xf]
  %v273 = vld [vmem:[%s1 + $0x140] sm:$0xf]
  %v274 = vld [vmem:[%s1 + $0x144] sm:$0xf]
  %v275 = vld [vmem:[%s1 + $0x148] sm:$0xf]
  %v276 = vld [vmem:[%s1 + $0x14c] sm:$0xf]
  %v277 = vld [vmem:[%s1 + $0x150] sm:$0xf]
  %v278 = vld [vmem:[%s1 + $0x154] sm:$0xf]
  %v279 = vld [vmem:[%s1 + $0x158] sm:$0xf]
  %v280 = vld [vmem:[%s1 + $0x15c] sm:$0xf]
  %v281 = vld [vmem:[%s1 + $0x160] sm:$0xf]
  %v282 = vld [vmem:[%s1 + $0x164] sm:$0xf]
  %v283 = vld [vmem:[%s1 + $0x168] sm:$0xf]
  %v284 = vld [vmem:[%s1 + $0x16c] sm:$0xf]
  %v285 = vld [vmem:[%s1 + $0x170] sm:$0xf]
  %v286 = vld [vmem:[%s1 + $0x174] sm:$0xf]
  %v287 = vld [vmem:[%s1 + $0x178] sm:$0xf]
  %v288 = vld [vmem:[%s1 + $0x17c] sm:$0xf]
  %v289 = vld [vmem:[%s1 + $0x180] sm:$0xf]
  %v290 = vld [vmem:[%s1 + $0x184] sm:$0xf]
  %v291 = vld [vmem:[%s1 + $0x188] sm:$0xf]
  %v292 = vld [vmem:[%s1 + $0x18c] sm:$0xf]
  %v293 = vld [vmem:[%s1 + $0x190] sm:$0xf]
  %v294 = vld [vmem:[%s1 + $0x194] sm:$0xf]
  %v295 = vld [vmem:[%s1 + $0x198] sm:$0xf]
  %v296 = vld [vmem:[%s1 + $0x19c] sm:$0xf]
  %v297 = vld [vmem:[%s1 + $0x1a0] sm:$0xf]
  %v298 = vld [vmem:[%s1 + $0x1a4] sm:$0xf]
  %v299 = vld [vmem:[%s1 + $0x1a8] sm:$0xf]
  %v300 = vld [vmem:[%s1 + $0x1ac] sm:$0xf]
  %v301 = vld [vmem:[%s1 + $0x1b0] sm:$0xf]
  %v302 = vld [vmem:[%s1 + $0x1b4] sm:$0xf]
  %v303 = vld [vmem:[%s1 + $0x1b8] sm:$0xf]
  %v304 = vld [vmem:[%s1 + $0x1bc] sm:$0xf]
  %v305 = vld [vmem:[%s1 + $0x1c0] sm:$0xf]
  %v306 = vld [vmem:[%s1 + $0x1c4] sm:$0xf]
  %v307 = vld [vmem:[%s1 + $0x1c8] sm:$0xf]
  %v308 = vld [vmem:[%s1 + $0x1cc] sm:$0xf]
  %v309 = vld [vmem:[%s1 + $0x1d0] sm:$0xf]
  %v310 = vld [vmem:[%s1 + $0x1d4] sm:$0xf]
  %v311 = vld [vmem:[%s1 + $0x1d8] sm:$0xf]
  %v312 = vld [vmem:[%s1 + $0x1dc] sm:$0xf]
  %v313 = vld [vmem:[%s1 + $0x1e0] sm:$0xf]
  %v314 = vld [vmem:[%s1 + $0x1e4] sm:$0xf]
  %v315 = vld [vmem:[%s1 + $0x1e8] sm:$0xf]
  %v316 = vld [vmem:[%s1 + $0x1ec] sm:$0xf]
  %v317 = vld [vmem:[%s1 + $0x1f0] sm:$0xf]
  %v318 = vld [vmem:[%s1 + $0x1f4] sm:$0xf]
  %v319 = vld [vmem:[%s1 + $0x1f8] sm:$0xf]
  %v320 = vld [vmem:[%s1 + $0x1fc] sm:$0xf]
  %v321 = vld [vmem:[%s1 + $0x200] sm:$0xf]
  %v322 = vld [vmem:[%s1 + $0x204] sm:$0xf]
  %v323 = vld [vmem:[%s1 + $0x208] sm:$0xf]
  %v324 = vld [vmem:[%s1 + $0x20c] sm:$0xf]
  %v325 = vld [vmem:[%s1 + $0x210] sm:$0xf]
  %v326 = vld [vmem:[%s1 + $0x214] sm:$0xf]
  %v327 = vld [vmem:[%s1 + $0x218] sm:$0xf]
  %v328 = vld [vmem:[%s1 + $0x21c] sm:$0xf]
  %v329 = vld [vmem:[%s1 + $0x220] sm:$0xf]
  %v330 = vld [vmem:[%s1 + $0x224] sm:$0xf]
  %v331 = vld [vmem:[%s1 + $0x228] sm:$0xf]
  %v332 = vld [vmem:[%s1 + $0x22c] sm:$0xf]
  %v333 = vld [vmem:[%s1 + $0x230] sm:$0xf]
  %v334 = vld [vmem:[%s1 + $0x234] sm:$0xf]
  %v335 = vld [vmem:[%s1 + $0x238] sm:$0xf]
  %v336 = vld [vmem:[%s1 + $0x23c] sm:$0xf]
  %v337 = vld [vmem:[%s1 + $0x240] sm:$0xf]
  %v338 = vld [vmem:[%s1 + $0x244] sm:$0xf]
  %v339 = vld [vmem:[%s1 + $0x248] sm:$0xf]
  %v340 = vld [vmem:[%s1 + $0x24c] sm:$0xf]
  %v341 = vld [vmem:[%s1 + $0x250] sm:$0xf]
  %v342 = vld [vmem:[%s1 + $0x254] sm:$0xf]
  %v343 = vld [vmem:[%s1 + $0x258] sm:$0xf]
  %v344 = vld [vmem:[%s1 + $0x25c] sm:$0xf]
  %v345 = vld [vmem:[%s1 + $0x260] sm:$0xf]
  %v346 = vld [vmem:[%s1 + $0x264] sm:$0xf]
  %v347 = vld [vmem:[%s1 + $0x268] sm:$0xf]
  %v348 = vld [vmem:[%s1 + $0x26c] sm:$0xf]
  %v349 = vld [vmem:[%s1 + $0x270] sm:$0xf]
  %v350 = vld [vmem:[%s1 + $0x274] sm:$0xf]
  %v351 = vld [vmem:[%s1 + $0x278] sm:$0xf]
  %v352 = vld [vmem:[%s1 + $0x27c] sm:$0xf]
  %v353 = vld [vmem:[%s1 + $0x280] sm:$0xf]
  %v354 = vld [vmem:[%s1 + $0x284] sm:$0xf]
  %v355 = vld [vmem:[%s1 + $0x288] sm:$0xf]
  %v356 = vld [vmem:[%s1 + $0x28c] sm:$0xf]
  %v357 = vld [vmem:[%s1 + $0x290] sm:$0xf]
  %v358 = vld [vmem:[%s1 + $0x294] sm:$0xf]
  %v359 = vld [vmem:[%s1 + $0x298] sm:$0xf]
  %v360 = vld [vmem:[%s1 + $0x29c] sm:$0xf]
  %v361 = vld [vmem:[%s1 + $0x2a0] sm:$0xf]
  %v362 = vld [vmem:[%s1 + $0x2a4] sm:$0xf]
  %v363 = vld [vmem:[%s1 + $0x2a8] sm:$0xf]
  %v364 = vld [vmem:[%s1 + $0x2ac] sm:$0xf]
  %v365 = vld [vmem:[%s1 + $0x2b0] sm:$0xf]
  %v366 = vld [vmem:[%s1 + $0x2b4] sm:$0xf]
  %v367 = vld [vmem:[%s1 + $0x2b8] sm:$0xf]
  %v368 = vld [vmem:[%s1 + $0x2bc] sm:$0xf]
  %v369 = vld [vmem:[%s1 + $0x2c0] sm:$0xf]
  %v370 = vld [vmem:[%s1 + $0x2c4] sm:$0xf]
  %v371 = vld [vmem:[%s1 + $0x2c8] sm:$0xf]
  %v372 = vld [vmem:[%s1 + $0x2cc] sm:$0xf]
  %v373 = vld [vmem:[%s1 + $0x2d0] sm:$0xf]
  %v374 = vld [vmem:[%s1 + $0x2d4] sm:$0xf]
  %v375 = vld [vmem:[%s1 + $0x2d8] sm:$0xf]
  %v376 = vld [vmem:[%s1 + $0x2dc] sm:$0xf]
  %v377 = vld [vmem:[%s1 + $0x2e0] sm:$0xf]
  %v378 = vld [vmem:[%s1 + $0x2e4] sm:$0xf]
  %v379 = vld [vmem:[%s1 + $0x2e8] sm:$0xf]
  %v380 = vld [vmem:[%s1 + $0x2ec] sm:$0xf]
  %v381 = vld [vmem:[%s1 + $0x2f0] sm:$0xf]
  %v382 = vld [vmem:[%s1 + $0x2f4] sm:$0xf]
  %v383 = vld [vmem:[%s1 + $0x2f8] sm:$0xf]
  %v384 = vld [vmem:[%s1 + $0x2fc] sm:$0xf]
  %v385 = vld [vmem:[%s1 + $0x300] sm:$0xf]
  %v386 = vld [vmem:[%s1 + $0x304] sm:$0xf]
  %v387 = vld [vmem:[%s1 + $0x308] sm:$0xf]
  %v388 = vld [vmem:[%s1 + $0x30c] sm:$0xf]
  %v389 = vld [vmem:[%s1 + $0x310] sm:$0xf]
  %v390 = vld [vmem:[%s1 + $0x314] sm:$0xf]
  %v391 = vld [vmem:[%s1 + $0x318] sm:$0xf]
  %v392 = vld [vmem:[%s1 + $0x31c] sm:$0xf]
  %v393 = vld [vmem:[%s1 + $0x320] sm:$0xf]
  %v394 = vld [vmem:[%s1 + $0x324] sm:$0xf]
  %v395 = vld [vmem:[%s1 + $0x328] sm:$0xf]
  %v396 = vld [vmem:[%s1 + $0x32c] sm:$0xf]
  %v397 = vld [vmem:[%s1 + $0x330] sm:$0xf]
  %v398 = vld [vmem:[%s1 + $0x334] sm:$0xf]
  %v399 = vld [vmem:[%s1 + $0x338] sm:$0xf]
  %v400 = vld [vmem:[%s1 + $0x33c] sm:$0xf]
  %v401 = vld [vmem:[%s1 + $0x340] sm:$0xf]
  %v402 = vld [vmem:[%s1 + $0x344] sm:$0xf]
  %v403 = vld [vmem:[%s1 + $0x348] sm:$0xf]
  %v404 = vld [vmem:[%s1 + $0x34c] sm:$0xf]
  %v405 = vld [vmem:[%s1 + $0x350] sm:$0xf]
  %v406 = vld [vmem:[%s1 + $0x354] sm:$0xf]
  %v407 = vld [vmem:[%s1 + $0x358] sm:$0xf]
  %v408 = vld [vmem:[%s1 + $0x35c] sm:$0xf]
  %v409 = vld [vmem:[%s1 + $0x360] sm:$0xf]
  %v410 = vld [vmem:[%s1 + $0x364] sm:$0xf]
  %v411 = vld [vmem:[%s1 + $0x368] sm:$0xf]
  %v412 = vld [vmem:[%s1 + $0x36c] sm:$0xf]
  %v413 = vld [vmem:[%s1 + $0x370] sm:$0xf]
  %v414 = vld [vmem:[%s1 + $0x374] sm:$0xf]
  %v415 = vld [vmem:[%s1 + $0x378] sm:$0xf]
  %v416 = vld [vmem:[%s1 + $0x37c] sm:$0xf]
  %v417 = vld [vmem:[%s1 + $0x380] sm:$0xf]
  %v418 = vld [vmem:[%s1 + $0x384] sm:$0xf]
  %v419 = vld [vmem:[%s1 + $0x388] sm:$0xf]
  %v420 = vld [vmem:[%s1 + $0x38c] sm:$0xf]
  %v421 = vld [vmem:[%s1 + $0x390] sm:$0xf]
  %v422 = vld [vmem:[%s1 + $0x394] sm:$0xf]
  %v423 = vld [vmem:[%s1 + $0x398] sm:$0xf]
  %v424 = vld [vmem:[%s1 + $0x39c] sm:$0xf]
  %v425 = vld [vmem:[%s1 + $0x3a0] sm:$0xf]
  %v426 = vld [vmem:[%s1 + $0x3a4] sm:$0xf]
  %v427 = vld [vmem:[%s1 + $0x3a8] sm:$0xf]
  %v428 = vld [vmem:[%s1 + $0x3ac] sm:$0xf]
  %v429 = vld [vmem:[%s1 + $0x3b0] sm:$0xf]
  %v430 = vld [vmem:[%s1 + $0x3b4] sm:$0xf]
  %v431 = vld [vmem:[%s1 + $0x3b8] sm:$0xf]
  %v432 = vld [vmem:[%s1 + $0x3bc] sm:$0xf]
  %v433 = vld [vmem:[%s1 + $0x3c0] sm:$0xf]
  %v434 = vld [vmem:[%s1 + $0x3c4] sm:$0xf]
  %v435 = vld [vmem:[%s1 + $0x3c8] sm:$0xf]
  %v436 = vld [vmem:[%s1 + $0x3cc] sm:$0xf]
  %v437 = vld [vmem:[%s1 + $0x3d0] sm:$0xf]
  %v438 = vld [vmem:[%s1 + $0x3d4] sm:$0xf]
  %v439 = vld [vmem:[%s1 + $0x3d8] sm:$0xf]
  %v440 = vld [vmem:[%s1 + $0x3dc] sm:$0xf]
  %v441 = vld [vmem:[%s1 + $0x3e0] sm:$0xf]
  %v442 = vld [vmem:[%s1 + $0x3e4] sm:$0xf]
  %v443 = vld [vmem:[%s1 + $0x3e8] sm:$0xf]
  %v444 = vld [vmem:[%s1 + $0x3ec] sm:$0xf]
  %v445 = vld [vmem:[%s1 + $0x3f0] sm:$0xf]
  %v446 = vld [vmem:[%s1 + $0x3f4] sm:$0xf]
  %v447 = vld [vmem:[%s1 + $0x3f8] sm:$0xf]
  %v448 = vld [vmem:[%s1 + $0x3fc] sm:$0xf]
  %v449 = vld [vmem:[%s1 + $0x400] sm:$0xf]
  %v450 = vld [vmem:[%s1 + $0x404] sm:$0xf]
  %v451 = vld [vmem:[%s1 + $0x408] sm:$0xf]
  %v452 = vld [vmem:[%s1 + $0x40c] sm:$0xf]
  %v453 = vld [vmem:[%s1 + $0x410] sm:$0xf]
  %v454 = vld [vmem:[%s1 + $0x414] sm:$0xf]
  %v455 = vld [vmem:[%s1 + $0x418] sm:$0xf]
  %v456 = vld [vmem:[%s1 + $0x41c] sm:$0xf]
  %v457 = vld [vmem:[%s1 + $0x420] sm:$0xf]
  %v458 = vld [vmem:[%s1 + $0x424] sm:$0xf]
  %v459 = vld [vmem:[%s1 + $0x428] sm:$0xf]
  %v460 = vld [vmem:[%s1 + $0x42c] sm:$0xf]
  %v461 = vld [vmem:[%s1 + $0x430] sm:$0xf]
  %v462 = vld [vmem:[%s1 + $0x434] sm:$0xf]
  %v463 = vld [vmem:[%s1 + $0x438] sm:$0xf]
  %v464 = vld [vmem:[%s1 + $0x43c] sm:$0xf]
  %v465 = vld [vmem:[%s1 + $0x440] sm:$0xf]
  %v466 = vld [vmem:[%s1 + $0x444] sm:$0xf]
  %v467 = vld [vmem:[%s1 + $0x448] sm:$0xf]
  %v468 = vld [vmem:[%s1 + $0x44c] sm:$0xf]
  %v469 = vld [vmem:[%s1 + $0x450] sm:$0xf]
  %v470 = vld [vmem:[%s1 + $0x454] sm:$0xf]
  %v471 = vld [vmem:[%s1 + $0x458] sm:$0xf]
  %v472 = vld [vmem:[%s1 + $0x45c] sm:$0xf]
  %v473 = vld [vmem:[%s1 + $0x460] sm:$0xf]
  %v474 = vld [vmem:[%s1 + $0x464] sm:$0xf]
  %v475 = vld [vmem:[%s1 + $0x468] sm:$0xf]
  %v476 = vld [vmem:[%s1 + $0x46c] sm:$0xf]
  %v477 = vld [vmem:[%s1 + $0x470] sm:$0xf]
  %v478 = vld [vmem:[%s1 + $0x474] sm:$0xf]
  %v479 = vld [vmem:[%s1 + $0x478] sm:$0xf]
  %v480 = vld [vmem:[%s1 + $0x47c] sm:$0xf]
  %v481 = vld [vmem:[%s1 + $0x480] sm:$0xf]
  %v482 = vld [vmem:[%s1 + $0x484] sm:$0xf]
  %v483 = vld [vmem:[%s1 + $0x488] sm:$0xf]
  %v484 = vld [vmem:[%s1 + $0x48c] sm:$0xf]
  %v485 = vld [vmem:[%s1 + $0x490] sm:$0xf]
  %v486 = vld [vmem:[%s1 + $0x494] sm:$0xf]
  %v487 = vld [vmem:[%s1 + $0x498] sm:$0xf]
  %v488 = vld [vmem:[%s1 + $0x49c] sm:$0xf]
  %v489 = vld [vmem:[%s1 + $0x4a0] sm:$0xf]
  %v490 = vld [vmem:[%s1 + $0x4a4] sm:$0xf]
  %v491 = vld [vmem:[%s1 + $0x4a8] sm:$0xf]
  %v492 = vld [vmem:[%s1 + $0x4ac] sm:$0xf]
  %v493 = vld [vmem:[%s1 + $0x4b0] sm:$0xf]
  %v494 = vld [vmem:[%s1 + $0x4b4] sm:$0xf]
  %v495 = vld [vmem:[%s1 + $0x4b8] sm:$0xf]
  %v496 = vld [vmem:[%s1 + $0x4bc] sm:$0xf]
  %v497 = vld [vmem:[%s1 + $0x4c0] sm:$0xf]
  %v498 = vld [vmem:[%s1 + $0x4c4] sm:$0xf]
  %v499 = vld [vmem:[%s1 + $0x4c8] sm:$0xf]
  %v500 = vld [vmem:[%s1 + $0x4cc] sm:$0xf]
  %v501 = vld [vmem:[%s1 + $0x4d0] sm:$0xf]
  %v502 = vld [vmem:[%s1 + $0x4d4] sm:$0xf]
  %v503 = vld [vmem:[%s1 + $0x4d8] sm:$0xf]
  %v504 = vld [vmem:[%s1 + $0x4dc] sm:$0xf]
  %v505 = vld [vmem:[%s1 + $0x4e0] sm:$0xf]
  %v506 = vld [vmem:[%s1 + $0x4e4] sm:$0xf]
  %v507 = vld [vmem:[%s1 + $0x4e8] sm:$0xf]
  %v508 = vld [vmem:[%s1 + $0x4ec] sm:$0xf]
  %v509 = vld [vmem:[%s1 + $0x4f0] sm:$0xf]
  %v510 = vld [vmem:[%s1 + $0x4f4] sm:$0xf]
  %v511 = vld [vmem:[%s1 + $0x4f8] sm:$0xf]
  %v512 = vld [vmem:[%s1 + $0x4fc] sm:$0xf]
  %v513 = vld [vmem:[%s1 + $0x500] sm:$0xf]
  %v514 = vld [vmem:[%s1 + $0x504] sm:$0xf]
  %v515 = vld [vmem:[%s1 + $0x508] sm:$0xf]
  %v516 = vld [vmem:[%s1 + $0x50c] sm:$0xf]
  %v517 = vld [vmem:[%s1 + $0x510] sm:$0xf]
  %v518 = vld [vmem:[%s1 + $0x514] sm:$0xf]
  %v519 = vld [vmem:[%s1 + $0x518] sm:$0xf]
  %v520 = vld [vmem:[%s1 + $0x51c] sm:$0xf]
  %v521 = vld [vmem:[%s1 + $0x520] sm:$0xf]
  %v522 = vld [vmem:[%s1 + $0x524] sm:$0xf]
  %v523 = vld [vmem:[%s1 + $0x528] sm:$0xf]
  %v524 = vld [vmem:[%s1 + $0x52c] sm:$0xf]
  %v525 = vld [vmem:[%s1 + $0x530] sm:$0xf]
  %v526 = vld [vmem:[%s1 + $0x534] sm:$0xf]
  %v527 = vld [vmem:[%s1 + $0x538] sm:$0xf]
  %v528 = vld [vmem:[%s1 + $0x53c] sm:$0xf]
  %v529 = vld [vmem:[%s1 + $0x540] sm:$0xf]
  %v530 = vld [vmem:[%s1 + $0x544] sm:$0xf]
  %v531 = vld [vmem:[%s1 + $0x548] sm:$0xf]
  %v532 = vld [vmem:[%s1 + $0x54c] sm:$0xf]
  %v533 = vld [vmem:[%s1 + $0x550] sm:$0xf]
  %v534 = vld [vmem:[%s1 + $0x554] sm:$0xf]
  %v535 = vld [vmem:[%s1 + $0x558] sm:$0xf]
  %v536 = vld [vmem:[%s1 + $0x55c] sm:$0xf]
  %v537 = vld [vmem:[%s1 + $0x560] sm:$0xf]
  %v538 = vld [vmem:[%s1 + $0x564] sm:$0xf]
  %v539 = vld [vmem:[%s1 + $0x568] sm:$0xf]
  %v540 = vld [vmem:[%s1 + $0x56c] sm:$0xf]
  %v541 = vld [vmem:[%s1 + $0x570] sm:$0xf]
  %v542 = vld [vmem:[%s1 + $0x574] sm:$0xf]
  %v543 = vld [vmem:[%s1 + $0x578] sm:$0xf]
  %v544 = vld [vmem:[%s1 + $0x57c] sm:$0xf]
  %v545 = vld [vmem:[%s2] sm:$0x1]
  %v547 = vlaneseq
  %v548 = vshrl.u32 %v547, 7
  %v549 = vsub.s32 0, %v548
  %v550 = vrot.slane %v545, %v549
  %v728 = vunpack.c.l.b16 %v17
  %v729 = vunpack.c.h.b16 %v17
  %v730 = vunpack.c.l.b16 %v18
  %v731 = vunpack.c.h.b16 %v18
  %v732 = vunpack.c.l.b16 %v19
  %v733 = vunpack.c.h.b16 %v19
  %v734 = vunpack.c.l.b16 %v20
  %v735 = vunpack.c.h.b16 %v20
  %v736 = vunpack.c.l.b16 %v21
  %v737 = vunpack.c.h.b16 %v21
  %v738 = vunpack.c.l.b16 %v22
  %v739 = vunpack.c.h.b16 %v22
  %v740 = vunpack.c.l.b16 %v23
  %v741 = vunpack.c.h.b16 %v23
  %v742 = vunpack.c.l.b16 %v24
  %v743 = vunpack.c.h.b16 %v24
  %v744 = vunpack.c.l.b16 %v25
  %v745 = vunpack.c.h.b16 %v25
  %v746 = vunpack.c.l.b16 %v26
  %v747 = vunpack.c.h.b16 %v26
  %v748 = vunpack.c.l.b16 %v27
  %v749 = vunpack.c.h.b16 %v27
  %v750 = vunpack.c.l.b16 %v28
  %v751 = vunpack.c.h.b16 %v28
  %v752 = vunpack.c.l.b16 %v29
  %v753 = vunpack.c.h.b16 %v29
  %v754 = vunpack.c.l.b16 %v30
  %v755 = vunpack.c.h.b16 %v30
  %v756 = vunpack.c.l.b16 %v31
  %v757 = vunpack.c.h.b16 %v31
  %v758 = vunpack.c.l.b16 %v32
  %v759 = vunpack.c.h.b16 %v32
  %v760 = vunpack.c.l.b16 %v33
  %v761 = vunpack.c.h.b16 %v33
  %v762 = vunpack.c.l.b16 %v34
  %v763 = vunpack.c.h.b16 %v34
  %v764 = vunpack.c.l.b16 %v35
  %v765 = vunpack.c.h.b16 %v35
  %v766 = vunpack.c.l.b16 %v36
  %v767 = vunpack.c.h.b16 %v36
  %v768 = vunpack.c.l.b16 %v37
  %v769 = vunpack.c.h.b16 %v37
  %v770 = vunpack.c.l.b16 %v38
  %v771 = vunpack.c.h.b16 %v38
  %v772 = vunpack.c.l.b16 %v39
  %v773 = vunpack.c.h.b16 %v39
  %v774 = vunpack.c.l.b16 %v40
  %v775 = vunpack.c.h.b16 %v40
  %v776 = vunpack.c.l.b16 %v41
  %v777 = vunpack.c.h.b16 %v41
  %v778 = vunpack.c.l.b16 %v42
  %v779 = vunpack.c.h.b16 %v42
  %v780 = vunpack.c.l.b16 %v43
  %v781 = vunpack.c.h.b16 %v43
  %v782 = vunpack.c.l.b16 %v44
  %v783 = vunpack.c.h.b16 %v44
  %v784 = vunpack.c.l.b16 %v45
  %v785 = vunpack.c.h.b16 %v45
  %v786 = vunpack.c.l.b16 %v46
  %v787 = vunpack.c.h.b16 %v46
  %v788 = vunpack.c.l.b16 %v47
  %v789 = vunpack.c.h.b16 %v47
  %v790 = vunpack.c.l.b16 %v48
  %v791 = vunpack.c.h.b16 %v48
  %v792 = vunpack.c.l.b16 %v49
  %v793 = vunpack.c.h.b16 %v49
  %v794 = vunpack.c.l.b16 %v50
  %v795 = vunpack.c.h.b16 %v50
  %v796 = vunpack.c.l.b16 %v51
  %v797 = vunpack.c.h.b16 %v51
  %v798 = vunpack.c.l.b16 %v52
  %v799 = vunpack.c.h.b16 %v52
  %v800 = vunpack.c.l.b16 %v53
  %v801 = vunpack.c.h.b16 %v53
  %v802 = vunpack.c.l.b16 %v54
  %v803 = vunpack.c.h.b16 %v54
  %v804 = vunpack.c.l.b16 %v55
  %v805 = vunpack.c.h.b16 %v55
  %v806 = vunpack.c.l.b16 %v56
  %v807 = vunpack.c.h.b16 %v56
  %v808 = vunpack.c.l.b16 %v57
  %v809 = vunpack.c.h.b16 %v57
  %v810 = vunpack.c.l.b16 %v58
  %v811 = vunpack.c.h.b16 %v58
  %v812 = vunpack.c.l.b16 %v59
  %v813 = vunpack.c.h.b16 %v59
  %v814 = vunpack.c.l.b16 %v60
  %v815 = vunpack.c.h.b16 %v60
  %v816 = vunpack.c.l.b16 %v61
  %v817 = vunpack.c.h.b16 %v61
  %v818 = vunpack.c.l.b16 %v62
  %v819 = vunpack.c.h.b16 %v62
  %v820 = vunpack.c.l.b16 %v63
  %v821 = vunpack.c.h.b16 %v63
  %v822 = vunpack.c.l.b16 %v64
  %v823 = vunpack.c.h.b16 %v64
  %v824 = vunpack.c.l.b16 %v65
  %v825 = vunpack.c.h.b16 %v65
  %v826 = vunpack.c.l.b16 %v66
  %v827 = vunpack.c.h.b16 %v66
  %v828 = vunpack.c.l.b16 %v67
  %v829 = vunpack.c.h.b16 %v67
  %v830 = vunpack.c.l.b16 %v68
  %v831 = vunpack.c.h.b16 %v68
  %v832 = vunpack.c.l.b16 %v69
  %v833 = vunpack.c.h.b16 %v69
  %v834 = vunpack.c.l.b16 %v70
  %v835 = vunpack.c.h.b16 %v70
  %v836 = vunpack.c.l.b16 %v71
  %v837 = vunpack.c.h.b16 %v71
  %v838 = vunpack.c.l.b16 %v72
  %v839 = vunpack.c.h.b16 %v72
  %v840 = vunpack.c.l.b16 %v73
  %v841 = vunpack.c.h.b16 %v73
  %v842 = vunpack.c.l.b16 %v74
  %v843 = vunpack.c.h.b16 %v74
  %v844 = vunpack.c.l.b16 %v75
  %v845 = vunpack.c.h.b16 %v75
  %v846 = vunpack.c.l.b16 %v76
  %v847 = vunpack.c.h.b16 %v76
  %v848 = vunpack.c.l.b16 %v77
  %v849 = vunpack.c.h.b16 %v77
  %v850 = vunpack.c.l.b16 %v78
  %v851 = vunpack.c.h.b16 %v78
  %v852 = vunpack.c.l.b16 %v79
  %v853 = vunpack.c.h.b16 %v79
  %v854 = vunpack.c.l.b16 %v80
  %v855 = vunpack.c.h.b16 %v80
  %v856 = vunpack.c.l.b16 %v81
  %v857 = vunpack.c.h.b16 %v81
  %v858 = vunpack.c.l.b16 %v82
  %v859 = vunpack.c.h.b16 %v82
  %v860 = vunpack.c.l.b16 %v83
  %v861 = vunpack.c.h.b16 %v83
  %v862 = vunpack.c.l.b16 %v84
  %v863 = vunpack.c.h.b16 %v84
  %v864 = vunpack.c.l.b16 %v85
  %v865 = vunpack.c.h.b16 %v85
  %v866 = vunpack.c.l.b16 %v86
  %v867 = vunpack.c.h.b16 %v86
  %v868 = vunpack.c.l.b16 %v87
  %v869 = vunpack.c.h.b16 %v87
  %v870 = vunpack.c.l.b16 %v88
  %v871 = vunpack.c.h.b16 %v88
  %v872 = vunpack.c.l.b16 %v89
  %v873 = vunpack.c.h.b16 %v89
  %v874 = vunpack.c.l.b16 %v90
  %v875 = vunpack.c.h.b16 %v90
  %v876 = vunpack.c.l.b16 %v91
  %v877 = vunpack.c.h.b16 %v91
  %v878 = vunpack.c.l.b16 %v92
  %v879 = vunpack.c.h.b16 %v92
  %v880 = vunpack.c.l.b16 %v93
  %v881 = vunpack.c.h.b16 %v93
  %v882 = vunpack.c.l.b16 %v94
  %v883 = vunpack.c.h.b16 %v94
  %v884 = vunpack.c.l.b16 %v95
  %v885 = vunpack.c.h.b16 %v95
  %v886 = vunpack.c.l.b16 %v96
  %v887 = vunpack.c.h.b16 %v96
  %v888 = vunpack.c.l.b16 %v97
  %v889 = vunpack.c.h.b16 %v97
  %v890 = vunpack.c.l.b16 %v98
  %v891 = vunpack.c.h.b16 %v98
  %v892 = vunpack.c.l.b16 %v99
  %v893 = vunpack.c.h.b16 %v99
  %v894 = vunpack.c.l.b16 %v100
  %v895 = vunpack.c.h.b16 %v100
  %v896 = vunpack.c.l.b16 %v101
  %v897 = vunpack.c.h.b16 %v101
  %v898 = vunpack.c.l.b16 %v102
  %v899 = vunpack.c.h.b16 %v102
  %v900 = vunpack.c.l.b16 %v103
  %v901 = vunpack.c.h.b16 %v103
  %v902 = vunpack.c.l.b16 %v104
  %v903 = vunpack.c.h.b16 %v104
  %v904 = vunpack.c.l.b16 %v105
  %v905 = vunpack.c.h.b16 %v105
  %v906 = vunpack.c.l.b16 %v106
  %v907 = vunpack.c.h.b16 %v106
  %v908 = vunpack.c.l.b16 %v107
  %v909 = vunpack.c.h.b16 %v107
  %v910 = vunpack.c.l.b16 %v108
  %v911 = vunpack.c.h.b16 %v108
  %v912 = vunpack.c.l.b16 %v109
  %v913 = vunpack.c.h.b16 %v109
  %v914 = vunpack.c.l.b16 %v110
  %v915 = vunpack.c.h.b16 %v110
  %v916 = vunpack.c.l.b16 %v111
  %v917 = vunpack.c.h.b16 %v111
  %v918 = vunpack.c.l.b16 %v112
  %v919 = vunpack.c.h.b16 %v112
  %v920 = vunpack.c.l.b16 %v113
  %v921 = vunpack.c.h.b16 %v113
  %v922 = vunpack.c.l.b16 %v114
  %v923 = vunpack.c.h.b16 %v114
  %v924 = vunpack.c.l.b16 %v115
  %v925 = vunpack.c.h.b16 %v115
  %v926 = vunpack.c.l.b16 %v116
  %v927 = vunpack.c.h.b16 %v116
  %v928 = vunpack.c.l.b16 %v117
  %v929 = vunpack.c.h.b16 %v117
  %v930 = vunpack.c.l.b16 %v118
  %v931 = vunpack.c.h.b16 %v118
  %v932 = vunpack.c.l.b16 %v119
  %v933 = vunpack.c.h.b16 %v119
  %v934 = vunpack.c.l.b16 %v120
  %v935 = vunpack.c.h.b16 %v120
  %v936 = vunpack.c.l.b16 %v121
  %v937 = vunpack.c.h.b16 %v121
  %v938 = vunpack.c.l.b16 %v122
  %v939 = vunpack.c.h.b16 %v122
  %v940 = vunpack.c.l.b16 %v123
  %v941 = vunpack.c.h.b16 %v123
  %v942 = vunpack.c.l.b16 %v124
  %v943 = vunpack.c.h.b16 %v124
  %v944 = vunpack.c.l.b16 %v125
  %v945 = vunpack.c.h.b16 %v125
  %v946 = vunpack.c.l.b16 %v126
  %v947 = vunpack.c.h.b16 %v126
  %v948 = vunpack.c.l.b16 %v127
  %v949 = vunpack.c.h.b16 %v127
  %v950 = vunpack.c.l.b16 %v128
  %v951 = vunpack.c.h.b16 %v128
  %v952 = vunpack.c.l.b16 %v129
  %v953 = vunpack.c.h.b16 %v129
  %v954 = vunpack.c.l.b16 %v130
  %v955 = vunpack.c.h.b16 %v130
  %v956 = vunpack.c.l.b16 %v131
  %v957 = vunpack.c.h.b16 %v131
  %v958 = vunpack.c.l.b16 %v132
  %v959 = vunpack.c.h.b16 %v132
  %v960 = vunpack.c.l.b16 %v133
  %v961 = vunpack.c.h.b16 %v133
  %v962 = vunpack.c.l.b16 %v134
  %v963 = vunpack.c.h.b16 %v134
  %v964 = vunpack.c.l.b16 %v135
  %v965 = vunpack.c.h.b16 %v135
  %v966 = vunpack.c.l.b16 %v136
  %v967 = vunpack.c.h.b16 %v136
  %v968 = vunpack.c.l.b16 %v137
  %v969 = vunpack.c.h.b16 %v137
  %v970 = vunpack.c.l.b16 %v138
  %v971 = vunpack.c.h.b16 %v138
  %v972 = vunpack.c.l.b16 %v139
  %v973 = vunpack.c.h.b16 %v139
  %v974 = vunpack.c.l.b16 %v140
  %v975 = vunpack.c.h.b16 %v140
  %v976 = vunpack.c.l.b16 %v141
  %v977 = vunpack.c.h.b16 %v141
  %v978 = vunpack.c.l.b16 %v142
  %v979 = vunpack.c.h.b16 %v142
  %v980 = vunpack.c.l.b16 %v143
  %v981 = vunpack.c.h.b16 %v143
  %v982 = vunpack.c.l.b16 %v144
  %v983 = vunpack.c.h.b16 %v144
  %v984 = vunpack.c.l.b16 %v145
  %v985 = vunpack.c.h.b16 %v145
  %v986 = vunpack.c.l.b16 %v146
  %v987 = vunpack.c.h.b16 %v146
  %v988 = vunpack.c.l.b16 %v147
  %v989 = vunpack.c.h.b16 %v147
  %v990 = vunpack.c.l.b16 %v148
  %v991 = vunpack.c.h.b16 %v148
  %v992 = vunpack.c.l.b16 %v149
  %v993 = vunpack.c.h.b16 %v149
  %v994 = vunpack.c.l.b16 %v150
  %v995 = vunpack.c.h.b16 %v150
  %v996 = vunpack.c.l.b16 %v151
  %v997 = vunpack.c.h.b16 %v151
  %v998 = vunpack.c.l.b16 %v152
  %v999 = vunpack.c.h.b16 %v152
  %v1000 = vunpack.c.l.b16 %v153
  %v1001 = vunpack.c.h.b16 %v153
  %v1002 = vunpack.c.l.b16 %v154
  %v1003 = vunpack.c.h.b16 %v154
  %v1004 = vunpack.c.l.b16 %v155
  %v1005 = vunpack.c.h.b16 %v155
  %v1006 = vunpack.c.l.b16 %v156
  %v1007 = vunpack.c.h.b16 %v156
  %v1008 = vunpack.c.l.b16 %v157
  %v1009 = vunpack.c.h.b16 %v157
  %v1010 = vunpack.c.l.b16 %v158
  %v1011 = vunpack.c.h.b16 %v158
  %v1012 = vunpack.c.l.b16 %v159
  %v1013 = vunpack.c.h.b16 %v159
  %v1014 = vunpack.c.l.b16 %v160
  %v1015 = vunpack.c.h.b16 %v160
  %v1016 = vunpack.c.l.b16 %v161
  %v1017 = vunpack.c.h.b16 %v161
  %v1018 = vunpack.c.l.b16 %v162
  %v1019 = vunpack.c.h.b16 %v162
  %v1020 = vunpack.c.l.b16 %v163
  %v1021 = vunpack.c.h.b16 %v163
  %v1022 = vunpack.c.l.b16 %v164
  %v1023 = vunpack.c.h.b16 %v164
  %v1024 = vunpack.c.l.b16 %v165
  %v1025 = vunpack.c.h.b16 %v165
  %v1026 = vunpack.c.l.b16 %v166
  %v1027 = vunpack.c.h.b16 %v166
  %v1028 = vunpack.c.l.b16 %v167
  %v1029 = vunpack.c.h.b16 %v167
  %v1030 = vunpack.c.l.b16 %v168
  %v1031 = vunpack.c.h.b16 %v168
  %v1032 = vunpack.c.l.b16 %v169
  %v1033 = vunpack.c.h.b16 %v169
  %v1034 = vunpack.c.l.b16 %v170
  %v1035 = vunpack.c.h.b16 %v170
  %v1036 = vunpack.c.l.b16 %v171
  %v1037 = vunpack.c.h.b16 %v171
  %v1038 = vunpack.c.l.b16 %v172
  %v1039 = vunpack.c.h.b16 %v172
  %v1040 = vunpack.c.l.b16 %v173
  %v1041 = vunpack.c.h.b16 %v173
  %v1042 = vunpack.c.l.b16 %v174
  %v1043 = vunpack.c.h.b16 %v174
  %v1044 = vunpack.c.l.b16 %v175
  %v1045 = vunpack.c.h.b16 %v175
  %v1046 = vunpack.c.l.b16 %v176
  %v1047 = vunpack.c.h.b16 %v176
  %v1048 = vunpack.c.l.b16 %v177
  %v1049 = vunpack.c.h.b16 %v177
  %v1050 = vunpack.c.l.b16 %v178
  %v1051 = vunpack.c.h.b16 %v178
  %v1052 = vunpack.c.l.b16 %v179
  %v1053 = vunpack.c.h.b16 %v179
  %v1054 = vunpack.c.l.b16 %v180
  %v1055 = vunpack.c.h.b16 %v180
  %v1056 = vunpack.c.l.b16 %v181
  %v1057 = vunpack.c.h.b16 %v181
  %v1058 = vunpack.c.l.b16 %v182
  %v1059 = vunpack.c.h.b16 %v182
  %v1060 = vunpack.c.l.b16 %v183
  %v1061 = vunpack.c.h.b16 %v183
  %v1062 = vunpack.c.l.b16 %v184
  %v1063 = vunpack.c.h.b16 %v184
  %v1064 = vunpack.c.l.b16 %v185
  %v1065 = vunpack.c.h.b16 %v185
  %v1066 = vunpack.c.l.b16 %v186
  %v1067 = vunpack.c.h.b16 %v186
  %v1068 = vunpack.c.l.b16 %v187
  %v1069 = vunpack.c.h.b16 %v187
  %v1070 = vunpack.c.l.b16 %v188
  %v1071 = vunpack.c.h.b16 %v188
  %v1072 = vunpack.c.l.b16 %v189
  %v1073 = vunpack.c.h.b16 %v189
  %v1074 = vunpack.c.l.b16 %v190
  %v1075 = vunpack.c.h.b16 %v190
  %v1076 = vunpack.c.l.b16 %v191
  %v1077 = vunpack.c.h.b16 %v191
  %v1078 = vunpack.c.l.b16 %v192
  %v1079 = vunpack.c.h.b16 %v192
  %v1080 = vpack.c.b16 %v750, %v728
  %v1081 = vpack.c.b16 %v751, %v729
  %v1082 = vpack.c.b16 %v752, %v730
  %v1083 = vpack.c.b16 %v753, %v731
  %v1084 = vpack.c.b16 %v754, %v732
  %v1085 = vpack.c.b16 %v755, %v733
  %v1086 = vpack.c.b16 %v756, %v734
  %v1087 = vpack.c.b16 %v757, %v735
  %v1088 = vpack.c.b16 %v758, %v736
  %v1089 = vpack.c.b16 %v759, %v737
  %v1090 = vpack.c.b16 %v760, %v738
  %v1091 = vpack.c.b16 %v761, %v739
  %v1092 = vpack.c.b16 %v762, %v740
  %v1093 = vpack.c.b16 %v763, %v741
  %v1094 = vpack.c.b16 %v764, %v742
  %v1095 = vpack.c.b16 %v765, %v743
  %v1096 = vpack.c.b16 %v766, %v744
  %v1097 = vpack.c.b16 %v767, %v745
  %v1098 = vpack.c.b16 %v768, %v746
  %v1099 = vpack.c.b16 %v769, %v747
  %v1100 = vpack.c.b16 %v770, %v748
  %v1101 = vpack.c.b16 %v771, %v749
  %v1102 = vpack.c.b16 %v794, %v772
  %v1103 = vpack.c.b16 %v795, %v773
  %v1104 = vpack.c.b16 %v796, %v774
  %v1105 = vpack.c.b16 %v797, %v775
  %v1106 = vpack.c.b16 %v798, %v776
  %v1107 = vpack.c.b16 %v799, %v777
  %v1108 = vpack.c.b16 %v800, %v778
  %v1109 = vpack.c.b16 %v801, %v779
  %v1110 = vpack.c.b16 %v802, %v780
  %v1111 = vpack.c.b16 %v803, %v781
  %v1112 = vpack.c.b16 %v804, %v782
  %v1113 = vpack.c.b16 %v805, %v783
  %v1114 = vpack.c.b16 %v806, %v784
  %v1115 = vpack.c.b16 %v807, %v785
  %v1116 = vpack.c.b16 %v808, %v786
  %v1117 = vpack.c.b16 %v809, %v787
  %v1118 = vpack.c.b16 %v810, %v788
  %v1119 = vpack.c.b16 %v811, %v789
  %v1120 = vpack.c.b16 %v812, %v790
  %v1121 = vpack.c.b16 %v813, %v791
  %v1122 = vpack.c.b16 %v814, %v792
  %v1123 = vpack.c.b16 %v815, %v793
  %v1124 = vpack.c.b16 %v838, %v816
  %v1125 = vpack.c.b16 %v839, %v817
  %v1126 = vpack.c.b16 %v840, %v818
  %v1127 = vpack.c.b16 %v841, %v819
  %v1128 = vpack.c.b16 %v842, %v820
  %v1129 = vpack.c.b16 %v843, %v821
  %v1130 = vpack.c.b16 %v844, %v822
  %v1131 = vpack.c.b16 %v845, %v823
  %v1132 = vpack.c.b16 %v846, %v824
  %v1133 = vpack.c.b16 %v847, %v825
  %v1134 = vpack.c.b16 %v848, %v826
  %v1135 = vpack.c.b16 %v849, %v827
  %v1136 = vpack.c.b16 %v850, %v828
  %v1137 = vpack.c.b16 %v851, %v829
  %v1138 = vpack.c.b16 %v852, %v830
  %v1139 = vpack.c.b16 %v853, %v831
  %v1140 = vpack.c.b16 %v854, %v832
  %v1141 = vpack.c.b16 %v855, %v833
  %v1142 = vpack.c.b16 %v856, %v834
  %v1143 = vpack.c.b16 %v857, %v835
  %v1144 = vpack.c.b16 %v858, %v836
  %v1145 = vpack.c.b16 %v859, %v837
  %v1146 = vpack.c.b16 %v882, %v860
  %v1147 = vpack.c.b16 %v883, %v861
  %v1148 = vpack.c.b16 %v884, %v862
  %v1149 = vpack.c.b16 %v885, %v863
  %v1150 = vpack.c.b16 %v886, %v864
  %v1151 = vpack.c.b16 %v887, %v865
  %v1152 = vpack.c.b16 %v888, %v866
  %v1153 = vpack.c.b16 %v889, %v867
  %v1154 = vpack.c.b16 %v890, %v868
  %v1155 = vpack.c.b16 %v891, %v869
  %v1156 = vpack.c.b16 %v892, %v870
  %v1157 = vpack.c.b16 %v893, %v871
  %v1158 = vpack.c.b16 %v894, %v872
  %v1159 = vpack.c.b16 %v895, %v873
  %v1160 = vpack.c.b16 %v896, %v874
  %v1161 = vpack.c.b16 %v897, %v875
  %v1162 = vpack.c.b16 %v898, %v876
  %v1163 = vpack.c.b16 %v899, %v877
  %v1164 = vpack.c.b16 %v900, %v878
  %v1165 = vpack.c.b16 %v901, %v879
  %v1166 = vpack.c.b16 %v902, %v880
  %v1167 = vpack.c.b16 %v903, %v881
  %v1168 = vpack.c.b16 %v926, %v904
  %v1169 = vpack.c.b16 %v927, %v905
  %v1170 = vpack.c.b16 %v928, %v906
  %v1171 = vpack.c.b16 %v929, %v907
  %v1172 = vpack.c.b16 %v930, %v908
  %v1173 = vpack.c.b16 %v931, %v909
  %v1174 = vpack.c.b16 %v932, %v910
  %v1175 = vpack.c.b16 %v933, %v911
  %v1176 = vpack.c.b16 %v934, %v912
  %v1177 = vpack.c.b16 %v935, %v913
  %v1178 = vpack.c.b16 %v936, %v914
  %v1179 = vpack.c.b16 %v937, %v915
  %v1180 = vpack.c.b16 %v938, %v916
  %v1181 = vpack.c.b16 %v939, %v917
  %v1182 = vpack.c.b16 %v940, %v918
  %v1183 = vpack.c.b16 %v941, %v919
  %v1184 = vpack.c.b16 %v942, %v920
  %v1185 = vpack.c.b16 %v943, %v921
  %v1186 = vpack.c.b16 %v944, %v922
  %v1187 = vpack.c.b16 %v945, %v923
  %v1188 = vpack.c.b16 %v946, %v924
  %v1189 = vpack.c.b16 %v947, %v925
  %v1190 = vpack.c.b16 %v970, %v948
  %v1191 = vpack.c.b16 %v971, %v949
  %v1192 = vpack.c.b16 %v972, %v950
  %v1193 = vpack.c.b16 %v973, %v951
  %v1194 = vpack.c.b16 %v974, %v952
  %v1195 = vpack.c.b16 %v975, %v953
  %v1196 = vpack.c.b16 %v976, %v954
  %v1197 = vpack.c.b16 %v977, %v955
  %v1198 = vpack.c.b16 %v978, %v956
  %v1199 = vpack.c.b16 %v979, %v957
  %v1200 = vpack.c.b16 %v980, %v958
  %v1201 = vpack.c.b16 %v981, %v959
  %v1202 = vpack.c.b16 %v982, %v960
  %v1203 = vpack.c.b16 %v983, %v961
  %v1204 = vpack.c.b16 %v984, %v962
  %v1205 = vpack.c.b16 %v985, %v963
  %v1206 = vpack.c.b16 %v986, %v964
  %v1207 = vpack.c.b16 %v987, %v965
  %v1208 = vpack.c.b16 %v988, %v966
  %v1209 = vpack.c.b16 %v989, %v967
  %v1210 = vpack.c.b16 %v990, %v968
  %v1211 = vpack.c.b16 %v991, %v969
  %v1212 = vpack.c.b16 %v1014, %v992
  %v1213 = vpack.c.b16 %v1015, %v993
  %v1214 = vpack.c.b16 %v1016, %v994
  %v1215 = vpack.c.b16 %v1017, %v995
  %v1216 = vpack.c.b16 %v1018, %v996
  %v1217 = vpack.c.b16 %v1019, %v997
  %v1218 = vpack.c.b16 %v1020, %v998
  %v1219 = vpack.c.b16 %v1021, %v999
  %v1220 = vpack.c.b16 %v1022, %v1000
  %v1221 = vpack.c.b16 %v1023, %v1001
  %v1222 = vpack.c.b16 %v1024, %v1002
  %v1223 = vpack.c.b16 %v1025, %v1003
  %v1224 = vpack.c.b16 %v1026, %v1004
  %v1225 = vpack.c.b16 %v1027, %v1005
  %v1226 = vpack.c.b16 %v1028, %v1006
  %v1227 = vpack.c.b16 %v1029, %v1007
  %v1228 = vpack.c.b16 %v1030, %v1008
  %v1229 = vpack.c.b16 %v1031, %v1009
  %v1230 = vpack.c.b16 %v1032, %v1010
  %v1231 = vpack.c.b16 %v1033, %v1011
  %v1232 = vpack.c.b16 %v1034, %v1012
  %v1233 = vpack.c.b16 %v1035, %v1013
  %v1234 = vpack.c.b16 %v1058, %v1036
  %v1235 = vpack.c.b16 %v1059, %v1037
  %v1236 = vpack.c.b16 %v1060, %v1038
  %v1237 = vpack.c.b16 %v1061, %v1039
  %v1238 = vpack.c.b16 %v1062, %v1040
  %v1239 = vpack.c.b16 %v1063, %v1041
  %v1240 = vpack.c.b16 %v1064, %v1042
  %v1241 = vpack.c.b16 %v1065, %v1043
  %v1242 = vpack.c.b16 %v1066, %v1044
  %v1243 = vpack.c.b16 %v1067, %v1045
  %v1244 = vpack.c.b16 %v1068, %v1046
  %v1245 = vpack.c.b16 %v1069, %v1047
  %v1246 = vpack.c.b16 %v1070, %v1048
  %v1247 = vpack.c.b16 %v1071, %v1049
  %v1248 = vpack.c.b16 %v1072, %v1050
  %v1249 = vpack.c.b16 %v1073, %v1051
  %v1250 = vpack.c.b16 %v1074, %v1052
  %v1251 = vpack.c.b16 %v1075, %v1053
  %v1252 = vpack.c.b16 %v1076, %v1054
  %v1253 = vpack.c.b16 %v1077, %v1055
  %v1254 = vpack.c.b16 %v1078, %v1056
  %v1255 = vpack.c.b16 %v1079, %v1057
  %v1784 = vunpack.c.l.b16 %v193
  %v1785 = vunpack.c.l.b16 %v194
  %v1786 = vunpack.c.l.b16 %v195
  %v1787 = vunpack.c.l.b16 %v196
  %v1788 = vunpack.c.l.b16 %v197
  %v1789 = vunpack.c.l.b16 %v198
  %v1790 = vunpack.c.l.b16 %v199
  %v1791 = vunpack.c.l.b16 %v200
  %v1792 = vunpack.c.l.b16 %v201
  %v1793 = vunpack.c.l.b16 %v202
  %v1794 = vunpack.c.l.b16 %v203
  %v1795 = vunpack.c.l.b16 %v204
  %v1796 = vunpack.c.l.b16 %v205
  %v1797 = vunpack.c.l.b16 %v206
  %v1798 = vunpack.c.l.b16 %v207
  %v1799 = vunpack.c.l.b16 %v208
  %v1800 = vunpack.c.l.b16 %v209
  %v1801 = vunpack.c.l.b16 %v210
  %v1802 = vunpack.c.l.b16 %v211
  %v1803 = vunpack.c.l.b16 %v212
  %v1804 = vunpack.c.l.b16 %v213
  %v1805 = vunpack.c.l.b16 %v214
  %v1806 = vunpack.c.l.b16 %v215
  %v1807 = vunpack.c.l.b16 %v216
  %v1808 = vunpack.c.l.b16 %v217
  %v1809 = vunpack.c.l.b16 %v218
  %v1810 = vunpack.c.l.b16 %v219
  %v1811 = vunpack.c.l.b16 %v220
  %v1812 = vunpack.c.l.b16 %v221
  %v1813 = vunpack.c.l.b16 %v222
  %v1814 = vunpack.c.l.b16 %v223
  %v1815 = vunpack.c.l.b16 %v224
  %v1816 = vunpack.c.l.b16 %v225
  %v1817 = vunpack.c.l.b16 %v226
  %v1818 = vunpack.c.l.b16 %v227
  %v1819 = vunpack.c.l.b16 %v228
  %v1820 = vunpack.c.l.b16 %v229
  %v1821 = vunpack.c.l.b16 %v230
  %v1822 = vunpack.c.l.b16 %v231
  %v1823 = vunpack.c.l.b16 %v232
  %v1824 = vunpack.c.l.b16 %v233
  %v1825 = vunpack.c.l.b16 %v234
  %v1826 = vunpack.c.l.b16 %v235
  %v1827 = vunpack.c.l.b16 %v236
  %v1828 = vunpack.c.l.b16 %v237
  %v1829 = vunpack.c.l.b16 %v238
  %v1830 = vunpack.c.l.b16 %v239
  %v1831 = vunpack.c.l.b16 %v240
  %v1832 = vunpack.c.l.b16 %v241
  %v1833 = vunpack.c.l.b16 %v242
  %v1834 = vunpack.c.l.b16 %v243
  %v1835 = vunpack.c.l.b16 %v244
  %v1836 = vunpack.c.l.b16 %v245
  %v1837 = vunpack.c.l.b16 %v246
  %v1838 = vunpack.c.l.b16 %v247
  %v1839 = vunpack.c.l.b16 %v248
  %v1840 = vunpack.c.l.b16 %v249
  %v1841 = vunpack.c.l.b16 %v250
  %v1842 = vunpack.c.l.b16 %v251
  %v1843 = vunpack.c.l.b16 %v252
  %v1844 = vunpack.c.l.b16 %v253
  %v1845 = vunpack.c.l.b16 %v254
  %v1846 = vunpack.c.l.b16 %v255
  %v1847 = vunpack.c.l.b16 %v256
  %v1848 = vunpack.c.l.b16 %v257
  %v1849 = vunpack.c.l.b16 %v258
  %v1850 = vunpack.c.l.b16 %v259
  %v1851 = vunpack.c.l.b16 %v260
  %v1852 = vunpack.c.l.b16 %v261
  %v1853 = vunpack.c.l.b16 %v262
  %v1854 = vunpack.c.l.b16 %v263
  %v1855 = vunpack.c.l.b16 %v264
  %v1856 = vunpack.c.l.b16 %v265
  %v1857 = vunpack.c.l.b16 %v266
  %v1858 = vunpack.c.l.b16 %v267
  %v1859 = vunpack.c.l.b16 %v268
  %v1860 = vunpack.c.l.b16 %v269
  %v1861 = vunpack.c.l.b16 %v270
  %v1862 = vunpack.c.l.b16 %v271
  %v1863 = vunpack.c.l.b16 %v272
  %v1864 = vunpack.c.l.b16 %v273
  %v1865 = vunpack.c.l.b16 %v274
  %v1866 = vunpack.c.l.b16 %v275
  %v1867 = vunpack.c.l.b16 %v276
  %v1868 = vunpack.c.l.b16 %v277
  %v1869 = vunpack.c.l.b16 %v278
  %v1870 = vunpack.c.l.b16 %v279
  %v1871 = vunpack.c.l.b16 %v280
  %v1872 = vunpack.c.l.b16 %v281
  %v1873 = vunpack.c.l.b16 %v282
  %v1874 = vunpack.c.l.b16 %v283
  %v1875 = vunpack.c.l.b16 %v284
  %v1876 = vunpack.c.l.b16 %v285
  %v1877 = vunpack.c.l.b16 %v286
  %v1878 = vunpack.c.l.b16 %v287
  %v1879 = vunpack.c.l.b16 %v288
  %v1880 = vunpack.c.l.b16 %v289
  %v1881 = vunpack.c.l.b16 %v290
  %v1882 = vunpack.c.l.b16 %v291
  %v1883 = vunpack.c.l.b16 %v292
  %v1884 = vunpack.c.l.b16 %v293
  %v1885 = vunpack.c.l.b16 %v294
  %v1886 = vunpack.c.l.b16 %v295
  %v1887 = vunpack.c.l.b16 %v296
  %v1888 = vunpack.c.l.b16 %v297
  %v1889 = vunpack.c.l.b16 %v298
  %v1890 = vunpack.c.l.b16 %v299
  %v1891 = vunpack.c.l.b16 %v300
  %v1892 = vunpack.c.l.b16 %v301
  %v1893 = vunpack.c.l.b16 %v302
  %v1894 = vunpack.c.l.b16 %v303
  %v1895 = vunpack.c.l.b16 %v304
  %v1896 = vunpack.c.l.b16 %v305
  %v1897 = vunpack.c.l.b16 %v306
  %v1898 = vunpack.c.l.b16 %v307
  %v1899 = vunpack.c.l.b16 %v308
  %v1900 = vunpack.c.l.b16 %v309
  %v1901 = vunpack.c.l.b16 %v310
  %v1902 = vunpack.c.l.b16 %v311
  %v1903 = vunpack.c.l.b16 %v312
  %v1904 = vunpack.c.l.b16 %v313
  %v1905 = vunpack.c.l.b16 %v314
  %v1906 = vunpack.c.l.b16 %v315
  %v1907 = vunpack.c.l.b16 %v316
  %v1908 = vunpack.c.l.b16 %v317
  %v1909 = vunpack.c.l.b16 %v318
  %v1910 = vunpack.c.l.b16 %v319
  %v1911 = vunpack.c.l.b16 %v320
  %v1912 = vunpack.c.l.b16 %v321
  %v1913 = vunpack.c.l.b16 %v322
  %v1914 = vunpack.c.l.b16 %v323
  %v1915 = vunpack.c.l.b16 %v324
  %v1916 = vunpack.c.l.b16 %v325
  %v1917 = vunpack.c.l.b16 %v326
  %v1918 = vunpack.c.l.b16 %v327
  %v1919 = vunpack.c.l.b16 %v328
  %v1920 = vunpack.c.l.b16 %v329
  %v1921 = vunpack.c.l.b16 %v330
  %v1922 = vunpack.c.l.b16 %v331
  %v1923 = vunpack.c.l.b16 %v332
  %v1924 = vunpack.c.l.b16 %v333
  %v1925 = vunpack.c.l.b16 %v334
  %v1926 = vunpack.c.l.b16 %v335
  %v1927 = vunpack.c.l.b16 %v336
  %v1928 = vunpack.c.l.b16 %v337
  %v1929 = vunpack.c.l.b16 %v338
  %v1930 = vunpack.c.l.b16 %v339
  %v1931 = vunpack.c.l.b16 %v340
  %v1932 = vunpack.c.l.b16 %v341
  %v1933 = vunpack.c.l.b16 %v342
  %v1934 = vunpack.c.l.b16 %v343
  %v1935 = vunpack.c.l.b16 %v344
  %v1936 = vunpack.c.l.b16 %v345
  %v1937 = vunpack.c.l.b16 %v346
  %v1938 = vunpack.c.l.b16 %v347
  %v1939 = vunpack.c.l.b16 %v348
  %v1940 = vunpack.c.l.b16 %v349
  %v1941 = vunpack.c.l.b16 %v350
  %v1942 = vunpack.c.l.b16 %v351
  %v1943 = vunpack.c.l.b16 %v352
  %v1944 = vunpack.c.l.b16 %v353
  %v1945 = vunpack.c.l.b16 %v354
  %v1946 = vunpack.c.l.b16 %v355
  %v1947 = vunpack.c.l.b16 %v356
  %v1948 = vunpack.c.l.b16 %v357
  %v1949 = vunpack.c.l.b16 %v358
  %v1950 = vunpack.c.l.b16 %v359
  %v1951 = vunpack.c.l.b16 %v360
  %v1952 = vunpack.c.l.b16 %v361
  %v1953 = vunpack.c.l.b16 %v362
  %v1954 = vunpack.c.l.b16 %v363
  %v1955 = vunpack.c.l.b16 %v364
  %v1956 = vunpack.c.l.b16 %v365
  %v1957 = vunpack.c.l.b16 %v366
  %v1958 = vunpack.c.l.b16 %v367
  %v1959 = vunpack.c.l.b16 %v368
  %v1960 = vunpack.c.l.b16 %v369
  %v1961 = vunpack.c.l.b16 %v370
  %v1962 = vunpack.c.l.b16 %v371
  %v1963 = vunpack.c.l.b16 %v372
  %v1964 = vunpack.c.l.b16 %v373
  %v1965 = vunpack.c.l.b16 %v374
  %v1966 = vunpack.c.l.b16 %v375
  %v1967 = vunpack.c.l.b16 %v376
  %v1968 = vunpack.c.l.b16 %v377
  %v1969 = vunpack.c.l.b16 %v378
  %v1970 = vunpack.c.l.b16 %v379
  %v1971 = vunpack.c.l.b16 %v380
  %v1972 = vunpack.c.l.b16 %v381
  %v1973 = vunpack.c.l.b16 %v382
  %v1974 = vunpack.c.l.b16 %v383
  %v1975 = vunpack.c.l.b16 %v384
  %v1976 = vunpack.c.l.b16 %v385
  %v1977 = vunpack.c.l.b16 %v386
  %v1978 = vunpack.c.l.b16 %v387
  %v1979 = vunpack.c.l.b16 %v388
  %v1980 = vunpack.c.l.b16 %v389
  %v1981 = vunpack.c.l.b16 %v390
  %v1982 = vunpack.c.l.b16 %v391
  %v1983 = vunpack.c.l.b16 %v392
  %v1984 = vunpack.c.l.b16 %v393
  %v1985 = vunpack.c.l.b16 %v394
  %v1986 = vunpack.c.l.b16 %v395
  %v1987 = vunpack.c.l.b16 %v396
  %v1988 = vunpack.c.l.b16 %v397
  %v1989 = vunpack.c.l.b16 %v398
  %v1990 = vunpack.c.l.b16 %v399
  %v1991 = vunpack.c.l.b16 %v400
  %v1992 = vunpack.c.l.b16 %v401
  %v1993 = vunpack.c.l.b16 %v402
  %v1994 = vunpack.c.l.b16 %v403
  %v1995 = vunpack.c.l.b16 %v404
  %v1996 = vunpack.c.l.b16 %v405
  %v1997 = vunpack.c.l.b16 %v406
  %v1998 = vunpack.c.l.b16 %v407
  %v1999 = vunpack.c.l.b16 %v408
  %v2000 = vunpack.c.l.b16 %v409
  %v2001 = vunpack.c.l.b16 %v410
  %v2002 = vunpack.c.l.b16 %v411
  %v2003 = vunpack.c.l.b16 %v412
  %v2004 = vunpack.c.l.b16 %v413
  %v2005 = vunpack.c.l.b16 %v414
  %v2006 = vunpack.c.l.b16 %v415
  %v2007 = vunpack.c.l.b16 %v416
  %v2008 = vunpack.c.l.b16 %v417
  %v2009 = vunpack.c.l.b16 %v418
  %v2010 = vunpack.c.l.b16 %v419
  %v2011 = vunpack.c.l.b16 %v420
  %v2012 = vunpack.c.l.b16 %v421
  %v2013 = vunpack.c.l.b16 %v422
  %v2014 = vunpack.c.l.b16 %v423
  %v2015 = vunpack.c.l.b16 %v424
  %v2016 = vunpack.c.l.b16 %v425
  %v2017 = vunpack.c.l.b16 %v426
  %v2018 = vunpack.c.l.b16 %v427
  %v2019 = vunpack.c.l.b16 %v428
  %v2020 = vunpack.c.l.b16 %v429
  %v2021 = vunpack.c.l.b16 %v430
  %v2022 = vunpack.c.l.b16 %v431
  %v2023 = vunpack.c.l.b16 %v432
  %v2024 = vunpack.c.l.b16 %v433
  %v2025 = vunpack.c.l.b16 %v434
  %v2026 = vunpack.c.l.b16 %v435
  %v2027 = vunpack.c.l.b16 %v436
  %v2028 = vunpack.c.l.b16 %v437
  %v2029 = vunpack.c.l.b16 %v438
  %v2030 = vunpack.c.l.b16 %v439
  %v2031 = vunpack.c.l.b16 %v440
  %v2032 = vunpack.c.l.b16 %v441
  %v2033 = vunpack.c.l.b16 %v442
  %v2034 = vunpack.c.l.b16 %v443
  %v2035 = vunpack.c.l.b16 %v444
  %v2036 = vunpack.c.l.b16 %v445
  %v2037 = vunpack.c.l.b16 %v446
  %v2038 = vunpack.c.l.b16 %v447
  %v2039 = vunpack.c.l.b16 %v448
  %v2040 = vunpack.c.l.b16 %v449
  %v2041 = vunpack.c.l.b16 %v450
  %v2042 = vunpack.c.l.b16 %v451
  %v2043 = vunpack.c.l.b16 %v452
  %v2044 = vunpack.c.l.b16 %v453
  %v2045 = vunpack.c.l.b16 %v454
  %v2046 = vunpack.c.l.b16 %v455
  %v2047 = vunpack.c.l.b16 %v456
  %v2048 = vunpack.c.l.b16 %v457
  %v2049 = vunpack.c.l.b16 %v458
  %v2050 = vunpack.c.l.b16 %v459
  %v2051 = vunpack.c.l.b16 %v460
  %v2052 = vunpack.c.l.b16 %v461
  %v2053 = vunpack.c.l.b16 %v462
  %v2054 = vunpack.c.l.b16 %v463
  %v2055 = vunpack.c.l.b16 %v464
  %v2056 = vunpack.c.l.b16 %v465
  %v2057 = vunpack.c.l.b16 %v466
  %v2058 = vunpack.c.l.b16 %v467
  %v2059 = vunpack.c.l.b16 %v468
  %v2060 = vunpack.c.l.b16 %v469
  %v2061 = vunpack.c.l.b16 %v470
  %v2062 = vunpack.c.l.b16 %v471
  %v2063 = vunpack.c.l.b16 %v472
  %v2064 = vunpack.c.l.b16 %v473
  %v2065 = vunpack.c.l.b16 %v474
  %v2066 = vunpack.c.l.b16 %v475
  %v2067 = vunpack.c.l.b16 %v476
  %v2068 = vunpack.c.l.b16 %v477
  %v2069 = vunpack.c.l.b16 %v478
  %v2070 = vunpack.c.l.b16 %v479
  %v2071 = vunpack.c.l.b16 %v480
  %v2072 = vunpack.c.l.b16 %v481
  %v2073 = vunpack.c.l.b16 %v482
  %v2074 = vunpack.c.l.b16 %v483
  %v2075 = vunpack.c.l.b16 %v484
  %v2076 = vunpack.c.l.b16 %v485
  %v2077 = vunpack.c.l.b16 %v486
  %v2078 = vunpack.c.l.b16 %v487
  %v2079 = vunpack.c.l.b16 %v488
  %v2080 = vunpack.c.l.b16 %v489
  %v2081 = vunpack.c.l.b16 %v490
  %v2082 = vunpack.c.l.b16 %v491
  %v2083 = vunpack.c.l.b16 %v492
  %v2084 = vunpack.c.l.b16 %v493
  %v2085 = vunpack.c.l.b16 %v494
  %v2086 = vunpack.c.l.b16 %v495
  %v2087 = vunpack.c.l.b16 %v496
  %v2088 = vunpack.c.l.b16 %v497
  %v2089 = vunpack.c.l.b16 %v498
  %v2090 = vunpack.c.l.b16 %v499
  %v2091 = vunpack.c.l.b16 %v500
  %v2092 = vunpack.c.l.b16 %v501
  %v2093 = vunpack.c.l.b16 %v502
  %v2094 = vunpack.c.l.b16 %v503
  %v2095 = vunpack.c.l.b16 %v504
  %v2096 = vunpack.c.l.b16 %v505
  %v2097 = vunpack.c.l.b16 %v506
  %v2098 = vunpack.c.l.b16 %v507
  %v2099 = vunpack.c.l.b16 %v508
  %v2100 = vunpack.c.l.b16 %v509
  %v2101 = vunpack.c.l.b16 %v510
  %v2102 = vunpack.c.l.b16 %v511
  %v2103 = vunpack.c.l.b16 %v512
  %v2104 = vunpack.c.l.b16 %v513
  %v2105 = vunpack.c.l.b16 %v514
  %v2106 = vunpack.c.l.b16 %v515
  %v2107 = vunpack.c.l.b16 %v516
  %v2108 = vunpack.c.l.b16 %v517
  %v2109 = vunpack.c.l.b16 %v518
  %v2110 = vunpack.c.l.b16 %v519
  %v2111 = vunpack.c.l.b16 %v520
  %v2112 = vunpack.c.l.b16 %v521
  %v2113 = vunpack.c.l.b16 %v522
  %v2114 = vunpack.c.l.b16 %v523
  %v2115 = vunpack.c.l.b16 %v524
  %v2116 = vunpack.c.l.b16 %v525
  %v2117 = vunpack.c.l.b16 %v526
  %v2118 = vunpack.c.l.b16 %v527
  %v2119 = vunpack.c.l.b16 %v528
  %v2120 = vunpack.c.l.b16 %v529
  %v2121 = vunpack.c.l.b16 %v530
  %v2122 = vunpack.c.l.b16 %v531
  %v2123 = vunpack.c.l.b16 %v532
  %v2124 = vunpack.c.l.b16 %v533
  %v2125 = vunpack.c.l.b16 %v534
  %v2126 = vunpack.c.l.b16 %v535
  %v2127 = vunpack.c.l.b16 %v536
  %v2128 = vunpack.c.l.b16 %v537
  %v2129 = vunpack.c.l.b16 %v538
  %v2130 = vunpack.c.l.b16 %v539
  %v2131 = vunpack.c.l.b16 %v540
  %v2132 = vunpack.c.l.b16 %v541
  %v2133 = vunpack.c.l.b16 %v542
  %v2134 = vunpack.c.l.b16 %v543
  %v2135 = vunpack.c.l.b16 %v544
  %v2136 = vpack.c.b16 %v1785, %v1784
  %v2137 = vpack.c.b16 %v1787, %v1786
  %v2138 = vpack.c.b16 %v1789, %v1788
  %v2139 = vpack.c.b16 %v1791, %v1790
  %v2140 = vpack.c.b16 %v1793, %v1792
  %v2141 = vpack.c.b16 %v1795, %v1794
  %v2142 = vpack.c.b16 %v1797, %v1796
  %v2143 = vpack.c.b16 %v1799, %v1798
  %v2144 = vpack.c.b16 %v1801, %v1800
  %v2145 = vpack.c.b16 %v1803, %v1802
  %v2146 = vpack.c.b16 %v1805, %v1804
  %v2147 = vpack.c.b16 %v1807, %v1806
  %v2148 = vpack.c.b16 %v1809, %v1808
  %v2149 = vpack.c.b16 %v1811, %v1810
  %v2150 = vpack.c.b16 %v1813, %v1812
  %v2151 = vpack.c.b16 %v1815, %v1814
  %v2152 = vpack.c.b16 %v1817, %v1816
  %v2153 = vpack.c.b16 %v1819, %v1818
  %v2154 = vpack.c.b16 %v1821, %v1820
  %v2155 = vpack.c.b16 %v1823, %v1822
  %v2156 = vpack.c.b16 %v1825, %v1824
  %v2157 = vpack.c.b16 %v1827, %v1826
  %v2158 = vpack.c.b16 %v1829, %v1828
  %v2159 = vpack.c.b16 %v1831, %v1830
  %v2160 = vpack.c.b16 %v1833, %v1832
  %v2161 = vpack.c.b16 %v1835, %v1834
  %v2162 = vpack.c.b16 %v1837, %v1836
  %v2163 = vpack.c.b16 %v1839, %v1838
  %v2164 = vpack.c.b16 %v1841, %v1840
  %v2165 = vpack.c.b16 %v1843, %v1842
  %v2166 = vpack.c.b16 %v1845, %v1844
  %v2167 = vpack.c.b16 %v1847, %v1846
  %v2168 = vpack.c.b16 %v1849, %v1848
  %v2169 = vpack.c.b16 %v1851, %v1850
  %v2170 = vpack.c.b16 %v1853, %v1852
  %v2171 = vpack.c.b16 %v1855, %v1854
  %v2172 = vpack.c.b16 %v1857, %v1856
  %v2173 = vpack.c.b16 %v1859, %v1858
  %v2174 = vpack.c.b16 %v1861, %v1860
  %v2175 = vpack.c.b16 %v1863, %v1862
  %v2176 = vpack.c.b16 %v1865, %v1864
  %v2177 = vpack.c.b16 %v1867, %v1866
  %v2178 = vpack.c.b16 %v1869, %v1868
  %v2179 = vpack.c.b16 %v1871, %v1870
  %v2180 = vpack.c.b16 %v1873, %v1872
  %v2181 = vpack.c.b16 %v1875, %v1874
  %v2182 = vpack.c.b16 %v1877, %v1876
  %v2183 = vpack.c.b16 %v1879, %v1878
  %v2184 = vpack.c.b16 %v1881, %v1880
  %v2185 = vpack.c.b16 %v1883, %v1882
  %v2186 = vpack.c.b16 %v1885, %v1884
  %v2187 = vpack.c.b16 %v1887, %v1886
  %v2188 = vpack.c.b16 %v1889, %v1888
  %v2189 = vpack.c.b16 %v1891, %v1890
  %v2190 = vpack.c.b16 %v1893, %v1892
  %v2191 = vpack.c.b16 %v1895, %v1894
  %v2192 = vpack.c.b16 %v1897, %v1896
  %v2193 = vpack.c.b16 %v1899, %v1898
  %v2194 = vpack.c.b16 %v1901, %v1900
  %v2195 = vpack.c.b16 %v1903, %v1902
  %v2196 = vpack.c.b16 %v1905, %v1904
  %v2197 = vpack.c.b16 %v1907, %v1906
  %v2198 = vpack.c.b16 %v1909, %v1908
  %v2199 = vpack.c.b16 %v1911, %v1910
  %v2200 = vpack.c.b16 %v1913, %v1912
  %v2201 = vpack.c.b16 %v1915, %v1914
  %v2202 = vpack.c.b16 %v1917, %v1916
  %v2203 = vpack.c.b16 %v1919, %v1918
  %v2204 = vpack.c.b16 %v1921, %v1920
  %v2205 = vpack.c.b16 %v1923, %v1922
  %v2206 = vpack.c.b16 %v1925, %v1924
  %v2207 = vpack.c.b16 %v1927, %v1926
  %v2208 = vpack.c.b16 %v1929, %v1928
  %v2209 = vpack.c.b16 %v1931, %v1930
  %v2210 = vpack.c.b16 %v1933, %v1932
  %v2211 = vpack.c.b16 %v1935, %v1934
  %v2212 = vpack.c.b16 %v1937, %v1936
  %v2213 = vpack.c.b16 %v1939, %v1938
  %v2214 = vpack.c.b16 %v1941, %v1940
  %v2215 = vpack.c.b16 %v1943, %v1942
  %v2216 = vpack.c.b16 %v1945, %v1944
  %v2217 = vpack.c.b16 %v1947, %v1946
  %v2218 = vpack.c.b16 %v1949, %v1948
  %v2219 = vpack.c.b16 %v1951, %v1950
  %v2220 = vpack.c.b16 %v1953, %v1952
  %v2221 = vpack.c.b16 %v1955, %v1954
  %v2222 = vpack.c.b16 %v1957, %v1956
  %v2223 = vpack.c.b16 %v1959, %v1958
  %v2224 = vpack.c.b16 %v1961, %v1960
  %v2225 = vpack.c.b16 %v1963, %v1962
  %v2226 = vpack.c.b16 %v1965, %v1964
  %v2227 = vpack.c.b16 %v1967, %v1966
  %v2228 = vpack.c.b16 %v1969, %v1968
  %v2229 = vpack.c.b16 %v1971, %v1970
  %v2230 = vpack.c.b16 %v1973, %v1972
  %v2231 = vpack.c.b16 %v1975, %v1974
  %v2232 = vpack.c.b16 %v1977, %v1976
  %v2233 = vpack.c.b16 %v1979, %v1978
  %v2234 = vpack.c.b16 %v1981, %v1980
  %v2235 = vpack.c.b16 %v1983, %v1982
  %v2236 = vpack.c.b16 %v1985, %v1984
  %v2237 = vpack.c.b16 %v1987, %v1986
  %v2238 = vpack.c.b16 %v1989, %v1988
  %v2239 = vpack.c.b16 %v1991, %v1990
  %v2240 = vpack.c.b16 %v1993, %v1992
  %v2241 = vpack.c.b16 %v1995, %v1994
  %v2242 = vpack.c.b16 %v1997, %v1996
  %v2243 = vpack.c.b16 %v1999, %v1998
  %v2244 = vpack.c.b16 %v2001, %v2000
  %v2245 = vpack.c.b16 %v2003, %v2002
  %v2246 = vpack.c.b16 %v2005, %v2004
  %v2247 = vpack.c.b16 %v2007, %v2006
  %v2248 = vpack.c.b16 %v2009, %v2008
  %v2249 = vpack.c.b16 %v2011, %v2010
  %v2250 = vpack.c.b16 %v2013, %v2012
  %v2251 = vpack.c.b16 %v2015, %v2014
  %v2252 = vpack.c.b16 %v2017, %v2016
  %v2253 = vpack.c.b16 %v2019, %v2018
  %v2254 = vpack.c.b16 %v2021, %v2020
  %v2255 = vpack.c.b16 %v2023, %v2022
  %v2256 = vpack.c.b16 %v2025, %v2024
  %v2257 = vpack.c.b16 %v2027, %v2026
  %v2258 = vpack.c.b16 %v2029, %v2028
  %v2259 = vpack.c.b16 %v2031, %v2030
  %v2260 = vpack.c.b16 %v2033, %v2032
  %v2261 = vpack.c.b16 %v2035, %v2034
  %v2262 = vpack.c.b16 %v2037, %v2036
  %v2263 = vpack.c.b16 %v2039, %v2038
  %v2264 = vpack.c.b16 %v2041, %v2040
  %v2265 = vpack.c.b16 %v2043, %v2042
  %v2266 = vpack.c.b16 %v2045, %v2044
  %v2267 = vpack.c.b16 %v2047, %v2046
  %v2268 = vpack.c.b16 %v2049, %v2048
  %v2269 = vpack.c.b16 %v2051, %v2050
  %v2270 = vpack.c.b16 %v2053, %v2052
  %v2271 = vpack.c.b16 %v2055, %v2054
  %v2272 = vpack.c.b16 %v2057, %v2056
  %v2273 = vpack.c.b16 %v2059, %v2058
  %v2274 = vpack.c.b16 %v2061, %v2060
  %v2275 = vpack.c.b16 %v2063, %v2062
  %v2276 = vpack.c.b16 %v2065, %v2064
  %v2277 = vpack.c.b16 %v2067, %v2066
  %v2278 = vpack.c.b16 %v2069, %v2068
  %v2279 = vpack.c.b16 %v2071, %v2070
  %v2280 = vpack.c.b16 %v2073, %v2072
  %v2281 = vpack.c.b16 %v2075, %v2074
  %v2282 = vpack.c.b16 %v2077, %v2076
  %v2283 = vpack.c.b16 %v2079, %v2078
  %v2284 = vpack.c.b16 %v2081, %v2080
  %v2285 = vpack.c.b16 %v2083, %v2082
  %v2286 = vpack.c.b16 %v2085, %v2084
  %v2287 = vpack.c.b16 %v2087, %v2086
  %v2288 = vpack.c.b16 %v2089, %v2088
  %v2289 = vpack.c.b16 %v2091, %v2090
  %v2290 = vpack.c.b16 %v2093, %v2092
  %v2291 = vpack.c.b16 %v2095, %v2094
  %v2292 = vpack.c.b16 %v2097, %v2096
  %v2293 = vpack.c.b16 %v2099, %v2098
  %v2294 = vpack.c.b16 %v2101, %v2100
  %v2295 = vpack.c.b16 %v2103, %v2102
  %v2296 = vpack.c.b16 %v2105, %v2104
  %v2297 = vpack.c.b16 %v2107, %v2106
  %v2298 = vpack.c.b16 %v2109, %v2108
  %v2299 = vpack.c.b16 %v2111, %v2110
  %v2300 = vpack.c.b16 %v2113, %v2112
  %v2301 = vpack.c.b16 %v2115, %v2114
  %v2302 = vpack.c.b16 %v2117, %v2116
  %v2303 = vpack.c.b16 %v2119, %v2118
  %v2304 = vpack.c.b16 %v2121, %v2120
  %v2305 = vpack.c.b16 %v2123, %v2122
  %v2306 = vpack.c.b16 %v2125, %v2124
  %v2307 = vpack.c.b16 %v2127, %v2126
  %v2308 = vpack.c.b16 %v2129, %v2128
  %v2309 = vpack.c.b16 %v2131, %v2130
  %v2310 = vpack.c.b16 %v2133, %v2132
  %v2311 = vpack.c.b16 %v2135, %v2134
  %2488 = vmatprep.subr.bf16.mxu0 0
  %2489 = vmatpush1.bf16.msra.mxu0 %v2143
  %2490 = vmatprep.subr.bf16.mxu0 0
  %2491 = vmatpush1.bf16.msra.mxu0 %v2142
  %2492 = vmatprep.subr.bf16.mxu0 0
  %2493 = vmatpush1.bf16.msra.mxu0 %v2141
  %2494 = vmatprep.subr.bf16.mxu0 0
  %2495 = vmatpush1.bf16.msra.mxu0 %v2140
  %2496 = vmatprep.subr.bf16.mxu0 0
  %2497 = vmatpush1.bf16.msra.mxu0 %v2139
  %2498 = vmatprep.subr.bf16.mxu0 0
  %2499 = vmatpush1.bf16.msra.mxu0 %v2138
  %2500 = vmatprep.subr.bf16.mxu0 0
  %2501 = vmatpush1.bf16.msra.mxu0 %v2137
  %2502 = vmatprep.subr.bf16.mxu0 0
  %2503 = vmatpush1.bf16.msra.mxu0 %v2136
  %2504 = vmatprep.subr.bf16.mxu0 0
  %2505 = vmatpush2.bf16.msra.mxu0 %v2151
  %2506 = vmatprep.subr.bf16.mxu0 0
  %2507 = vmatpush2.bf16.msra.mxu0 %v2150
  %2508 = vmatprep.subr.bf16.mxu0 0
  %2509 = vmatpush2.bf16.msra.mxu0 %v2149
  %2510 = vmatprep.subr.bf16.mxu0 0
  %2511 = vmatpush2.bf16.msra.mxu0 %v2148
  %2512 = vmatprep.subr.bf16.mxu0 0
  %2513 = vmatpush2.bf16.msra.mxu0 %v2147
  %2514 = vmatprep.subr.bf16.mxu0 0
  %2515 = vmatpush2.bf16.msra.mxu0 %v2146
  %2516 = vmatprep.subr.bf16.mxu0 0
  %2517 = vmatpush2.bf16.msra.mxu0 %v2145
  %2518 = vmatprep.subr.bf16.mxu0 0
  %2519 = vmatpush2.bf16.msra.mxu0 %v2144
  %2520 = vmatprep.mubr.bf16.mxu0 %v1081
  %2521 = vmatmul.mubr.bf16.gmra.mxu0 %v1080
  %v2522 = vpop.f32.mrf.mxu0
  %v2523 = vadd.f32 %v550, %v2522
  %v2524 = vpop.f32.mrf.mxu0
  %v2525 = vpop.f32.mrf.mxu0
  %v2526 = vadd.f32 %v550, %v2525
  %v2527 = vpop.f32.mrf.mxu0
  %2528 = vmatprep.mubr.bf16.mxu0 %v1103
  %2529 = vmatmul.mubr.bf16.gmra.mxu0 %v1102
  %v2530 = vpop.f32.mrf.mxu0
  %v2531 = vadd.f32 %v550, %v2530
  %v2532 = vpop.f32.mrf.mxu0
  %v2533 = vpop.f32.mrf.mxu0
  %v2534 = vadd.f32 %v550, %v2533
  %v2535 = vpop.f32.mrf.mxu0
  %2536 = vmatprep.mubr.bf16.mxu0 %v1125
  %2537 = vmatmul.mubr.bf16.gmra.mxu0 %v1124
  %v2538 = vpop.f32.mrf.mxu0
  %v2539 = vadd.f32 %v550, %v2538
  %v2540 = vpop.f32.mrf.mxu0
  %v2541 = vpop.f32.mrf.mxu0
  %v2542 = vadd.f32 %v550, %v2541
  %v2543 = vpop.f32.mrf.mxu0
  %2544 = vmatprep.mubr.bf16.mxu0 %v1147
  %2545 = vmatmul.mubr.bf16.gmra.mxu0 %v1146
  %v2546 = vpop.f32.mrf.mxu0
  %v2547 = vadd.f32 %v550, %v2546
  %v2548 = vpop.f32.mrf.mxu0
  %v2549 = vpop.f32.mrf.mxu0
  %v2550 = vadd.f32 %v550, %v2549
  %v2551 = vpop.f32.mrf.mxu0
  %2552 = vmatprep.mubr.bf16.mxu0 %v1169
  %2553 = vmatmul.mubr.bf16.gmra.mxu0 %v1168
  %v2554 = vpop.f32.mrf.mxu0
  %v2555 = vadd.f32 %v550, %v2554
  %v2556 = vpop.f32.mrf.mxu0
  %v2557 = vpop.f32.mrf.mxu0
  %v2558 = vadd.f32 %v550, %v2557
  %v2559 = vpop.f32.mrf.mxu0
  %2560 = vmatprep.mubr.bf16.mxu0 %v1191
  %2561 = vmatmul.mubr.bf16.gmra.mxu0 %v1190
  %v2562 = vpop.f32.mrf.mxu0
  %v2563 = vadd.f32 %v550, %v2562
  %v2564 = vpop.f32.mrf.mxu0
  %v2565 = vpop.f32.mrf.mxu0
  %v2566 = vadd.f32 %v550, %v2565
  %v2567 = vpop.f32.mrf.mxu0
  %2568 = vmatprep.mubr.bf16.mxu0 %v1213
  %2569 = vmatmul.mubr.bf16.gmra.mxu0 %v1212
  %v2570 = vpop.f32.mrf.mxu0
  %v2571 = vadd.f32 %v550, %v2570
  %v2572 = vpop.f32.mrf.mxu0
  %v2573 = vpop.f32.mrf.mxu0
  %v2574 = vadd.f32 %v550, %v2573
  %v2575 = vpop.f32.mrf.mxu0
  %2576 = vmatprep.mubr.bf16.mxu0 %v1235
  %2577 = vmatmul.mubr.bf16.gmra.mxu0 %v1234
  %v2578 = vpop.f32.mrf.mxu0
  %v2579 = vadd.f32 %v550, %v2578
  %v2580 = vpop.f32.mrf.mxu0
  %v2581 = vpop.f32.mrf.mxu0
  %v2582 = vadd.f32 %v550, %v2581
  %v2583 = vpop.f32.mrf.mxu0
  %2584 = vdwg.mxu0
  %2585 = vmatprep.subr.bf16.mxu0 0
  %2586 = vmatpush1.bf16.msra.mxu0 %v2159
  %2587 = vmatprep.subr.bf16.mxu0 0
  %2588 = vmatpush1.bf16.msra.mxu0 %v2158
  %2589 = vmatprep.subr.bf16.mxu0 0
  %2590 = vmatpush1.bf16.msra.mxu0 %v2157
  %2591 = vmatprep.subr.bf16.mxu0 0
  %2592 = vmatpush1.bf16.msra.mxu0 %v2156
  %2593 = vmatprep.subr.bf16.mxu0 0
  %2594 = vmatpush1.bf16.msra.mxu0 %v2155
  %2595 = vmatprep.subr.bf16.mxu0 0
  %2596 = vmatpush1.bf16.msra.mxu0 %v2154
  %2597 = vmatprep.subr.bf16.mxu0 0
  %2598 = vmatpush1.bf16.msra.mxu0 %v2153
  %2599 = vmatprep.subr.bf16.mxu0 0
  %2600 = vmatpush1.bf16.msra.mxu0 %v2152
  %2601 = vmatprep.subr.bf16.mxu0 0
  %2602 = vmatpush2.bf16.msra.mxu0 %v2167
  %2603 = vmatprep.subr.bf16.mxu0 0
  %2604 = vmatpush2.bf16.msra.mxu0 %v2166
  %2605 = vmatprep.subr.bf16.mxu0 0
  %2606 = vmatpush2.bf16.msra.mxu0 %v2165
  %2607 = vmatprep.subr.bf16.mxu0 0
  %2608 = vmatpush2.bf16.msra.mxu0 %v2164
  %2609 = vmatprep.subr.bf16.mxu0 0
  %2610 = vmatpush2.bf16.msra.mxu0 %v2163
  %2611 = vmatprep.subr.bf16.mxu0 0
  %2612 = vmatpush2.bf16.msra.mxu0 %v2162
  %2613 = vmatprep.subr.bf16.mxu0 0
  %2614 = vmatpush2.bf16.msra.mxu0 %v2161
  %2615 = vmatprep.subr.bf16.mxu0 0
  %2616 = vmatpush2.bf16.msra.mxu0 %v2160
  %2617 = vmatprep.mubr.bf16.mxu0 %v1083
  %2618 = vmatmul.mubr.bf16.gmra.mxu0 %v1082
  %v2619 = vpop.f32.mrf.mxu0
  %v2620 = vadd.f32 %v2523, %v2619
  %v2621 = vpop.f32.mrf.mxu0
  %v2622 = vpop.f32.mrf.mxu0
  %v2623 = vadd.f32 %v2526, %v2622
  %v2624 = vpop.f32.mrf.mxu0
  %2625 = vmatprep.mubr.bf16.mxu0 %v1105
  %2626 = vmatmul.mubr.bf16.gmra.mxu0 %v1104
  %v2627 = vpop.f32.mrf.mxu0
  %v2628 = vadd.f32 %v2531, %v2627
  %v2629 = vpop.f32.mrf.mxu0
  %v2630 = vpop.f32.mrf.mxu0
  %v2631 = vadd.f32 %v2534, %v2630
  %v2632 = vpop.f32.mrf.mxu0
  %2633 = vmatprep.mubr.bf16.mxu0 %v1127
  %2634 = vmatmul.mubr.bf16.gmra.mxu0 %v1126
  %v2635 = vpop.f32.mrf.mxu0
  %v2636 = vadd.f32 %v2539, %v2635
  %v2637 = vpop.f32.mrf.mxu0
  %v2638 = vpop.f32.mrf.mxu0
  %v2639 = vadd.f32 %v2542, %v2638
  %v2640 = vpop.f32.mrf.mxu0
  %2641 = vmatprep.mubr.bf16.mxu0 %v1149
  %2642 = vmatmul.mubr.bf16.gmra.mxu0 %v1148
  %v2643 = vpop.f32.mrf.mxu0
  %v2644 = vadd.f32 %v2547, %v2643
  %v2645 = vpop.f32.mrf.mxu0
  %v2646 = vpop.f32.mrf.mxu0
  %v2647 = vadd.f32 %v2550, %v2646
  %v2648 = vpop.f32.mrf.mxu0
  %2649 = vmatprep.mubr.bf16.mxu0 %v1171
  %2650 = vmatmul.mubr.bf16.gmra.mxu0 %v1170
  %v2651 = vpop.f32.mrf.mxu0
  %v2652 = vadd.f32 %v2555, %v2651
  %v2653 = vpop.f32.mrf.mxu0
  %v2654 = vpop.f32.mrf.mxu0
  %v2655 = vadd.f32 %v2558, %v2654
  %v2656 = vpop.f32.mrf.mxu0
  %2657 = vmatprep.mubr.bf16.mxu0 %v1193
  %2658 = vmatmul.mubr.bf16.gmra.mxu0 %v1192
  %v2659 = vpop.f32.mrf.mxu0
  %v2660 = vadd.f32 %v2563, %v2659
  %v2661 = vpop.f32.mrf.mxu0
  %v2662 = vpop.f32.mrf.mxu0
  %v2663 = vadd.f32 %v2566, %v2662
  %v2664 = vpop.f32.mrf.mxu0
  %2665 = vmatprep.mubr.bf16.mxu0 %v1215
  %2666 = vmatmul.mubr.bf16.gmra.mxu0 %v1214
  %v2667 = vpop.f32.mrf.mxu0
  %v2668 = vadd.f32 %v2571, %v2667
  %v2669 = vpop.f32.mrf.mxu0
  %v2670 = vpop.f32.mrf.mxu0
  %v2671 = vadd.f32 %v2574, %v2670
  %v2672 = vpop.f32.mrf.mxu0
  %2673 = vmatprep.mubr.bf16.mxu0 %v1237
  %2674 = vmatmul.mubr.bf16.gmra.mxu0 %v1236
  %v2675 = vpop.f32.mrf.mxu0
  %v2676 = vadd.f32 %v2579, %v2675
  %v2677 = vpop.f32.mrf.mxu0
  %v2678 = vpop.f32.mrf.mxu0
  %v2679 = vadd.f32 %v2582, %v2678
  %v2680 = vpop.f32.mrf.mxu0
  %2681 = vdwg.mxu0
  %2682 = vmatprep.subr.bf16.mxu0 0
  %2683 = vmatpush1.bf16.msra.mxu0 %v2175
  %2684 = vmatprep.subr.bf16.mxu0 0
  %2685 = vmatpush1.bf16.msra.mxu0 %v2174
  %2686 = vmatprep.subr.bf16.mxu0 0
  %2687 = vmatpush1.bf16.msra.mxu0 %v2173
  %2688 = vmatprep.subr.bf16.mxu0 0
  %2689 = vmatpush1.bf16.msra.mxu0 %v2172
  %2690 = vmatprep.subr.bf16.mxu0 0
  %2691 = vmatpush1.bf16.msra.mxu0 %v2171
  %2692 = vmatprep.subr.bf16.mxu0 0
  %2693 = vmatpush1.bf16.msra.mxu0 %v2170
  %2694 = vmatprep.subr.bf16.mxu0 0
  %2695 = vmatpush1.bf16.msra.mxu0 %v2169
  %2696 = vmatprep.subr.bf16.mxu0 0
  %2697 = vmatpush1.bf16.msra.mxu0 %v2168
  %2698 = vmatprep.subr.bf16.mxu0 0
  %2699 = vmatpush2.bf16.msra.mxu0 %v2183
  %2700 = vmatprep.subr.bf16.mxu0 0
  %2701 = vmatpush2.bf16.msra.mxu0 %v2182
  %2702 = vmatprep.subr.bf16.mxu0 0
  %2703 = vmatpush2.bf16.msra.mxu0 %v2181
  %2704 = vmatprep.subr.bf16.mxu0 0
  %2705 = vmatpush2.bf16.msra.mxu0 %v2180
  %2706 = vmatprep.subr.bf16.mxu0 0
  %2707 = vmatpush2.bf16.msra.mxu0 %v2179
  %2708 = vmatprep.subr.bf16.mxu0 0
  %2709 = vmatpush2.bf16.msra.mxu0 %v2178
  %2710 = vmatprep.subr.bf16.mxu0 0
  %2711 = vmatpush2.bf16.msra.mxu0 %v2177
  %2712 = vmatprep.subr.bf16.mxu0 0
  %2713 = vmatpush2.bf16.msra.mxu0 %v2176
  %2714 = vmatprep.mubr.bf16.mxu0 %v1085
  %2715 = vmatmul.mubr.bf16.gmra.mxu0 %v1084
  %v2716 = vpop.f32.mrf.mxu0
  %v2717 = vadd.f32 %v2620, %v2716
  %v2718 = vpop.f32.mrf.mxu0
  %v2719 = vpop.f32.mrf.mxu0
  %v2720 = vadd.f32 %v2623, %v2719
  %v2721 = vpop.f32.mrf.mxu0
  %2722 = vmatprep.mubr.bf16.mxu0 %v1107
  %2723 = vmatmul.mubr.bf16.gmra.mxu0 %v1106
  %v2724 = vpop.f32.mrf.mxu0
  %v2725 = vadd.f32 %v2628, %v2724
  %v2726 = vpop.f32.mrf.mxu0
  %v2727 = vpop.f32.mrf.mxu0
  %v2728 = vadd.f32 %v2631, %v2727
  %v2729 = vpop.f32.mrf.mxu0
  %2730 = vmatprep.mubr.bf16.mxu0 %v1129
  %2731 = vmatmul.mubr.bf16.gmra.mxu0 %v1128
  %v2732 = vpop.f32.mrf.mxu0
  %v2733 = vadd.f32 %v2636, %v2732
  %v2734 = vpop.f32.mrf.mxu0
  %v2735 = vpop.f32.mrf.mxu0
  %v2736 = vadd.f32 %v2639, %v2735
  %v2737 = vpop.f32.mrf.mxu0
  %2738 = vmatprep.mubr.bf16.mxu0 %v1151
  %2739 = vmatmul.mubr.bf16.gmra.mxu0 %v1150
  %v2740 = vpop.f32.mrf.mxu0
  %v2741 = vadd.f32 %v2644, %v2740
  %v2742 = vpop.f32.mrf.mxu0
  %v2743 = vpop.f32.mrf.mxu0
  %v2744 = vadd.f32 %v2647, %v2743
  %v2745 = vpop.f32.mrf.mxu0
  %2746 = vmatprep.mubr.bf16.mxu0 %v1173
  %2747 = vmatmul.mubr.bf16.gmra.mxu0 %v1172
  %v2748 = vpop.f32.mrf.mxu0
  %v2749 = vadd.f32 %v2652, %v2748
  %v2750 = vpop.f32.mrf.mxu0
  %v2751 = vpop.f32.mrf.mxu0
  %v2752 = vadd.f32 %v2655, %v2751
  %v2753 = vpop.f32.mrf.mxu0
  %2754 = vmatprep.mubr.bf16.mxu0 %v1195
  %2755 = vmatmul.mubr.bf16.gmra.mxu0 %v1194
  %v2756 = vpop.f32.mrf.mxu0
  %v2757 = vadd.f32 %v2660, %v2756
  %v2758 = vpop.f32.mrf.mxu0
  %v2759 = vpop.f32.mrf.mxu0
  %v2760 = vadd.f32 %v2663, %v2759
  %v2761 = vpop.f32.mrf.mxu0
  %2762 = vmatprep.mubr.bf16.mxu0 %v1217
  %2763 = vmatmul.mubr.bf16.gmra.mxu0 %v1216
  %v2764 = vpop.f32.mrf.mxu0
  %v2765 = vadd.f32 %v2668, %v2764
  %v2766 = vpop.f32.mrf.mxu0
  %v2767 = vpop.f32.mrf.mxu0
  %v2768 = vadd.f32 %v2671, %v2767
  %v2769 = vpop.f32.mrf.mxu0
  %2770 = vmatprep.mubr.bf16.mxu0 %v1239
  %2771 = vmatmul.mubr.bf16.gmra.mxu0 %v1238
  %v2772 = vpop.f32.mrf.mxu0
  %v2773 = vadd.f32 %v2676, %v2772
  %v2774 = vpop.f32.mrf.mxu0
  %v2775 = vpop.f32.mrf.mxu0
  %v2776 = vadd.f32 %v2679, %v2775
  %v2777 = vpop.f32.mrf.mxu0
  %2778 = vdwg.mxu0
  %2779 = vmatprep.subr.bf16.mxu0 0
  %2780 = vmatpush1.bf16.msra.mxu0 %v2191
  %2781 = vmatprep.subr.bf16.mxu0 0
  %2782 = vmatpush1.bf16.msra.mxu0 %v2190
  %2783 = vmatprep.subr.bf16.mxu0 0
  %2784 = vmatpush1.bf16.msra.mxu0 %v2189
  %2785 = vmatprep.subr.bf16.mxu0 0
  %2786 = vmatpush1.bf16.msra.mxu0 %v2188
  %2787 = vmatprep.subr.bf16.mxu0 0
  %2788 = vmatpush1.bf16.msra.mxu0 %v2187
  %2789 = vmatprep.subr.bf16.mxu0 0
  %2790 = vmatpush1.bf16.msra.mxu0 %v2186
  %2791 = vmatprep.subr.bf16.mxu0 0
  %2792 = vmatpush1.bf16.msra.mxu0 %v2185
  %2793 = vmatprep.subr.bf16.mxu0 0
  %2794 = vmatpush1.bf16.msra.mxu0 %v2184
  %2795 = vmatprep.subr.bf16.mxu0 0
  %2796 = vmatpush2.bf16.msra.mxu0 %v2199
  %2797 = vmatprep.subr.bf16.mxu0 0
  %2798 = vmatpush2.bf16.msra.mxu0 %v2198
  %2799 = vmatprep.subr.bf16.mxu0 0
  %2800 = vmatpush2.bf16.msra.mxu0 %v2197
  %2801 = vmatprep.subr.bf16.mxu0 0
  %2802 = vmatpush2.bf16.msra.mxu0 %v2196
  %2803 = vmatprep.subr.bf16.mxu0 0
  %2804 = vmatpush2.bf16.msra.mxu0 %v2195
  %2805 = vmatprep.subr.bf16.mxu0 0
  %2806 = vmatpush2.bf16.msra.mxu0 %v2194
  %2807 = vmatprep.subr.bf16.mxu0 0
  %2808 = vmatpush2.bf16.msra.mxu0 %v2193
  %2809 = vmatprep.subr.bf16.mxu0 0
  %2810 = vmatpush2.bf16.msra.mxu0 %v2192
  %2811 = vmatprep.mubr.bf16.mxu0 %v1087
  %2812 = vmatmul.mubr.bf16.gmra.mxu0 %v1086
  %v2813 = vpop.f32.mrf.mxu0
  %v2814 = vadd.f32 %v2717, %v2813
  %v2815 = vpop.f32.mrf.mxu0
  %v2816 = vpop.f32.mrf.mxu0
  %v2817 = vadd.f32 %v2720, %v2816
  %v2818 = vpop.f32.mrf.mxu0
  %2819 = vmatprep.mubr.bf16.mxu0 %v1109
  %2820 = vmatmul.mubr.bf16.gmra.mxu0 %v1108
  %v2821 = vpop.f32.mrf.mxu0
  %v2822 = vadd.f32 %v2725, %v2821
  %v2823 = vpop.f32.mrf.mxu0
  %v2824 = vpop.f32.mrf.mxu0
  %v2825 = vadd.f32 %v2728, %v2824
  %v2826 = vpop.f32.mrf.mxu0
  %2827 = vmatprep.mubr.bf16.mxu0 %v1131
  %2828 = vmatmul.mubr.bf16.gmra.mxu0 %v1130
  %v2829 = vpop.f32.mrf.mxu0
  %v2830 = vadd.f32 %v2733, %v2829
  %v2831 = vpop.f32.mrf.mxu0
  %v2832 = vpop.f32.mrf.mxu0
  %v2833 = vadd.f32 %v2736, %v2832
  %v2834 = vpop.f32.mrf.mxu0
  %2835 = vmatprep.mubr.bf16.mxu0 %v1153
  %2836 = vmatmul.mubr.bf16.gmra.mxu0 %v1152
  %v2837 = vpop.f32.mrf.mxu0
  %v2838 = vadd.f32 %v2741, %v2837
  %v2839 = vpop.f32.mrf.mxu0
  %v2840 = vpop.f32.mrf.mxu0
  %v2841 = vadd.f32 %v2744, %v2840
  %v2842 = vpop.f32.mrf.mxu0
  %2843 = vmatprep.mubr.bf16.mxu0 %v1175
  %2844 = vmatmul.mubr.bf16.gmra.mxu0 %v1174
  %v2845 = vpop.f32.mrf.mxu0
  %v2846 = vadd.f32 %v2749, %v2845
  %v2847 = vpop.f32.mrf.mxu0
  %v2848 = vpop.f32.mrf.mxu0
  %v2849 = vadd.f32 %v2752, %v2848
  %v2850 = vpop.f32.mrf.mxu0
  %2851 = vmatprep.mubr.bf16.mxu0 %v1197
  %2852 = vmatmul.mubr.bf16.gmra.mxu0 %v1196
  %v2853 = vpop.f32.mrf.mxu0
  %v2854 = vadd.f32 %v2757, %v2853
  %v2855 = vpop.f32.mrf.mxu0
  %v2856 = vpop.f32.mrf.mxu0
  %v2857 = vadd.f32 %v2760, %v2856
  %v2858 = vpop.f32.mrf.mxu0
  %2859 = vmatprep.mubr.bf16.mxu0 %v1219
  %2860 = vmatmul.mubr.bf16.gmra.mxu0 %v1218
  %v2861 = vpop.f32.mrf.mxu0
  %v2862 = vadd.f32 %v2765, %v2861
  %v2863 = vpop.f32.mrf.mxu0
  %v2864 = vpop.f32.mrf.mxu0
  %v2865 = vadd.f32 %v2768, %v2864
  %v2866 = vpop.f32.mrf.mxu0
  %2867 = vmatprep.mubr.bf16.mxu0 %v1241
  %2868 = vmatmul.mubr.bf16.gmra.mxu0 %v1240
  %v2869 = vpop.f32.mrf.mxu0
  %v2870 = vadd.f32 %v2773, %v2869
  %v2871 = vpop.f32.mrf.mxu0
  %v2872 = vpop.f32.mrf.mxu0
  %v2873 = vadd.f32 %v2776, %v2872
  %v2874 = vpop.f32.mrf.mxu0
  %2875 = vdwg.mxu0
  %2876 = vmatprep.subr.bf16.mxu0 0
  %2877 = vmatpush1.bf16.msra.mxu0 %v2207
  %2878 = vmatprep.subr.bf16.mxu0 0
  %2879 = vmatpush1.bf16.msra.mxu0 %v2206
  %2880 = vmatprep.subr.bf16.mxu0 0
  %2881 = vmatpush1.bf16.msra.mxu0 %v2205
  %2882 = vmatprep.subr.bf16.mxu0 0
  %2883 = vmatpush1.bf16.msra.mxu0 %v2204
  %2884 = vmatprep.subr.bf16.mxu0 0
  %2885 = vmatpush1.bf16.msra.mxu0 %v2203
  %2886 = vmatprep.subr.bf16.mxu0 0
  %2887 = vmatpush1.bf16.msra.mxu0 %v2202
  %2888 = vmatprep.subr.bf16.mxu0 0
  %2889 = vmatpush1.bf16.msra.mxu0 %v2201
  %2890 = vmatprep.subr.bf16.mxu0 0
  %2891 = vmatpush1.bf16.msra.mxu0 %v2200
  %2892 = vmatprep.subr.bf16.mxu0 0
  %2893 = vmatpush2.bf16.msra.mxu0 %v2215
  %2894 = vmatprep.subr.bf16.mxu0 0
  %2895 = vmatpush2.bf16.msra.mxu0 %v2214
  %2896 = vmatprep.subr.bf16.mxu0 0
  %2897 = vmatpush2.bf16.msra.mxu0 %v2213
  %2898 = vmatprep.subr.bf16.mxu0 0
  %2899 = vmatpush2.bf16.msra.mxu0 %v2212
  %2900 = vmatprep.subr.bf16.mxu0 0
  %2901 = vmatpush2.bf16.msra.mxu0 %v2211
  %2902 = vmatprep.subr.bf16.mxu0 0
  %2903 = vmatpush2.bf16.msra.mxu0 %v2210
  %2904 = vmatprep.subr.bf16.mxu0 0
  %2905 = vmatpush2.bf16.msra.mxu0 %v2209
  %2906 = vmatprep.subr.bf16.mxu0 0
  %2907 = vmatpush2.bf16.msra.mxu0 %v2208
  %2908 = vmatprep.mubr.bf16.mxu0 %v1089
  %2909 = vmatmul.mubr.bf16.gmra.mxu0 %v1088
  %v2910 = vpop.f32.mrf.mxu0
  %v2911 = vadd.f32 %v2814, %v2910
  %v2912 = vpop.f32.mrf.mxu0
  %v2913 = vpop.f32.mrf.mxu0
  %v2914 = vadd.f32 %v2817, %v2913
  %v2915 = vpop.f32.mrf.mxu0
  %2916 = vmatprep.mubr.bf16.mxu0 %v1111
  %2917 = vmatmul.mubr.bf16.gmra.mxu0 %v1110
  %v2918 = vpop.f32.mrf.mxu0
  %v2919 = vadd.f32 %v2822, %v2918
  %v2920 = vpop.f32.mrf.mxu0
  %v2921 = vpop.f32.mrf.mxu0
  %v2922 = vadd.f32 %v2825, %v2921
  %v2923 = vpop.f32.mrf.mxu0
  %2924 = vmatprep.mubr.bf16.mxu0 %v1133
  %2925 = vmatmul.mubr.bf16.gmra.mxu0 %v1132
  %v2926 = vpop.f32.mrf.mxu0
  %v2927 = vadd.f32 %v2830, %v2926
  %v2928 = vpop.f32.mrf.mxu0
  %v2929 = vpop.f32.mrf.mxu0
  %v2930 = vadd.f32 %v2833, %v2929
  %v2931 = vpop.f32.mrf.mxu0
  %2932 = vmatprep.mubr.bf16.mxu0 %v1155
  %2933 = vmatmul.mubr.bf16.gmra.mxu0 %v1154
  %v2934 = vpop.f32.mrf.mxu0
  %v2935 = vadd.f32 %v2838, %v2934
  %v2936 = vpop.f32.mrf.mxu0
  %v2937 = vpop.f32.mrf.mxu0
  %v2938 = vadd.f32 %v2841, %v2937
  %v2939 = vpop.f32.mrf.mxu0
  %2940 = vmatprep.mubr.bf16.mxu0 %v1177
  %2941 = vmatmul.mubr.bf16.gmra.mxu0 %v1176
  %v2942 = vpop.f32.mrf.mxu0
  %v2943 = vadd.f32 %v2846, %v2942
  %v2944 = vpop.f32.mrf.mxu0
  %v2945 = vpop.f32.mrf.mxu0
  %v2946 = vadd.f32 %v2849, %v2945
  %v2947 = vpop.f32.mrf.mxu0
  %2948 = vmatprep.mubr.bf16.mxu0 %v1199
  %2949 = vmatmul.mubr.bf16.gmra.mxu0 %v1198
  %v2950 = vpop.f32.mrf.mxu0
  %v2951 = vadd.f32 %v2854, %v2950
  %v2952 = vpop.f32.mrf.mxu0
  %v2953 = vpop.f32.mrf.mxu0
  %v2954 = vadd.f32 %v2857, %v2953
  %v2955 = vpop.f32.mrf.mxu0
  %2956 = vmatprep.mubr.bf16.mxu0 %v1221
  %2957 = vmatmul.mubr.bf16.gmra.mxu0 %v1220
  %v2958 = vpop.f32.mrf.mxu0
  %v2959 = vadd.f32 %v2862, %v2958
  %v2960 = vpop.f32.mrf.mxu0
  %v2961 = vpop.f32.mrf.mxu0
  %v2962 = vadd.f32 %v2865, %v2961
  %v2963 = vpop.f32.mrf.mxu0
  %2964 = vmatprep.mubr.bf16.mxu0 %v1243
  %2965 = vmatmul.mubr.bf16.gmra.mxu0 %v1242
  %v2966 = vpop.f32.mrf.mxu0
  %v2967 = vadd.f32 %v2870, %v2966
  %v2968 = vpop.f32.mrf.mxu0
  %v2969 = vpop.f32.mrf.mxu0
  %v2970 = vadd.f32 %v2873, %v2969
  %v2971 = vpop.f32.mrf.mxu0
  %2972 = vdwg.mxu0
  %2973 = vmatprep.subr.bf16.mxu0 0
  %2974 = vmatpush1.bf16.msra.mxu0 %v2223
  %2975 = vmatprep.subr.bf16.mxu0 0
  %2976 = vmatpush1.bf16.msra.mxu0 %v2222
  %2977 = vmatprep.subr.bf16.mxu0 0
  %2978 = vmatpush1.bf16.msra.mxu0 %v2221
  %2979 = vmatprep.subr.bf16.mxu0 0
  %2980 = vmatpush1.bf16.msra.mxu0 %v2220
  %2981 = vmatprep.subr.bf16.mxu0 0
  %2982 = vmatpush1.bf16.msra.mxu0 %v2219
  %2983 = vmatprep.subr.bf16.mxu0 0
  %2984 = vmatpush1.bf16.msra.mxu0 %v2218
  %2985 = vmatprep.subr.bf16.mxu0 0
  %2986 = vmatpush1.bf16.msra.mxu0 %v2217
  %2987 = vmatprep.subr.bf16.mxu0 0
  %2988 = vmatpush1.bf16.msra.mxu0 %v2216
  %2989 = vmatprep.subr.bf16.mxu0 0
  %2990 = vmatpush2.bf16.msra.mxu0 %v2231
  %2991 = vmatprep.subr.bf16.mxu0 0
  %2992 = vmatpush2.bf16.msra.mxu0 %v2230
  %2993 = vmatprep.subr.bf16.mxu0 0
  %2994 = vmatpush2.bf16.msra.mxu0 %v2229
  %2995 = vmatprep.subr.bf16.mxu0 0
  %2996 = vmatpush2.bf16.msra.mxu0 %v2228
  %2997 = vmatprep.subr.bf16.mxu0 0
  %2998 = vmatpush2.bf16.msra.mxu0 %v2227
  %2999 = vmatprep.subr.bf16.mxu0 0
  %3000 = vmatpush2.bf16.msra.mxu0 %v2226
  %3001 = vmatprep.subr.bf16.mxu0 0
  %3002 = vmatpush2.bf16.msra.mxu0 %v2225
  %3003 = vmatprep.subr.bf16.mxu0 0
  %3004 = vmatpush2.bf16.msra.mxu0 %v2224
  %3005 = vmatprep.mubr.bf16.mxu0 %v1091
  %3006 = vmatmul.mubr.bf16.gmra.mxu0 %v1090
  %v3007 = vpop.f32.mrf.mxu0
  %v3008 = vadd.f32 %v2911, %v3007
  %v3009 = vpop.f32.mrf.mxu0
  %v3010 = vpop.f32.mrf.mxu0
  %v3011 = vadd.f32 %v2914, %v3010
  %v3012 = vpop.f32.mrf.mxu0
  %3013 = vmatprep.mubr.bf16.mxu0 %v1113
  %3014 = vmatmul.mubr.bf16.gmra.mxu0 %v1112
  %v3015 = vpop.f32.mrf.mxu0
  %v3016 = vadd.f32 %v2919, %v3015
  %v3017 = vpop.f32.mrf.mxu0
  %v3018 = vpop.f32.mrf.mxu0
  %v3019 = vadd.f32 %v2922, %v3018
  %v3020 = vpop.f32.mrf.mxu0
  %3021 = vmatprep.mubr.bf16.mxu0 %v1135
  %3022 = vmatmul.mubr.bf16.gmra.mxu0 %v1134
  %v3023 = vpop.f32.mrf.mxu0
  %v3024 = vadd.f32 %v2927, %v3023
  %v3025 = vpop.f32.mrf.mxu0
  %v3026 = vpop.f32.mrf.mxu0
  %v3027 = vadd.f32 %v2930, %v3026
  %v3028 = vpop.f32.mrf.mxu0
  %3029 = vmatprep.mubr.bf16.mxu0 %v1157
  %3030 = vmatmul.mubr.bf16.gmra.mxu0 %v1156
  %v3031 = vpop.f32.mrf.mxu0
  %v3032 = vadd.f32 %v2935, %v3031
  %v3033 = vpop.f32.mrf.mxu0
  %v3034 = vpop.f32.mrf.mxu0
  %v3035 = vadd.f32 %v2938, %v3034
  %v3036 = vpop.f32.mrf.mxu0
  %3037 = vmatprep.mubr.bf16.mxu0 %v1179
  %3038 = vmatmul.mubr.bf16.gmra.mxu0 %v1178
  %v3039 = vpop.f32.mrf.mxu0
  %v3040 = vadd.f32 %v2943, %v3039
  %v3041 = vpop.f32.mrf.mxu0
  %v3042 = vpop.f32.mrf.mxu0
  %v3043 = vadd.f32 %v2946, %v3042
  %v3044 = vpop.f32.mrf.mxu0
  %3045 = vmatprep.mubr.bf16.mxu0 %v1201
  %3046 = vmatmul.mubr.bf16.gmra.mxu0 %v1200
  %v3047 = vpop.f32.mrf.mxu0
  %v3048 = vadd.f32 %v2951, %v3047
  %v3049 = vpop.f32.mrf.mxu0
  %v3050 = vpop.f32.mrf.mxu0
  %v3051 = vadd.f32 %v2954, %v3050
  %v3052 = vpop.f32.mrf.mxu0
  %3053 = vmatprep.mubr.bf16.mxu0 %v1223
  %3054 = vmatmul.mubr.bf16.gmra.mxu0 %v1222
  %v3055 = vpop.f32.mrf.mxu0
  %v3056 = vadd.f32 %v2959, %v3055
  %v3057 = vpop.f32.mrf.mxu0
  %v3058 = vpop.f32.mrf.mxu0
  %v3059 = vadd.f32 %v2962, %v3058
  %v3060 = vpop.f32.mrf.mxu0
  %3061 = vmatprep.mubr.bf16.mxu0 %v1245
  %3062 = vmatmul.mubr.bf16.gmra.mxu0 %v1244
  %v3063 = vpop.f32.mrf.mxu0
  %v3064 = vadd.f32 %v2967, %v3063
  %v3065 = vpop.f32.mrf.mxu0
  %v3066 = vpop.f32.mrf.mxu0
  %v3067 = vadd.f32 %v2970, %v3066
  %v3068 = vpop.f32.mrf.mxu0
  %3069 = vdwg.mxu0
  %3070 = vmatprep.subr.bf16.mxu0 0
  %3071 = vmatpush1.bf16.msra.mxu0 %v2239
  %3072 = vmatprep.subr.bf16.mxu0 0
  %3073 = vmatpush1.bf16.msra.mxu0 %v2238
  %3074 = vmatprep.subr.bf16.mxu0 0
  %3075 = vmatpush1.bf16.msra.mxu0 %v2237
  %3076 = vmatprep.subr.bf16.mxu0 0
  %3077 = vmatpush1.bf16.msra.mxu0 %v2236
  %3078 = vmatprep.subr.bf16.mxu0 0
  %3079 = vmatpush1.bf16.msra.mxu0 %v2235
  %3080 = vmatprep.subr.bf16.mxu0 0
  %3081 = vmatpush1.bf16.msra.mxu0 %v2234
  %3082 = vmatprep.subr.bf16.mxu0 0
  %3083 = vmatpush1.bf16.msra.mxu0 %v2233
  %3084 = vmatprep.subr.bf16.mxu0 0
  %3085 = vmatpush1.bf16.msra.mxu0 %v2232
  %3086 = vmatprep.subr.bf16.mxu0 0
  %3087 = vmatpush2.bf16.msra.mxu0 %v2247
  %3088 = vmatprep.subr.bf16.mxu0 0
  %3089 = vmatpush2.bf16.msra.mxu0 %v2246
  %3090 = vmatprep.subr.bf16.mxu0 0
  %3091 = vmatpush2.bf16.msra.mxu0 %v2245
  %3092 = vmatprep.subr.bf16.mxu0 0
  %3093 = vmatpush2.bf16.msra.mxu0 %v2244
  %3094 = vmatprep.subr.bf16.mxu0 0
  %3095 = vmatpush2.bf16.msra.mxu0 %v2243
  %3096 = vmatprep.subr.bf16.mxu0 0
  %3097 = vmatpush2.bf16.msra.mxu0 %v2242
  %3098 = vmatprep.subr.bf16.mxu0 0
  %3099 = vmatpush2.bf16.msra.mxu0 %v2241
  %3100 = vmatprep.subr.bf16.mxu0 0
  %3101 = vmatpush2.bf16.msra.mxu0 %v2240
  %3102 = vmatprep.mubr.bf16.mxu0 %v1093
  %3103 = vmatmul.mubr.bf16.gmra.mxu0 %v1092
  %v3104 = vpop.f32.mrf.mxu0
  %v3105 = vadd.f32 %v3008, %v3104
  %v3106 = vpop.f32.mrf.mxu0
  %v3107 = vpop.f32.mrf.mxu0
  %v3108 = vadd.f32 %v3011, %v3107
  %v3109 = vpop.f32.mrf.mxu0
  %3110 = vmatprep.mubr.bf16.mxu0 %v1115
  %3111 = vmatmul.mubr.bf16.gmra.mxu0 %v1114
  %v3112 = vpop.f32.mrf.mxu0
  %v3113 = vadd.f32 %v3016, %v3112
  %v3114 = vpop.f32.mrf.mxu0
  %v3115 = vpop.f32.mrf.mxu0
  %v3116 = vadd.f32 %v3019, %v3115
  %v3117 = vpop.f32.mrf.mxu0
  %3118 = vmatprep.mubr.bf16.mxu0 %v1137
  %3119 = vmatmul.mubr.bf16.gmra.mxu0 %v1136
  %v3120 = vpop.f32.mrf.mxu0
  %v3121 = vadd.f32 %v3024, %v3120
  %v3122 = vpop.f32.mrf.mxu0
  %v3123 = vpop.f32.mrf.mxu0
  %v3124 = vadd.f32 %v3027, %v3123
  %v3125 = vpop.f32.mrf.mxu0
  %3126 = vmatprep.mubr.bf16.mxu0 %v1159
  %3127 = vmatmul.mubr.bf16.gmra.mxu0 %v1158
  %v3128 = vpop.f32.mrf.mxu0
  %v3129 = vadd.f32 %v3032, %v3128
  %v3130 = vpop.f32.mrf.mxu0
  %v3131 = vpop.f32.mrf.mxu0
  %v3132 = vadd.f32 %v3035, %v3131
  %v3133 = vpop.f32.mrf.mxu0
  %3134 = vmatprep.mubr.bf16.mxu0 %v1181
  %3135 = vmatmul.mubr.bf16.gmra.mxu0 %v1180
  %v3136 = vpop.f32.mrf.mxu0
  %v3137 = vadd.f32 %v3040, %v3136
  %v3138 = vpop.f32.mrf.mxu0
  %v3139 = vpop.f32.mrf.mxu0
  %v3140 = vadd.f32 %v3043, %v3139
  %v3141 = vpop.f32.mrf.mxu0
  %3142 = vmatprep.mubr.bf16.mxu0 %v1203
  %3143 = vmatmul.mubr.bf16.gmra.mxu0 %v1202
  %v3144 = vpop.f32.mrf.mxu0
  %v3145 = vadd.f32 %v3048, %v3144
  %v3146 = vpop.f32.mrf.mxu0
  %v3147 = vpop.f32.mrf.mxu0
  %v3148 = vadd.f32 %v3051, %v3147
  %v3149 = vpop.f32.mrf.mxu0
  %3150 = vmatprep.mubr.bf16.mxu0 %v1225
  %3151 = vmatmul.mubr.bf16.gmra.mxu0 %v1224
  %v3152 = vpop.f32.mrf.mxu0
  %v3153 = vadd.f32 %v3056, %v3152
  %v3154 = vpop.f32.mrf.mxu0
  %v3155 = vpop.f32.mrf.mxu0
  %v3156 = vadd.f32 %v3059, %v3155
  %v3157 = vpop.f32.mrf.mxu0
  %3158 = vmatprep.mubr.bf16.mxu0 %v1247
  %3159 = vmatmul.mubr.bf16.gmra.mxu0 %v1246
  %v3160 = vpop.f32.mrf.mxu0
  %v3161 = vadd.f32 %v3064, %v3160
  %v3162 = vpop.f32.mrf.mxu0
  %v3163 = vpop.f32.mrf.mxu0
  %v3164 = vadd.f32 %v3067, %v3163
  %v3165 = vpop.f32.mrf.mxu0
  %3166 = vdwg.mxu0
  %3167 = vmatprep.subr.bf16.mxu0 0
  %3168 = vmatpush1.bf16.msra.mxu0 %v2255
  %3169 = vmatprep.subr.bf16.mxu0 0
  %3170 = vmatpush1.bf16.msra.mxu0 %v2254
  %3171 = vmatprep.subr.bf16.mxu0 0
  %3172 = vmatpush1.bf16.msra.mxu0 %v2253
  %3173 = vmatprep.subr.bf16.mxu0 0
  %3174 = vmatpush1.bf16.msra.mxu0 %v2252
  %3175 = vmatprep.subr.bf16.mxu0 0
  %3176 = vmatpush1.bf16.msra.mxu0 %v2251
  %3177 = vmatprep.subr.bf16.mxu0 0
  %3178 = vmatpush1.bf16.msra.mxu0 %v2250
  %3179 = vmatprep.subr.bf16.mxu0 0
  %3180 = vmatpush1.bf16.msra.mxu0 %v2249
  %3181 = vmatprep.subr.bf16.mxu0 0
  %3182 = vmatpush1.bf16.msra.mxu0 %v2248
  %3183 = vmatprep.subr.bf16.mxu0 0
  %3184 = vmatpush2.bf16.msra.mxu0 %v2263
  %3185 = vmatprep.subr.bf16.mxu0 0
  %3186 = vmatpush2.bf16.msra.mxu0 %v2262
  %3187 = vmatprep.subr.bf16.mxu0 0
  %3188 = vmatpush2.bf16.msra.mxu0 %v2261
  %3189 = vmatprep.subr.bf16.mxu0 0
  %3190 = vmatpush2.bf16.msra.mxu0 %v2260
  %3191 = vmatprep.subr.bf16.mxu0 0
  %3192 = vmatpush2.bf16.msra.mxu0 %v2259
  %3193 = vmatprep.subr.bf16.mxu0 0
  %3194 = vmatpush2.bf16.msra.mxu0 %v2258
  %3195 = vmatprep.subr.bf16.mxu0 0
  %3196 = vmatpush2.bf16.msra.mxu0 %v2257
  %3197 = vmatprep.subr.bf16.mxu0 0
  %3198 = vmatpush2.bf16.msra.mxu0 %v2256
  %3199 = vmatprep.mubr.bf16.mxu0 %v1095
  %3200 = vmatmul.mubr.bf16.gmra.mxu0 %v1094
  %v3201 = vpop.f32.mrf.mxu0
  %v3202 = vadd.f32 %v3105, %v3201
  %v3203 = vpop.f32.mrf.mxu0
  %v3204 = vpop.f32.mrf.mxu0
  %v3205 = vadd.f32 %v3108, %v3204
  %v3206 = vpop.f32.mrf.mxu0
  %3207 = vmatprep.mubr.bf16.mxu0 %v1117
  %3208 = vmatmul.mubr.bf16.gmra.mxu0 %v1116
  %v3209 = vpop.f32.mrf.mxu0
  %v3210 = vadd.f32 %v3113, %v3209
  %v3211 = vpop.f32.mrf.mxu0
  %v3212 = vpop.f32.mrf.mxu0
  %v3213 = vadd.f32 %v3116, %v3212
  %v3214 = vpop.f32.mrf.mxu0
  %3215 = vmatprep.mubr.bf16.mxu0 %v1139
  %3216 = vmatmul.mubr.bf16.gmra.mxu0 %v1138
  %v3217 = vpop.f32.mrf.mxu0
  %v3218 = vadd.f32 %v3121, %v3217
  %v3219 = vpop.f32.mrf.mxu0
  %v3220 = vpop.f32.mrf.mxu0
  %v3221 = vadd.f32 %v3124, %v3220
  %v3222 = vpop.f32.mrf.mxu0
  %3223 = vmatprep.mubr.bf16.mxu0 %v1161
  %3224 = vmatmul.mubr.bf16.gmra.mxu0 %v1160
  %v3225 = vpop.f32.mrf.mxu0
  %v3226 = vadd.f32 %v3129, %v3225
  %v3227 = vpop.f32.mrf.mxu0
  %v3228 = vpop.f32.mrf.mxu0
  %v3229 = vadd.f32 %v3132, %v3228
  %v3230 = vpop.f32.mrf.mxu0
  %3231 = vmatprep.mubr.bf16.mxu0 %v1183
  %3232 = vmatmul.mubr.bf16.gmra.mxu0 %v1182
  %v3233 = vpop.f32.mrf.mxu0
  %v3234 = vadd.f32 %v3137, %v3233
  %v3235 = vpop.f32.mrf.mxu0
  %v3236 = vpop.f32.mrf.mxu0
  %v3237 = vadd.f32 %v3140, %v3236
  %v3238 = vpop.f32.mrf.mxu0
  %3239 = vmatprep.mubr.bf16.mxu0 %v1205
  %3240 = vmatmul.mubr.bf16.gmra.mxu0 %v1204
  %v3241 = vpop.f32.mrf.mxu0
  %v3242 = vadd.f32 %v3145, %v3241
  %v3243 = vpop.f32.mrf.mxu0
  %v3244 = vpop.f32.mrf.mxu0
  %v3245 = vadd.f32 %v3148, %v3244
  %v3246 = vpop.f32.mrf.mxu0
  %3247 = vmatprep.mubr.bf16.mxu0 %v1227
  %3248 = vmatmul.mubr.bf16.gmra.mxu0 %v1226
  %v3249 = vpop.f32.mrf.mxu0
  %v3250 = vadd.f32 %v3153, %v3249
  %v3251 = vpop.f32.mrf.mxu0
  %v3252 = vpop.f32.mrf.mxu0
  %v3253 = vadd.f32 %v3156, %v3252
  %v3254 = vpop.f32.mrf.mxu0
  %3255 = vmatprep.mubr.bf16.mxu0 %v1249
  %3256 = vmatmul.mubr.bf16.gmra.mxu0 %v1248
  %v3257 = vpop.f32.mrf.mxu0
  %v3258 = vadd.f32 %v3161, %v3257
  %v3259 = vpop.f32.mrf.mxu0
  %v3260 = vpop.f32.mrf.mxu0
  %v3261 = vadd.f32 %v3164, %v3260
  %v3262 = vpop.f32.mrf.mxu0
  %3263 = vdwg.mxu0
  %3264 = vmatprep.subr.bf16.mxu0 0
  %3265 = vmatpush1.bf16.msra.mxu0 %v2271
  %3266 = vmatprep.subr.bf16.mxu0 0
  %3267 = vmatpush1.bf16.msra.mxu0 %v2270
  %3268 = vmatprep.subr.bf16.mxu0 0
  %3269 = vmatpush1.bf16.msra.mxu0 %v2269
  %3270 = vmatprep.subr.bf16.mxu0 0
  %3271 = vmatpush1.bf16.msra.mxu0 %v2268
  %3272 = vmatprep.subr.bf16.mxu0 0
  %3273 = vmatpush1.bf16.msra.mxu0 %v2267
  %3274 = vmatprep.subr.bf16.mxu0 0
  %3275 = vmatpush1.bf16.msra.mxu0 %v2266
  %3276 = vmatprep.subr.bf16.mxu0 0
  %3277 = vmatpush1.bf16.msra.mxu0 %v2265
  %3278 = vmatprep.subr.bf16.mxu0 0
  %3279 = vmatpush1.bf16.msra.mxu0 %v2264
  %3280 = vmatprep.subr.bf16.mxu0 0
  %3281 = vmatpush2.bf16.msra.mxu0 %v2279
  %3282 = vmatprep.subr.bf16.mxu0 0
  %3283 = vmatpush2.bf16.msra.mxu0 %v2278
  %3284 = vmatprep.subr.bf16.mxu0 0
  %3285 = vmatpush2.bf16.msra.mxu0 %v2277
  %3286 = vmatprep.subr.bf16.mxu0 0
  %3287 = vmatpush2.bf16.msra.mxu0 %v2276
  %3288 = vmatprep.subr.bf16.mxu0 0
  %3289 = vmatpush2.bf16.msra.mxu0 %v2275
  %3290 = vmatprep.subr.bf16.mxu0 0
  %3291 = vmatpush2.bf16.msra.mxu0 %v2274
  %3292 = vmatprep.subr.bf16.mxu0 0
  %3293 = vmatpush2.bf16.msra.mxu0 %v2273
  %3294 = vmatprep.subr.bf16.mxu0 0
  %3295 = vmatpush2.bf16.msra.mxu0 %v2272
  %3296 = vmatprep.mubr.bf16.mxu0 %v1097
  %3297 = vmatmul.mubr.bf16.gmra.mxu0 %v1096
  %v3298 = vpop.f32.mrf.mxu0
  %v3299 = vadd.f32 %v3202, %v3298
  %v3300 = vpop.f32.mrf.mxu0
  %v3301 = vpop.f32.mrf.mxu0
  %v3302 = vadd.f32 %v3205, %v3301
  %v3303 = vpop.f32.mrf.mxu0
  %3304 = vmatprep.mubr.bf16.mxu0 %v1119
  %3305 = vmatmul.mubr.bf16.gmra.mxu0 %v1118
  %v3306 = vpop.f32.mrf.mxu0
  %v3307 = vadd.f32 %v3210, %v3306
  %v3308 = vpop.f32.mrf.mxu0
  %v3309 = vpop.f32.mrf.mxu0
  %v3310 = vadd.f32 %v3213, %v3309
  %v3311 = vpop.f32.mrf.mxu0
  %3312 = vmatprep.mubr.bf16.mxu0 %v1141
  %3313 = vmatmul.mubr.bf16.gmra.mxu0 %v1140
  %v3314 = vpop.f32.mrf.mxu0
  %v3315 = vadd.f32 %v3218, %v3314
  %v3316 = vpop.f32.mrf.mxu0
  %v3317 = vpop.f32.mrf.mxu0
  %v3318 = vadd.f32 %v3221, %v3317
  %v3319 = vpop.f32.mrf.mxu0
  %3320 = vmatprep.mubr.bf16.mxu0 %v1163
  %3321 = vmatmul.mubr.bf16.gmra.mxu0 %v1162
  %v3322 = vpop.f32.mrf.mxu0
  %v3323 = vadd.f32 %v3226, %v3322
  %v3324 = vpop.f32.mrf.mxu0
  %v3325 = vpop.f32.mrf.mxu0
  %v3326 = vadd.f32 %v3229, %v3325
  %v3327 = vpop.f32.mrf.mxu0
  %3328 = vmatprep.mubr.bf16.mxu0 %v1185
  %3329 = vmatmul.mubr.bf16.gmra.mxu0 %v1184
  %v3330 = vpop.f32.mrf.mxu0
  %v3331 = vadd.f32 %v3234, %v3330
  %v3332 = vpop.f32.mrf.mxu0
  %v3333 = vpop.f32.mrf.mxu0
  %v3334 = vadd.f32 %v3237, %v3333
  %v3335 = vpop.f32.mrf.mxu0
  %3336 = vmatprep.mubr.bf16.mxu0 %v1207
  %3337 = vmatmul.mubr.bf16.gmra.mxu0 %v1206
  %v3338 = vpop.f32.mrf.mxu0
  %v3339 = vadd.f32 %v3242, %v3338
  %v3340 = vpop.f32.mrf.mxu0
  %v3341 = vpop.f32.mrf.mxu0
  %v3342 = vadd.f32 %v3245, %v3341
  %v3343 = vpop.f32.mrf.mxu0
  %3344 = vmatprep.mubr.bf16.mxu0 %v1229
  %3345 = vmatmul.mubr.bf16.gmra.mxu0 %v1228
  %v3346 = vpop.f32.mrf.mxu0
  %v3347 = vadd.f32 %v3250, %v3346
  %v3348 = vpop.f32.mrf.mxu0
  %v3349 = vpop.f32.mrf.mxu0
  %v3350 = vadd.f32 %v3253, %v3349
  %v3351 = vpop.f32.mrf.mxu0
  %3352 = vmatprep.mubr.bf16.mxu0 %v1251
  %3353 = vmatmul.mubr.bf16.gmra.mxu0 %v1250
  %v3354 = vpop.f32.mrf.mxu0
  %v3355 = vadd.f32 %v3258, %v3354
  %v3356 = vpop.f32.mrf.mxu0
  %v3357 = vpop.f32.mrf.mxu0
  %v3358 = vadd.f32 %v3261, %v3357
  %v3359 = vpop.f32.mrf.mxu0
  %3360 = vdwg.mxu0
  %3361 = vmatprep.subr.bf16.mxu0 0
  %3362 = vmatpush1.bf16.msra.mxu0 %v2287
  %3363 = vmatprep.subr.bf16.mxu0 0
  %3364 = vmatpush1.bf16.msra.mxu0 %v2286
  %3365 = vmatprep.subr.bf16.mxu0 0
  %3366 = vmatpush1.bf16.msra.mxu0 %v2285
  %3367 = vmatprep.subr.bf16.mxu0 0
  %3368 = vmatpush1.bf16.msra.mxu0 %v2284
  %3369 = vmatprep.subr.bf16.mxu0 0
  %3370 = vmatpush1.bf16.msra.mxu0 %v2283
  %3371 = vmatprep.subr.bf16.mxu0 0
  %3372 = vmatpush1.bf16.msra.mxu0 %v2282
  %3373 = vmatprep.subr.bf16.mxu0 0
  %3374 = vmatpush1.bf16.msra.mxu0 %v2281
  %3375 = vmatprep.subr.bf16.mxu0 0
  %3376 = vmatpush1.bf16.msra.mxu0 %v2280
  %3377 = vmatprep.subr.bf16.mxu0 0
  %3378 = vmatpush2.bf16.msra.mxu0 %v2295
  %3379 = vmatprep.subr.bf16.mxu0 0
  %3380 = vmatpush2.bf16.msra.mxu0 %v2294
  %3381 = vmatprep.subr.bf16.mxu0 0
  %3382 = vmatpush2.bf16.msra.mxu0 %v2293
  %3383 = vmatprep.subr.bf16.mxu0 0
  %3384 = vmatpush2.bf16.msra.mxu0 %v2292
  %3385 = vmatprep.subr.bf16.mxu0 0
  %3386 = vmatpush2.bf16.msra.mxu0 %v2291
  %3387 = vmatprep.subr.bf16.mxu0 0
  %3388 = vmatpush2.bf16.msra.mxu0 %v2290
  %3389 = vmatprep.subr.bf16.mxu0 0
  %3390 = vmatpush2.bf16.msra.mxu0 %v2289
  %3391 = vmatprep.subr.bf16.mxu0 0
  %3392 = vmatpush2.bf16.msra.mxu0 %v2288
  %3393 = vmatprep.mubr.bf16.mxu0 %v1099
  %3394 = vmatmul.mubr.bf16.gmra.mxu0 %v1098
  %v3395 = vpop.f32.mrf.mxu0
  %v3396 = vadd.f32 %v3299, %v3395
  %v3397 = vpop.f32.mrf.mxu0
  %v3398 = vpop.f32.mrf.mxu0
  %v3399 = vadd.f32 %v3302, %v3398
  %v3400 = vpop.f32.mrf.mxu0
  %3401 = vmatprep.mubr.bf16.mxu0 %v1121
  %3402 = vmatmul.mubr.bf16.gmra.mxu0 %v1120
  %v3403 = vpop.f32.mrf.mxu0
  %v3404 = vadd.f32 %v3307, %v3403
  %v3405 = vpop.f32.mrf.mxu0
  %v3406 = vpop.f32.mrf.mxu0
  %v3407 = vadd.f32 %v3310, %v3406
  %v3408 = vpop.f32.mrf.mxu0
  %3409 = vmatprep.mubr.bf16.mxu0 %v1143
  %3410 = vmatmul.mubr.bf16.gmra.mxu0 %v1142
  %v3411 = vpop.f32.mrf.mxu0
  %v3412 = vadd.f32 %v3315, %v3411
  %v3413 = vpop.f32.mrf.mxu0
  %v3414 = vpop.f32.mrf.mxu0
  %v3415 = vadd.f32 %v3318, %v3414
  %v3416 = vpop.f32.mrf.mxu0
  %3417 = vmatprep.mubr.bf16.mxu0 %v1165
  %3418 = vmatmul.mubr.bf16.gmra.mxu0 %v1164
  %v3419 = vpop.f32.mrf.mxu0
  %v3420 = vadd.f32 %v3323, %v3419
  %v3421 = vpop.f32.mrf.mxu0
  %v3422 = vpop.f32.mrf.mxu0
  %v3423 = vadd.f32 %v3326, %v3422
  %v3424 = vpop.f32.mrf.mxu0
  %3425 = vmatprep.mubr.bf16.mxu0 %v1187
  %3426 = vmatmul.mubr.bf16.gmra.mxu0 %v1186
  %v3427 = vpop.f32.mrf.mxu0
  %v3428 = vadd.f32 %v3331, %v3427
  %v3429 = vpop.f32.mrf.mxu0
  %v3430 = vpop.f32.mrf.mxu0
  %v3431 = vadd.f32 %v3334, %v3430
  %v3432 = vpop.f32.mrf.mxu0
  %3433 = vmatprep.mubr.bf16.mxu0 %v1209
  %3434 = vmatmul.mubr.bf16.gmra.mxu0 %v1208
  %v3435 = vpop.f32.mrf.mxu0
  %v3436 = vadd.f32 %v3339, %v3435
  %v3437 = vpop.f32.mrf.mxu0
  %v3438 = vpop.f32.mrf.mxu0
  %v3439 = vadd.f32 %v3342, %v3438
  %v3440 = vpop.f32.mrf.mxu0
  %3441 = vmatprep.mubr.bf16.mxu0 %v1231
  %3442 = vmatmul.mubr.bf16.gmra.mxu0 %v1230
  %v3443 = vpop.f32.mrf.mxu0
  %v3444 = vadd.f32 %v3347, %v3443
  %v3445 = vpop.f32.mrf.mxu0
  %v3446 = vpop.f32.mrf.mxu0
  %v3447 = vadd.f32 %v3350, %v3446
  %v3448 = vpop.f32.mrf.mxu0
  %3449 = vmatprep.mubr.bf16.mxu0 %v1253
  %3450 = vmatmul.mubr.bf16.gmra.mxu0 %v1252
  %v3451 = vpop.f32.mrf.mxu0
  %v3452 = vadd.f32 %v3355, %v3451
  %v3453 = vpop.f32.mrf.mxu0
  %v3454 = vpop.f32.mrf.mxu0
  %v3455 = vadd.f32 %v3358, %v3454
  %v3456 = vpop.f32.mrf.mxu0
  %3457 = vdwg.mxu0
  %3458 = vmatprep.subr.bf16.mxu0 0
  %3459 = vmatpush1.bf16.msra.mxu0 %v2303
  %3460 = vmatprep.subr.bf16.mxu0 0
  %3461 = vmatpush1.bf16.msra.mxu0 %v2302
  %3462 = vmatprep.subr.bf16.mxu0 0
  %3463 = vmatpush1.bf16.msra.mxu0 %v2301
  %3464 = vmatprep.subr.bf16.mxu0 0
  %3465 = vmatpush1.bf16.msra.mxu0 %v2300
  %3466 = vmatprep.subr.bf16.mxu0 0
  %3467 = vmatpush1.bf16.msra.mxu0 %v2299
  %3468 = vmatprep.subr.bf16.mxu0 0
  %3469 = vmatpush1.bf16.msra.mxu0 %v2298
  %3470 = vmatprep.subr.bf16.mxu0 0
  %3471 = vmatpush1.bf16.msra.mxu0 %v2297
  %3472 = vmatprep.subr.bf16.mxu0 0
  %3473 = vmatpush1.bf16.msra.mxu0 %v2296
  %3474 = vmatprep.subr.bf16.mxu0 0
  %3475 = vmatpush2.bf16.msra.mxu0 %v2311
  %3476 = vmatprep.subr.bf16.mxu0 0
  %3477 = vmatpush2.bf16.msra.mxu0 %v2310
  %3478 = vmatprep.subr.bf16.mxu0 0
  %3479 = vmatpush2.bf16.msra.mxu0 %v2309
  %3480 = vmatprep.subr.bf16.mxu0 0
  %3481 = vmatpush2.bf16.msra.mxu0 %v2308
  %3482 = vmatprep.subr.bf16.mxu0 0
  %3483 = vmatpush2.bf16.msra.mxu0 %v2307
  %3484 = vmatprep.subr.bf16.mxu0 0
  %3485 = vmatpush2.bf16.msra.mxu0 %v2306
  %3486 = vmatprep.subr.bf16.mxu0 0
  %3487 = vmatpush2.bf16.msra.mxu0 %v2305
  %3488 = vmatprep.subr.bf16.mxu0 0
  %3489 = vmatpush2.bf16.msra.mxu0 %v2304
  %3490 = vmatprep.mubr.bf16.mxu0 %v1101
  %3491 = vmatmul.mubr.bf16.gmra.mxu0 %v1100
  %v3492 = vpop.f32.mrf.mxu0
  %v3493 = vadd.f32 %v3396, %v3492
  %v3494 = vpop.f32.mrf.mxu0
  %v3495 = vpop.f32.mrf.mxu0
  %v3496 = vadd.f32 %v3399, %v3495
  %v3497 = vpop.f32.mrf.mxu0
  %3498 = vmatprep.mubr.bf16.mxu0 %v1123
  %3499 = vmatmul.mubr.bf16.gmra.mxu0 %v1122
  %v3500 = vpop.f32.mrf.mxu0
  %v3501 = vadd.f32 %v3404, %v3500
  %v3502 = vpop.f32.mrf.mxu0
  %v3503 = vpop.f32.mrf.mxu0
  %v3504 = vadd.f32 %v3407, %v3503
  %v3505 = vpop.f32.mrf.mxu0
  %3506 = vmatprep.mubr.bf16.mxu0 %v1145
  %3507 = vmatmul.mubr.bf16.gmra.mxu0 %v1144
  %v3508 = vpop.f32.mrf.mxu0
  %v3509 = vadd.f32 %v3412, %v3508
  %v3510 = vpop.f32.mrf.mxu0
  %v3511 = vpop.f32.mrf.mxu0
  %v3512 = vadd.f32 %v3415, %v3511
  %v3513 = vpop.f32.mrf.mxu0
  %3514 = vmatprep.mubr.bf16.mxu0 %v1167
  %3515 = vmatmul.mubr.bf16.gmra.mxu0 %v1166
  %v3516 = vpop.f32.mrf.mxu0
  %v3517 = vadd.f32 %v3420, %v3516
  %v3518 = vpop.f32.mrf.mxu0
  %v3519 = vpop.f32.mrf.mxu0
  %v3520 = vadd.f32 %v3423, %v3519
  %v3521 = vpop.f32.mrf.mxu0
  %3522 = vmatprep.mubr.bf16.mxu0 %v1189
  %3523 = vmatmul.mubr.bf16.gmra.mxu0 %v1188
  %v3524 = vpop.f32.mrf.mxu0
  %v3525 = vadd.f32 %v3428, %v3524
  %v3526 = vpop.f32.mrf.mxu0
  %v3527 = vpop.f32.mrf.mxu0
  %v3528 = vadd.f32 %v3431, %v3527
  %v3529 = vpop.f32.mrf.mxu0
  %3530 = vmatprep.mubr.bf16.mxu0 %v1211
  %3531 = vmatmul.mubr.bf16.gmra.mxu0 %v1210
  %v3532 = vpop.f32.mrf.mxu0
  %v3533 = vadd.f32 %v3436, %v3532
  %v3534 = vpop.f32.mrf.mxu0
  %v3535 = vpop.f32.mrf.mxu0
  %v3536 = vadd.f32 %v3439, %v3535
  %v3537 = vpop.f32.mrf.mxu0
  %3538 = vmatprep.mubr.bf16.mxu0 %v1233
  %3539 = vmatmul.mubr.bf16.gmra.mxu0 %v1232
  %v3540 = vpop.f32.mrf.mxu0
  %v3541 = vadd.f32 %v3444, %v3540
  %v3542 = vpop.f32.mrf.mxu0
  %v3543 = vpop.f32.mrf.mxu0
  %v3544 = vadd.f32 %v3447, %v3543
  %v3545 = vpop.f32.mrf.mxu0
  %3546 = vmatprep.mubr.bf16.mxu0 %v1255
  %3547 = vmatmul.mubr.bf16.gmra.mxu0 %v1254
  %v3548 = vpop.f32.mrf.mxu0
  %v3549 = vadd.f32 %v3452, %v3548
  %v3550 = vpop.f32.mrf.mxu0
  %v3551 = vpop.f32.mrf.mxu0
  %v3552 = vadd.f32 %v3455, %v3551
  %v3553 = vpop.f32.mrf.mxu0
  %3554 = vdwg.mxu0
  %v3555 = vmax.f32 %v3493, 0.0
  %v3556 = vmax.f32 %v3496, 0.0
  %v3557 = vmax.f32 %v3501, 0.0
  %v3558 = vmax.f32 %v3504, 0.0
  %v3559 = vmax.f32 %v3509, 0.0
  %v3560 = vmax.f32 %v3512, 0.0
  %v3561 = vmax.f32 %v3517, 0.0
  %v3562 = vmax.f32 %v3520, 0.0
  %v3563 = vmax.f32 %v3525, 0.0
  %v3564 = vmax.f32 %v3528, 0.0
  %v3565 = vmax.f32 %v3533, 0.0
  %v3566 = vmax.f32 %v3536, 0.0
  %v3567 = vmax.f32 %v3541, 0.0
  %v3568 = vmax.f32 %v3544, 0.0
  %v3569 = vmax.f32 %v3549, 0.0
  %v3570 = vmax.f32 %v3552, 0.0
  %v3571 = vpack.c.bf16 %v3556, %v3555
  %v3572 = vpack.c.bf16 %v3558, %v3557
  %v3573 = vpack.c.bf16 %v3560, %v3559
  %v3574 = vpack.c.bf16 %v3562, %v3561
  %v3575 = vpack.c.bf16 %v3564, %v3563
  %v3576 = vpack.c.bf16 %v3566, %v3565
  %v3577 = vpack.c.bf16 %v3568, %v3567
  %v3578 = vpack.c.bf16 %v3570, %v3569
  %v3587 = vunpack.c.l.b16 %v3571
  %v3588 = vunpack.c.h.b16 %v3571
  %v3589 = vunpack.c.l.b16 %v3572
  %v3590 = vunpack.c.h.b16 %v3572
  %v3591 = vunpack.c.l.b16 %v3573
  %v3592 = vunpack.c.h.b16 %v3573
  %v3593 = vunpack.c.l.b16 %v3574
  %v3594 = vunpack.c.h.b16 %v3574
  %v3595 = vunpack.c.l.b16 %v3575
  %v3596 = vunpack.c.h.b16 %v3575
  %v3597 = vunpack.c.l.b16 %v3576
  %v3598 = vunpack.c.h.b16 %v3576
  %v3599 = vunpack.c.l.b16 %v3577
  %v3600 = vunpack.c.h.b16 %v3577
  %v3601 = vunpack.c.l.b16 %v3578
  %v3602 = vunpack.c.h.b16 %v3578
  %v3603 = vpack.c.b16 %v3587, %v3587
  %v3604 = vpack.c.b16 %v3588, %v3588
  %v3605 = vpack.c.b16 %v3589, %v3589
  %v3606 = vpack.c.b16 %v3590, %v3590
  %v3607 = vpack.c.b16 %v3591, %v3591
  %v3608 = vpack.c.b16 %v3592, %v3592
  %v3609 = vpack.c.b16 %v3593, %v3593
  %v3610 = vpack.c.b16 %v3594, %v3594
  %v3611 = vpack.c.b16 %v3595, %v3595
  %v3612 = vpack.c.b16 %v3596, %v3596
  %v3613 = vpack.c.b16 %v3597, %v3597
  %v3614 = vpack.c.b16 %v3598, %v3598
  %v3615 = vpack.c.b16 %v3599, %v3599
  %v3616 = vpack.c.b16 %v3600, %v3600
  %v3617 = vpack.c.b16 %v3601, %v3601
  %v3618 = vpack.c.b16 %v3602, %v3602
  %3635 = vst [vmem:[%s3] sm:$0xf] %v3603
  %3636 = vst [vmem:[%s3 + $0x4] sm:$0xf] %v3604
  %3637 = vst [vmem:[%s3 + $0x8] sm:$0xf] %v3605
  %3638 = vst [vmem:[%s3 + $0xc] sm:$0xf] %v3606
  %3639 = vst [vmem:[%s3 + $0x10] sm:$0xf] %v3607
  %3640 = vst [vmem:[%s3 + $0x14] sm:$0xf] %v3608
  %3641 = vst [vmem:[%s3 + $0x18] sm:$0xf] %v3609
  %3642 = vst [vmem:[%s3 + $0x1c] sm:$0xf] %v3610
  %3643 = vst [vmem:[%s3 + $0x20] sm:$0xf] %v3611
  %3644 = vst [vmem:[%s3 + $0x24] sm:$0xf] %v3612
  %3645 = vst [vmem:[%s3 + $0x28] sm:$0xf] %v3613
  %3646 = vst [vmem:[%s3 + $0x2c] sm:$0xf] %v3614
  %3647 = vst [vmem:[%s3 + $0x30] sm:$0xf] %v3615
  %3648 = vst [vmem:[%s3 + $0x34] sm:$0xf] %v3616
  %3649 = vst [vmem:[%s3 + $0x38] sm:$0xf] %v3617
  %3650 = vst [vmem:[%s3 + $0x3c] sm:$0xf] %v3618
  %v3651 = vadd.f32 %v3555, %v3556
  %v3652 = vadd.f32 %v3651, %v3557
  %v3653 = vadd.f32 %v3652, %v3558
  %v3654 = vadd.f32 %v3653, %v3559
  %v3655 = vadd.f32 %v3654, %v3560
  %v3656 = vadd.f32 %v3655, %v3561
  %v3657 = vadd.f32 %v3656, %v3562
  %v3658 = vadd.f32 %v3657, %v3563
  %v3659 = vadd.f32 %v3658, %v3564
  %v3660 = vadd.f32 %v3659, %v3565
  %v3661 = vadd.f32 %v3660, %v3566
  %v3662 = vadd.f32 %v3661, %v3567
  %v3663 = vadd.f32 %v3662, %v3568
  %v3664 = vadd.f32 %v3663, %v3569
  %v3665 = vadd.f32 %v3664, %v3570
  %v3666 = vrot.slane %v3665, 4
  %v3667 = vadd.f32 %v3665, %v3666
  %v3668 = vrot.slane %v3667, 2
  %v3669 = vadd.f32 %v3667, %v3668
  %v3670 = vrot.slane %v3669, 1
  %v3671 = vadd.f32 %v3669, %v3670
  %v3672 = vmul.f32 %v3555, %v3555
  %v3673 = vmul.f32 %v3556, %v3556
  %v3674 = vmul.f32 %v3557, %v3557
  %v3675 = vmul.f32 %v3558, %v3558
  %v3676 = vmul.f32 %v3559, %v3559
  %v3677 = vmul.f32 %v3560, %v3560
  %v3678 = vmul.f32 %v3561, %v3561
  %v3679 = vmul.f32 %v3562, %v3562
  %v3680 = vmul.f32 %v3563, %v3563
  %v3681 = vmul.f32 %v3564, %v3564
  %v3682 = vmul.f32 %v3565, %v3565
  %v3683 = vmul.f32 %v3566, %v3566
  %v3684 = vmul.f32 %v3567, %v3567
  %v3685 = vmul.f32 %v3568, %v3568
  %v3686 = vmul.f32 %v3569, %v3569
  %v3687 = vmul.f32 %v3570, %v3570
  %v3688 = vadd.f32 %v3672, %v3673
  %v3689 = vadd.f32 %v3688, %v3674
  %v3690 = vadd.f32 %v3689, %v3675
  %v3691 = vadd.f32 %v3690, %v3676
  %v3692 = vadd.f32 %v3691, %v3677
  %v3693 = vadd.f32 %v3692, %v3678
  %v3694 = vadd.f32 %v3693, %v3679
  %v3695 = vadd.f32 %v3694, %v3680
  %v3696 = vadd.f32 %v3695, %v3681
  %v3697 = vadd.f32 %v3696, %v3682
  %v3698 = vadd.f32 %v3697, %v3683
  %v3699 = vadd.f32 %v3698, %v3684
  %v3700 = vadd.f32 %v3699, %v3685
  %v3701 = vadd.f32 %v3700, %v3686
  %v3702 = vadd.f32 %v3701, %v3687
  %v3703 = vrot.slane %v3702, 4
  %v3704 = vadd.f32 %v3702, %v3703
  %v3705 = vrot.slane %v3704, 2
  %v3706 = vadd.f32 %v3704, %v3705
  %v3707 = vrot.slane %v3706, 1
  %v3708 = vadd.f32 %v3706, %v3707
  %v3709 = vlaneseq
  %v3710 = vshrl.u32 %v3709, 7
  %vm3711 = vcmp.eq.s32.totalorder %v3710, 0
  %vm3712 = vcmp.eq.s32.totalorder %v3710, 1
  %v3713 = vsel %vm3712, %v3708, 0.0
  %v3714 = vsel %vm3711, %v3671, %v3713
  %3715 = vst [vmem:[%s4] sm:$0xff] %v3714
  // Predicated region
  $region14: #{cnn3d_forward.9} parent=0 // pred_check
    _
  $region15: #{cnn3d_forward.9} parent=0 // pred_check_branch
    %3717 = sbr.rel (0) target = $region17
  $region16: #{cnn3d_forward.9} parent=0 // pred_region
    _
  $region17: #{cnn3d_forward.9} parent=0 // pred_fallthru
    _
  // Predicated region
  $region18: #{cnn3d_forward.9} parent=0 // pred_check
    _
  $region19: #{cnn3d_forward.9} parent=0 // pred_check_branch
    %3719 = sbr.rel (0) target = $region21
  $region20: #{cnn3d_forward.9} parent=0 // pred_region
    _
  $region21: #{cnn3d_forward.9} parent=0 // pred_fallthru
    _
  // Predicated region
  $region22: #{cnn3d_forward.9} parent=0 // pred_check
    _
  $region23: #{cnn3d_forward.9} parent=0 // pred_check_branch
    %3721 = sbr.rel (0) target = $region25
  $region24: #{cnn3d_forward.9} parent=0 // pred_region
    _
  $region25: #{cnn3d_forward.9} parent=0 // pred_fallthru
    _
  // Predicated region
  $region26: #{cnn3d_forward.9} parent=0 // pred_check
    _
  $region27: #{cnn3d_forward.9} parent=0 // pred_check_branch
    %3723 = sbr.rel (0) target = $region29
  $region28: #{cnn3d_forward.9} parent=0 // pred_region
    _
  $region29: #{cnn3d_forward.9} parent=0 // pred_fallthru
    _

// kernel: cnn3d_forward.11
$region0: #{cnn3d_forward.11}
  #allocation0 [shape = 'u32[]', space=smem, size = 0x4, offset = 0x4, fixed_abs, tag = 'smem constant byte address 0x4 - core index']
  #allocation1 [shape = 'u32[144,128]{1,0:T(1,128)}', space=vmem, size = 0x12000, scoped, tag = 'internal scratch']
  %s0 = inlined_call_operand.vmem [shape: bf16[16,1024], index: 0, kind: input, shape index: {}]
  %s1 = inlined_call_operand.vmem [shape: bf16[1024,128], index: 1, kind: input, shape index: {}]
  %s2 = inlined_call_operand.vmem [shape: f32[1,128], index: 2, kind: input, shape index: {}]
  %s3 = inlined_call_operand.vmem [shape: bf16[16,128], index: 3, kind: output, shape index: {0}]
  %s4 = inlined_call_operand.vmem [shape: f32[8,128], index: 4, kind: output, shape index: {1}]
  %5 = xla_tuple %s3, %s4
  %s6 = sld [smem:[#allocation0]]
  $region30: #{cnn3d_forward.11} parent=0
    _
  %s8 = ssub.s32 1, %s6
  %s9 = scalar_select 0, %s8, %s6
  // Predicated region
  $region2: #{cnn3d_forward.11} parent=0 // pred_check
    _
  $region3: #{cnn3d_forward.11} parent=0 // pred_check_branch
    %11 = sbr.rel (0) target = $region5
  $region4: #{cnn3d_forward.11} parent=0 // pred_region
    _
  $region5: #{cnn3d_forward.11} parent=0 // pred_fallthru
    _
  // Predicated region
  $region6: #{cnn3d_forward.11} parent=0 // pred_check
    _
  $region7: #{cnn3d_forward.11} parent=0 // pred_check_branch
    %13 = sbr.rel (0) target = $region9
  $region8: #{cnn3d_forward.11} parent=0 // pred_region
    _
  $region9: #{cnn3d_forward.11} parent=0 // pred_fallthru
    _
  // Predicated region
  $region10: #{cnn3d_forward.11} parent=0 // pred_check
    _
  $region11: #{cnn3d_forward.11} parent=0 // pred_check_branch
    %15 = sbr.rel (0) target = $region13
  $region12: #{cnn3d_forward.11} parent=0 // pred_region
    _
  $region13: #{cnn3d_forward.11} parent=0 // pred_fallthru
    _
  %v17 = vld [vmem:[%s0] sm:$0xff]
  %v18 = vld [vmem:[%s0 + $0x8] sm:$0xff]
  %v19 = vld [vmem:[%s0 + $0x10] sm:$0xff]
  %v20 = vld [vmem:[%s0 + $0x18] sm:$0xff]
  %v21 = vld [vmem:[%s0 + $0x20] sm:$0xff]
  %v22 = vld [vmem:[%s0 + $0x28] sm:$0xff]
  %v23 = vld [vmem:[%s0 + $0x30] sm:$0xff]
  %v24 = vld [vmem:[%s0 + $0x38] sm:$0xff]
  %v25 = vld [vmem:[%s1] sm:$0xf]
  %v26 = vld [vmem:[%s1 + $0x4] sm:$0xf]
  %v27 = vld [vmem:[%s1 + $0x8] sm:$0xf]
  %v28 = vld [vmem:[%s1 + $0xc] sm:$0xf]
  %v29 = vld [vmem:[%s1 + $0x10] sm:$0xf]
  %v30 = vld [vmem:[%s1 + $0x14] sm:$0xf]
  %v31 = vld [vmem:[%s1 + $0x18] sm:$0xf]
  %v32 = vld [vmem:[%s1 + $0x1c] sm:$0xf]
  %v33 = vld [vmem:[%s1 + $0x20] sm:$0xf]
  %v34 = vld [vmem:[%s1 + $0x24] sm:$0xf]
  %v35 = vld [vmem:[%s1 + $0x28] sm:$0xf]
  %v36 = vld [vmem:[%s1 + $0x2c] sm:$0xf]
  %v37 = vld [vmem:[%s1 + $0x30] sm:$0xf]
  %v38 = vld [vmem:[%s1 + $0x34] sm:$0xf]
  %v39 = vld [vmem:[%s1 + $0x38] sm:$0xf]
  %v40 = vld [vmem:[%s1 + $0x3c] sm:$0xf]
  %v41 = vld [vmem:[%s1 + $0x40] sm:$0xf]
  %v42 = vld [vmem:[%s1 + $0x44] sm:$0xf]
  %v43 = vld [vmem:[%s1 + $0x48] sm:$0xf]
  %v44 = vld [vmem:[%s1 + $0x4c] sm:$0xf]
  %v45 = vld [vmem:[%s1 + $0x50] sm:$0xf]
  %v46 = vld [vmem:[%s1 + $0x54] sm:$0xf]
  %v47 = vld [vmem:[%s1 + $0x58] sm:$0xf]
  %v48 = vld [vmem:[%s1 + $0x5c] sm:$0xf]
  %v49 = vld [vmem:[%s1 + $0x60] sm:$0xf]
  %v50 = vld [vmem:[%s1 + $0x64] sm:$0xf]
  %v51 = vld [vmem:[%s1 + $0x68] sm:$0xf]
  %v52 = vld [vmem:[%s1 + $0x6c] sm:$0xf]
  %v53 = vld [vmem:[%s1 + $0x70] sm:$0xf]
  %v54 = vld [vmem:[%s1 + $0x74] sm:$0xf]
  %v55 = vld [vmem:[%s1 + $0x78] sm:$0xf]
  %v56 = vld [vmem:[%s1 + $0x7c] sm:$0xf]
  %v57 = vld [vmem:[%s1 + $0x80] sm:$0xf]
  %v58 = vld [vmem:[%s1 + $0x84] sm:$0xf]
  %v59 = vld [vmem:[%s1 + $0x88] sm:$0xf]
  %v60 = vld [vmem:[%s1 + $0x8c] sm:$0xf]
  %v61 = vld [vmem:[%s1 + $0x90] sm:$0xf]
  %v62 = vld [vmem:[%s1 + $0x94] sm:$0xf]
  %v63 = vld [vmem:[%s1 + $0x98] sm:$0xf]
  %v64 = vld [vmem:[%s1 + $0x9c] sm:$0xf]
  %v65 = vld [vmem:[%s1 + $0xa0] sm:$0xf]
  %v66 = vld [vmem:[%s1 + $0xa4] sm:$0xf]
  %v67 = vld [vmem:[%s1 + $0xa8] sm:$0xf]
  %v68 = vld [vmem:[%s1 + $0xac] sm:$0xf]
  %v69 = vld [vmem:[%s1 + $0xb0] sm:$0xf]
  %v70 = vld [vmem:[%s1 + $0xb4] sm:$0xf]
  %v71 = vld [vmem:[%s1 + $0xb8] sm:$0xf]
  %v72 = vld [vmem:[%s1 + $0xbc] sm:$0xf]
  %v73 = vld [vmem:[%s1 + $0xc0] sm:$0xf]
  %v74 = vld [vmem:[%s1 + $0xc4] sm:$0xf]
  %v75 = vld [vmem:[%s1 + $0xc8] sm:$0xf]
  %v76 = vld [vmem:[%s1 + $0xcc] sm:$0xf]
  %v77 = vld [vmem:[%s1 + $0xd0] sm:$0xf]
  %v78 = vld [vmem:[%s1 + $0xd4] sm:$0xf]
  %v79 = vld [vmem:[%s1 + $0xd8] sm:$0xf]
  %v80 = vld [vmem:[%s1 + $0xdc] sm:$0xf]
  %v81 = vld [vmem:[%s1 + $0xe0] sm:$0xf]
  %v82 = vld [vmem:[%s1 + $0xe4] sm:$0xf]
  %v83 = vld [vmem:[%s1 + $0xe8] sm:$0xf]
  %v84 = vld [vmem:[%s1 + $0xec] sm:$0xf]
  %v85 = vld [vmem:[%s1 + $0xf0] sm:$0xf]
  %v86 = vld [vmem:[%s1 + $0xf4] sm:$0xf]
  %v87 = vld [vmem:[%s1 + $0xf8] sm:$0xf]
  %v88 = vld [vmem:[%s1 + $0xfc] sm:$0xf]
  %v89 = vld [vmem:[%s1 + $0x100] sm:$0xf]
  %v90 = vld [vmem:[%s1 + $0x104] sm:$0xf]
  %v91 = vld [vmem:[%s1 + $0x108] sm:$0xf]
  %v92 = vld [vmem:[%s1 + $0x10c] sm:$0xf]
  %v93 = vld [vmem:[%s1 + $0x110] sm:$0xf]
  %v94 = vld [vmem:[%s1 + $0x114] sm:$0xf]
  %v95 = vld [vmem:[%s1 + $0x118] sm:$0xf]
  %v96 = vld [vmem:[%s1 + $0x11c] sm:$0xf]
  %v97 = vld [vmem:[%s1 + $0x120] sm:$0xf]
  %v98 = vld [vmem:[%s1 + $0x124] sm:$0xf]
  %v99 = vld [vmem:[%s1 + $0x128] sm:$0xf]
  %v100 = vld [vmem:[%s1 + $0x12c] sm:$0xf]
  %v101 = vld [vmem:[%s1 + $0x130] sm:$0xf]
  %v102 = vld [vmem:[%s1 + $0x134] sm:$0xf]
  %v103 = vld [vmem:[%s1 + $0x138] sm:$0xf]
  %v104 = vld [vmem:[%s1 + $0x13c] sm:$0xf]
  %v105 = vld [vmem:[%s1 + $0x140] sm:$0xf]
  %v106 = vld [vmem:[%s1 + $0x144] sm:$0xf]
  %v107 = vld [vmem:[%s1 + $0x148] sm:$0xf]
  %v108 = vld [vmem:[%s1 + $0x14c] sm:$0xf]
  %v109 = vld [vmem:[%s1 + $0x150] sm:$0xf]
  %v110 = vld [vmem:[%s1 + $0x154] sm:$0xf]
  %v111 = vld [vmem:[%s1 + $0x158] sm:$0xf]
  %v112 = vld [vmem:[%s1 + $0x15c] sm:$0xf]
  %v113 = vld [vmem:[%s1 + $0x160] sm:$0xf]
  %v114 = vld [vmem:[%s1 + $0x164] sm:$0xf]
  %v115 = vld [vmem:[%s1 + $0x168] sm:$0xf]
  %v116 = vld [vmem:[%s1 + $0x16c] sm:$0xf]
  %v117 = vld [vmem:[%s1 + $0x170] sm:$0xf]
  %v118 = vld [vmem:[%s1 + $0x174] sm:$0xf]
  %v119 = vld [vmem:[%s1 + $0x178] sm:$0xf]
  %v120 = vld [vmem:[%s1 + $0x17c] sm:$0xf]
  %v121 = vld [vmem:[%s1 + $0x180] sm:$0xf]
  %v122 = vld [vmem:[%s1 + $0x184] sm:$0xf]
  %v123 = vld [vmem:[%s1 + $0x188] sm:$0xf]
  %v124 = vld [vmem:[%s1 + $0x18c] sm:$0xf]
  %v125 = vld [vmem:[%s1 + $0x190] sm:$0xf]
  %v126 = vld [vmem:[%s1 + $0x194] sm:$0xf]
  %v127 = vld [vmem:[%s1 + $0x198] sm:$0xf]
  %v128 = vld [vmem:[%s1 + $0x19c] sm:$0xf]
  %v129 = vld [vmem:[%s1 + $0x1a0] sm:$0xf]
  %v130 = vld [vmem:[%s1 + $0x1a4] sm:$0xf]
  %v131 = vld [vmem:[%s1 + $0x1a8] sm:$0xf]
  %v132 = vld [vmem:[%s1 + $0x1ac] sm:$0xf]
  %v133 = vld [vmem:[%s1 + $0x1b0] sm:$0xf]
  %v134 = vld [vmem:[%s1 + $0x1b4] sm:$0xf]
  %v135 = vld [vmem:[%s1 + $0x1b8] sm:$0xf]
  %v136 = vld [vmem:[%s1 + $0x1bc] sm:$0xf]
  %v137 = vld [vmem:[%s1 + $0x1c0] sm:$0xf]
  %v138 = vld [vmem:[%s1 + $0x1c4] sm:$0xf]
  %v139 = vld [vmem:[%s1 + $0x1c8] sm:$0xf]
  %v140 = vld [vmem:[%s1 + $0x1cc] sm:$0xf]
  %v141 = vld [vmem:[%s1 + $0x1d0] sm:$0xf]
  %v142 = vld [vmem:[%s1 + $0x1d4] sm:$0xf]
  %v143 = vld [vmem:[%s1 + $0x1d8] sm:$0xf]
  %v144 = vld [vmem:[%s1 + $0x1dc] sm:$0xf]
  %v145 = vld [vmem:[%s1 + $0x1e0] sm:$0xf]
  %v146 = vld [vmem:[%s1 + $0x1e4] sm:$0xf]
  %v147 = vld [vmem:[%s1 + $0x1e8] sm:$0xf]
  %v148 = vld [vmem:[%s1 + $0x1ec] sm:$0xf]
  %v149 = vld [vmem:[%s1 + $0x1f0] sm:$0xf]
  %v150 = vld [vmem:[%s1 + $0x1f4] sm:$0xf]
  %v151 = vld [vmem:[%s1 + $0x1f8] sm:$0xf]
  %v152 = vld [vmem:[%s1 + $0x1fc] sm:$0xf]
  %v153 = vld [vmem:[%s2] sm:$0x1]
  %v155 = vlaneseq
  %v156 = vshrl.u32 %v155, 7
  %v157 = vsub.s32 0, %v156
  %v158 = vrot.slane %v153, %v157
  %v168 = vunpack.c.l.b16 %v17
  %v169 = vunpack.c.h.b16 %v17
  %v170 = vunpack.c.l.b16 %v18
  %v171 = vunpack.c.h.b16 %v18
  %v172 = vunpack.c.l.b16 %v19
  %v173 = vunpack.c.h.b16 %v19
  %v174 = vunpack.c.l.b16 %v20
  %v175 = vunpack.c.h.b16 %v20
  %v176 = vunpack.c.l.b16 %v21
  %v177 = vunpack.c.h.b16 %v21
  %v178 = vunpack.c.l.b16 %v22
  %v179 = vunpack.c.h.b16 %v22
  %v180 = vunpack.c.l.b16 %v23
  %v181 = vunpack.c.h.b16 %v23
  %v182 = vunpack.c.l.b16 %v24
  %v183 = vunpack.c.h.b16 %v24
  %v184 = vpack.c.b16 %v176, %v168
  %v185 = vpack.c.b16 %v177, %v169
  %v186 = vpack.c.b16 %v178, %v170
  %v187 = vpack.c.b16 %v179, %v171
  %v188 = vpack.c.b16 %v180, %v172
  %v189 = vpack.c.b16 %v181, %v173
  %v190 = vpack.c.b16 %v182, %v174
  %v191 = vpack.c.b16 %v183, %v175
  %v328 = vunpack.c.l.b16 %v25
  %v329 = vunpack.c.l.b16 %v26
  %v330 = vunpack.c.l.b16 %v27
  %v331 = vunpack.c.l.b16 %v28
  %v332 = vunpack.c.l.b16 %v29
  %v333 = vunpack.c.l.b16 %v30
  %v334 = vunpack.c.l.b16 %v31
  %v335 = vunpack.c.l.b16 %v32
  %v336 = vunpack.c.l.b16 %v33
  %v337 = vunpack.c.l.b16 %v34
  %v338 = vunpack.c.l.b16 %v35
  %v339 = vunpack.c.l.b16 %v36
  %v340 = vunpack.c.l.b16 %v37
  %v341 = vunpack.c.l.b16 %v38
  %v342 = vunpack.c.l.b16 %v39
  %v343 = vunpack.c.l.b16 %v40
  %v344 = vunpack.c.l.b16 %v41
  %v345 = vunpack.c.l.b16 %v42
  %v346 = vunpack.c.l.b16 %v43
  %v347 = vunpack.c.l.b16 %v44
  %v348 = vunpack.c.l.b16 %v45
  %v349 = vunpack.c.l.b16 %v46
  %v350 = vunpack.c.l.b16 %v47
  %v351 = vunpack.c.l.b16 %v48
  %v352 = vunpack.c.l.b16 %v49
  %v353 = vunpack.c.l.b16 %v50
  %v354 = vunpack.c.l.b16 %v51
  %v355 = vunpack.c.l.b16 %v52
  %v356 = vunpack.c.l.b16 %v53
  %v357 = vunpack.c.l.b16 %v54
  %v358 = vunpack.c.l.b16 %v55
  %v359 = vunpack.c.l.b16 %v56
  %v360 = vunpack.c.l.b16 %v57
  %v361 = vunpack.c.l.b16 %v58
  %v362 = vunpack.c.l.b16 %v59
  %v363 = vunpack.c.l.b16 %v60
  %v364 = vunpack.c.l.b16 %v61
  %v365 = vunpack.c.l.b16 %v62
  %v366 = vunpack.c.l.b16 %v63
  %v367 = vunpack.c.l.b16 %v64
  %v368 = vunpack.c.l.b16 %v65
  %v369 = vunpack.c.l.b16 %v66
  %v370 = vunpack.c.l.b16 %v67
  %v371 = vunpack.c.l.b16 %v68
  %v372 = vunpack.c.l.b16 %v69
  %v373 = vunpack.c.l.b16 %v70
  %v374 = vunpack.c.l.b16 %v71
  %v375 = vunpack.c.l.b16 %v72
  %v376 = vunpack.c.l.b16 %v73
  %v377 = vunpack.c.l.b16 %v74
  %v378 = vunpack.c.l.b16 %v75
  %v379 = vunpack.c.l.b16 %v76
  %v380 = vunpack.c.l.b16 %v77
  %v381 = vunpack.c.l.b16 %v78
  %v382 = vunpack.c.l.b16 %v79
  %v383 = vunpack.c.l.b16 %v80
  %v384 = vunpack.c.l.b16 %v81
  %v385 = vunpack.c.l.b16 %v82
  %v386 = vunpack.c.l.b16 %v83
  %v387 = vunpack.c.l.b16 %v84
  %v388 = vunpack.c.l.b16 %v85
  %v389 = vunpack.c.l.b16 %v86
  %v390 = vunpack.c.l.b16 %v87
  %v391 = vunpack.c.l.b16 %v88
  %v392 = vunpack.c.l.b16 %v89
  %v393 = vunpack.c.l.b16 %v90
  %v394 = vunpack.c.l.b16 %v91
  %v395 = vunpack.c.l.b16 %v92
  %v396 = vunpack.c.l.b16 %v93
  %v397 = vunpack.c.l.b16 %v94
  %v398 = vunpack.c.l.b16 %v95
  %v399 = vunpack.c.l.b16 %v96
  %v400 = vunpack.c.l.b16 %v97
  %v401 = vunpack.c.l.b16 %v98
  %v402 = vunpack.c.l.b16 %v99
  %v403 = vunpack.c.l.b16 %v100
  %v404 = vunpack.c.l.b16 %v101
  %v405 = vunpack.c.l.b16 %v102
  %v406 = vunpack.c.l.b16 %v103
  %v407 = vunpack.c.l.b16 %v104
  %v408 = vunpack.c.l.b16 %v105
  %v409 = vunpack.c.l.b16 %v106
  %v410 = vunpack.c.l.b16 %v107
  %v411 = vunpack.c.l.b16 %v108
  %v412 = vunpack.c.l.b16 %v109
  %v413 = vunpack.c.l.b16 %v110
  %v414 = vunpack.c.l.b16 %v111
  %v415 = vunpack.c.l.b16 %v112
  %v416 = vunpack.c.l.b16 %v113
  %v417 = vunpack.c.l.b16 %v114
  %v418 = vunpack.c.l.b16 %v115
  %v419 = vunpack.c.l.b16 %v116
  %v420 = vunpack.c.l.b16 %v117
  %v421 = vunpack.c.l.b16 %v118
  %v422 = vunpack.c.l.b16 %v119
  %v423 = vunpack.c.l.b16 %v120
  %v424 = vunpack.c.l.b16 %v121
  %v425 = vunpack.c.l.b16 %v122
  %v426 = vunpack.c.l.b16 %v123
  %v427 = vunpack.c.l.b16 %v124
  %v428 = vunpack.c.l.b16 %v125
  %v429 = vunpack.c.l.b16 %v126
  %v430 = vunpack.c.l.b16 %v127
  %v431 = vunpack.c.l.b16 %v128
  %v432 = vunpack.c.l.b16 %v129
  %v433 = vunpack.c.l.b16 %v130
  %v434 = vunpack.c.l.b16 %v131
  %v435 = vunpack.c.l.b16 %v132
  %v436 = vunpack.c.l.b16 %v133
  %v437 = vunpack.c.l.b16 %v134
  %v438 = vunpack.c.l.b16 %v135
  %v439 = vunpack.c.l.b16 %v136
  %v440 = vunpack.c.l.b16 %v137
  %v441 = vunpack.c.l.b16 %v138
  %v442 = vunpack.c.l.b16 %v139
  %v443 = vunpack.c.l.b16 %v140
  %v444 = vunpack.c.l.b16 %v141
  %v445 = vunpack.c.l.b16 %v142
  %v446 = vunpack.c.l.b16 %v143
  %v447 = vunpack.c.l.b16 %v144
  %v448 = vunpack.c.l.b16 %v145
  %v449 = vunpack.c.l.b16 %v146
  %v450 = vunpack.c.l.b16 %v147
  %v451 = vunpack.c.l.b16 %v148
  %v452 = vunpack.c.l.b16 %v149
  %v453 = vunpack.c.l.b16 %v150
  %v454 = vunpack.c.l.b16 %v151
  %v455 = vunpack.c.l.b16 %v152
  %v456 = vpack.c.b16 %v329, %v328
  %v457 = vpack.c.b16 %v331, %v330
  %v458 = vpack.c.b16 %v333, %v332
  %v459 = vpack.c.b16 %v335, %v334
  %v460 = vpack.c.b16 %v337, %v336
  %v461 = vpack.c.b16 %v339, %v338
  %v462 = vpack.c.b16 %v341, %v340
  %v463 = vpack.c.b16 %v343, %v342
  %v464 = vpack.c.b16 %v345, %v344
  %v465 = vpack.c.b16 %v347, %v346
  %v466 = vpack.c.b16 %v349, %v348
  %v467 = vpack.c.b16 %v351, %v350
  %v468 = vpack.c.b16 %v353, %v352
  %v469 = vpack.c.b16 %v355, %v354
  %v470 = vpack.c.b16 %v357, %v356
  %v471 = vpack.c.b16 %v359, %v358
  %v472 = vpack.c.b16 %v361, %v360
  %v473 = vpack.c.b16 %v363, %v362
  %v474 = vpack.c.b16 %v365, %v364
  %v475 = vpack.c.b16 %v367, %v366
  %v476 = vpack.c.b16 %v369, %v368
  %v477 = vpack.c.b16 %v371, %v370
  %v478 = vpack.c.b16 %v373, %v372
  %v479 = vpack.c.b16 %v375, %v374
  %v480 = vpack.c.b16 %v377, %v376
  %v481 = vpack.c.b16 %v379, %v378
  %v482 = vpack.c.b16 %v381, %v380
  %v483 = vpack.c.b16 %v383, %v382
  %v484 = vpack.c.b16 %v385, %v384
  %v485 = vpack.c.b16 %v387, %v386
  %v486 = vpack.c.b16 %v389, %v388
  %v487 = vpack.c.b16 %v391, %v390
  %v488 = vpack.c.b16 %v393, %v392
  %v489 = vpack.c.b16 %v395, %v394
  %v490 = vpack.c.b16 %v397, %v396
  %v491 = vpack.c.b16 %v399, %v398
  %v492 = vpack.c.b16 %v401, %v400
  %v493 = vpack.c.b16 %v403, %v402
  %v494 = vpack.c.b16 %v405, %v404
  %v495 = vpack.c.b16 %v407, %v406
  %v496 = vpack.c.b16 %v409, %v408
  %v497 = vpack.c.b16 %v411, %v410
  %v498 = vpack.c.b16 %v413, %v412
  %v499 = vpack.c.b16 %v415, %v414
  %v500 = vpack.c.b16 %v417, %v416
  %v501 = vpack.c.b16 %v419, %v418
  %v502 = vpack.c.b16 %v421, %v420
  %v503 = vpack.c.b16 %v423, %v422
  %v504 = vpack.c.b16 %v425, %v424
  %v505 = vpack.c.b16 %v427, %v426
  %v506 = vpack.c.b16 %v429, %v428
  %v507 = vpack.c.b16 %v431, %v430
  %v508 = vpack.c.b16 %v433, %v432
  %v509 = vpack.c.b16 %v435, %v434
  %v510 = vpack.c.b16 %v437, %v436
  %v511 = vpack.c.b16 %v439, %v438
  %v512 = vpack.c.b16 %v441, %v440
  %v513 = vpack.c.b16 %v443, %v442
  %v514 = vpack.c.b16 %v445, %v444
  %v515 = vpack.c.b16 %v447, %v446
  %v516 = vpack.c.b16 %v449, %v448
  %v517 = vpack.c.b16 %v451, %v450
  %v518 = vpack.c.b16 %v453, %v452
  %v519 = vpack.c.b16 %v455, %v454
  %584 = vmatprep.subr.bf16.mxu0 0
  %585 = vmatpush1.bf16.msra.mxu0 %v463
  %586 = vmatprep.subr.bf16.mxu0 0
  %587 = vmatpush1.bf16.msra.mxu0 %v462
  %588 = vmatprep.subr.bf16.mxu0 0
  %589 = vmatpush1.bf16.msra.mxu0 %v461
  %590 = vmatprep.subr.bf16.mxu0 0
  %591 = vmatpush1.bf16.msra.mxu0 %v460
  %592 = vmatprep.subr.bf16.mxu0 0
  %593 = vmatpush1.bf16.msra.mxu0 %v459
  %594 = vmatprep.subr.bf16.mxu0 0
  %595 = vmatpush1.bf16.msra.mxu0 %v458
  %596 = vmatprep.subr.bf16.mxu0 0
  %597 = vmatpush1.bf16.msra.mxu0 %v457
  %598 = vmatprep.subr.bf16.mxu0 0
  %599 = vmatpush1.bf16.msra.mxu0 %v456
  %600 = vmatprep.subr.bf16.mxu0 0
  %601 = vmatpush2.bf16.msra.mxu0 %v471
  %602 = vmatprep.subr.bf16.mxu0 0
  %603 = vmatpush2.bf16.msra.mxu0 %v470
  %604 = vmatprep.subr.bf16.mxu0 0
  %605 = vmatpush2.bf16.msra.mxu0 %v469
  %606 = vmatprep.subr.bf16.mxu0 0
  %607 = vmatpush2.bf16.msra.mxu0 %v468
  %608 = vmatprep.subr.bf16.mxu0 0
  %609 = vmatpush2.bf16.msra.mxu0 %v467
  %610 = vmatprep.subr.bf16.mxu0 0
  %611 = vmatpush2.bf16.msra.mxu0 %v466
  %612 = vmatprep.subr.bf16.mxu0 0
  %613 = vmatpush2.bf16.msra.mxu0 %v465
  %614 = vmatprep.subr.bf16.mxu0 0
  %615 = vmatpush2.bf16.msra.mxu0 %v464
  %616 = vmatprep.mubr.bf16.mxu0 %v185
  %617 = vmatmul.mubr.bf16.gmra.mxu0 %v184
  %v618 = vpop.f32.mrf.mxu0
  %v619 = vadd.f32 %v158, %v618
  %v620 = vpop.f32.mrf.mxu0
  %v621 = vpop.f32.mrf.mxu0
  %v622 = vadd.f32 %v158, %v621
  %v623 = vpop.f32.mrf.mxu0
  %624 = vdwg.mxu0
  %625 = vmatprep.subr.bf16.mxu0 0
  %626 = vmatpush1.bf16.msra.mxu0 %v479
  %627 = vmatprep.subr.bf16.mxu0 0
  %628 = vmatpush1.bf16.msra.mxu0 %v478
  %629 = vmatprep.subr.bf16.mxu0 0
  %630 = vmatpush1.bf16.msra.mxu0 %v477
  %631 = vmatprep.subr.bf16.mxu0 0
  %632 = vmatpush1.bf16.msra.mxu0 %v476
  %633 = vmatprep.subr.bf16.mxu0 0
  %634 = vmatpush1.bf16.msra.mxu0 %v475
  %635 = vmatprep.subr.bf16.mxu0 0
  %636 = vmatpush1.bf16.msra.mxu0 %v474
  %637 = vmatprep.subr.bf16.mxu0 0
  %638 = vmatpush1.bf16.msra.mxu0 %v473
  %639 = vmatprep.subr.bf16.mxu0 0
  %640 = vmatpush1.bf16.msra.mxu0 %v472
  %641 = vmatprep.subr.bf16.mxu0 0
  %642 = vmatpush2.bf16.msra.mxu0 %v487
  %643 = vmatprep.subr.bf16.mxu0 0
  %644 = vmatpush2.bf16.msra.mxu0 %v486
  %645 = vmatprep.subr.bf16.mxu0 0
  %646 = vmatpush2.bf16.msra.mxu0 %v485
  %647 = vmatprep.subr.bf16.mxu0 0
  %648 = vmatpush2.bf16.msra.mxu0 %v484
  %649 = vmatprep.subr.bf16.mxu0 0
  %650 = vmatpush2.bf16.msra.mxu0 %v483
  %651 = vmatprep.subr.bf16.mxu0 0
  %652 = vmatpush2.bf16.msra.mxu0 %v482
  %653 = vmatprep.subr.bf16.mxu0 0
  %654 = vmatpush2.bf16.msra.mxu0 %v481
  %655 = vmatprep.subr.bf16.mxu0 0
  %656 = vmatpush2.bf16.msra.mxu0 %v480
  %657 = vmatprep.mubr.bf16.mxu0 %v187
  %658 = vmatmul.mubr.bf16.gmra.mxu0 %v186
  %v659 = vpop.f32.mrf.mxu0
  %v660 = vadd.f32 %v619, %v659
  %v661 = vpop.f32.mrf.mxu0
  %v662 = vpop.f32.mrf.mxu0
  %v663 = vadd.f32 %v622, %v662
  %v664 = vpop.f32.mrf.mxu0
  %665 = vdwg.mxu0
  %666 = vmatprep.subr.bf16.mxu0 0
  %667 = vmatpush1.bf16.msra.mxu0 %v495
  %668 = vmatprep.subr.bf16.mxu0 0
  %669 = vmatpush1.bf16.msra.mxu0 %v494
  %670 = vmatprep.subr.bf16.mxu0 0
  %671 = vmatpush1.bf16.msra.mxu0 %v493
  %672 = vmatprep.subr.bf16.mxu0 0
  %673 = vmatpush1.bf16.msra.mxu0 %v492
  %674 = vmatprep.subr.bf16.mxu0 0
  %675 = vmatpush1.bf16.msra.mxu0 %v491
  %676 = vmatprep.subr.bf16.mxu0 0
  %677 = vmatpush1.bf16.msra.mxu0 %v490
  %678 = vmatprep.subr.bf16.mxu0 0
  %679 = vmatpush1.bf16.msra.mxu0 %v489
  %680 = vmatprep.subr.bf16.mxu0 0
  %681 = vmatpush1.bf16.msra.mxu0 %v488
  %682 = vmatprep.subr.bf16.mxu0 0
  %683 = vmatpush2.bf16.msra.mxu0 %v503
  %684 = vmatprep.subr.bf16.mxu0 0
  %685 = vmatpush2.bf16.msra.mxu0 %v502
  %686 = vmatprep.subr.bf16.mxu0 0
  %687 = vmatpush2.bf16.msra.mxu0 %v501
  %688 = vmatprep.subr.bf16.mxu0 0
  %689 = vmatpush2.bf16.msra.mxu0 %v500
  %690 = vmatprep.subr.bf16.mxu0 0
  %691 = vmatpush2.bf16.msra.mxu0 %v499
  %692 = vmatprep.subr.bf16.mxu0 0
  %693 = vmatpush2.bf16.msra.mxu0 %v498
  %694 = vmatprep.subr.bf16.mxu0 0
  %695 = vmatpush2.bf16.msra.mxu0 %v497
  %696 = vmatprep.subr.bf16.mxu0 0
  %697 = vmatpush2.bf16.msra.mxu0 %v496
  %698 = vmatprep.mubr.bf16.mxu0 %v189
  %699 = vmatmul.mubr.bf16.gmra.mxu0 %v188
  %v700 = vpop.f32.mrf.mxu0
  %v701 = vadd.f32 %v660, %v700
  %v702 = vpop.f32.mrf.mxu0
  %v703 = vpop.f32.mrf.mxu0
  %v704 = vadd.f32 %v663, %v703
  %v705 = vpop.f32.mrf.mxu0
  %706 = vdwg.mxu0
  %707 = vmatprep.subr.bf16.mxu0 0
  %708 = vmatpush1.bf16.msra.mxu0 %v511
  %709 = vmatprep.subr.bf16.mxu0 0
  %710 = vmatpush1.bf16.msra.mxu0 %v510
  %711 = vmatprep.subr.bf16.mxu0 0
  %712 = vmatpush1.bf16.msra.mxu0 %v509
  %713 = vmatprep.subr.bf16.mxu0 0
  %714 = vmatpush1.bf16.msra.mxu0 %v508
  %715 = vmatprep.subr.bf16.mxu0 0
  %716 = vmatpush1.bf16.msra.mxu0 %v507
  %717 = vmatprep.subr.bf16.mxu0 0
  %718 = vmatpush1.bf16.msra.mxu0 %v506
  %719 = vmatprep.subr.bf16.mxu0 0
  %720 = vmatpush1.bf16.msra.mxu0 %v505
  %721 = vmatprep.subr.bf16.mxu0 0
  %722 = vmatpush1.bf16.msra.mxu0 %v504
  %723 = vmatprep.subr.bf16.mxu0 0
  %724 = vmatpush2.bf16.msra.mxu0 %v519
  %725 = vmatprep.subr.bf16.mxu0 0
  %726 = vmatpush2.bf16.msra.mxu0 %v518
  %727 = vmatprep.subr.bf16.mxu0 0
  %728 = vmatpush2.bf16.msra.mxu0 %v517
  %729 = vmatprep.subr.bf16.mxu0 0
  %730 = vmatpush2.bf16.msra.mxu0 %v516
  %731 = vmatprep.subr.bf16.mxu0 0
  %732 = vmatpush2.bf16.msra.mxu0 %v515
  %733 = vmatprep.subr.bf16.mxu0 0
  %734 = vmatpush2.bf16.msra.mxu0 %v514
  %735 = vmatprep.subr.bf16.mxu0 0
  %736 = vmatpush2.bf16.msra.mxu0 %v513
  %737 = vmatprep.subr.bf16.mxu0 0
  %738 = vmatpush2.bf16.msra.mxu0 %v512
  %739 = vmatprep.mubr.bf16.mxu0 %v191
  %740 = vmatmul.mubr.bf16.gmra.mxu0 %v190
  %v741 = vpop.f32.mrf.mxu0
  %v742 = vadd.f32 %v701, %v741
  %v743 = vpop.f32.mrf.mxu0
  %v744 = vpop.f32.mrf.mxu0
  %v745 = vadd.f32 %v704, %v744
  %v746 = vpop.f32.mrf.mxu0
  %747 = vdwg.mxu0
  %v748 = vmax.f32 %v742, 0.0
  %v749 = vmax.f32 %v745, 0.0
  %v750 = vpack.c.bf16 %v749, %v748
  %v752 = vunpack.c.l.b16 %v750
  %v753 = vunpack.c.h.b16 %v750
  %v754 = vpack.c.b16 %v752, %v752
  %v755 = vpack.c.b16 %v753, %v753
  %758 = vst [vmem:[%s3] sm:$0xf] %v754
  %759 = vst [vmem:[%s3 + $0x4] sm:$0xf] %v755
  %v760 = vadd.f32 %v748, %v749
  %v761 = vrot.slane %v760, 4
  %v762 = vadd.f32 %v760, %v761
  %v763 = vrot.slane %v762, 2
  %v764 = vadd.f32 %v762, %v763
  %v765 = vrot.slane %v764, 1
  %v766 = vadd.f32 %v764, %v765
  %v767 = vmul.f32 %v748, %v748
  %v768 = vmul.f32 %v749, %v749
  %v769 = vadd.f32 %v767, %v768
  %v770 = vrot.slane %v769, 4
  %v771 = vadd.f32 %v769, %v770
  %v772 = vrot.slane %v771, 2
  %v773 = vadd.f32 %v771, %v772
  %v774 = vrot.slane %v773, 1
  %v775 = vadd.f32 %v773, %v774
  %v776 = vlaneseq
  %v777 = vshrl.u32 %v776, 7
  %vm778 = vcmp.eq.s32.totalorder %v777, 0
  %vm779 = vcmp.eq.s32.totalorder %v777, 1
  %v780 = vsel %vm779, %v775, 0.0
  %v781 = vsel %vm778, %v766, %v780
  %782 = vst [vmem:[%s4] sm:$0xff] %v781
  // Predicated region
  $region14: #{cnn3d_forward.11} parent=0 // pred_check
    _
  $region15: #{cnn3d_forward.11} parent=0 // pred_check_branch
    %784 = sbr.rel (0) target = $region17
  $region16: #{cnn3d_forward.11} parent=0 // pred_region
    _
  $region17: #{cnn3d_forward.11} parent=0 // pred_fallthru
    _
  // Predicated region
  $region18: #{cnn3d_forward.11} parent=0 // pred_check
    _
  $region19: #{cnn3d_forward.11} parent=0 // pred_check_branch
    %786 = sbr.rel (0) target = $region21
  $region20: #{cnn3d_forward.11} parent=0 // pred_region
    _
  $region21: #{cnn3d_forward.11} parent=0 // pred_fallthru
    _
  // Predicated region
  $region22: #{cnn3d_forward.11} parent=0 // pred_check
    _
  $region23: #{cnn3d_forward.11} parent=0 // pred_check_branch
    %788 = sbr.rel (0) target = $region25
  $region24: #{cnn3d_forward.11} parent=0 // pred_region
    _
  $region25: #{cnn3d_forward.11} parent=0 // pred_fallthru
    _
  // Predicated region
  $region26: #{cnn3d_forward.11} parent=0 // pred_check
    _
  $region27: #{cnn3d_forward.11} parent=0 // pred_check_branch
    %790 = sbr.rel (0) target = $region29
  $region28: #{cnn3d_forward.11} parent=0 // pred_region
    _
  $region29: #{cnn3d_forward.11} parent=0 // pred_fallthru
    _

// kernel: cnn3d_forward.13
$region0: #{cnn3d_forward.13}
  #allocation0 [shape = 'u32[]', space=smem, size = 0x4, offset = 0x4, fixed_abs, tag = 'smem constant byte address 0x4 - core index']
  #allocation1 [shape = 'u32[144,128]{1,0:T(1,128)}', space=vmem, size = 0x12000, scoped, tag = 'internal scratch']
  %s0 = inlined_call_operand.vmem [shape: bf16[8,128], index: 0, kind: input, shape index: {}]
  %s1 = inlined_call_operand.vmem [shape: bf16[128,128], index: 1, kind: input, shape index: {}]
  %s2 = inlined_call_operand.vmem [shape: f32[1,128], index: 2, kind: input, shape index: {}]
  %s3 = inlined_call_operand.vmem [shape: f32[8,128], index: 3, kind: output, shape index: {0}]
  %s4 = inlined_call_operand.vmem [shape: f32[8,128], index: 4, kind: output, shape index: {1}]
  %5 = xla_tuple %s3, %s4
  %s6 = sld [smem:[#allocation0]]
  $region30: #{cnn3d_forward.13} parent=0
    _
  %s8 = ssub.s32 1, %s6
  %s9 = scalar_select 0, %s8, %s6
  // Predicated region
  $region2: #{cnn3d_forward.13} parent=0 // pred_check
    _
  $region3: #{cnn3d_forward.13} parent=0 // pred_check_branch
    %11 = sbr.rel (0) target = $region5
  $region4: #{cnn3d_forward.13} parent=0 // pred_region
    _
  $region5: #{cnn3d_forward.13} parent=0 // pred_fallthru
    _
  // Predicated region
  $region6: #{cnn3d_forward.13} parent=0 // pred_check
    _
  $region7: #{cnn3d_forward.13} parent=0 // pred_check_branch
    %13 = sbr.rel (0) target = $region9
  $region8: #{cnn3d_forward.13} parent=0 // pred_region
    _
  $region9: #{cnn3d_forward.13} parent=0 // pred_fallthru
    _
  // Predicated region
  $region10: #{cnn3d_forward.13} parent=0 // pred_check
    _
  $region11: #{cnn3d_forward.13} parent=0 // pred_check_branch
    %15 = sbr.rel (0) target = $region13
  $region12: #{cnn3d_forward.13} parent=0 // pred_region
    _
  $region13: #{cnn3d_forward.13} parent=0 // pred_fallthru
    _
  %v17 = vld [vmem:[%s0] sm:$0xf]
  %v18 = vld [vmem:[%s1] sm:$0xf]
  %v19 = vld [vmem:[%s1 + $0x4] sm:$0xf]
  %v20 = vld [vmem:[%s1 + $0x8] sm:$0xf]
  %v21 = vld [vmem:[%s1 + $0xc] sm:$0xf]
  %v22 = vld [vmem:[%s1 + $0x10] sm:$0xf]
  %v23 = vld [vmem:[%s1 + $0x14] sm:$0xf]
  %v24 = vld [vmem:[%s1 + $0x18] sm:$0xf]
  %v25 = vld [vmem:[%s1 + $0x1c] sm:$0xf]
  %v26 = vld [vmem:[%s1 + $0x20] sm:$0xf]
  %v27 = vld [vmem:[%s1 + $0x24] sm:$0xf]
  %v28 = vld [vmem:[%s1 + $0x28] sm:$0xf]
  %v29 = vld [vmem:[%s1 + $0x2c] sm:$0xf]
  %v30 = vld [vmem:[%s1 + $0x30] sm:$0xf]
  %v31 = vld [vmem:[%s1 + $0x34] sm:$0xf]
  %v32 = vld [vmem:[%s1 + $0x38] sm:$0xf]
  %v33 = vld [vmem:[%s1 + $0x3c] sm:$0xf]
  %v34 = vld [vmem:[%s2] sm:$0x1]
  %v36 = vlaneseq
  %v37 = vshrl.u32 %v36, 7
  %v38 = vsub.s32 0, %v37
  %v39 = vrot.slane %v34, %v38
  %v57 = vunpack.c.l.b16 %v18
  %v58 = vunpack.c.l.b16 %v19
  %v59 = vunpack.c.l.b16 %v20
  %v60 = vunpack.c.l.b16 %v21
  %v61 = vunpack.c.l.b16 %v22
  %v62 = vunpack.c.l.b16 %v23
  %v63 = vunpack.c.l.b16 %v24
  %v64 = vunpack.c.l.b16 %v25
  %v65 = vunpack.c.l.b16 %v26
  %v66 = vunpack.c.l.b16 %v27
  %v67 = vunpack.c.l.b16 %v28
  %v68 = vunpack.c.l.b16 %v29
  %v69 = vunpack.c.l.b16 %v30
  %v70 = vunpack.c.l.b16 %v31
  %v71 = vunpack.c.l.b16 %v32
  %v72 = vunpack.c.l.b16 %v33
  %v73 = vpack.c.b16 %v58, %v57
  %v74 = vpack.c.b16 %v60, %v59
  %v75 = vpack.c.b16 %v62, %v61
  %v76 = vpack.c.b16 %v64, %v63
  %v77 = vpack.c.b16 %v66, %v65
  %v78 = vpack.c.b16 %v68, %v67
  %v79 = vpack.c.b16 %v70, %v69
  %v80 = vpack.c.b16 %v72, %v71
  %89 = vmatprep.subr.bf16.mxu0 0
  %90 = vmatpush1.bf16.msra.mxu0 %v80
  %91 = vmatprep.subr.bf16.mxu0 0
  %92 = vmatpush1.bf16.msra.mxu0 %v79
  %93 = vmatprep.subr.bf16.mxu0 0
  %94 = vmatpush1.bf16.msra.mxu0 %v78
  %95 = vmatprep.subr.bf16.mxu0 0
  %96 = vmatpush1.bf16.msra.mxu0 %v77
  %97 = vmatprep.subr.bf16.mxu0 0
  %98 = vmatpush1.bf16.msra.mxu0 %v76
  %99 = vmatprep.subr.bf16.mxu0 0
  %100 = vmatpush1.bf16.msra.mxu0 %v75
  %101 = vmatprep.subr.bf16.mxu0 0
  %102 = vmatpush1.bf16.msra.mxu0 %v74
  %103 = vmatprep.subr.bf16.mxu0 0
  %104 = vmatpush1.bf16.msra.mxu0 %v73
  %105 = vmatprep.subr.bf16.mxu0 0
  %106 = vmatpush2.bf16.msra.mxu0 0
  %107 = vmatprep.subr.bf16.mxu0 0
  %108 = vmatpush2.bf16.msra.mxu0 0
  %109 = vmatprep.subr.bf16.mxu0 0
  %110 = vmatpush2.bf16.msra.mxu0 0
  %111 = vmatprep.subr.bf16.mxu0 0
  %112 = vmatpush2.bf16.msra.mxu0 0
  %113 = vmatprep.subr.bf16.mxu0 0
  %114 = vmatpush2.bf16.msra.mxu0 0
  %115 = vmatprep.subr.bf16.mxu0 0
  %116 = vmatpush2.bf16.msra.mxu0 0
  %117 = vmatprep.subr.bf16.mxu0 0
  %118 = vmatpush2.bf16.msra.mxu0 0
  %119 = vmatprep.subr.bf16.mxu0 0
  %120 = vmatpush2.bf16.msra.mxu0 0
  %121 = vmatprep.mubr.bf16.mxu0 0
  %122 = vmatmul.mubr.bf16.gmra.mxu0 %v17
  %v123 = vpop.f32.mrf.mxu0
  %v124 = vadd.f32 %v39, %v123
  %v125 = vpop.f32.mrf.mxu0
  %v126 = vpop.f32.mrf.mxu0
  %v127 = vpop.f32.mrf.mxu0
  %128 = vdwg.mxu0
  %v129 = vmax.f32 %v124, 0.0
  %v130 = vlaneseq
  %v131 = vshrl.u32 %v130, 7
  %s132 = smul.u32 0, 8
  %v133 = vstv %s132
  %v134 = vadd.s32 %v131, %v133
  %vm135 = vcmp.lt.s32.totalorder %v134, 2
  %v136 = vsel %vm135, %v129, 0.0
  %137 = vst [vmem:[%s3] sm:$0xff] %v136
  %v138 = vrot.slane %v136, 4
  %v139 = vadd.f32 %v136, %v138
  %v140 = vrot.slane %v139, 2
  %v141 = vadd.f32 %v139, %v140
  %v142 = vrot.slane %v141, 1
  %v143 = vadd.f32 %v141, %v142
  %v144 = vmul.f32 %v136, %v136
  %v145 = vrot.slane %v144, 4
  %v146 = vadd.f32 %v144, %v145
  %v147 = vrot.slane %v146, 2
  %v148 = vadd.f32 %v146, %v147
  %v149 = vrot.slane %v148, 1
  %v150 = vadd.f32 %v148, %v149
  %vm151 = vcmp.eq.s32.totalorder %v131, 0
  %vm152 = vcmp.eq.s32.totalorder %v131, 1
  %v153 = vsel %vm152, %v150, 0.0
  %v154 = vsel %vm151, %v143, %v153
  %155 = vst [vmem:[%s4] sm:$0xff] %v154
  // Predicated region
  $region14: #{cnn3d_forward.13} parent=0 // pred_check
    _
  $region15: #{cnn3d_forward.13} parent=0 // pred_check_branch
    %157 = sbr.rel (0) target = $region17
  $region16: #{cnn3d_forward.13} parent=0 // pred_region
    _
  $region17: #{cnn3d_forward.13} parent=0 // pred_fallthru
    _
  // Predicated region
  $region18: #{cnn3d_forward.13} parent=0 // pred_check
    _
  $region19: #{cnn3d_forward.13} parent=0 // pred_check_branch
    %159 = sbr.rel (0) target = $region21
  $region20: #{cnn3d_forward.13} parent=0 // pred_region
    _
  $region21: #{cnn3d_forward.13} parent=0 // pred_fallthru
    _
  // Predicated region
  $region22: #{cnn3d_forward.13} parent=0 // pred_check
    _
  $region23: #{cnn3d_forward.13} parent=0 // pred_check_branch
    %161 = sbr.rel (0) target = $region25
  $region24: #{cnn3d_forward.13} parent=0 // pred_region
    _
  $region25: #{cnn3d_forward.13} parent=0 // pred_fallthru
    _
  // Predicated region
  $region26: #{cnn3d_forward.13} parent=0 // pred_check
    _
  $region27: #{cnn3d_forward.13} parent=0 // pred_check_branch
    %163 = sbr.rel (0) target = $region29
  $region28: #{cnn3d_forward.13} parent=0 // pred_region
    _
  $region29: #{cnn3d_forward.13} parent=0 // pred_fallthru
    _

// kernel: cnn3d_forward.12
$region0: #{cnn3d_forward.12}
  #allocation0 [shape = 'u32[]', space=smem, size = 0x4, offset = 0x4, fixed_abs, tag = 'smem constant byte address 0x4 - core index']
  #allocation1 [shape = 'u32[144,128]{1,0:T(1,128)}', space=vmem, size = 0x12000, scoped, tag = 'internal scratch']
  %s0 = inlined_call_operand.vmem [shape: bf16[2,2,1,2,1,256], index: 0, kind: input, shape index: {}]
  %s1 = inlined_call_operand.vmem [shape: f32[1,256], index: 1, kind: input, shape index: {}]
  %s2 = inlined_call_operand.vmem [shape: f32[1,256], index: 2, kind: input, shape index: {}]
  %s3 = inlined_call_operand.vmem [shape: bf16[2,1,1,1,128], index: 3, kind: output, shape index: {}]
  %s4 = sld [smem:[#allocation0]]
  $region45: #{cnn3d_forward.12} parent=0
    _
  %s6 = ssub.s32 1, %s4
  %s7 = scalar_select 0, %s6, %s4
  loop: start=0, step=1, limit=4
  $region2: #{cnn3d_forward.12} parent=0 // loop_pre_header
    _
  $region3: #{cnn3d_forward.12} parent=0 // loop_header
    %s9 = sphi 0, %s13
    %p10 = scmp.ge.s32.totalorder %s9, 4
    %s16 = sphi 0, %s28
    %s17 = sphi 0, %s24
    %s18 = sphi 0, %s16
    %s19 = sphi 0, %s17
    %s20 = sphi 0, %s18
    %s21 = sphi 0, %s19
    %s33 = sphi 0, %s35
    %s36 = sphi 0, %s33
    %s37 = sphi 0, %s36
    %s53 = sphi 0, %s37
    %s57 = sphi 0, %s57
    %s59 = sphi 0, %s57
    %s60 = sphi 0, %s59
    %s74 = sphi 0, %s60
    %s78 = sphi 0, %s78
    %s80 = sphi 0, %s78
    %s81 = sphi 0, %s80
    %s95 = sphi 0, %s81
    %s103 = sphi 0, %s105
    %s106 = sphi 0, %s103
    %s107 = sphi 0, %s106
    %s123 = sphi 0, %s107
  $region4: #{cnn3d_forward.12} parent=0 // loop_header_branch
    %12 = sbr.rel (%p10) target = $region8
  $region5: #{cnn3d_forward.12} parent=0 // loop_body
    %s14 = ssub.s32 %s9, 1
    %s15 = ssub.s32 %s9, 2
    %s22 = sadd.s32 1, %s17
    %p23 = scmp.ge.s32.totalorder %s22, 1
    %s24 = scalar_select %p23, 0, %s22
    %s25 = sadd.s32 1, %s16
    %s26 = scalar_select %p23, %s25, %s16
    %p27 = scmp.ge.s32.totalorder %s26, 2
    %s28 = scalar_select %p27, 0, %s26
    %s29 = ssub.s32 %s16, %s28
    %s30 = ssub.s32 %s17, %s24
    %s31 = sor.u32 %s29, %s30
    %p32 = scmp.eq.s32.totalorder %s31, 0
    %s34 = sadd.s32 %s33, 1
    %s35 = scalar_select %p32, %s33, %s34
    %p38 = pneg %p32
    %p39 = scmp.eq.s32.totalorder %s9, 1
    %p40 = por %p38, %p39
    %p41 = scmp.ne.s32.totalorder %s33, %s36
    %p42 = scmp.eq.s32.totalorder %s9, 0
    %p43 = por %p41, %p42
    %p44 = scmp.ne.s32.totalorder %s33, %s36
    %p45 = scmp.eq.s32.totalorder %s14, 1
    %p46 = por %p44, %p45
    %p47 = scmp.ne.s32.totalorder %s36, %s37
    %p48 = scmp.eq.s32.totalorder %s14, 0
    %p49 = por %p47, %p48
    %p50 = scmp.ne.s32.totalorder %s36, %s37
    %p51 = scmp.eq.s32.totalorder %s15, 1
    %p52 = por %p50, %p51
    %p54 = scmp.ne.s32.totalorder %s37, %s53
    %p55 = scmp.eq.s32.totalorder %s15, 0
    %p56 = por %p54, %p55
    %s58 = sadd.s32 %s57, 1
    %p61 = scmp.eq.s32.totalorder %s9, 1
    %p62 = scmp.ne.s32.totalorder %s57, %s59
    %p63 = scmp.eq.s32.totalorder %s9, 0
    %p64 = por %p62, %p63
    %p65 = scmp.ne.s32.totalorder %s57, %s59
    %p66 = scmp.eq.s32.totalorder %s14, 1
    %p67 = por %p65, %p66
    %p68 = scmp.ne.s32.totalorder %s59, %s60
    %p69 = scmp.eq.s32.totalorder %s14, 0
    %p70 = por %p68, %p69
    %p71 = scmp.ne.s32.totalorder %s59, %s60
    %p72 = scmp.eq.s32.totalorder %s15, 1
    %p73 = por %p71, %p72
    %p75 = scmp.ne.s32.totalorder %s60, %s74
    %p76 = scmp.eq.s32.totalorder %s15, 0
    %p77 = por %p75, %p76
    %s79 = sadd.s32 %s78, 1
    %p82 = scmp.eq.s32.totalorder %s9, 1
    %p83 = scmp.ne.s32.totalorder %s78, %s80
    %p84 = scmp.eq.s32.totalorder %s9, 0
    %p85 = por %p83, %p84
    %p86 = scmp.ne.s32.totalorder %s78, %s80
    %p87 = scmp.eq.s32.totalorder %s14, 1
    %p88 = por %p86, %p87
    %p89 = scmp.ne.s32.totalorder %s80, %s81
    %p90 = scmp.eq.s32.totalorder %s14, 0
    %p91 = por %p89, %p90
    %p92 = scmp.ne.s32.totalorder %s80, %s81
    %p93 = scmp.eq.s32.totalorder %s15, 1
    %p94 = por %p92, %p93
    %p96 = scmp.ne.s32.totalorder %s81, %s95
    %p97 = scmp.eq.s32.totalorder %s15, 0
    %p98 = por %p96, %p97
    %s99 = ssub.s32 %s16, %s28
    %s100 = ssub.s32 %s17, %s24
    %s101 = sor.u32 %s99, %s100
    %p102 = scmp.eq.s32.totalorder %s101, 0
    %s104 = sadd.s32 %s103, 1
    %s105 = scalar_select %p102, %s103, %s104
    %p108 = pneg %p102
    %p109 = scmp.eq.s32.totalorder %s9, 1
    %p110 = por %p108, %p109
    %p111 = scmp.ne.s32.totalorder %s103, %s106
    %p112 = scmp.eq.s32.totalorder %s9, 0
    %p113 = por %p111, %p112
    %p114 = scmp.ne.s32.totalorder %s103, %s106
    %p115 = scmp.eq.s32.totalorder %s14, 1
    %p116 = por %p114, %p115
    %p117 = scmp.ne.s32.totalorder %s106, %s107
    %p118 = scmp.eq.s32.totalorder %s14, 0
    %p119 = por %p117, %p118
    %p120 = scmp.ne.s32.totalorder %s106, %s107
    %p121 = scmp.eq.s32.totalorder %s15, 1
    %p122 = por %p120, %p121
    %p124 = scmp.ne.s32.totalorder %s107, %s123
    %p125 = scmp.eq.s32.totalorder %s15, 0
    %p126 = por %p124, %p125
    %p127 = scmp.le.s32.totalorder 1, %s9
    %p128 = scmp.lt.s32.totalorder %s9, 3
    %p129 = pnand %p127, %p128
    %p130 = pneg %p129
    // Predicated region
    $region9: #{cnn3d_forward.12} parent=5 // pred_check
      _
    $region10: #{cnn3d_forward.12} parent=5 // pred_check_branch
      %132 = sbr.rel (%p129) target = $region12
    $region11: #{cnn3d_forward.12} parent=5 // pred_region
      %s133 = ssub.s32 %s9, 1
      // Predicated region
      $region13: #{cnn3d_forward.12} parent=11 // pred_check
        %p134 = pneg %p70
      $region14: #{cnn3d_forward.12} parent=11 // pred_check_branch
        %136 = sbr.rel (%p134) target = $region16
      $region15: #{cnn3d_forward.12} parent=11 // pred_region
        _
      $region16: #{cnn3d_forward.12} parent=11 // pred_fallthru
        _
      // Predicated region
      $region17: #{cnn3d_forward.12} parent=11 // pred_check
        %p137 = pneg %p91
      $region18: #{cnn3d_forward.12} parent=11 // pred_check_branch
        %139 = sbr.rel (%p137) target = $region20
      $region19: #{cnn3d_forward.12} parent=11 // pred_region
        _
      $region20: #{cnn3d_forward.12} parent=11 // pred_fallthru
        _
    $region12: #{cnn3d_forward.12} parent=5 // pred_fallthru
      _
    %p140 = scmp.lt.s32.totalorder %s9, 2
    // Predicated region
    $region21: #{cnn3d_forward.12} parent=5 // pred_check
      %p141 = pneg %p140
    $region22: #{cnn3d_forward.12} parent=5 // pred_check_branch
      %143 = sbr.rel (%p141) target = $region24
    $region23: #{cnn3d_forward.12} parent=5 // pred_region
      // Predicated region
      $region25: #{cnn3d_forward.12} parent=23 // pred_check
        %p144 = pneg %p43
      $region26: #{cnn3d_forward.12} parent=23 // pred_check_branch
        %146 = sbr.rel (%p144) target = $region28
      $region27: #{cnn3d_forward.12} parent=23 // pred_region
        %s147 = smul.u32 2, %s17
        %p148 = scmp.lt.s32.totalorder %s16, 1
        %s149 = scalar_select %p148, %s16, 1
        %p150 = scmp.lt.s32.totalorder %s147, 1
        %s151 = scalar_select %p150, %s147, 1
        %s152 = smul.addr %s151, 4
        %s153 = smul.addr %s149, 8
        %s154 = sadd.s32 %s152, %s153
        %s155 = scalar_lea.vmem %s0, %s154
        %s156 = smul.u32 2, %s17
      $region28: #{cnn3d_forward.12} parent=23 // pred_fallthru
        _
    $region24: #{cnn3d_forward.12} parent=5 // pred_fallthru
      _
    %p157 = scmp.le.s32.totalorder 1, %s9
    %p158 = scmp.lt.s32.totalorder %s9, 3
    %p159 = pnand %p157, %p158
    %p160 = pneg %p159
    // Predicated region
    $region29: #{cnn3d_forward.12} parent=5 // pred_check
      _
    $region30: #{cnn3d_forward.12} parent=5 // pred_check_branch
      %162 = sbr.rel (%p159) target = $region32
    $region31: #{cnn3d_forward.12} parent=5 // pred_region
      %s163 = ssub.s32 %s9, 1
      %s164 = smul.u32 2, %s19
      %p165 = scmp.lt.s32.totalorder %s18, 1
      %s166 = scalar_select %p165, %s18, 1
      %p167 = scmp.lt.s32.totalorder %s164, 1
      %s168 = scalar_select %p167, %s164, 1
      %s169 = smul.addr %s168, 4
      %s170 = smul.addr %s166, 8
      %s171 = sadd.s32 %s169, %s170
      %s172 = scalar_lea.vmem %s0, %s171
      %p173 = pneg %p49
      %p174 = pneg %p46
      %p175 = pneg %p70
      %p176 = pneg %p67
      %p177 = pneg %p91
      %p178 = pneg %p88
      %p179 = pneg %p119
      %p180 = pneg %p116
      %p181 = scmp.lt.s32.totalorder %s18, 1
      %s182 = scalar_select %p181, %s18, 1
      %p183 = scmp.lt.s32.totalorder %s19, 0
      %s184 = scalar_select %p183, %s19, 0
      %s185 = sadd.s32 %s184, %s182
      %s186 = scalar_lea.vmem %s3, %s185
      %s187 = smul.u32 2, %s19
      %p188 = scmp.lt.s32.totalorder %s18, 1
      %s189 = scalar_select %p188, %s18, 1
      %p190 = scmp.lt.s32.totalorder %s187, 1
      %s191 = scalar_select %p190, %s187, 1
      %s192 = smul.addr %s191, 4
      %s193 = smul.addr %s189, 8
      %s194 = sadd.s32 %s192, %s193
      %s195 = scalar_lea.vmem %s0, %s194
      %s196 = smul.u32 2, %s19
      %p197 = scmp.lt.s32.totalorder %s18, 1
      %s198 = scalar_select %p197, %s18, 1
      %p199 = scmp.lt.s32.totalorder %s19, 0
      %s200 = scalar_select %p199, %s19, 0
      %s201 = sadd.s32 %s200, %s198
      %s202 = scalar_lea.vmem %s3, %s201
      %v203 = vld [vmem:[%s1] sm:$0x3]
      %v204 = vld [vmem:[%s2] sm:$0x3]
      %v205 = vld [vmem:[%s195] sm:$0x3]
      %v206 = vunpack.c.l.bf16 %v205
      %v209 = vunpack.c.l.s4 857870592
      %v210 = vunpack.c.0.s8 %v209
      %v211 = vlaneseq
      %v212 = vshrl.u32 %v211, 7
      %v213 = vsub.s32 %v210, %v212
      %v214 = vrot.slane %v203, %v213
      %v216 = vmul.f32 %v206, %v214
      %v219 = vunpack.c.l.s4 857870592
      %v220 = vunpack.c.0.s8 %v219
      %v221 = vlaneseq
      %v222 = vshrl.u32 %v221, 7
      %v223 = vsub.s32 %v220, %v222
      %v224 = vrot.slane %v204, %v223
      %v226 = vadd.f32 %v216, %v224
      %s227 = scalar_lea.vmem %s195, 2
      %v228 = vld [vmem:[%s227] sm:$0x3]
      %v229 = vunpack.c.l.bf16 %v228
      %v230 = vmul.f32 %v229, %v214
      %v231 = vadd.f32 %v230, %v224
      %v232 = vmax.f32 %v226, %v231
      %s233 = scalar_lea.vmem %s195, 4
      %v234 = vld [vmem:[%s233] sm:$0x3]
      %v235 = vunpack.c.l.bf16 %v234
      %v236 = vmul.f32 %v235, %v214
      %v237 = vadd.f32 %v236, %v224
      %v238 = vmax.f32 %v232, %v237
      %s239 = scalar_lea.vmem %s195, 6
      %v240 = vld [vmem:[%s239] sm:$0x3]
      %v241 = vunpack.c.l.bf16 %v240
      %v242 = vmul.f32 %v241, %v214
      %v243 = vadd.f32 %v242, %v224
      %v244 = vmax.f32 %v238, %v243
      %v246 = vrot.slane %v244, 2
      %v248 = vmax.f32 %v244, %v246
      %v249 = vpack.c.bf16 %v248, %v248
      %vm250 = vcmask 1040384
      %vm251 = vsmask.f32 256
      %vm252 = vmand %vm250, %vm251
      %v253 = vld [vmem:[%s202] sm:$0x1]
      %v254 = vsel %vm252, %v249, %v253
      %255 = vst [vmem:[%s202] sm:$0x1] %v254
      %p256 = scmp.lt.s32.totalorder %s18, 1
      %s257 = scalar_select %p256, %s18, 1
      %p258 = scmp.lt.s32.totalorder %s19, 0
      %s259 = scalar_select %p258, %s19, 0
      %s260 = sadd.s32 %s259, %s257
      %s261 = scalar_lea.vmem %s3, %s260
      // Predicated region
      $region33: #{cnn3d_forward.12} parent=31 // pred_check
        %p262 = pneg %p116
      $region34: #{cnn3d_forward.12} parent=31 // pred_check_branch
        %264 = sbr.rel (%p262) target = $region36
      $region35: #{cnn3d_forward.12} parent=31 // pred_region
        _
      $region36: #{cnn3d_forward.12} parent=31 // pred_fallthru
        _
    $region32: #{cnn3d_forward.12} parent=5 // pred_fallthru
      _
    %p265 = scmp.le.s32.totalorder 2, %s9
    // Predicated region
    $region37: #{cnn3d_forward.12} parent=5 // pred_check
      %p266 = pneg %p265
    $region38: #{cnn3d_forward.12} parent=5 // pred_check_branch
      %268 = sbr.rel (%p266) target = $region40
    $region39: #{cnn3d_forward.12} parent=5 // pred_region
      %s269 = ssub.s32 %s9, 2
      // Predicated region
      $region41: #{cnn3d_forward.12} parent=39 // pred_check
        %p270 = pneg %p122
      $region42: #{cnn3d_forward.12} parent=39 // pred_check_branch
        %272 = sbr.rel (%p270) target = $region44
      $region43: #{cnn3d_forward.12} parent=39 // pred_region
        %p273 = scmp.lt.s32.totalorder %s20, 1
        %s274 = scalar_select %p273, %s20, 1
        %p275 = scmp.lt.s32.totalorder %s21, 0
        %s276 = scalar_select %p275, %s21, 0
        %s277 = sadd.s32 %s276, %s274
        %s278 = scalar_lea.vmem %s3, %s277
      $region44: #{cnn3d_forward.12} parent=39 // pred_fallthru
        _
    $region40: #{cnn3d_forward.12} parent=5 // pred_fallthru
      _
  $region6: #{cnn3d_forward.12} parent=0 // loop_footer
    %s13 = sadd.s32 1, %s9
  $region7: #{cnn3d_forward.12} parent=0 // loop_footer_branch
    %8 = sbr.rel target = $region3
  $region8: #{cnn3d_forward.12} parent=0 // loop_exit
    _

// kernel: cnn3d_forward.15
$region0: #{cnn3d_forward.15}
  #allocation0 [shape = 'u32[]', space=smem, size = 0x4, offset = 0x4, fixed_abs, tag = 'smem constant byte address 0x4 - core index']
  #allocation1 [shape = 'u32[144,128]{1,0:T(1,128)}', space=vmem, size = 0x12000, scoped, tag = 'internal scratch']
  %s0 = inlined_call_operand.vmem [shape: bf16[8,128], index: 0, kind: input, shape index: {}]
  %s1 = inlined_call_operand.vmem [shape: bf16[128,128], index: 1, kind: input, shape index: {}]
  %s2 = inlined_call_operand.vmem [shape: f32[1,128], index: 2, kind: input, shape index: {}]
  %s3 = inlined_call_operand.vmem [shape: f32[8,128], index: 3, kind: output, shape index: {}]
  %s4 = sld [smem:[#allocation0]]
  $region22: #{cnn3d_forward.15} parent=0
    _
  %s6 = ssub.s32 1, %s4
  %s7 = scalar_select 0, %s6, %s4
  // Predicated region
  $region2: #{cnn3d_forward.15} parent=0 // pred_check
    _
  $region3: #{cnn3d_forward.15} parent=0 // pred_check_branch
    %9 = sbr.rel (0) target = $region5
  $region4: #{cnn3d_forward.15} parent=0 // pred_region
    _
  $region5: #{cnn3d_forward.15} parent=0 // pred_fallthru
    _
  // Predicated region
  $region6: #{cnn3d_forward.15} parent=0 // pred_check
    _
  $region7: #{cnn3d_forward.15} parent=0 // pred_check_branch
    %11 = sbr.rel (0) target = $region9
  $region8: #{cnn3d_forward.15} parent=0 // pred_region
    _
  $region9: #{cnn3d_forward.15} parent=0 // pred_fallthru
    _
  // Predicated region
  $region10: #{cnn3d_forward.15} parent=0 // pred_check
    _
  $region11: #{cnn3d_forward.15} parent=0 // pred_check_branch
    %13 = sbr.rel (0) target = $region13
  $region12: #{cnn3d_forward.15} parent=0 // pred_region
    _
  $region13: #{cnn3d_forward.15} parent=0 // pred_fallthru
    _
  %v15 = vld [vmem:[%s0] sm:$0xf]
  %v16 = vld [vmem:[%s1] sm:$0xf]
  %v17 = vld [vmem:[%s1 + $0x4] sm:$0xf]
  %v18 = vld [vmem:[%s1 + $0x8] sm:$0xf]
  %v19 = vld [vmem:[%s1 + $0xc] sm:$0xf]
  %v20 = vld [vmem:[%s1 + $0x10] sm:$0xf]
  %v21 = vld [vmem:[%s1 + $0x14] sm:$0xf]
  %v22 = vld [vmem:[%s1 + $0x18] sm:$0xf]
  %v23 = vld [vmem:[%s1 + $0x1c] sm:$0xf]
  %v24 = vld [vmem:[%s1 + $0x20] sm:$0xf]
  %v25 = vld [vmem:[%s1 + $0x24] sm:$0xf]
  %v26 = vld [vmem:[%s1 + $0x28] sm:$0xf]
  %v27 = vld [vmem:[%s1 + $0x2c] sm:$0xf]
  %v28 = vld [vmem:[%s1 + $0x30] sm:$0xf]
  %v29 = vld [vmem:[%s1 + $0x34] sm:$0xf]
  %v30 = vld [vmem:[%s1 + $0x38] sm:$0xf]
  %v31 = vld [vmem:[%s1 + $0x3c] sm:$0xf]
  %v32 = vld [vmem:[%s2] sm:$0x1]
  %v34 = vlaneseq
  %v35 = vshrl.u32 %v34, 7
  %v36 = vsub.s32 0, %v35
  %v37 = vrot.slane %v32, %v36
  %v55 = vunpack.c.l.b16 %v16
  %v56 = vunpack.c.l.b16 %v17
  %v57 = vunpack.c.l.b16 %v18
  %v58 = vunpack.c.l.b16 %v19
  %v59 = vunpack.c.l.b16 %v20
  %v60 = vunpack.c.l.b16 %v21
  %v61 = vunpack.c.l.b16 %v22
  %v62 = vunpack.c.l.b16 %v23
  %v63 = vunpack.c.l.b16 %v24
  %v64 = vunpack.c.l.b16 %v25
  %v65 = vunpack.c.l.b16 %v26
  %v66 = vunpack.c.l.b16 %v27
  %v67 = vunpack.c.l.b16 %v28
  %v68 = vunpack.c.l.b16 %v29
  %v69 = vunpack.c.l.b16 %v30
  %v70 = vunpack.c.l.b16 %v31
  %v71 = vpack.c.b16 %v56, %v55
  %v72 = vpack.c.b16 %v58, %v57
  %v73 = vpack.c.b16 %v60, %v59
  %v74 = vpack.c.b16 %v62, %v61
  %v75 = vpack.c.b16 %v64, %v63
  %v76 = vpack.c.b16 %v66, %v65
  %v77 = vpack.c.b16 %v68, %v67
  %v78 = vpack.c.b16 %v70, %v69
  %87 = vmatprep.subr.bf16.mxu0 0
  %88 = vmatpush1.bf16.msra.mxu0 %v78
  %89 = vmatprep.subr.bf16.mxu0 0
  %90 = vmatpush1.bf16.msra.mxu0 %v77
  %91 = vmatprep.subr.bf16.mxu0 0
  %92 = vmatpush1.bf16.msra.mxu0 %v76
  %93 = vmatprep.subr.bf16.mxu0 0
  %94 = vmatpush1.bf16.msra.mxu0 %v75
  %95 = vmatprep.subr.bf16.mxu0 0
  %96 = vmatpush1.bf16.msra.mxu0 %v74
  %97 = vmatprep.subr.bf16.mxu0 0
  %98 = vmatpush1.bf16.msra.mxu0 %v73
  %99 = vmatprep.subr.bf16.mxu0 0
  %100 = vmatpush1.bf16.msra.mxu0 %v72
  %101 = vmatprep.subr.bf16.mxu0 0
  %102 = vmatpush1.bf16.msra.mxu0 %v71
  %103 = vmatprep.subr.bf16.mxu0 0
  %104 = vmatpush2.bf16.msra.mxu0 0
  %105 = vmatprep.subr.bf16.mxu0 0
  %106 = vmatpush2.bf16.msra.mxu0 0
  %107 = vmatprep.subr.bf16.mxu0 0
  %108 = vmatpush2.bf16.msra.mxu0 0
  %109 = vmatprep.subr.bf16.mxu0 0
  %110 = vmatpush2.bf16.msra.mxu0 0
  %111 = vmatprep.subr.bf16.mxu0 0
  %112 = vmatpush2.bf16.msra.mxu0 0
  %113 = vmatprep.subr.bf16.mxu0 0
  %114 = vmatpush2.bf16.msra.mxu0 0
  %115 = vmatprep.subr.bf16.mxu0 0
  %116 = vmatpush2.bf16.msra.mxu0 0
  %117 = vmatprep.subr.bf16.mxu0 0
  %118 = vmatpush2.bf16.msra.mxu0 0
  %119 = vmatprep.mubr.bf16.mxu0 0
  %120 = vmatmul.mubr.bf16.gmra.mxu0 %v15
  %v121 = vpop.f32.mrf.mxu0
  %v122 = vadd.f32 %v37, %v121
  %v123 = vpop.f32.mrf.mxu0
  %v124 = vpop.f32.mrf.mxu0
  %v125 = vpop.f32.mrf.mxu0
  %126 = vdwg.mxu0
  %127 = vst [vmem:[%s3] sm:$0xff] %v122
  // Predicated region
  $region14: #{cnn3d_forward.15} parent=0 // pred_check
    _
  $region15: #{cnn3d_forward.15} parent=0 // pred_check_branch
    %129 = sbr.rel (0) target = $region17
  $region16: #{cnn3d_forward.15} parent=0 // pred_region
    _
  $region17: #{cnn3d_forward.15} parent=0 // pred_fallthru
    _
  // Predicated region
  $region18: #{cnn3d_forward.15} parent=0 // pred_check
    _
  $region19: #{cnn3d_forward.15} parent=0 // pred_check_branch
    %131 = sbr.rel (0) target = $region21
  $region20: #{cnn3d_forward.15} parent=0 // pred_region
    _
  $region21: #{cnn3d_forward.15} parent=0 // pred_fallthru
    _

// kernel: cnn3d_forward.14
$region0: #{cnn3d_forward.14}
  #allocation0 [shape = 'u32[]', space=smem, size = 0x4, offset = 0x4, fixed_abs, tag = 'smem constant byte address 0x4 - core index']
  #allocation1 [shape = 'u32[144,128]{1,0:T(1,128)}', space=vmem, size = 0x12000, scoped, tag = 'internal scratch']
  %s0 = inlined_call_operand.vmem [shape: f32[8,128], index: 0, kind: input, shape index: {}]
  %s1 = inlined_call_operand.vmem [shape: f32[1,128], index: 1, kind: input, shape index: {}]
  %s2 = inlined_call_operand.vmem [shape: f32[1,128], index: 2, kind: input, shape index: {}]
  %s3 = inlined_call_operand.vmem [shape: f32[8,128], index: 3, kind: output, shape index: {}]
  %s4 = sld [smem:[#allocation0]]
  $region22: #{cnn3d_forward.14} parent=0
    _
  %s6 = ssub.s32 1, %s4
  %s7 = scalar_select 0, %s6, %s4
  // Predicated region
  $region2: #{cnn3d_forward.14} parent=0 // pred_check
    _
  $region3: #{cnn3d_forward.14} parent=0 // pred_check_branch
    %9 = sbr.rel (0) target = $region5
  $region4: #{cnn3d_forward.14} parent=0 // pred_region
    _
  $region5: #{cnn3d_forward.14} parent=0 // pred_fallthru
    _
  // Predicated region
  $region6: #{cnn3d_forward.14} parent=0 // pred_check
    _
  $region7: #{cnn3d_forward.14} parent=0 // pred_check_branch
    %11 = sbr.rel (0) target = $region9
  $region8: #{cnn3d_forward.14} parent=0 // pred_region
    _
  $region9: #{cnn3d_forward.14} parent=0 // pred_fallthru
    _
  // Predicated region
  $region10: #{cnn3d_forward.14} parent=0 // pred_check
    _
  $region11: #{cnn3d_forward.14} parent=0 // pred_check_branch
    %13 = sbr.rel (0) target = $region13
  $region12: #{cnn3d_forward.14} parent=0 // pred_region
    _
  $region13: #{cnn3d_forward.14} parent=0 // pred_fallthru
    _
  %v14 = vld [vmem:[%s0] sm:$0xff]
  %v15 = vld [vmem:[%s1] sm:$0x1]
  %v17 = vlaneseq
  %v18 = vshrl.u32 %v17, 7
  %v19 = vsub.s32 0, %v18
  %v20 = vrot.slane %v15, %v19
  %v22 = vmul.f32 %v14, %v20
  %v23 = vld [vmem:[%s2] sm:$0x1]
  %v25 = vlaneseq
  %v26 = vshrl.u32 %v25, 7
  %v27 = vsub.s32 0, %v26
  %v28 = vrot.slane %v23, %v27
  %v30 = vadd.f32 %v22, %v28
  %31 = vst [vmem:[%s3] sm:$0xff] %v30
  // Predicated region
  $region14: #{cnn3d_forward.14} parent=0 // pred_check
    _
  $region15: #{cnn3d_forward.14} parent=0 // pred_check_branch
    %33 = sbr.rel (0) target = $region17
  $region16: #{cnn3d_forward.14} parent=0 // pred_region
    _
  $region17: #{cnn3d_forward.14} parent=0 // pred_fallthru
    _
  // Predicated region
  $region18: #{cnn3d_forward.14} parent=0 // pred_check
    _
  $region19: #{cnn3d_forward.14} parent=0 // pred_check_branch
    %35 = sbr.rel (0) target = $region21
  $region20: #{cnn3d_forward.14} parent=0 // pred_region
    _
  $region21: #{cnn3d_forward.14} parent=0 // pred_fallthru
    _

</llo_original>
